<compile_context>
chip_gen: v5e
topology: v5e:2x2
jax: 0.10.0
libtpu: 0.0.40
codegen_flags: <defaults>
</compile_context>

<pallas_src>
import jax
import jax.numpy as jnp
from jax.experimental import pallas as pl
from jax.experimental.pallas import tpu as pltpu

F_DIM = 1920                 # feature dim of every layer in MLP_Proj
TK = 480                     # hidden-feature tile width (1920 = 4 * 480)
N_K = F_DIM // TK            # 4 hidden tiles
N_HALVES = 2                 # K-axis split (one half per TensorCore on v7x)
N_K_PER_HALF = N_K // N_HALVES
BN_EPS = 1e-5


def mlp_proj_kernel(x_ref, w1_ref, g_ref, beta_ref, w2_ref, b2_ref, o_ref):
    half = pl.program_id(0)                      # K half (one per TC on v7x)
    k = pl.program_id(1)                         # hidden tile within the half
    kk = half * pl.num_programs(1) + k           # global hidden-tile index

    @pl.when(k == 0)
    def _():
        # Fold b2 into the accumulator init; only half 0 carries the bias.
        scale = (half == 0).astype(jnp.float32)
        o_ref[...] = jnp.broadcast_to(b2_ref[...] * scale, o_ref.shape)

    # ---- Linear 1 for this hidden tile ----
    # W1 tile is a contiguous row slab of the native (out, in) weight; contract
    # the last dims of both operands (x @ W1_tile^T). b1 omitted: training-mode
    # BN's batch-mean subtraction cancels it exactly.
    x_bf16 = x_ref[...].astype(jnp.bfloat16)
    h = jax.lax.dot_general(
        x_bf16, w1_ref[...],
        dimension_numbers=(((1,), (1,)), ((), ())),
        preferred_element_type=jnp.float32)      # (B, TK), f32 accumulation

    # ---- BatchNorm1d (training mode: biased batch stats) + affine + ReLU ----
    mean = jnp.mean(h, axis=0, keepdims=True)
    var = jnp.mean((h - mean) ** 2, axis=0, keepdims=True)   # biased variance
    g = g_ref[pl.ds(kk, 1), :]                   # (1, TK)
    b = beta_ref[pl.ds(kk, 1), :]                # (1, TK)
    y = (h - mean) * jax.lax.rsqrt(var + BN_EPS) * g + b
    y = jnp.maximum(y, 0.0)

    # ---- Linear 2: accumulate into this half's resident partial output ----
    o_ref[...] += jnp.dot(y.astype(jnp.bfloat16), w2_ref[...],
                          preferred_element_type=jnp.float32)


def prepare_params(w1, b1, gamma, beta, w2, b2):
    """One-time, off-hot-path parameter prep (model-load time).

    * Casts weights to bf16 so the kernel streams half the bytes.
    * W1 stays in native (out, in) layout (row tiles are already contiguous).
    * W2 is transposed once to (in, out) so its K tiles are contiguous too.
    * b1 is dropped: training-mode BatchNorm cancels it exactly.
    """
    del b1
    w1_bf16 = w1.astype(jnp.bfloat16)                    # (hidden, in) native
    w2t_bf16 = w2.T.astype(jnp.bfloat16)                 # (in=hidden, out)
    g = gamma.astype(jnp.float32).reshape(N_K, TK)
    be = beta.astype(jnp.float32).reshape(N_K, TK)
    b2_2d = b2.astype(jnp.float32).reshape(1, F_DIM)
    return w1_bf16, g, be, w2t_bf16, b2_2d


def mlp_proj(x, w1_bf16, g, be, w2t_bf16, b2_2d):
    """Hot-path forward pass. Expects params from prepare_params()."""
    B, F = x.shape
    assert F == F_DIM
    assert B >= 2, "training-mode BatchNorm1d needs batch size >= 2"

    flops = 2 * 2 * B * F_DIM * F_DIM
    bytes_accessed = (2 * F_DIM * F_DIM * 2            # bf16 W1 + W2
                      + B * F_DIM * 4                  # x
                      + N_HALVES * B * F_DIM * 4       # partial outputs
                      + 3 * F_DIM * 4)                 # gamma / beta / b2

    grid_spec = pltpu.PrefetchScalarGridSpec(
        num_scalar_prefetch=0,
        grid=(N_HALVES, N_K_PER_HALF),
        in_specs=[
            pl.BlockSpec((B, F_DIM), lambda h, k: (0, 0)),          # x (resident)
            pl.BlockSpec((TK, F_DIM),
                         lambda h, k: (h * N_K_PER_HALF + k, 0)),   # W1 row tile
            pl.BlockSpec((N_K, TK), lambda h, k: (0, 0)),           # gamma (resident)
            pl.BlockSpec((N_K, TK), lambda h, k: (0, 0)),           # beta (resident)
            pl.BlockSpec((TK, F_DIM),
                         lambda h, k: (h * N_K_PER_HALF + k, 0)),   # W2^T row tile
            pl.BlockSpec((1, F_DIM), lambda h, k: (0, 0)),          # b2 (resident)
        ],
        out_specs=pl.BlockSpec((None, B, F_DIM), lambda h, k: (h, 0, 0)),
    )

    partials = pl.pallas_call(
        mlp_proj_kernel,
        out_shape=jax.ShapeDtypeStruct((N_HALVES, B, F_DIM), jnp.float32),
        grid_spec=grid_spec,
        compiler_params=pltpu.CompilerParams(
            # Leading axis shards the K halves across cores on dual-TC chips;
            # trailing axis is the reduction (resident output accumulator).
            dimension_semantics=("parallel", "arbitrary"),
            # Double-buffered bf16 W1+W2 tiles at TK=480 ~= 7.4 MiB; 32 MiB
            # leaves ample headroom even on v7x (64 MiB physical VMEM).
            vmem_limit_bytes=32 << 20,
        ),
        cost_estimate=pl.CostEstimate(flops=flops, transcendentals=0,
                                      bytes_accessed=bytes_accessed),
    )(x, w1_bf16, g, be, w2t_bf16, b2_2d)

    # Tiny cross-half combine (2 x ~61 KB) -- negligible vs ~15 MB of weights.
    return partials[0] + partials[1]


def reference(x, w1, b1, gamma, beta, w2, b2):
    h = x @ w1.T + b1
    mean = jnp.mean(h, axis=0, keepdims=True)
    var = jnp.mean((h - mean) ** 2, axis=0, keepdims=True)
    y = (h - mean) / jnp.sqrt(var + BN_EPS) * gamma + beta
    y = jnp.maximum(y, 0.0)
    return y @ w2.T + b2


if __name__ == "__main__":
    key = jax.random.PRNGKey(0)
    k_x, k_w1, k_b1, k_w2, k_b2, k_g, k_be = jax.random.split(key, 7)

    B = 8  # small batch (>1 required for BatchNorm1d training mode)
    bound = 1.0 / (F_DIM ** 0.5)  # PyTorch nn.Linear default init bound

    x = jax.random.normal(k_x, (B, F_DIM), dtype=jnp.float32)
    w1 = jax.random.uniform(k_w1, (F_DIM, F_DIM), jnp.float32, -bound, bound)
    b1 = jax.random.uniform(k_b1, (F_DIM,), jnp.float32, -bound, bound)
    w2 = jax.random.uniform(k_w2, (F_DIM, F_DIM), jnp.float32, -bound, bound)
    b2 = jax.random.uniform(k_b2, (F_DIM,), jnp.float32, -bound, bound)
    # (PyTorch default is gamma=1, beta=0; randomize to exercise the affine path.)
    gamma = jax.random.uniform(k_g, (F_DIM,), jnp.float32, 0.5, 1.5)
    beta = 0.1 * jax.random.normal(k_be, (F_DIM,), dtype=jnp.float32)

    # One-time parameter prep (bf16 cast + W2 transpose) -- off the hot path.
    params = jax.block_until_ready(prepare_params(w1, b1, gamma, beta, w2, b2))

    out = jax.block_until_ready(mlp_proj(x, *params))

    # Reference uses the same bf16-rounded weights (kernel streams bf16 weights
    # but accumulates in f32), so the remaining difference is only activation
    # rounding inside the kernel.
    w1_r = w1.astype(jnp.bfloat16).astype(jnp.float32)
    w2_r = w2.astype(jnp.bfloat16).astype(jnp.float32)
    ref = reference(x, w1_r, b1, gamma, beta, w2_r, b2)

    assert out.shape == (B, F_DIM)
    max_err = jnp.max(jnp.abs(out - ref))
    assert jnp.allclose(out, ref, atol=2e-2, rtol=2e-2), \
        f"max abs err {max_err}"

    print("KERNEL_OK")
</pallas_src>

<mosaic_0001>
module attributes {stable_mosaic.version = 11 : i64} {
  func.func @mlp_proj_kernel(%arg0: i32, %arg1: i32, %arg2: memref<8x1920xf32, #tpu.memory_space<vmem>>, %arg3: memref<480x1920xbf16, #tpu.memory_space<vmem>>, %arg4: memref<4x480xf32, #tpu.memory_space<vmem>>, %arg5: memref<4x480xf32, #tpu.memory_space<vmem>>, %arg6: memref<480x1920xbf16, #tpu.memory_space<vmem>>, %arg7: memref<1x1920xf32, #tpu.memory_space<vmem>>, %arg8: memref<1x8x1920xf32, #tpu.memory_space<vmem>>) attributes {dimension_semantics = [#tpu.dimension_semantics<parallel>, #tpu.dimension_semantics<arbitrary>], iteration_bounds = array<i64: 2, 2>, scalar_prefetch = 0 : i64, scratch_operands = 0 : i64, tpu.core_type = #tpu.core_type<tc>, window_params = [{pipeline_mode = #tpu.pipeline_mode<synchronous>, transform_indices = @transform_0, window_bounds = array<i64: 8, 1920>}, {transform_indices = @transform_1, window_bounds = array<i64: 480, 1920>}, {pipeline_mode = #tpu.pipeline_mode<synchronous>, transform_indices = @transform_2, window_bounds = array<i64: 4, 480>}, {pipeline_mode = #tpu.pipeline_mode<synchronous>, transform_indices = @transform_3, window_bounds = array<i64: 4, 480>}, {transform_indices = @transform_4, window_bounds = array<i64: 480, 1920>}, {pipeline_mode = #tpu.pipeline_mode<synchronous>, transform_indices = @transform_5, window_bounds = array<i64: 1, 1920>}, {transform_indices = @transform_6, window_bounds = array<i64: 1, 8, 1920>}]} {
    %c2_i32 = arith.constant 2 : i32
    %0 = arith.muli %arg0, %c2_i32 : i32
    %1 = arith.addi %0, %arg1 : i32
    %c0_i32 = arith.constant 0 : i32
    %2 = arith.cmpi eq, %arg1, %c0_i32 : i32
    %3 = arith.extui %2 : i1 to i32
    %c0_i32_0 = arith.constant 0 : i32
    %4 = arith.cmpi ne, %3, %c0_i32_0 : i32
    scf.if %4 {
      %c0_i32_21 = arith.constant 0 : i32
      %46 = arith.cmpi eq, %arg0, %c0_i32_21 : i32
      %47 = arith.extui %46 : i1 to i32
      %48 = arith.sitofp %47 : i32 to f32
      %c0_22 = arith.constant 0 : index
      %c0_23 = arith.constant 0 : index
      %49 = vector.load %arg7[%c0_22, %c0_23] : memref<1x1920xf32, #tpu.memory_space<vmem>>, vector<1x1920xf32>
      %50 = vector.broadcast %48 : f32 to vector<1x1920xf32>
      %51 = arith.mulf %49, %50 : vector<1x1920xf32>
      %52 = vector.shape_cast %51 : vector<1x1920xf32> to vector<1x1920xf32>
      %53 = vector.broadcast %52 : vector<1x1920xf32> to vector<8x1920xf32>
      %c0_24 = arith.constant 0 : index
      %c0_25 = arith.constant 0 : index
      %c0_26 = arith.constant 0 : index
      %54 = vector.load %arg8[%c0_24, %c0_25, %c0_26] : memref<1x8x1920xf32, #tpu.memory_space<vmem>>, vector<1x8x1920xf32>
      %55 = vector.shape_cast %54 : vector<1x8x1920xf32> to vector<8x1920xf32>
      %56 = vector.shape_cast %53 : vector<8x1920xf32> to vector<1x8x1920xf32>
      tpu.vector_store %arg8[%c0_24, %c0_25, %c0_26], %56 {strides = array<i32>} : memref<1x8x1920xf32, #tpu.memory_space<vmem>>, vector<1x8x1920xf32>,
    } else {
    }
    %c0 = arith.constant 0 : index
    %c0_1 = arith.constant 0 : index
    %5 = vector.load %arg2[%c0, %c0_1] : memref<8x1920xf32, #tpu.memory_space<vmem>>, vector<8x1920xf32>
    %6 = arith.truncf %5 : vector<8x1920xf32> to vector<8x1920xbf16>
    %c0_2 = arith.constant 0 : index
    %c0_3 = arith.constant 0 : index
    %7 = vector.load %arg3[%c0_2, %c0_3] : memref<480x1920xbf16, #tpu.memory_space<vmem>>, vector<480x1920xbf16>
    %cst = arith.constant dense<0.000000e+00> : vector<8x480xf32>
    %8 = tpu.matmul %6, %7, %cst {dimension_numbers = #tpu.dot_dimension_numbers<[1], [1], [0], [0], [0, 0, 1, 0], [], []>} : vector<8x1920xbf16>, vector<480x1920xbf16>, vector<8x480xf32> -> vector<8x480xf32>
    %cst_4 = arith.constant dense<0.000000e+00> : vector<480xf32>
    %9 = vector.multi_reduction <add>, %8, %cst_4 [0] : vector<8x480xf32> to vector<480xf32>
    %10 = vector.shape_cast %9 : vector<480xf32> to vector<1x480xf32>
    %cst_5 = arith.constant 8.000000e+00 : f32
    %11 = vector.broadcast %cst_5 : f32 to vector<1x480xf32>
    %12 = arith.divf %10, %11 : vector<1x480xf32>
    %13 = vector.broadcast %12 : vector<1x480xf32> to vector<8x480xf32>
    %14 = arith.subf %8, %13 : vector<8x480xf32>
    %15 = arith.mulf %14, %14 : vector<8x480xf32>
    %cst_6 = arith.constant dense<0.000000e+00> : vector<480xf32>
    %16 = vector.multi_reduction <add>, %15, %cst_6 [0] : vector<8x480xf32> to vector<480xf32>
    %17 = vector.shape_cast %16 : vector<480xf32> to vector<1x480xf32>
    %cst_7 = arith.constant 8.000000e+00 : f32
    %18 = vector.broadcast %cst_7 : f32 to vector<1x480xf32>
    %19 = arith.divf %17, %18 : vector<1x480xf32>
    %20 = arith.index_cast %1 : i32 to index
    %c0_8 = arith.constant 0 : index
    %21 = vector.load %arg4[%20, %c0_8] : memref<4x480xf32, #tpu.memory_space<vmem>>, vector<1x480xf32>
    %22 = arith.index_cast %1 : i32 to index
    %c0_9 = arith.constant 0 : index
    %23 = vector.load %arg5[%22, %c0_9] : memref<4x480xf32, #tpu.memory_space<vmem>>, vector<1x480xf32>
    %24 = vector.broadcast %12 : vector<1x480xf32> to vector<8x480xf32>
    %25 = arith.subf %8, %24 : vector<8x480xf32>
    %cst_10 = arith.constant 9.99999974E-6 : f32
    %26 = vector.broadcast %cst_10 : f32 to vector<1x480xf32>
    %27 = arith.addf %19, %26 : vector<1x480xf32>
    %28 = math.rsqrt %27 : vector<1x480xf32>
    %29 = vector.broadcast %28 : vector<1x480xf32> to vector<8x480xf32>
    %30 = arith.mulf %25, %29 : vector<8x480xf32>
    %31 = vector.broadcast %21 : vector<1x480xf32> to vector<8x480xf32>
    %32 = arith.mulf %30, %31 : vector<8x480xf32>
    %33 = vector.broadcast %23 : vector<1x480xf32> to vector<8x480xf32>
    %34 = arith.addf %32, %33 : vector<8x480xf32>
    %cst_11 = arith.constant 0.000000e+00 : f32
    %35 = vector.broadcast %cst_11 : f32 to vector<8x480xf32>
    %36 = arith.maximumf %34, %35 : vector<8x480xf32>
    %c0_12 = arith.constant 0 : index
    %c0_13 = arith.constant 0 : index
    %c0_14 = arith.constant 0 : index
    %37 = vector.load %arg8[%c0_12, %c0_13, %c0_14] : memref<1x8x1920xf32, #tpu.memory_space<vmem>>, vector<1x8x1920xf32>
    %38 = vector.shape_cast %37 : vector<1x8x1920xf32> to vector<8x1920xf32>
    %39 = arith.truncf %36 : vector<8x480xf32> to vector<8x480xbf16>
    %c0_15 = arith.constant 0 : index
    %c0_16 = arith.constant 0 : index
    %40 = vector.load %arg6[%c0_15, %c0_16] : memref<480x1920xbf16, #tpu.memory_space<vmem>>, vector<480x1920xbf16>
    %cst_17 = arith.constant dense<0.000000e+00> : vector<8x1920xf32>
    %41 = tpu.matmul %39, %40, %cst_17 {dimension_numbers = #tpu.dot_dimension_numbers<[1], [0], [0], [1], [0, 0, 1, 1], [], []>} : vector<8x480xbf16>, vector<480x1920xbf16>, vector<8x1920xf32> -> vector<8x1920xf32>
    %42 = arith.addf %38, %41 : vector<8x1920xf32>
    %c0_18 = arith.constant 0 : index
    %c0_19 = arith.constant 0 : index
    %c0_20 = arith.constant 0 : index
    %43 = vector.load %arg8[%c0_18, %c0_19, %c0_20] : memref<1x8x1920xf32, #tpu.memory_space<vmem>>, vector<1x8x1920xf32>
    %44 = vector.shape_cast %43 : vector<1x8x1920xf32> to vector<8x1920xf32>
    %45 = vector.shape_cast %42 : vector<8x1920xf32> to vector<1x8x1920xf32>
    tpu.vector_store %arg8[%c0_18, %c0_19, %c0_20], %45 {strides = array<i32>} : memref<1x8x1920xf32, #tpu.memory_space<vmem>>, vector<1x8x1920xf32>,
    return
  }
  func.func @transform_0(%arg0: i32, %arg1: i32) -> (i32, i32) {
    %c0_i32 = arith.constant 0 : i32
    %c0_i32_0 = arith.constant 0 : i32
    %c0_i32_1 = arith.constant 0 : i32
    return %c0_i32, %c0_i32_0 : i32, i32
  }
  func.func @transform_1(%arg0: i32, %arg1: i32) -> (i32, i32) {
    %c2_i32 = arith.constant 2 : i32
    %0 = arith.muli %arg0, %c2_i32 : i32
    %1 = arith.addi %0, %arg1 : i32
    %c0_i32 = arith.constant 0 : i32
    %c0_i32_0 = arith.constant 0 : i32
    return %1, %c0_i32 : i32, i32
  }
  func.func @transform_2(%arg0: i32, %arg1: i32) -> (i32, i32) {
    %c0_i32 = arith.constant 0 : i32
    %c0_i32_0 = arith.constant 0 : i32
    %c0_i32_1 = arith.constant 0 : i32
    return %c0_i32, %c0_i32_0 : i32, i32
  }
  func.func @transform_3(%arg0: i32, %arg1: i32) -> (i32, i32) {
    %c0_i32 = arith.constant 0 : i32
    %c0_i32_0 = arith.constant 0 : i32
    %c0_i32_1 = arith.constant 0 : i32
    return %c0_i32, %c0_i32_0 : i32, i32
  }
  func.func @transform_4(%arg0: i32, %arg1: i32) -> (i32, i32) {
    %c2_i32 = arith.constant 2 : i32
    %0 = arith.muli %arg0, %c2_i32 : i32
    %1 = arith.addi %0, %arg1 : i32
    %c0_i32 = arith.constant 0 : i32
    %c0_i32_0 = arith.constant 0 : i32
    return %1, %c0_i32 : i32, i32
  }
  func.func @transform_5(%arg0: i32, %arg1: i32) -> (i32, i32) {
    %c0_i32 = arith.constant 0 : i32
    %c0_i32_0 = arith.constant 0 : i32
    %c0_i32_1 = arith.constant 0 : i32
    return %c0_i32, %c0_i32_0 : i32, i32
  }
  func.func @transform_6(%arg0: i32, %arg1: i32) -> (i32, i32, i32) {
    %c0_i32 = arith.constant 0 : i32
    %c0_i32_0 = arith.constant 0 : i32
    %c0_i32_1 = arith.constant 0 : i32
    return %arg0, %c0_i32, %c0_i32_0 : i32, i32, i32
  }
}

</mosaic_0001>

<llo_original>
// kernel: tpu_custom_call.1
$region0: #{tpu_custom_call.1}
  #allocation0 [shape = 'u32[]', space=smem, size = 0x4, offset = 0x4, fixed_abs, tag = 'smem constant byte address 0x4 - core index']
  #allocation1 [shape = 'u32[72,128]{1,0:T(1,128)}', space=vmem, size = 0x9000, scoped, tag = 'internal scratch']
  %s0 = inlined_call_operand.hbm [shape: f32[8,1920], index: 0, kind: input, shape index: {}]
  %s1 = inlined_call_operand.hbm [shape: bf16[1920,1920], index: 1, kind: input, shape index: {}]
  %s2 = inlined_call_operand.hbm [shape: f32[4,480], index: 2, kind: input, shape index: {}]
  %s3 = inlined_call_operand.hbm [shape: f32[4,480], index: 3, kind: input, shape index: {}]
  %s4 = inlined_call_operand.hbm [shape: bf16[1920,1920], index: 4, kind: input, shape index: {}]
  %s5 = inlined_call_operand.hbm [shape: f32[1,1920], index: 5, kind: input, shape index: {}]
  %s6 = inlined_call_operand.hbm [shape: f32[2,8,1920], index: 6, kind: output, shape index: {}]
  %s7 = sld [smem:[#allocation0]]
  $region85: #{tpu_custom_call.1} parent=0
    _
  %s9 = ssub.s32 1, %s7
  %s10 = scalar_select 0, %s9, %s7
  $region1: #{tpu_custom_call.1} parent=0
    #allocation2 [shape = 'u8[61440]{0}', space=vmem, size = 0xf000, scoped, tag = 'input window, operand 0, single buffered']
    #allocation3 [shape = 's32[2]{0}', space=sflag, size = 0x8, scoped, tag = 'scoped memory for tpu_custom_call.1']
    #allocation4 [shape = 's32[2]{0}', space=sflag, size = 0x8, scoped, tag = 'scoped memory for tpu_custom_call.1']
    #allocation5 [shape = 'u8[3686400]{0}', space=vmem, size = 0x384000, scoped, tag = 'input window, operand 1']
    #allocation6 [shape = 's32[2]{0}', space=sflag, size = 0x8, scoped, tag = 'scoped memory for tpu_custom_call.1']
    #allocation7 [shape = 'u8[8192]{0}', space=vmem, size = 0x2000, scoped, tag = 'input window, operand 2, single buffered']
    #allocation8 [shape = 'u8[8192]{0}', space=vmem, size = 0x2000, scoped, tag = 'input window, operand 3, single buffered']
    #allocation9 [shape = 's32[1]{0}', space=sflag, size = 0x4, scoped, tag = 'scoped memory for tpu_custom_call.1']
    #allocation10 [shape = 'u8[3686400]{0}', space=vmem, size = 0x384000, scoped, tag = 'input window, operand 4']
    #allocation11 [shape = 'u8[7680]{0}', space=vmem, size = 0x2000, scoped, tag = 'input window, operand 5, single buffered']
    #allocation12 [shape = 'u8[122880]{0}', space=vmem, size = 0x1e000, scoped, tag = 'output window, operand 0']
    %11 = vsyncpa [#allocation3], 0
    %12 = vsyncpa [#allocation6], 0
    %s13 = scalar_lea.sflag [#allocation6], 1
    %14 = vsyncpa %s13, 0
    %15 = vsyncpa [#allocation9], 0
    %16 = vsyncpa [#allocation4], 0
    %s17 = scalar_lea.sflag [#allocation4], 1
    %18 = vsyncpa %s17, 0
    loop: start=0, step=1, limit=6
    $region2: #{tpu_custom_call.1} parent=1 // loop_pre_header
      _
    $region3: #{tpu_custom_call.1} parent=1 // loop_header
      %s20 = sphi 0, %s24
      %p21 = scmp.ge.s32.totalorder %s20, 6
      %s27 = sphi 0, %s39
      %s28 = sphi 0, %s35
      %s29 = sphi 0, %s27
      %s30 = sphi 0, %s28
      %s31 = sphi 0, %s29
      %s32 = sphi 0, %s30
      %s40 = sphi 0, %s40
      %s42 = sphi 0, %s40
      %s43 = sphi 0, %s42
      %s57 = sphi 0, %s43
      %s67 = sphi 0, %s69
      %s70 = sphi 0, %s67
      %s71 = sphi 0, %s70
      %s87 = sphi 0, %s71
      %s91 = sphi 0, %s91
      %s93 = sphi 0, %s91
      %s94 = sphi 0, %s93
      %s108 = sphi 0, %s94
      %s112 = sphi 0, %s112
      %s114 = sphi 0, %s112
      %s115 = sphi 0, %s114
      %s129 = sphi 0, %s115
      %s139 = sphi 0, %s141
      %s142 = sphi 0, %s139
      %s143 = sphi 0, %s142
      %s159 = sphi 0, %s143
      %s163 = sphi 0, %s163
      %s165 = sphi 0, %s163
      %s166 = sphi 0, %s165
      %s180 = sphi 0, %s166
      %s186 = sphi 0, %s188
      %s189 = sphi 0, %s186
      %s190 = sphi 0, %s189
      %s206 = sphi 0, %s190
    $region4: #{tpu_custom_call.1} parent=1 // loop_header_branch
      %23 = sbr.rel (%p21) target = $region8
    $region5: #{tpu_custom_call.1} parent=1 // loop_body
      %s25 = ssub.s32 %s20, 1
      %s26 = ssub.s32 %s20, 2
      %s33 = sadd.s32 1, %s28
      %p34 = scmp.ge.s32.totalorder %s33, 2
      %s35 = scalar_select %p34, 0, %s33
      %s36 = sadd.s32 1, %s27
      %s37 = scalar_select %p34, %s36, %s27
      %p38 = scmp.ge.s32.totalorder %s37, 2
      %s39 = scalar_select %p38, 0, %s37
      %s41 = sadd.s32 %s40, 1
      %p44 = scmp.eq.s32.totalorder %s20, 3
      %p45 = scmp.ne.s32.totalorder %s40, %s42
      %p46 = scmp.eq.s32.totalorder %s20, 0
      %p47 = por %p45, %p46
      %p48 = scmp.ne.s32.totalorder %s40, %s42
      %p49 = scmp.eq.s32.totalorder %s25, 3
      %p50 = por %p48, %p49
      %p51 = scmp.ne.s32.totalorder %s42, %s43
      %p52 = scmp.eq.s32.totalorder %s25, 0
      %p53 = por %p51, %p52
      %p54 = scmp.ne.s32.totalorder %s42, %s43
      %p55 = scmp.eq.s32.totalorder %s26, 3
      %p56 = por %p54, %p55
      %p58 = scmp.ne.s32.totalorder %s43, %s57
      %p59 = scmp.eq.s32.totalorder %s26, 0
      %p60 = por %p58, %p59
      %s61 = smul.u32 %s27, 2
      %s62 = sadd.s32 %s61, %s28
      %s63 = smul.u32 %s39, 2
      %s64 = sadd.s32 %s63, %s35
      %s65 = ssub.s32 %s62, %s64
      %p66 = scmp.eq.s32.totalorder %s65, 0
      %s68 = sadd.s32 %s67, 1
      %s69 = scalar_select %p66, %s67, %s68
      %p72 = pneg %p66
      %p73 = scmp.eq.s32.totalorder %s20, 3
      %p74 = por %p72, %p73
      %p75 = scmp.ne.s32.totalorder %s67, %s70
      %p76 = scmp.eq.s32.totalorder %s20, 0
      %p77 = por %p75, %p76
      %p78 = scmp.ne.s32.totalorder %s67, %s70
      %p79 = scmp.eq.s32.totalorder %s25, 3
      %p80 = por %p78, %p79
      %p81 = scmp.ne.s32.totalorder %s70, %s71
      %p82 = scmp.eq.s32.totalorder %s25, 0
      %p83 = por %p81, %p82
      %p84 = scmp.ne.s32.totalorder %s70, %s71
      %p85 = scmp.eq.s32.totalorder %s26, 3
      %p86 = por %p84, %p85
      %p88 = scmp.ne.s32.totalorder %s71, %s87
      %p89 = scmp.eq.s32.totalorder %s26, 0
      %p90 = por %p88, %p89
      %s92 = sadd.s32 %s91, 1
      %p95 = scmp.eq.s32.totalorder %s20, 3
      %p96 = scmp.ne.s32.totalorder %s91, %s93
      %p97 = scmp.eq.s32.totalorder %s20, 0
      %p98 = por %p96, %p97
      %p99 = scmp.ne.s32.totalorder %s91, %s93
      %p100 = scmp.eq.s32.totalorder %s25, 3
      %p101 = por %p99, %p100
      %p102 = scmp.ne.s32.totalorder %s93, %s94
      %p103 = scmp.eq.s32.totalorder %s25, 0
      %p104 = por %p102, %p103
      %p105 = scmp.ne.s32.totalorder %s93, %s94
      %p106 = scmp.eq.s32.totalorder %s26, 3
      %p107 = por %p105, %p106
      %p109 = scmp.ne.s32.totalorder %s94, %s108
      %p110 = scmp.eq.s32.totalorder %s26, 0
      %p111 = por %p109, %p110
      %s113 = sadd.s32 %s112, 1
      %p116 = scmp.eq.s32.totalorder %s20, 3
      %p117 = scmp.ne.s32.totalorder %s112, %s114
      %p118 = scmp.eq.s32.totalorder %s20, 0
      %p119 = por %p117, %p118
      %p120 = scmp.ne.s32.totalorder %s112, %s114
      %p121 = scmp.eq.s32.totalorder %s25, 3
      %p122 = por %p120, %p121
      %p123 = scmp.ne.s32.totalorder %s114, %s115
      %p124 = scmp.eq.s32.totalorder %s25, 0
      %p125 = por %p123, %p124
      %p126 = scmp.ne.s32.totalorder %s114, %s115
      %p127 = scmp.eq.s32.totalorder %s26, 3
      %p128 = por %p126, %p127
      %p130 = scmp.ne.s32.totalorder %s115, %s129
      %p131 = scmp.eq.s32.totalorder %s26, 0
      %p132 = por %p130, %p131
      %s133 = smul.u32 %s27, 2
      %s134 = sadd.s32 %s133, %s28
      %s135 = smul.u32 %s39, 2
      %s136 = sadd.s32 %s135, %s35
      %s137 = ssub.s32 %s134, %s136
      %p138 = scmp.eq.s32.totalorder %s137, 0
      %s140 = sadd.s32 %s139, 1
      %s141 = scalar_select %p138, %s139, %s140
      %p144 = pneg %p138
      %p145 = scmp.eq.s32.totalorder %s20, 3
      %p146 = por %p144, %p145
      %p147 = scmp.ne.s32.totalorder %s139, %s142
      %p148 = scmp.eq.s32.totalorder %s20, 0
      %p149 = por %p147, %p148
      %p150 = scmp.ne.s32.totalorder %s139, %s142
      %p151 = scmp.eq.s32.totalorder %s25, 3
      %p152 = por %p150, %p151
      %p153 = scmp.ne.s32.totalorder %s142, %s143
      %p154 = scmp.eq.s32.totalorder %s25, 0
      %p155 = por %p153, %p154
      %p156 = scmp.ne.s32.totalorder %s142, %s143
      %p157 = scmp.eq.s32.totalorder %s26, 3
      %p158 = por %p156, %p157
      %p160 = scmp.ne.s32.totalorder %s143, %s159
      %p161 = scmp.eq.s32.totalorder %s26, 0
      %p162 = por %p160, %p161
      %s164 = sadd.s32 %s163, 1
      %p167 = scmp.eq.s32.totalorder %s20, 3
      %p168 = scmp.ne.s32.totalorder %s163, %s165
      %p169 = scmp.eq.s32.totalorder %s20, 0
      %p170 = por %p168, %p169
      %p171 = scmp.ne.s32.totalorder %s163, %s165
      %p172 = scmp.eq.s32.totalorder %s25, 3
      %p173 = por %p171, %p172
      %p174 = scmp.ne.s32.totalorder %s165, %s166
      %p175 = scmp.eq.s32.totalorder %s25, 0
      %p176 = por %p174, %p175
      %p177 = scmp.ne.s32.totalorder %s165, %s166
      %p178 = scmp.eq.s32.totalorder %s26, 3
      %p179 = por %p177, %p178
      %p181 = scmp.ne.s32.totalorder %s166, %s180
      %p182 = scmp.eq.s32.totalorder %s26, 0
      %p183 = por %p181, %p182
      %s184 = ssub.s32 %s27, %s39
      %p185 = scmp.eq.s32.totalorder %s184, 0
      %s187 = sadd.s32 %s186, 1
      %s188 = scalar_select %p185, %s186, %s187
      %p191 = pneg %p185
      %p192 = scmp.eq.s32.totalorder %s20, 3
      %p193 = por %p191, %p192
      %p194 = scmp.ne.s32.totalorder %s186, %s189
      %p195 = scmp.eq.s32.totalorder %s20, 0
      %p196 = por %p194, %p195
      %p197 = scmp.ne.s32.totalorder %s186, %s189
      %p198 = scmp.eq.s32.totalorder %s25, 3
      %p199 = por %p197, %p198
      %p200 = scmp.ne.s32.totalorder %s189, %s190
      %p201 = scmp.eq.s32.totalorder %s25, 0
      %p202 = por %p200, %p201
      %p203 = scmp.ne.s32.totalorder %s189, %s190
      %p204 = scmp.eq.s32.totalorder %s26, 3
      %p205 = por %p203, %p204
      %p207 = scmp.ne.s32.totalorder %s190, %s206
      %p208 = scmp.eq.s32.totalorder %s26, 0
      %p209 = por %p207, %p208
      %p210 = scmp.le.s32.totalorder 1, %s20
      %p211 = scmp.lt.s32.totalorder %s20, 5
      %p212 = pnand %p210, %p211
      %p213 = pneg %p212
      // Predicated region
      $region9: #{tpu_custom_call.1} parent=5 // pred_check
        _
      $region10: #{tpu_custom_call.1} parent=5 // pred_check_branch
        %215 = sbr.rel (%p212) target = $region12
      $region11: #{tpu_custom_call.1} parent=5 // pred_region
        %s216 = ssub.s32 %s20, 1
        // Predicated region
        $region13: #{tpu_custom_call.1} parent=11 // pred_check
          %p217 = pneg %p53
        $region14: #{tpu_custom_call.1} parent=11 // pred_check_branch
          %219 = sbr.rel (%p217) target = $region16
        $region15: #{tpu_custom_call.1} parent=11 // pred_region
          %221 = vsyncadd [#allocation3], 0
          %s223 = sshll.u32 %s0, 4
          %s224 = int_to_ptr.hbm [resolvable:$true] %s223
          %s225 = sshll.u32 [#allocation2], 4
          %s226 = int_to_ptr.vmem [resolvable:$true] %s225
          %228 = dma.hbm_to_vmem [thread:$0]  %s224, 1920, %s226, [#allocation3]
        $region16: #{tpu_custom_call.1} parent=11 // pred_fallthru
          _
        // Predicated region
        $region17: #{tpu_custom_call.1} parent=11 // pred_check
          %p229 = pneg %p104
        $region18: #{tpu_custom_call.1} parent=11 // pred_check_branch
          %231 = sbr.rel (%p229) target = $region20
        $region19: #{tpu_custom_call.1} parent=11 // pred_region
          %233 = vsyncadd [#allocation6], 0
          %s235 = sshll.u32 %s2, 4
          %s236 = int_to_ptr.hbm [resolvable:$true] %s235
          %s237 = sshll.u32 [#allocation7], 4
          %s238 = int_to_ptr.vmem [resolvable:$true] %s237
          %240 = dma.hbm_to_vmem [thread:$0]  %s236, 256, %s238, [#allocation6]
        $region20: #{tpu_custom_call.1} parent=11 // pred_fallthru
          _
        // Predicated region
        $region21: #{tpu_custom_call.1} parent=11 // pred_check
          %p241 = pneg %p125
        $region22: #{tpu_custom_call.1} parent=11 // pred_check_branch
          %243 = sbr.rel (%p241) target = $region24
        $region23: #{tpu_custom_call.1} parent=11 // pred_region
          %245 = vsyncadd [#allocation9], 0
          %s247 = sshll.u32 %s3, 4
          %s248 = int_to_ptr.hbm [resolvable:$true] %s247
          %s249 = sshll.u32 [#allocation8], 4
          %s250 = int_to_ptr.vmem [resolvable:$true] %s249
          %252 = dma.hbm_to_vmem [thread:$0]  %s248, 256, %s250, [#allocation9]
        $region24: #{tpu_custom_call.1} parent=11 // pred_fallthru
          _
        // Predicated region
        $region25: #{tpu_custom_call.1} parent=11 // pred_check
          %p253 = pneg %p176
        $region26: #{tpu_custom_call.1} parent=11 // pred_check_branch
          %255 = sbr.rel (%p253) target = $region28
        $region27: #{tpu_custom_call.1} parent=11 // pred_region
          %257 = vsyncadd [#allocation6], 0
          %s259 = sshll.u32 %s5, 4
          %s260 = int_to_ptr.hbm [resolvable:$true] %s259
          %s261 = sshll.u32 [#allocation11], 4
          %s262 = int_to_ptr.vmem [resolvable:$true] %s261
          %264 = dma.hbm_to_vmem [thread:$0]  %s260, 240, %s262, [#allocation6]
        $region28: #{tpu_custom_call.1} parent=11 // pred_fallthru
          _
      $region12: #{tpu_custom_call.1} parent=5 // pred_fallthru
        _
      %p265 = scmp.lt.s32.totalorder %s20, 4
      // Predicated region
      $region29: #{tpu_custom_call.1} parent=5 // pred_check
        %p266 = pneg %p265
      $region30: #{tpu_custom_call.1} parent=5 // pred_check_branch
        %268 = sbr.rel (%p266) target = $region32
      $region31: #{tpu_custom_call.1} parent=5 // pred_region
        // Predicated region
        $region33: #{tpu_custom_call.1} parent=31 // pred_check
          %p269 = pneg %p77
        $region34: #{tpu_custom_call.1} parent=31 // pred_check_branch
          %271 = sbr.rel (%p269) target = $region36
        $region35: #{tpu_custom_call.1} parent=31 // pred_region
          %s272 = sand.u32 %s20, 1
          %s273 = scalar_lea.sflag [#allocation6], %s272
          %s274 = sand.u32 %s67, 1
          %s275 = smul.addr %s274, 3600
          %s276 = scalar_lea.vmem [#allocation5], %s275
          %s277 = smul.u32 %s27, 2
          %s278 = sadd.s32 %s277, %s28
          %s279 = smul.u32 60, %s278
          %281 = vsyncadd %s273, 0
          %s282 = smul.addr %s279, 15
          %s283 = smul.addr %s282, 4
          %s284 = scalar_lea.hbm %s1, %s283
          %s285 = sshll.u32 %s284, 4
          %s286 = int_to_ptr.hbm [resolvable:$true] %s285
          %s287 = sshll.u32 %s276, 4
          %s288 = int_to_ptr.vmem [resolvable:$true] %s287
          %293 = dma.hbm_to_vmem [thread:$0]  %s286, 57600, %s288, %s273, 960, 960, 60
        $region36: #{tpu_custom_call.1} parent=31 // pred_fallthru
          _
        // Predicated region
        $region37: #{tpu_custom_call.1} parent=31 // pred_check
          %p294 = pneg %p149
        $region38: #{tpu_custom_call.1} parent=31 // pred_check_branch
          %296 = sbr.rel (%p294) target = $region40
        $region39: #{tpu_custom_call.1} parent=31 // pred_region
          %s297 = sand.u32 %s20, 1
          %s298 = scalar_lea.sflag [#allocation3], %s297
          %s299 = sand.u32 %s139, 1
          %s300 = smul.addr %s299, 3600
          %s301 = scalar_lea.vmem [#allocation10], %s300
          %s302 = smul.u32 %s27, 2
          %s303 = sadd.s32 %s302, %s28
          %s304 = smul.u32 60, %s303
          %306 = vsyncadd %s298, 0
          %s307 = smul.addr %s304, 15
          %s308 = smul.addr %s307, 4
          %s309 = scalar_lea.hbm %s4, %s308
          %s310 = sshll.u32 %s309, 4
          %s311 = int_to_ptr.hbm [resolvable:$true] %s310
          %s312 = sshll.u32 %s301, 4
          %s313 = int_to_ptr.vmem [resolvable:$true] %s312
          %318 = dma.hbm_to_vmem [thread:$0]  %s311, 57600, %s313, %s298, 960, 960, 60
        $region40: #{tpu_custom_call.1} parent=31 // pred_fallthru
          _
      $region32: #{tpu_custom_call.1} parent=5 // pred_fallthru
        _
      %p319 = scmp.le.s32.totalorder 1, %s20
      %p320 = scmp.lt.s32.totalorder %s20, 5
      %p321 = pnand %p319, %p320
      %p322 = pneg %p321
      // Predicated region
      $region41: #{tpu_custom_call.1} parent=5 // pred_check
        _
      $region42: #{tpu_custom_call.1} parent=5 // pred_check_branch
        %324 = sbr.rel (%p321) target = $region44
      $region43: #{tpu_custom_call.1} parent=5 // pred_region
        %s325 = ssub.s32 %s20, 1
        // Predicated region
        $region45: #{tpu_custom_call.1} parent=43 // pred_check
          %p326 = pneg %p53
        $region46: #{tpu_custom_call.1} parent=43 // pred_check_branch
          %328 = sbr.rel (%p326) target = $region48
        $region47: #{tpu_custom_call.1} parent=43 // pred_region
          %330 = dma.done [#allocation3], 1920
        $region48: #{tpu_custom_call.1} parent=43 // pred_fallthru
          _
        %s331 = sand.u32 %s25, 1
        %s332 = scalar_lea.sflag [#allocation6], %s331
        %s333 = sand.u32 %s70, 1
        %s334 = smul.addr %s333, 3600
        %s335 = scalar_lea.vmem [#allocation5], %s334
        // Predicated region
        $region49: #{tpu_custom_call.1} parent=43 // pred_check
          %p336 = pneg %p83
        $region50: #{tpu_custom_call.1} parent=43 // pred_check_branch
          %338 = sbr.rel (%p336) target = $region52
        $region51: #{tpu_custom_call.1} parent=43 // pred_region
          %340 = dma.done %s332, 57600
        $region52: #{tpu_custom_call.1} parent=43 // pred_fallthru
          _
        // Predicated region
        $region53: #{tpu_custom_call.1} parent=43 // pred_check
          %p341 = pneg %p104
        $region54: #{tpu_custom_call.1} parent=43 // pred_check_branch
          %343 = sbr.rel (%p341) target = $region56
        $region55: #{tpu_custom_call.1} parent=43 // pred_region
          %345 = dma.done [#allocation6], 256
        $region56: #{tpu_custom_call.1} parent=43 // pred_fallthru
          _
        // Predicated region
        $region57: #{tpu_custom_call.1} parent=43 // pred_check
          %p346 = pneg %p125
        $region58: #{tpu_custom_call.1} parent=43 // pred_check_branch
          %348 = sbr.rel (%p346) target = $region60
        $region59: #{tpu_custom_call.1} parent=43 // pred_region
          %350 = dma.done [#allocation9], 256
        $region60: #{tpu_custom_call.1} parent=43 // pred_fallthru
          _
        %s351 = sand.u32 %s25, 1
        %s352 = scalar_lea.sflag [#allocation3], %s351
        %s353 = sand.u32 %s142, 1
        %s354 = smul.addr %s353, 3600
        %s355 = scalar_lea.vmem [#allocation10], %s354
        // Predicated region
        $region61: #{tpu_custom_call.1} parent=43 // pred_check
          %p356 = pneg %p155
        $region62: #{tpu_custom_call.1} parent=43 // pred_check_branch
          %358 = sbr.rel (%p356) target = $region64
        $region63: #{tpu_custom_call.1} parent=43 // pred_region
          %360 = dma.done %s352, 57600
        $region64: #{tpu_custom_call.1} parent=43 // pred_fallthru
          _
        // Predicated region
        $region65: #{tpu_custom_call.1} parent=43 // pred_check
          %p361 = pneg %p176
        $region66: #{tpu_custom_call.1} parent=43 // pred_check_branch
          %363 = sbr.rel (%p361) target = $region68
        $region67: #{tpu_custom_call.1} parent=43 // pred_region
          %365 = dma.done [#allocation6], 240
        $region68: #{tpu_custom_call.1} parent=43 // pred_fallthru
          _
        %p366 = pneg %p53
        %p367 = pneg %p50
        %s368 = sand.u32 %s25, 1
        %s369 = scalar_lea.sflag [#allocation6], %s368
        %s370 = sand.u32 %s70, 1
        %s371 = smul.addr %s370, 3600
        %s372 = scalar_lea.vmem [#allocation5], %s371
        %p373 = pneg %p83
        %p374 = pneg %p80
        %p375 = pneg %p104
        %p376 = pneg %p101
        %p377 = pneg %p125
        %p378 = pneg %p122
        %s379 = sand.u32 %s25, 1
        %s380 = scalar_lea.sflag [#allocation3], %s379
        %s381 = sand.u32 %s142, 1
        %s382 = smul.addr %s381, 3600
        %s383 = scalar_lea.vmem [#allocation10], %s382
        %p384 = pneg %p155
        %p385 = pneg %p152
        %p386 = pneg %p176
        %p387 = pneg %p173
        %p388 = pneg %p202
        %p389 = pneg %p199
        %s390 = sand.u32 %s189, 1
        %s391 = scalar_lea.sflag [#allocation4], %s390
        %s392 = sand.u32 %s189, 1
        %s393 = smul.addr %s392, 120
        %s394 = scalar_lea.vmem [#allocation12], %s393
        %s395 = smul.u32 %s29, 2
        %s396 = sadd.s32 %s395, %s30
        %s397 = smul.u32 60, %s396
        %s398 = smul.u32 %s29, 2
        %s399 = sadd.s32 %s398, %s30
        %s400 = smul.u32 60, %s399
        %s402 = smul.u32 %s29, 2
        %s403 = sadd.s32 %s402, %s30
        %p404 = scmp.eq.s32.totalorder %s30, 0
        // Predicated region
        $region69: #{tpu_custom_call.1} parent=43 // pred_check
          %p405 = pneg %p404
        $region70: #{tpu_custom_call.1} parent=43 // pred_check_branch
          %407 = sbr.rel (%p405) target = $region72
        $region71: #{tpu_custom_call.1} parent=43 // pred_region
          %p408 = scmp.eq.s32.totalorder %s29, 0
          %s409 = scalar_select %p408, 1, 0
          %s410 = scvt.s32.f32 %s409
          %v411 = vld [vmem:[#allocation11] sm:$0xff]
          %v412 = vld [vmem:[#allocation11 + $0x8] sm:$0xff]
          %v413 = vstv %s410
          %v414 = vmul.f32 %v411, %v413
          %v415 = vmul.f32 %v412, %v413
          %v418 = vperm.slane %v414, 0
          %v419 = vperm.slane %v414, 1
          %v420 = vperm.slane %v414, 2
          %v421 = vperm.slane %v414, 3
          %v422 = vperm.slane %v414, 4
          %v423 = vperm.slane %v414, 5
          %v424 = vperm.slane %v414, 6
          %v425 = vperm.slane %v414, 7
          %v426 = vperm.slane %v415, 0
          %v427 = vperm.slane %v415, 1
          %v428 = vperm.slane %v415, 2
          %v429 = vperm.slane %v415, 3
          %v430 = vperm.slane %v415, 4
          %v431 = vperm.slane %v415, 5
          %v432 = vperm.slane %v415, 6
          %448 = vst [vmem:[%s394] sm:$0xff] %v418
          %449 = vst [vmem:[%s394 + $0x8] sm:$0xff] %v419
          %450 = vst [vmem:[%s394 + $0x10] sm:$0xff] %v420
          %451 = vst [vmem:[%s394 + $0x18] sm:$0xff] %v421
          %452 = vst [vmem:[%s394 + $0x20] sm:$0xff] %v422
          %453 = vst [vmem:[%s394 + $0x28] sm:$0xff] %v423
          %454 = vst [vmem:[%s394 + $0x30] sm:$0xff] %v424
          %455 = vst [vmem:[%s394 + $0x38] sm:$0xff] %v425
          %456 = vst [vmem:[%s394 + $0x40] sm:$0xff] %v426
          %457 = vst [vmem:[%s394 + $0x48] sm:$0xff] %v427
          %458 = vst [vmem:[%s394 + $0x50] sm:$0xff] %v428
          %459 = vst [vmem:[%s394 + $0x58] sm:$0xff] %v429
          %460 = vst [vmem:[%s394 + $0x60] sm:$0xff] %v430
          %461 = vst [vmem:[%s394 + $0x68] sm:$0xff] %v431
          %462 = vst [vmem:[%s394 + $0x70] sm:$0xff] %v432
        $region72: #{tpu_custom_call.1} parent=43 // pred_fallthru
          _
        %v463 = vld [vmem:[#allocation2] sm:$0xff]
        %v464 = vld [vmem:[#allocation2 + $0x8] sm:$0xff]
        %v465 = vld [vmem:[#allocation2 + $0x10] sm:$0xff]
        %v466 = vld [vmem:[#allocation2 + $0x18] sm:$0xff]
        %v467 = vld [vmem:[#allocation2 + $0x20] sm:$0xff]
        %v468 = vld [vmem:[#allocation2 + $0x28] sm:$0xff]
        %v469 = vld [vmem:[#allocation2 + $0x30] sm:$0xff]
        %v470 = vld [vmem:[#allocation2 + $0x38] sm:$0xff]
        %v471 = vld [vmem:[#allocation2 + $0x40] sm:$0xff]
        %v472 = vld [vmem:[#allocation2 + $0x48] sm:$0xff]
        %v473 = vld [vmem:[#allocation2 + $0x50] sm:$0xff]
        %v474 = vld [vmem:[#allocation2 + $0x58] sm:$0xff]
        %v475 = vld [vmem:[#allocation2 + $0x60] sm:$0xff]
        %v476 = vld [vmem:[#allocation2 + $0x68] sm:$0xff]
        %v477 = vld [vmem:[#allocation2 + $0x70] sm:$0xff]
        %v478 = vpack.c.bf16 %v463, %v463
        %v479 = vpack.c.bf16 %v464, %v464
        %v480 = vpack.c.bf16 %v465, %v465
        %v481 = vpack.c.bf16 %v466, %v466
        %v482 = vpack.c.bf16 %v467, %v467
        %v483 = vpack.c.bf16 %v468, %v468
        %v484 = vpack.c.bf16 %v469, %v469
        %v485 = vpack.c.bf16 %v470, %v470
        %v486 = vpack.c.bf16 %v471, %v471
        %v487 = vpack.c.bf16 %v472, %v472
        %v488 = vpack.c.bf16 %v473, %v473
        %v489 = vpack.c.bf16 %v474, %v474
        %v490 = vpack.c.bf16 %v475, %v475
        %v491 = vpack.c.bf16 %v476, %v476
        %v492 = vpack.c.bf16 %v477, %v477
        %v493 = vld [vmem:[%s335] sm:$0xff]
        %v494 = vld [vmem:[%s335 + $0x8] sm:$0xff]
        %v495 = vld [vmem:[%s335 + $0x10] sm:$0xff]
        %v496 = vld [vmem:[%s335 + $0x18] sm:$0xff]
        %v497 = vld [vmem:[%s335 + $0x20] sm:$0xff]
        %v498 = vld [vmem:[%s335 + $0x28] sm:$0xff]
        %v499 = vld [vmem:[%s335 + $0x30] sm:$0xff]
        %v500 = vld [vmem:[%s335 + $0x38] sm:$0xf]
        %v501 = vld [vmem:[%s335 + $0x3c] sm:$0xff]
        %v502 = vld [vmem:[%s335 + $0x44] sm:$0xff]
        %v503 = vld [vmem:[%s335 + $0x4c] sm:$0xff]
        %v504 = vld [vmem:[%s335 + $0x54] sm:$0xff]
        %v505 = vld [vmem:[%s335 + $0x5c] sm:$0xff]
        %v506 = vld [vmem:[%s335 + $0x64] sm:$0xff]
        %v507 = vld [vmem:[%s335 + $0x6c] sm:$0xff]
        %v508 = vld [vmem:[%s335 + $0x74] sm:$0xf]
        %v509 = vld [vmem:[%s335 + $0x78] sm:$0xff]
        %v510 = vld [vmem:[%s335 + $0x80] sm:$0xff]
        %v511 = vld [vmem:[%s335 + $0x88] sm:$0xff]
        %v512 = vld [vmem:[%s335 + $0x90] sm:$0xff]
        %v513 = vld [vmem:[%s335 + $0x98] sm:$0xff]
        %v514 = vld [vmem:[%s335 + $0xa0] sm:$0xff]
        %v515 = vld [vmem:[%s335 + $0xa8] sm:$0xff]
        %v516 = vld [vmem:[%s335 + $0xb0] sm:$0xf]
        %v517 = vld [vmem:[%s335 + $0xb4] sm:$0xff]
        %v518 = vld [vmem:[%s335 + $0xbc] sm:$0xff]
        %v519 = vld [vmem:[%s335 + $0xc4] sm:$0xff]
        %v520 = vld [vmem:[%s335 + $0xcc] sm:$0xff]
        %v521 = vld [vmem:[%s335 + $0xd4] sm:$0xff]
        %v522 = vld [vmem:[%s335 + $0xdc] sm:$0xff]
        %v523 = vld [vmem:[%s335 + $0xe4] sm:$0xff]
        %v524 = vld [vmem:[%s335 + $0xec] sm:$0xf]
        %v525 = vld [vmem:[%s335 + $0xf0] sm:$0xff]
        %v526 = vld [vmem:[%s335 + $0xf8] sm:$0xff]
        %v527 = vld [vmem:[%s335 + $0x100] sm:$0xff]
        %v528 = vld [vmem:[%s335 + $0x108] sm:$0xff]
        %v529 = vld [vmem:[%s335 + $0x110] sm:$0xff]
        %v530 = vld [vmem:[%s335 + $0x118] sm:$0xff]
        %v531 = vld [vmem:[%s335 + $0x120] sm:$0xff]
        %v532 = vld [vmem:[%s335 + $0x128] sm:$0xf]
        %v533 = vld [vmem:[%s335 + $0x12c] sm:$0xff]
        %v534 = vld [vmem:[%s335 + $0x134] sm:$0xff]
        %v535 = vld [vmem:[%s335 + $0x13c] sm:$0xff]
        %v536 = vld [vmem:[%s335 + $0x144] sm:$0xff]
        %v537 = vld [vmem:[%s335 + $0x14c] sm:$0xff]
        %v538 = vld [vmem:[%s335 + $0x154] sm:$0xff]
        %v539 = vld [vmem:[%s335 + $0x15c] sm:$0xff]
        %v540 = vld [vmem:[%s335 + $0x164] sm:$0xf]
        %v541 = vld [vmem:[%s335 + $0x168] sm:$0xff]
        %v542 = vld [vmem:[%s335 + $0x170] sm:$0xff]
        %v543 = vld [vmem:[%s335 + $0x178] sm:$0xff]
        %v544 = vld [vmem:[%s335 + $0x180] sm:$0xff]
        %v545 = vld [vmem:[%s335 + $0x188] sm:$0xff]
        %v546 = vld [vmem:[%s335 + $0x190] sm:$0xff]
        %v547 = vld [vmem:[%s335 + $0x198] sm:$0xff]
        %v548 = vld [vmem:[%s335 + $0x1a0] sm:$0xf]
        %v549 = vld [vmem:[%s335 + $0x1a4] sm:$0xff]
        %v550 = vld [vmem:[%s335 + $0x1ac] sm:$0xff]
        %v551 = vld [vmem:[%s335 + $0x1b4] sm:$0xff]
        %v552 = vld [vmem:[%s335 + $0x1bc] sm:$0xff]
        %v553 = vld [vmem:[%s335 + $0x1c4] sm:$0xff]
        %v554 = vld [vmem:[%s335 + $0x1cc] sm:$0xff]
        %v555 = vld [vmem:[%s335 + $0x1d4] sm:$0xff]
        %v556 = vld [vmem:[%s335 + $0x1dc] sm:$0xf]
        %v557 = vld [vmem:[%s335 + $0x1e0] sm:$0xff]
        %v558 = vld [vmem:[%s335 + $0x1e8] sm:$0xff]
        %v559 = vld [vmem:[%s335 + $0x1f0] sm:$0xff]
        %v560 = vld [vmem:[%s335 + $0x1f8] sm:$0xff]
        %v561 = vld [vmem:[%s335 + $0x200] sm:$0xff]
        %v562 = vld [vmem:[%s335 + $0x208] sm:$0xff]
        %v563 = vld [vmem:[%s335 + $0x210] sm:$0xff]
        %v564 = vld [vmem:[%s335 + $0x218] sm:$0xf]
        %v565 = vld [vmem:[%s335 + $0x21c] sm:$0xff]
        %v566 = vld [vmem:[%s335 + $0x224] sm:$0xff]
        %v567 = vld [vmem:[%s335 + $0x22c] sm:$0xff]
        %v568 = vld [vmem:[%s335 + $0x234] sm:$0xff]
        %v569 = vld [vmem:[%s335 + $0x23c] sm:$0xff]
        %v570 = vld [vmem:[%s335 + $0x244] sm:$0xff]
        %v571 = vld [vmem:[%s335 + $0x24c] sm:$0xff]
        %v572 = vld [vmem:[%s335 + $0x254] sm:$0xf]
        %v573 = vld [vmem:[%s335 + $0x258] sm:$0xff]
        %v574 = vld [vmem:[%s335 + $0x260] sm:$0xff]
        %v575 = vld [vmem:[%s335 + $0x268] sm:$0xff]
        %v576 = vld [vmem:[%s335 + $0x270] sm:$0xff]
        %v577 = vld [vmem:[%s335 + $0x278] sm:$0xff]
        %v578 = vld [vmem:[%s335 + $0x280] sm:$0xff]
        %v579 = vld [vmem:[%s335 + $0x288] sm:$0xff]
        %v580 = vld [vmem:[%s335 + $0x290] sm:$0xf]
        %v581 = vld [vmem:[%s335 + $0x294] sm:$0xff]
        %v582 = vld [vmem:[%s335 + $0x29c] sm:$0xff]
        %v583 = vld [vmem:[%s335 + $0x2a4] sm:$0xff]
        %v584 = vld [vmem:[%s335 + $0x2ac] sm:$0xff]
        %v585 = vld [vmem:[%s335 + $0x2b4] sm:$0xff]
        %v586 = vld [vmem:[%s335 + $0x2bc] sm:$0xff]
        %v587 = vld [vmem:[%s335 + $0x2c4] sm:$0xff]
        %v588 = vld [vmem:[%s335 + $0x2cc] sm:$0xf]
        %v589 = vld [vmem:[%s335 + $0x2d0] sm:$0xff]
        %v590 = vld [vmem:[%s335 + $0x2d8] sm:$0xff]
        %v591 = vld [vmem:[%s335 + $0x2e0] sm:$0xff]
        %v592 = vld [vmem:[%s335 + $0x2e8] sm:$0xff]
        %v593 = vld [vmem:[%s335 + $0x2f0] sm:$0xff]
        %v594 = vld [vmem:[%s335 + $0x2f8] sm:$0xff]
        %v595 = vld [vmem:[%s335 + $0x300] sm:$0xff]
        %v596 = vld [vmem:[%s335 + $0x308] sm:$0xf]
        %v597 = vld [vmem:[%s335 + $0x30c] sm:$0xff]
        %v598 = vld [vmem:[%s335 + $0x314] sm:$0xff]
        %v599 = vld [vmem:[%s335 + $0x31c] sm:$0xff]
        %v600 = vld [vmem:[%s335 + $0x324] sm:$0xff]
        %v601 = vld [vmem:[%s335 + $0x32c] sm:$0xff]
        %v602 = vld [vmem:[%s335 + $0x334] sm:$0xff]
        %v603 = vld [vmem:[%s335 + $0x33c] sm:$0xff]
        %v604 = vld [vmem:[%s335 + $0x344] sm:$0xf]
        %v605 = vld [vmem:[%s335 + $0x348] sm:$0xff]
        %v606 = vld [vmem:[%s335 + $0x350] sm:$0xff]
        %v607 = vld [vmem:[%s335 + $0x358] sm:$0xff]
        %v608 = vld [vmem:[%s335 + $0x360] sm:$0xff]
        %v609 = vld [vmem:[%s335 + $0x368] sm:$0xff]
        %v610 = vld [vmem:[%s335 + $0x370] sm:$0xff]
        %v611 = vld [vmem:[%s335 + $0x378] sm:$0xff]
        %v612 = vld [vmem:[%s335 + $0x380] sm:$0xf]
        %v613 = vld [vmem:[%s335 + $0x384] sm:$0xff]
        %v614 = vld [vmem:[%s335 + $0x38c] sm:$0xff]
        %v615 = vld [vmem:[%s335 + $0x394] sm:$0xff]
        %v616 = vld [vmem:[%s335 + $0x39c] sm:$0xff]
        %v617 = vld [vmem:[%s335 + $0x3a4] sm:$0xff]
        %v618 = vld [vmem:[%s335 + $0x3ac] sm:$0xff]
        %v619 = vld [vmem:[%s335 + $0x3b4] sm:$0xff]
        %v620 = vld [vmem:[%s335 + $0x3bc] sm:$0xf]
        %v621 = vld [vmem:[%s335 + $0x3c0] sm:$0xff]
        %v622 = vld [vmem:[%s335 + $0x3c8] sm:$0xff]
        %v623 = vld [vmem:[%s335 + $0x3d0] sm:$0xff]
        %v624 = vld [vmem:[%s335 + $0x3d8] sm:$0xff]
        %v625 = vld [vmem:[%s335 + $0x3e0] sm:$0xff]
        %v626 = vld [vmem:[%s335 + $0x3e8] sm:$0xff]
        %v627 = vld [vmem:[%s335 + $0x3f0] sm:$0xff]
        %v628 = vld [vmem:[%s335 + $0x3f8] sm:$0xf]
        %v629 = vld [vmem:[%s335 + $0x3fc] sm:$0xff]
        %v630 = vld [vmem:[%s335 + $0x404] sm:$0xff]
        %v631 = vld [vmem:[%s335 + $0x40c] sm:$0xff]
        %v632 = vld [vmem:[%s335 + $0x414] sm:$0xff]
        %v633 = vld [vmem:[%s335 + $0x41c] sm:$0xff]
        %v634 = vld [vmem:[%s335 + $0x424] sm:$0xff]
        %v635 = vld [vmem:[%s335 + $0x42c] sm:$0xff]
        %v636 = vld [vmem:[%s335 + $0x434] sm:$0xf]
        %v637 = vld [vmem:[%s335 + $0x438] sm:$0xff]
        %v638 = vld [vmem:[%s335 + $0x440] sm:$0xff]
        %v639 = vld [vmem:[%s335 + $0x448] sm:$0xff]
        %v640 = vld [vmem:[%s335 + $0x450] sm:$0xff]
        %v641 = vld [vmem:[%s335 + $0x458] sm:$0xff]
        %v642 = vld [vmem:[%s335 + $0x460] sm:$0xff]
        %v643 = vld [vmem:[%s335 + $0x468] sm:$0xff]
        %v644 = vld [vmem:[%s335 + $0x470] sm:$0xf]
        %v645 = vld [vmem:[%s335 + $0x474] sm:$0xff]
        %v646 = vld [vmem:[%s335 + $0x47c] sm:$0xff]
        %v647 = vld [vmem:[%s335 + $0x484] sm:$0xff]
        %v648 = vld [vmem:[%s335 + $0x48c] sm:$0xff]
        %v649 = vld [vmem:[%s335 + $0x494] sm:$0xff]
        %v650 = vld [vmem:[%s335 + $0x49c] sm:$0xff]
        %v651 = vld [vmem:[%s335 + $0x4a4] sm:$0xff]
        %v652 = vld [vmem:[%s335 + $0x4ac] sm:$0xf]
        %v653 = vld [vmem:[%s335 + $0x4b0] sm:$0xff]
        %v654 = vld [vmem:[%s335 + $0x4b8] sm:$0xff]
        %v655 = vld [vmem:[%s335 + $0x4c0] sm:$0xff]
        %v656 = vld [vmem:[%s335 + $0x4c8] sm:$0xff]
        %v657 = vld [vmem:[%s335 + $0x4d0] sm:$0xff]
        %v658 = vld [vmem:[%s335 + $0x4d8] sm:$0xff]
        %v659 = vld [vmem:[%s335 + $0x4e0] sm:$0xff]
        %v660 = vld [vmem:[%s335 + $0x4e8] sm:$0xf]
        %v661 = vld [vmem:[%s335 + $0x4ec] sm:$0xff]
        %v662 = vld [vmem:[%s335 + $0x4f4] sm:$0xff]
        %v663 = vld [vmem:[%s335 + $0x4fc] sm:$0xff]
        %v664 = vld [vmem:[%s335 + $0x504] sm:$0xff]
        %v665 = vld [vmem:[%s335 + $0x50c] sm:$0xff]
        %v666 = vld [vmem:[%s335 + $0x514] sm:$0xff]
        %v667 = vld [vmem:[%s335 + $0x51c] sm:$0xff]
        %v668 = vld [vmem:[%s335 + $0x524] sm:$0xf]
        %v669 = vld [vmem:[%s335 + $0x528] sm:$0xff]
        %v670 = vld [vmem:[%s335 + $0x530] sm:$0xff]
        %v671 = vld [vmem:[%s335 + $0x538] sm:$0xff]
        %v672 = vld [vmem:[%s335 + $0x540] sm:$0xff]
        %v673 = vld [vmem:[%s335 + $0x548] sm:$0xff]
        %v674 = vld [vmem:[%s335 + $0x550] sm:$0xff]
        %v675 = vld [vmem:[%s335 + $0x558] sm:$0xff]
        %v676 = vld [vmem:[%s335 + $0x560] sm:$0xf]
        %v677 = vld [vmem:[%s335 + $0x564] sm:$0xff]
        %v678 = vld [vmem:[%s335 + $0x56c] sm:$0xff]
        %v679 = vld [vmem:[%s335 + $0x574] sm:$0xff]
        %v680 = vld [vmem:[%s335 + $0x57c] sm:$0xff]
        %v681 = vld [vmem:[%s335 + $0x584] sm:$0xff]
        %v682 = vld [vmem:[%s335 + $0x58c] sm:$0xff]
        %v683 = vld [vmem:[%s335 + $0x594] sm:$0xff]
        %v684 = vld [vmem:[%s335 + $0x59c] sm:$0xf]
        %v685 = vld [vmem:[%s335 + $0x5a0] sm:$0xff]
        %v686 = vld [vmem:[%s335 + $0x5a8] sm:$0xff]
        %v687 = vld [vmem:[%s335 + $0x5b0] sm:$0xff]
        %v688 = vld [vmem:[%s335 + $0x5b8] sm:$0xff]
        %v689 = vld [vmem:[%s335 + $0x5c0] sm:$0xff]
        %v690 = vld [vmem:[%s335 + $0x5c8] sm:$0xff]
        %v691 = vld [vmem:[%s335 + $0x5d0] sm:$0xff]
        %v692 = vld [vmem:[%s335 + $0x5d8] sm:$0xf]
        %v693 = vld [vmem:[%s335 + $0x5dc] sm:$0xff]
        %v694 = vld [vmem:[%s335 + $0x5e4] sm:$0xff]
        %v695 = vld [vmem:[%s335 + $0x5ec] sm:$0xff]
        %v696 = vld [vmem:[%s335 + $0x5f4] sm:$0xff]
        %v697 = vld [vmem:[%s335 + $0x5fc] sm:$0xff]
        %v698 = vld [vmem:[%s335 + $0x604] sm:$0xff]
        %v699 = vld [vmem:[%s335 + $0x60c] sm:$0xff]
        %v700 = vld [vmem:[%s335 + $0x614] sm:$0xf]
        %v701 = vld [vmem:[%s335 + $0x618] sm:$0xff]
        %v702 = vld [vmem:[%s335 + $0x620] sm:$0xff]
        %v703 = vld [vmem:[%s335 + $0x628] sm:$0xff]
        %v704 = vld [vmem:[%s335 + $0x630] sm:$0xff]
        %v705 = vld [vmem:[%s335 + $0x638] sm:$0xff]
        %v706 = vld [vmem:[%s335 + $0x640] sm:$0xff]
        %v707 = vld [vmem:[%s335 + $0x648] sm:$0xff]
        %v708 = vld [vmem:[%s335 + $0x650] sm:$0xf]
        %v709 = vld [vmem:[%s335 + $0x654] sm:$0xff]
        %v710 = vld [vmem:[%s335 + $0x65c] sm:$0xff]
        %v711 = vld [vmem:[%s335 + $0x664] sm:$0xff]
        %v712 = vld [vmem:[%s335 + $0x66c] sm:$0xff]
        %v713 = vld [vmem:[%s335 + $0x674] sm:$0xff]
        %v714 = vld [vmem:[%s335 + $0x67c] sm:$0xff]
        %v715 = vld [vmem:[%s335 + $0x684] sm:$0xff]
        %v716 = vld [vmem:[%s335 + $0x68c] sm:$0xf]
        %v717 = vld [vmem:[%s335 + $0x690] sm:$0xff]
        %v718 = vld [vmem:[%s335 + $0x698] sm:$0xff]
        %v719 = vld [vmem:[%s335 + $0x6a0] sm:$0xff]
        %v720 = vld [vmem:[%s335 + $0x6a8] sm:$0xff]
        %v721 = vld [vmem:[%s335 + $0x6b0] sm:$0xff]
        %v722 = vld [vmem:[%s335 + $0x6b8] sm:$0xff]
        %v723 = vld [vmem:[%s335 + $0x6c0] sm:$0xff]
        %v724 = vld [vmem:[%s335 + $0x6c8] sm:$0xf]
        %v725 = vld [vmem:[%s335 + $0x6cc] sm:$0xff]
        %v726 = vld [vmem:[%s335 + $0x6d4] sm:$0xff]
        %v727 = vld [vmem:[%s335 + $0x6dc] sm:$0xff]
        %v728 = vld [vmem:[%s335 + $0x6e4] sm:$0xff]
        %v729 = vld [vmem:[%s335 + $0x6ec] sm:$0xff]
        %v730 = vld [vmem:[%s335 + $0x6f4] sm:$0xff]
        %v731 = vld [vmem:[%s335 + $0x6fc] sm:$0xff]
        %v732 = vld [vmem:[%s335 + $0x704] sm:$0xf]
        %v733 = vld [vmem:[%s335 + $0x708] sm:$0xff]
        %v734 = vld [vmem:[%s335 + $0x710] sm:$0xff]
        %v735 = vld [vmem:[%s335 + $0x718] sm:$0xff]
        %v736 = vld [vmem:[%s335 + $0x720] sm:$0xff]
        %v737 = vld [vmem:[%s335 + $0x728] sm:$0xff]
        %v738 = vld [vmem:[%s335 + $0x730] sm:$0xff]
        %v739 = vld [vmem:[%s335 + $0x738] sm:$0xff]
        %v740 = vld [vmem:[%s335 + $0x740] sm:$0xf]
        %v741 = vld [vmem:[%s335 + $0x744] sm:$0xff]
        %v742 = vld [vmem:[%s335 + $0x74c] sm:$0xff]
        %v743 = vld [vmem:[%s335 + $0x754] sm:$0xff]
        %v744 = vld [vmem:[%s335 + $0x75c] sm:$0xff]
        %v745 = vld [vmem:[%s335 + $0x764] sm:$0xff]
        %v746 = vld [vmem:[%s335 + $0x76c] sm:$0xff]
        %v747 = vld [vmem:[%s335 + $0x774] sm:$0xff]
        %v748 = vld [vmem:[%s335 + $0x77c] sm:$0xf]
        %v749 = vld [vmem:[%s335 + $0x780] sm:$0xff]
        %v750 = vld [vmem:[%s335 + $0x788] sm:$0xff]
        %v751 = vld [vmem:[%s335 + $0x790] sm:$0xff]
        %v752 = vld [vmem:[%s335 + $0x798] sm:$0xff]
        %v753 = vld [vmem:[%s335 + $0x7a0] sm:$0xff]
        %v754 = vld [vmem:[%s335 + $0x7a8] sm:$0xff]
        %v755 = vld [vmem:[%s335 + $0x7b0] sm:$0xff]
        %v756 = vld [vmem:[%s335 + $0x7b8] sm:$0xf]
        %v757 = vld [vmem:[%s335 + $0x7bc] sm:$0xff]
        %v758 = vld [vmem:[%s335 + $0x7c4] sm:$0xff]
        %v759 = vld [vmem:[%s335 + $0x7cc] sm:$0xff]
        %v760 = vld [vmem:[%s335 + $0x7d4] sm:$0xff]
        %v761 = vld [vmem:[%s335 + $0x7dc] sm:$0xff]
        %v762 = vld [vmem:[%s335 + $0x7e4] sm:$0xff]
        %v763 = vld [vmem:[%s335 + $0x7ec] sm:$0xff]
        %v764 = vld [vmem:[%s335 + $0x7f4] sm:$0xf]
        %v765 = vld [vmem:[%s335 + $0x7f8] sm:$0xff]
        %v766 = vld [vmem:[%s335 + $0x800] sm:$0xff]
        %v767 = vld [vmem:[%s335 + $0x808] sm:$0xff]
        %v768 = vld [vmem:[%s335 + $0x810] sm:$0xff]
        %v769 = vld [vmem:[%s335 + $0x818] sm:$0xff]
        %v770 = vld [vmem:[%s335 + $0x820] sm:$0xff]
        %v771 = vld [vmem:[%s335 + $0x828] sm:$0xff]
        %v772 = vld [vmem:[%s335 + $0x830] sm:$0xf]
        %v773 = vld [vmem:[%s335 + $0x834] sm:$0xff]
        %v774 = vld [vmem:[%s335 + $0x83c] sm:$0xff]
        %v775 = vld [vmem:[%s335 + $0x844] sm:$0xff]
        %v776 = vld [vmem:[%s335 + $0x84c] sm:$0xff]
        %v777 = vld [vmem:[%s335 + $0x854] sm:$0xff]
        %v778 = vld [vmem:[%s335 + $0x85c] sm:$0xff]
        %v779 = vld [vmem:[%s335 + $0x864] sm:$0xff]
        %v780 = vld [vmem:[%s335 + $0x86c] sm:$0xf]
        %v781 = vld [vmem:[%s335 + $0x870] sm:$0xff]
        %v782 = vld [vmem:[%s335 + $0x878] sm:$0xff]
        %v783 = vld [vmem:[%s335 + $0x880] sm:$0xff]
        %v784 = vld [vmem:[%s335 + $0x888] sm:$0xff]
        %v785 = vld [vmem:[%s335 + $0x890] sm:$0xff]
        %v786 = vld [vmem:[%s335 + $0x898] sm:$0xff]
        %v787 = vld [vmem:[%s335 + $0x8a0] sm:$0xff]
        %v788 = vld [vmem:[%s335 + $0x8a8] sm:$0xf]
        %v789 = vld [vmem:[%s335 + $0x8ac] sm:$0xff]
        %v790 = vld [vmem:[%s335 + $0x8b4] sm:$0xff]
        %v791 = vld [vmem:[%s335 + $0x8bc] sm:$0xff]
        %v792 = vld [vmem:[%s335 + $0x8c4] sm:$0xff]
        %v793 = vld [vmem:[%s335 + $0x8cc] sm:$0xff]
        %v794 = vld [vmem:[%s335 + $0x8d4] sm:$0xff]
        %v795 = vld [vmem:[%s335 + $0x8dc] sm:$0xff]
        %v796 = vld [vmem:[%s335 + $0x8e4] sm:$0xf]
        %v797 = vld [vmem:[%s335 + $0x8e8] sm:$0xff]
        %v798 = vld [vmem:[%s335 + $0x8f0] sm:$0xff]
        %v799 = vld [vmem:[%s335 + $0x8f8] sm:$0xff]
        %v800 = vld [vmem:[%s335 + $0x900] sm:$0xff]
        %v801 = vld [vmem:[%s335 + $0x908] sm:$0xff]
        %v802 = vld [vmem:[%s335 + $0x910] sm:$0xff]
        %v803 = vld [vmem:[%s335 + $0x918] sm:$0xff]
        %v804 = vld [vmem:[%s335 + $0x920] sm:$0xf]
        %v805 = vld [vmem:[%s335 + $0x924] sm:$0xff]
        %v806 = vld [vmem:[%s335 + $0x92c] sm:$0xff]
        %v807 = vld [vmem:[%s335 + $0x934] sm:$0xff]
        %v808 = vld [vmem:[%s335 + $0x93c] sm:$0xff]
        %v809 = vld [vmem:[%s335 + $0x944] sm:$0xff]
        %v810 = vld [vmem:[%s335 + $0x94c] sm:$0xff]
        %v811 = vld [vmem:[%s335 + $0x954] sm:$0xff]
        %v812 = vld [vmem:[%s335 + $0x95c] sm:$0xf]
        %v813 = vld [vmem:[%s335 + $0x960] sm:$0xff]
        %v814 = vld [vmem:[%s335 + $0x968] sm:$0xff]
        %v815 = vld [vmem:[%s335 + $0x970] sm:$0xff]
        %v816 = vld [vmem:[%s335 + $0x978] sm:$0xff]
        %v817 = vld [vmem:[%s335 + $0x980] sm:$0xff]
        %v818 = vld [vmem:[%s335 + $0x988] sm:$0xff]
        %v819 = vld [vmem:[%s335 + $0x990] sm:$0xff]
        %v820 = vld [vmem:[%s335 + $0x998] sm:$0xf]
        %v821 = vld [vmem:[%s335 + $0x99c] sm:$0xff]
        %v822 = vld [vmem:[%s335 + $0x9a4] sm:$0xff]
        %v823 = vld [vmem:[%s335 + $0x9ac] sm:$0xff]
        %v824 = vld [vmem:[%s335 + $0x9b4] sm:$0xff]
        %v825 = vld [vmem:[%s335 + $0x9bc] sm:$0xff]
        %v826 = vld [vmem:[%s335 + $0x9c4] sm:$0xff]
        %v827 = vld [vmem:[%s335 + $0x9cc] sm:$0xff]
        %v828 = vld [vmem:[%s335 + $0x9d4] sm:$0xf]
        %v829 = vld [vmem:[%s335 + $0x9d8] sm:$0xff]
        %v830 = vld [vmem:[%s335 + $0x9e0] sm:$0xff]
        %v831 = vld [vmem:[%s335 + $0x9e8] sm:$0xff]
        %v832 = vld [vmem:[%s335 + $0x9f0] sm:$0xff]
        %v833 = vld [vmem:[%s335 + $0x9f8] sm:$0xff]
        %v834 = vld [vmem:[%s335 + $0xa00] sm:$0xff]
        %v835 = vld [vmem:[%s335 + $0xa08] sm:$0xff]
        %v836 = vld [vmem:[%s335 + $0xa10] sm:$0xf]
        %v837 = vld [vmem:[%s335 + $0xa14] sm:$0xff]
        %v838 = vld [vmem:[%s335 + $0xa1c] sm:$0xff]
        %v839 = vld [vmem:[%s335 + $0xa24] sm:$0xff]
        %v840 = vld [vmem:[%s335 + $0xa2c] sm:$0xff]
        %v841 = vld [vmem:[%s335 + $0xa34] sm:$0xff]
        %v842 = vld [vmem:[%s335 + $0xa3c] sm:$0xff]
        %v843 = vld [vmem:[%s335 + $0xa44] sm:$0xff]
        %v844 = vld [vmem:[%s335 + $0xa4c] sm:$0xf]
        %v845 = vld [vmem:[%s335 + $0xa50] sm:$0xff]
        %v846 = vld [vmem:[%s335 + $0xa58] sm:$0xff]
        %v847 = vld [vmem:[%s335 + $0xa60] sm:$0xff]
        %v848 = vld [vmem:[%s335 + $0xa68] sm:$0xff]
        %v849 = vld [vmem:[%s335 + $0xa70] sm:$0xff]
        %v850 = vld [vmem:[%s335 + $0xa78] sm:$0xff]
        %v851 = vld [vmem:[%s335 + $0xa80] sm:$0xff]
        %v852 = vld [vmem:[%s335 + $0xa88] sm:$0xf]
        %v853 = vld [vmem:[%s335 + $0xa8c] sm:$0xff]
        %v854 = vld [vmem:[%s335 + $0xa94] sm:$0xff]
        %v855 = vld [vmem:[%s335 + $0xa9c] sm:$0xff]
        %v856 = vld [vmem:[%s335 + $0xaa4] sm:$0xff]
        %v857 = vld [vmem:[%s335 + $0xaac] sm:$0xff]
        %v858 = vld [vmem:[%s335 + $0xab4] sm:$0xff]
        %v859 = vld [vmem:[%s335 + $0xabc] sm:$0xff]
        %v860 = vld [vmem:[%s335 + $0xac4] sm:$0xf]
        %v861 = vld [vmem:[%s335 + $0xac8] sm:$0xff]
        %v862 = vld [vmem:[%s335 + $0xad0] sm:$0xff]
        %v863 = vld [vmem:[%s335 + $0xad8] sm:$0xff]
        %v864 = vld [vmem:[%s335 + $0xae0] sm:$0xff]
        %v865 = vld [vmem:[%s335 + $0xae8] sm:$0xff]
        %v866 = vld [vmem:[%s335 + $0xaf0] sm:$0xff]
        %v867 = vld [vmem:[%s335 + $0xaf8] sm:$0xff]
        %v868 = vld [vmem:[%s335 + $0xb00] sm:$0xf]
        %v869 = vld [vmem:[%s335 + $0xb04] sm:$0xff]
        %v870 = vld [vmem:[%s335 + $0xb0c] sm:$0xff]
        %v871 = vld [vmem:[%s335 + $0xb14] sm:$0xff]
        %v872 = vld [vmem:[%s335 + $0xb1c] sm:$0xff]
        %v873 = vld [vmem:[%s335 + $0xb24] sm:$0xff]
        %v874 = vld [vmem:[%s335 + $0xb2c] sm:$0xff]
        %v875 = vld [vmem:[%s335 + $0xb34] sm:$0xff]
        %v876 = vld [vmem:[%s335 + $0xb3c] sm:$0xf]
        %v877 = vld [vmem:[%s335 + $0xb40] sm:$0xff]
        %v878 = vld [vmem:[%s335 + $0xb48] sm:$0xff]
        %v879 = vld [vmem:[%s335 + $0xb50] sm:$0xff]
        %v880 = vld [vmem:[%s335 + $0xb58] sm:$0xff]
        %v881 = vld [vmem:[%s335 + $0xb60] sm:$0xff]
        %v882 = vld [vmem:[%s335 + $0xb68] sm:$0xff]
        %v883 = vld [vmem:[%s335 + $0xb70] sm:$0xff]
        %v884 = vld [vmem:[%s335 + $0xb78] sm:$0xf]
        %v885 = vld [vmem:[%s335 + $0xb7c] sm:$0xff]
        %v886 = vld [vmem:[%s335 + $0xb84] sm:$0xff]
        %v887 = vld [vmem:[%s335 + $0xb8c] sm:$0xff]
        %v888 = vld [vmem:[%s335 + $0xb94] sm:$0xff]
        %v889 = vld [vmem:[%s335 + $0xb9c] sm:$0xff]
        %v890 = vld [vmem:[%s335 + $0xba4] sm:$0xff]
        %v891 = vld [vmem:[%s335 + $0xbac] sm:$0xff]
        %v892 = vld [vmem:[%s335 + $0xbb4] sm:$0xf]
        %v893 = vld [vmem:[%s335 + $0xbb8] sm:$0xff]
        %v894 = vld [vmem:[%s335 + $0xbc0] sm:$0xff]
        %v895 = vld [vmem:[%s335 + $0xbc8] sm:$0xff]
        %v896 = vld [vmem:[%s335 + $0xbd0] sm:$0xff]
        %v897 = vld [vmem:[%s335 + $0xbd8] sm:$0xff]
        %v898 = vld [vmem:[%s335 + $0xbe0] sm:$0xff]
        %v899 = vld [vmem:[%s335 + $0xbe8] sm:$0xff]
        %v900 = vld [vmem:[%s335 + $0xbf0] sm:$0xf]
        %v901 = vld [vmem:[%s335 + $0xbf4] sm:$0xff]
        %v902 = vld [vmem:[%s335 + $0xbfc] sm:$0xff]
        %v903 = vld [vmem:[%s335 + $0xc04] sm:$0xff]
        %v904 = vld [vmem:[%s335 + $0xc0c] sm:$0xff]
        %v905 = vld [vmem:[%s335 + $0xc14] sm:$0xff]
        %v906 = vld [vmem:[%s335 + $0xc1c] sm:$0xff]
        %v907 = vld [vmem:[%s335 + $0xc24] sm:$0xff]
        %v908 = vld [vmem:[%s335 + $0xc2c] sm:$0xf]
        %v909 = vld [vmem:[%s335 + $0xc30] sm:$0xff]
        %v910 = vld [vmem:[%s335 + $0xc38] sm:$0xff]
        %v911 = vld [vmem:[%s335 + $0xc40] sm:$0xff]
        %v912 = vld [vmem:[%s335 + $0xc48] sm:$0xff]
        %v913 = vld [vmem:[%s335 + $0xc50] sm:$0xff]
        %v914 = vld [vmem:[%s335 + $0xc58] sm:$0xff]
        %v915 = vld [vmem:[%s335 + $0xc60] sm:$0xff]
        %v916 = vld [vmem:[%s335 + $0xc68] sm:$0xf]
        %v917 = vld [vmem:[%s335 + $0xc6c] sm:$0xff]
        %v918 = vld [vmem:[%s335 + $0xc74] sm:$0xff]
        %v919 = vld [vmem:[%s335 + $0xc7c] sm:$0xff]
        %v920 = vld [vmem:[%s335 + $0xc84] sm:$0xff]
        %v921 = vld [vmem:[%s335 + $0xc8c] sm:$0xff]
        %v922 = vld [vmem:[%s335 + $0xc94] sm:$0xff]
        %v923 = vld [vmem:[%s335 + $0xc9c] sm:$0xff]
        %v924 = vld [vmem:[%s335 + $0xca4] sm:$0xf]
        %v925 = vld [vmem:[%s335 + $0xca8] sm:$0xff]
        %v926 = vld [vmem:[%s335 + $0xcb0] sm:$0xff]
        %v927 = vld [vmem:[%s335 + $0xcb8] sm:$0xff]
        %v928 = vld [vmem:[%s335 + $0xcc0] sm:$0xff]
        %v929 = vld [vmem:[%s335 + $0xcc8] sm:$0xff]
        %v930 = vld [vmem:[%s335 + $0xcd0] sm:$0xff]
        %v931 = vld [vmem:[%s335 + $0xcd8] sm:$0xff]
        %v932 = vld [vmem:[%s335 + $0xce0] sm:$0xf]
        %v933 = vld [vmem:[%s335 + $0xce4] sm:$0xff]
        %v934 = vld [vmem:[%s335 + $0xcec] sm:$0xff]
        %v935 = vld [vmem:[%s335 + $0xcf4] sm:$0xff]
        %v936 = vld [vmem:[%s335 + $0xcfc] sm:$0xff]
        %v937 = vld [vmem:[%s335 + $0xd04] sm:$0xff]
        %v938 = vld [vmem:[%s335 + $0xd0c] sm:$0xff]
        %v939 = vld [vmem:[%s335 + $0xd14] sm:$0xff]
        %v940 = vld [vmem:[%s335 + $0xd1c] sm:$0xf]
        %v941 = vld [vmem:[%s335 + $0xd20] sm:$0xff]
        %v942 = vld [vmem:[%s335 + $0xd28] sm:$0xff]
        %v943 = vld [vmem:[%s335 + $0xd30] sm:$0xff]
        %v944 = vld [vmem:[%s335 + $0xd38] sm:$0xff]
        %v945 = vld [vmem:[%s335 + $0xd40] sm:$0xff]
        %v946 = vld [vmem:[%s335 + $0xd48] sm:$0xff]
        %v947 = vld [vmem:[%s335 + $0xd50] sm:$0xff]
        %v948 = vld [vmem:[%s335 + $0xd58] sm:$0xf]
        %v949 = vld [vmem:[%s335 + $0xd5c] sm:$0xff]
        %v950 = vld [vmem:[%s335 + $0xd64] sm:$0xff]
        %v951 = vld [vmem:[%s335 + $0xd6c] sm:$0xff]
        %v952 = vld [vmem:[%s335 + $0xd74] sm:$0xff]
        %v953 = vld [vmem:[%s335 + $0xd7c] sm:$0xff]
        %v954 = vld [vmem:[%s335 + $0xd84] sm:$0xff]
        %v955 = vld [vmem:[%s335 + $0xd8c] sm:$0xff]
        %v956 = vld [vmem:[%s335 + $0xd94] sm:$0xf]
        %v957 = vld [vmem:[%s335 + $0xd98] sm:$0xff]
        %v958 = vld [vmem:[%s335 + $0xda0] sm:$0xff]
        %v959 = vld [vmem:[%s335 + $0xda8] sm:$0xff]
        %v960 = vld [vmem:[%s335 + $0xdb0] sm:$0xff]
        %v961 = vld [vmem:[%s335 + $0xdb8] sm:$0xff]
        %v962 = vld [vmem:[%s335 + $0xdc0] sm:$0xff]
        %v963 = vld [vmem:[%s335 + $0xdc8] sm:$0xff]
        %v964 = vld [vmem:[%s335 + $0xdd0] sm:$0xf]
        %v965 = vld [vmem:[%s335 + $0xdd4] sm:$0xff]
        %v966 = vld [vmem:[%s335 + $0xddc] sm:$0xff]
        %v967 = vld [vmem:[%s335 + $0xde4] sm:$0xff]
        %v968 = vld [vmem:[%s335 + $0xdec] sm:$0xff]
        %v969 = vld [vmem:[%s335 + $0xdf4] sm:$0xff]
        %v970 = vld [vmem:[%s335 + $0xdfc] sm:$0xff]
        %v971 = vld [vmem:[%s335 + $0xe04] sm:$0xff]
        %v972 = vld [vmem:[%s335 + $0xe0c] sm:$0xf]
        %v1453 = vunpack.c.l.b16 %v493
        %v1454 = vunpack.c.h.b16 %v493
        %v1455 = vunpack.c.l.b16 %v494
        %v1456 = vunpack.c.h.b16 %v494
        %v1457 = vunpack.c.l.b16 %v495
        %v1458 = vunpack.c.h.b16 %v495
        %v1459 = vunpack.c.l.b16 %v496
        %v1460 = vunpack.c.h.b16 %v496
        %v1461 = vunpack.c.l.b16 %v497
        %v1462 = vunpack.c.h.b16 %v497
        %v1463 = vunpack.c.l.b16 %v498
        %v1464 = vunpack.c.h.b16 %v498
        %v1465 = vunpack.c.l.b16 %v499
        %v1466 = vunpack.c.h.b16 %v499
        %v1467 = vunpack.c.l.b16 %v500
        %v1468 = vunpack.c.l.b16 %v501
        %v1469 = vunpack.c.h.b16 %v501
        %v1470 = vunpack.c.l.b16 %v502
        %v1471 = vunpack.c.h.b16 %v502
        %v1472 = vunpack.c.l.b16 %v503
        %v1473 = vunpack.c.h.b16 %v503
        %v1474 = vunpack.c.l.b16 %v504
        %v1475 = vunpack.c.h.b16 %v504
        %v1476 = vunpack.c.l.b16 %v505
        %v1477 = vunpack.c.h.b16 %v505
        %v1478 = vunpack.c.l.b16 %v506
        %v1479 = vunpack.c.h.b16 %v506
        %v1480 = vunpack.c.l.b16 %v507
        %v1481 = vunpack.c.h.b16 %v507
        %v1482 = vunpack.c.l.b16 %v508
        %v1483 = vunpack.c.l.b16 %v509
        %v1484 = vunpack.c.h.b16 %v509
        %v1485 = vunpack.c.l.b16 %v510
        %v1486 = vunpack.c.h.b16 %v510
        %v1487 = vunpack.c.l.b16 %v511
        %v1488 = vunpack.c.h.b16 %v511
        %v1489 = vunpack.c.l.b16 %v512
        %v1490 = vunpack.c.h.b16 %v512
        %v1491 = vunpack.c.l.b16 %v513
        %v1492 = vunpack.c.h.b16 %v513
        %v1493 = vunpack.c.l.b16 %v514
        %v1494 = vunpack.c.h.b16 %v514
        %v1495 = vunpack.c.l.b16 %v515
        %v1496 = vunpack.c.h.b16 %v515
        %v1497 = vunpack.c.l.b16 %v516
        %v1498 = vunpack.c.l.b16 %v517
        %v1499 = vunpack.c.h.b16 %v517
        %v1500 = vunpack.c.l.b16 %v518
        %v1501 = vunpack.c.h.b16 %v518
        %v1502 = vunpack.c.l.b16 %v519
        %v1503 = vunpack.c.h.b16 %v519
        %v1504 = vunpack.c.l.b16 %v520
        %v1505 = vunpack.c.h.b16 %v520
        %v1506 = vunpack.c.l.b16 %v521
        %v1507 = vunpack.c.h.b16 %v521
        %v1508 = vunpack.c.l.b16 %v522
        %v1509 = vunpack.c.h.b16 %v522
        %v1510 = vunpack.c.l.b16 %v523
        %v1511 = vunpack.c.h.b16 %v523
        %v1512 = vunpack.c.l.b16 %v524
        %v1513 = vunpack.c.l.b16 %v525
        %v1514 = vunpack.c.h.b16 %v525
        %v1515 = vunpack.c.l.b16 %v526
        %v1516 = vunpack.c.h.b16 %v526
        %v1517 = vunpack.c.l.b16 %v527
        %v1518 = vunpack.c.h.b16 %v527
        %v1519 = vunpack.c.l.b16 %v528
        %v1520 = vunpack.c.h.b16 %v528
        %v1521 = vunpack.c.l.b16 %v529
        %v1522 = vunpack.c.h.b16 %v529
        %v1523 = vunpack.c.l.b16 %v530
        %v1524 = vunpack.c.h.b16 %v530
        %v1525 = vunpack.c.l.b16 %v531
        %v1526 = vunpack.c.h.b16 %v531
        %v1527 = vunpack.c.l.b16 %v532
        %v1528 = vunpack.c.l.b16 %v533
        %v1529 = vunpack.c.h.b16 %v533
        %v1530 = vunpack.c.l.b16 %v534
        %v1531 = vunpack.c.h.b16 %v534
        %v1532 = vunpack.c.l.b16 %v535
        %v1533 = vunpack.c.h.b16 %v535
        %v1534 = vunpack.c.l.b16 %v536
        %v1535 = vunpack.c.h.b16 %v536
        %v1536 = vunpack.c.l.b16 %v537
        %v1537 = vunpack.c.h.b16 %v537
        %v1538 = vunpack.c.l.b16 %v538
        %v1539 = vunpack.c.h.b16 %v538
        %v1540 = vunpack.c.l.b16 %v539
        %v1541 = vunpack.c.h.b16 %v539
        %v1542 = vunpack.c.l.b16 %v540
        %v1543 = vunpack.c.l.b16 %v541
        %v1544 = vunpack.c.h.b16 %v541
        %v1545 = vunpack.c.l.b16 %v542
        %v1546 = vunpack.c.h.b16 %v542
        %v1547 = vunpack.c.l.b16 %v543
        %v1548 = vunpack.c.h.b16 %v543
        %v1549 = vunpack.c.l.b16 %v544
        %v1550 = vunpack.c.h.b16 %v544
        %v1551 = vunpack.c.l.b16 %v545
        %v1552 = vunpack.c.h.b16 %v545
        %v1553 = vunpack.c.l.b16 %v546
        %v1554 = vunpack.c.h.b16 %v546
        %v1555 = vunpack.c.l.b16 %v547
        %v1556 = vunpack.c.h.b16 %v547
        %v1557 = vunpack.c.l.b16 %v548
        %v1558 = vunpack.c.l.b16 %v549
        %v1559 = vunpack.c.h.b16 %v549
        %v1560 = vunpack.c.l.b16 %v550
        %v1561 = vunpack.c.h.b16 %v550
        %v1562 = vunpack.c.l.b16 %v551
        %v1563 = vunpack.c.h.b16 %v551
        %v1564 = vunpack.c.l.b16 %v552
        %v1565 = vunpack.c.h.b16 %v552
        %v1566 = vunpack.c.l.b16 %v553
        %v1567 = vunpack.c.h.b16 %v553
        %v1568 = vunpack.c.l.b16 %v554
        %v1569 = vunpack.c.h.b16 %v554
        %v1570 = vunpack.c.l.b16 %v555
        %v1571 = vunpack.c.h.b16 %v555
        %v1572 = vunpack.c.l.b16 %v556
        %v1573 = vunpack.c.l.b16 %v557
        %v1574 = vunpack.c.h.b16 %v557
        %v1575 = vunpack.c.l.b16 %v558
        %v1576 = vunpack.c.h.b16 %v558
        %v1577 = vunpack.c.l.b16 %v559
        %v1578 = vunpack.c.h.b16 %v559
        %v1579 = vunpack.c.l.b16 %v560
        %v1580 = vunpack.c.h.b16 %v560
        %v1581 = vunpack.c.l.b16 %v561
        %v1582 = vunpack.c.h.b16 %v561
        %v1583 = vunpack.c.l.b16 %v562
        %v1584 = vunpack.c.h.b16 %v562
        %v1585 = vunpack.c.l.b16 %v563
        %v1586 = vunpack.c.h.b16 %v563
        %v1587 = vunpack.c.l.b16 %v564
        %v1588 = vunpack.c.l.b16 %v565
        %v1589 = vunpack.c.h.b16 %v565
        %v1590 = vunpack.c.l.b16 %v566
        %v1591 = vunpack.c.h.b16 %v566
        %v1592 = vunpack.c.l.b16 %v567
        %v1593 = vunpack.c.h.b16 %v567
        %v1594 = vunpack.c.l.b16 %v568
        %v1595 = vunpack.c.h.b16 %v568
        %v1596 = vunpack.c.l.b16 %v569
        %v1597 = vunpack.c.h.b16 %v569
        %v1598 = vunpack.c.l.b16 %v570
        %v1599 = vunpack.c.h.b16 %v570
        %v1600 = vunpack.c.l.b16 %v571
        %v1601 = vunpack.c.h.b16 %v571
        %v1602 = vunpack.c.l.b16 %v572
        %v1603 = vunpack.c.l.b16 %v573
        %v1604 = vunpack.c.h.b16 %v573
        %v1605 = vunpack.c.l.b16 %v574
        %v1606 = vunpack.c.h.b16 %v574
        %v1607 = vunpack.c.l.b16 %v575
        %v1608 = vunpack.c.h.b16 %v575
        %v1609 = vunpack.c.l.b16 %v576
        %v1610 = vunpack.c.h.b16 %v576
        %v1611 = vunpack.c.l.b16 %v577
        %v1612 = vunpack.c.h.b16 %v577
        %v1613 = vunpack.c.l.b16 %v578
        %v1614 = vunpack.c.h.b16 %v578
        %v1615 = vunpack.c.l.b16 %v579
        %v1616 = vunpack.c.h.b16 %v579
        %v1617 = vunpack.c.l.b16 %v580
        %v1618 = vunpack.c.l.b16 %v581
        %v1619 = vunpack.c.h.b16 %v581
        %v1620 = vunpack.c.l.b16 %v582
        %v1621 = vunpack.c.h.b16 %v582
        %v1622 = vunpack.c.l.b16 %v583
        %v1623 = vunpack.c.h.b16 %v583
        %v1624 = vunpack.c.l.b16 %v584
        %v1625 = vunpack.c.h.b16 %v584
        %v1626 = vunpack.c.l.b16 %v585
        %v1627 = vunpack.c.h.b16 %v585
        %v1628 = vunpack.c.l.b16 %v586
        %v1629 = vunpack.c.h.b16 %v586
        %v1630 = vunpack.c.l.b16 %v587
        %v1631 = vunpack.c.h.b16 %v587
        %v1632 = vunpack.c.l.b16 %v588
        %v1633 = vunpack.c.l.b16 %v589
        %v1634 = vunpack.c.h.b16 %v589
        %v1635 = vunpack.c.l.b16 %v590
        %v1636 = vunpack.c.h.b16 %v590
        %v1637 = vunpack.c.l.b16 %v591
        %v1638 = vunpack.c.h.b16 %v591
        %v1639 = vunpack.c.l.b16 %v592
        %v1640 = vunpack.c.h.b16 %v592
        %v1641 = vunpack.c.l.b16 %v593
        %v1642 = vunpack.c.h.b16 %v593
        %v1643 = vunpack.c.l.b16 %v594
        %v1644 = vunpack.c.h.b16 %v594
        %v1645 = vunpack.c.l.b16 %v595
        %v1646 = vunpack.c.h.b16 %v595
        %v1647 = vunpack.c.l.b16 %v596
        %v1648 = vunpack.c.l.b16 %v597
        %v1649 = vunpack.c.h.b16 %v597
        %v1650 = vunpack.c.l.b16 %v598
        %v1651 = vunpack.c.h.b16 %v598
        %v1652 = vunpack.c.l.b16 %v599
        %v1653 = vunpack.c.h.b16 %v599
        %v1654 = vunpack.c.l.b16 %v600
        %v1655 = vunpack.c.h.b16 %v600
        %v1656 = vunpack.c.l.b16 %v601
        %v1657 = vunpack.c.h.b16 %v601
        %v1658 = vunpack.c.l.b16 %v602
        %v1659 = vunpack.c.h.b16 %v602
        %v1660 = vunpack.c.l.b16 %v603
        %v1661 = vunpack.c.h.b16 %v603
        %v1662 = vunpack.c.l.b16 %v604
        %v1663 = vunpack.c.l.b16 %v605
        %v1664 = vunpack.c.h.b16 %v605
        %v1665 = vunpack.c.l.b16 %v606
        %v1666 = vunpack.c.h.b16 %v606
        %v1667 = vunpack.c.l.b16 %v607
        %v1668 = vunpack.c.h.b16 %v607
        %v1669 = vunpack.c.l.b16 %v608
        %v1670 = vunpack.c.h.b16 %v608
        %v1671 = vunpack.c.l.b16 %v609
        %v1672 = vunpack.c.h.b16 %v609
        %v1673 = vunpack.c.l.b16 %v610
        %v1674 = vunpack.c.h.b16 %v610
        %v1675 = vunpack.c.l.b16 %v611
        %v1676 = vunpack.c.h.b16 %v611
        %v1677 = vunpack.c.l.b16 %v612
        %v1678 = vunpack.c.l.b16 %v613
        %v1679 = vunpack.c.h.b16 %v613
        %v1680 = vunpack.c.l.b16 %v614
        %v1681 = vunpack.c.h.b16 %v614
        %v1682 = vunpack.c.l.b16 %v615
        %v1683 = vunpack.c.h.b16 %v615
        %v1684 = vunpack.c.l.b16 %v616
        %v1685 = vunpack.c.h.b16 %v616
        %v1686 = vunpack.c.l.b16 %v617
        %v1687 = vunpack.c.h.b16 %v617
        %v1688 = vunpack.c.l.b16 %v618
        %v1689 = vunpack.c.h.b16 %v618
        %v1690 = vunpack.c.l.b16 %v619
        %v1691 = vunpack.c.h.b16 %v619
        %v1692 = vunpack.c.l.b16 %v620
        %v1693 = vunpack.c.l.b16 %v621
        %v1694 = vunpack.c.h.b16 %v621
        %v1695 = vunpack.c.l.b16 %v622
        %v1696 = vunpack.c.h.b16 %v622
        %v1697 = vunpack.c.l.b16 %v623
        %v1698 = vunpack.c.h.b16 %v623
        %v1699 = vunpack.c.l.b16 %v624
        %v1700 = vunpack.c.h.b16 %v624
        %v1701 = vunpack.c.l.b16 %v625
        %v1702 = vunpack.c.h.b16 %v625
        %v1703 = vunpack.c.l.b16 %v626
        %v1704 = vunpack.c.h.b16 %v626
        %v1705 = vunpack.c.l.b16 %v627
        %v1706 = vunpack.c.h.b16 %v627
        %v1707 = vunpack.c.l.b16 %v628
        %v1708 = vunpack.c.l.b16 %v629
        %v1709 = vunpack.c.h.b16 %v629
        %v1710 = vunpack.c.l.b16 %v630
        %v1711 = vunpack.c.h.b16 %v630
        %v1712 = vunpack.c.l.b16 %v631
        %v1713 = vunpack.c.h.b16 %v631
        %v1714 = vunpack.c.l.b16 %v632
        %v1715 = vunpack.c.h.b16 %v632
        %v1716 = vunpack.c.l.b16 %v633
        %v1717 = vunpack.c.h.b16 %v633
        %v1718 = vunpack.c.l.b16 %v634
        %v1719 = vunpack.c.h.b16 %v634
        %v1720 = vunpack.c.l.b16 %v635
        %v1721 = vunpack.c.h.b16 %v635
        %v1722 = vunpack.c.l.b16 %v636
        %v1723 = vunpack.c.l.b16 %v637
        %v1724 = vunpack.c.h.b16 %v637
        %v1725 = vunpack.c.l.b16 %v638
        %v1726 = vunpack.c.h.b16 %v638
        %v1727 = vunpack.c.l.b16 %v639
        %v1728 = vunpack.c.h.b16 %v639
        %v1729 = vunpack.c.l.b16 %v640
        %v1730 = vunpack.c.h.b16 %v640
        %v1731 = vunpack.c.l.b16 %v641
        %v1732 = vunpack.c.h.b16 %v641
        %v1733 = vunpack.c.l.b16 %v642
        %v1734 = vunpack.c.h.b16 %v642
        %v1735 = vunpack.c.l.b16 %v643
        %v1736 = vunpack.c.h.b16 %v643
        %v1737 = vunpack.c.l.b16 %v644
        %v1738 = vunpack.c.l.b16 %v645
        %v1739 = vunpack.c.h.b16 %v645
        %v1740 = vunpack.c.l.b16 %v646
        %v1741 = vunpack.c.h.b16 %v646
        %v1742 = vunpack.c.l.b16 %v647
        %v1743 = vunpack.c.h.b16 %v647
        %v1744 = vunpack.c.l.b16 %v648
        %v1745 = vunpack.c.h.b16 %v648
        %v1746 = vunpack.c.l.b16 %v649
        %v1747 = vunpack.c.h.b16 %v649
        %v1748 = vunpack.c.l.b16 %v650
        %v1749 = vunpack.c.h.b16 %v650
        %v1750 = vunpack.c.l.b16 %v651
        %v1751 = vunpack.c.h.b16 %v651
        %v1752 = vunpack.c.l.b16 %v652
        %v1753 = vunpack.c.l.b16 %v653
        %v1754 = vunpack.c.h.b16 %v653
        %v1755 = vunpack.c.l.b16 %v654
        %v1756 = vunpack.c.h.b16 %v654
        %v1757 = vunpack.c.l.b16 %v655
        %v1758 = vunpack.c.h.b16 %v655
        %v1759 = vunpack.c.l.b16 %v656
        %v1760 = vunpack.c.h.b16 %v656
        %v1761 = vunpack.c.l.b16 %v657
        %v1762 = vunpack.c.h.b16 %v657
        %v1763 = vunpack.c.l.b16 %v658
        %v1764 = vunpack.c.h.b16 %v658
        %v1765 = vunpack.c.l.b16 %v659
        %v1766 = vunpack.c.h.b16 %v659
        %v1767 = vunpack.c.l.b16 %v660
        %v1768 = vunpack.c.l.b16 %v661
        %v1769 = vunpack.c.h.b16 %v661
        %v1770 = vunpack.c.l.b16 %v662
        %v1771 = vunpack.c.h.b16 %v662
        %v1772 = vunpack.c.l.b16 %v663
        %v1773 = vunpack.c.h.b16 %v663
        %v1774 = vunpack.c.l.b16 %v664
        %v1775 = vunpack.c.h.b16 %v664
        %v1776 = vunpack.c.l.b16 %v665
        %v1777 = vunpack.c.h.b16 %v665
        %v1778 = vunpack.c.l.b16 %v666
        %v1779 = vunpack.c.h.b16 %v666
        %v1780 = vunpack.c.l.b16 %v667
        %v1781 = vunpack.c.h.b16 %v667
        %v1782 = vunpack.c.l.b16 %v668
        %v1783 = vunpack.c.l.b16 %v669
        %v1784 = vunpack.c.h.b16 %v669
        %v1785 = vunpack.c.l.b16 %v670
        %v1786 = vunpack.c.h.b16 %v670
        %v1787 = vunpack.c.l.b16 %v671
        %v1788 = vunpack.c.h.b16 %v671
        %v1789 = vunpack.c.l.b16 %v672
        %v1790 = vunpack.c.h.b16 %v672
        %v1791 = vunpack.c.l.b16 %v673
        %v1792 = vunpack.c.h.b16 %v673
        %v1793 = vunpack.c.l.b16 %v674
        %v1794 = vunpack.c.h.b16 %v674
        %v1795 = vunpack.c.l.b16 %v675
        %v1796 = vunpack.c.h.b16 %v675
        %v1797 = vunpack.c.l.b16 %v676
        %v1798 = vunpack.c.l.b16 %v677
        %v1799 = vunpack.c.h.b16 %v677
        %v1800 = vunpack.c.l.b16 %v678
        %v1801 = vunpack.c.h.b16 %v678
        %v1802 = vunpack.c.l.b16 %v679
        %v1803 = vunpack.c.h.b16 %v679
        %v1804 = vunpack.c.l.b16 %v680
        %v1805 = vunpack.c.h.b16 %v680
        %v1806 = vunpack.c.l.b16 %v681
        %v1807 = vunpack.c.h.b16 %v681
        %v1808 = vunpack.c.l.b16 %v682
        %v1809 = vunpack.c.h.b16 %v682
        %v1810 = vunpack.c.l.b16 %v683
        %v1811 = vunpack.c.h.b16 %v683
        %v1812 = vunpack.c.l.b16 %v684
        %v1813 = vunpack.c.l.b16 %v685
        %v1814 = vunpack.c.h.b16 %v685
        %v1815 = vunpack.c.l.b16 %v686
        %v1816 = vunpack.c.h.b16 %v686
        %v1817 = vunpack.c.l.b16 %v687
        %v1818 = vunpack.c.h.b16 %v687
        %v1819 = vunpack.c.l.b16 %v688
        %v1820 = vunpack.c.h.b16 %v688
        %v1821 = vunpack.c.l.b16 %v689
        %v1822 = vunpack.c.h.b16 %v689
        %v1823 = vunpack.c.l.b16 %v690
        %v1824 = vunpack.c.h.b16 %v690
        %v1825 = vunpack.c.l.b16 %v691
        %v1826 = vunpack.c.h.b16 %v691
        %v1827 = vunpack.c.l.b16 %v692
        %v1828 = vunpack.c.l.b16 %v693
        %v1829 = vunpack.c.h.b16 %v693
        %v1830 = vunpack.c.l.b16 %v694
        %v1831 = vunpack.c.h.b16 %v694
        %v1832 = vunpack.c.l.b16 %v695
        %v1833 = vunpack.c.h.b16 %v695
        %v1834 = vunpack.c.l.b16 %v696
        %v1835 = vunpack.c.h.b16 %v696
        %v1836 = vunpack.c.l.b16 %v697
        %v1837 = vunpack.c.h.b16 %v697
        %v1838 = vunpack.c.l.b16 %v698
        %v1839 = vunpack.c.h.b16 %v698
        %v1840 = vunpack.c.l.b16 %v699
        %v1841 = vunpack.c.h.b16 %v699
        %v1842 = vunpack.c.l.b16 %v700
        %v1843 = vunpack.c.l.b16 %v701
        %v1844 = vunpack.c.h.b16 %v701
        %v1845 = vunpack.c.l.b16 %v702
        %v1846 = vunpack.c.h.b16 %v702
        %v1847 = vunpack.c.l.b16 %v703
        %v1848 = vunpack.c.h.b16 %v703
        %v1849 = vunpack.c.l.b16 %v704
        %v1850 = vunpack.c.h.b16 %v704
        %v1851 = vunpack.c.l.b16 %v705
        %v1852 = vunpack.c.h.b16 %v705
        %v1853 = vunpack.c.l.b16 %v706
        %v1854 = vunpack.c.h.b16 %v706
        %v1855 = vunpack.c.l.b16 %v707
        %v1856 = vunpack.c.h.b16 %v707
        %v1857 = vunpack.c.l.b16 %v708
        %v1858 = vunpack.c.l.b16 %v709
        %v1859 = vunpack.c.h.b16 %v709
        %v1860 = vunpack.c.l.b16 %v710
        %v1861 = vunpack.c.h.b16 %v710
        %v1862 = vunpack.c.l.b16 %v711
        %v1863 = vunpack.c.h.b16 %v711
        %v1864 = vunpack.c.l.b16 %v712
        %v1865 = vunpack.c.h.b16 %v712
        %v1866 = vunpack.c.l.b16 %v713
        %v1867 = vunpack.c.h.b16 %v713
        %v1868 = vunpack.c.l.b16 %v714
        %v1869 = vunpack.c.h.b16 %v714
        %v1870 = vunpack.c.l.b16 %v715
        %v1871 = vunpack.c.h.b16 %v715
        %v1872 = vunpack.c.l.b16 %v716
        %v1873 = vunpack.c.l.b16 %v717
        %v1874 = vunpack.c.h.b16 %v717
        %v1875 = vunpack.c.l.b16 %v718
        %v1876 = vunpack.c.h.b16 %v718
        %v1877 = vunpack.c.l.b16 %v719
        %v1878 = vunpack.c.h.b16 %v719
        %v1879 = vunpack.c.l.b16 %v720
        %v1880 = vunpack.c.h.b16 %v720
        %v1881 = vunpack.c.l.b16 %v721
        %v1882 = vunpack.c.h.b16 %v721
        %v1883 = vunpack.c.l.b16 %v722
        %v1884 = vunpack.c.h.b16 %v722
        %v1885 = vunpack.c.l.b16 %v723
        %v1886 = vunpack.c.h.b16 %v723
        %v1887 = vunpack.c.l.b16 %v724
        %v1888 = vunpack.c.l.b16 %v725
        %v1889 = vunpack.c.h.b16 %v725
        %v1890 = vunpack.c.l.b16 %v726
        %v1891 = vunpack.c.h.b16 %v726
        %v1892 = vunpack.c.l.b16 %v727
        %v1893 = vunpack.c.h.b16 %v727
        %v1894 = vunpack.c.l.b16 %v728
        %v1895 = vunpack.c.h.b16 %v728
        %v1896 = vunpack.c.l.b16 %v729
        %v1897 = vunpack.c.h.b16 %v729
        %v1898 = vunpack.c.l.b16 %v730
        %v1899 = vunpack.c.h.b16 %v730
        %v1900 = vunpack.c.l.b16 %v731
        %v1901 = vunpack.c.h.b16 %v731
        %v1902 = vunpack.c.l.b16 %v732
        %v1903 = vunpack.c.l.b16 %v733
        %v1904 = vunpack.c.h.b16 %v733
        %v1905 = vunpack.c.l.b16 %v734
        %v1906 = vunpack.c.h.b16 %v734
        %v1907 = vunpack.c.l.b16 %v735
        %v1908 = vunpack.c.h.b16 %v735
        %v1909 = vunpack.c.l.b16 %v736
        %v1910 = vunpack.c.h.b16 %v736
        %v1911 = vunpack.c.l.b16 %v737
        %v1912 = vunpack.c.h.b16 %v737
        %v1913 = vunpack.c.l.b16 %v738
        %v1914 = vunpack.c.h.b16 %v738
        %v1915 = vunpack.c.l.b16 %v739
        %v1916 = vunpack.c.h.b16 %v739
        %v1917 = vunpack.c.l.b16 %v740
        %v1918 = vunpack.c.l.b16 %v741
        %v1919 = vunpack.c.h.b16 %v741
        %v1920 = vunpack.c.l.b16 %v742
        %v1921 = vunpack.c.h.b16 %v742
        %v1922 = vunpack.c.l.b16 %v743
        %v1923 = vunpack.c.h.b16 %v743
        %v1924 = vunpack.c.l.b16 %v744
        %v1925 = vunpack.c.h.b16 %v744
        %v1926 = vunpack.c.l.b16 %v745
        %v1927 = vunpack.c.h.b16 %v745
        %v1928 = vunpack.c.l.b16 %v746
        %v1929 = vunpack.c.h.b16 %v746
        %v1930 = vunpack.c.l.b16 %v747
        %v1931 = vunpack.c.h.b16 %v747
        %v1932 = vunpack.c.l.b16 %v748
        %v1933 = vunpack.c.l.b16 %v749
        %v1934 = vunpack.c.h.b16 %v749
        %v1935 = vunpack.c.l.b16 %v750
        %v1936 = vunpack.c.h.b16 %v750
        %v1937 = vunpack.c.l.b16 %v751
        %v1938 = vunpack.c.h.b16 %v751
        %v1939 = vunpack.c.l.b16 %v752
        %v1940 = vunpack.c.h.b16 %v752
        %v1941 = vunpack.c.l.b16 %v753
        %v1942 = vunpack.c.h.b16 %v753
        %v1943 = vunpack.c.l.b16 %v754
        %v1944 = vunpack.c.h.b16 %v754
        %v1945 = vunpack.c.l.b16 %v755
        %v1946 = vunpack.c.h.b16 %v755
        %v1947 = vunpack.c.l.b16 %v756
        %v1948 = vunpack.c.l.b16 %v757
        %v1949 = vunpack.c.h.b16 %v757
        %v1950 = vunpack.c.l.b16 %v758
        %v1951 = vunpack.c.h.b16 %v758
        %v1952 = vunpack.c.l.b16 %v759
        %v1953 = vunpack.c.h.b16 %v759
        %v1954 = vunpack.c.l.b16 %v760
        %v1955 = vunpack.c.h.b16 %v760
        %v1956 = vunpack.c.l.b16 %v761
        %v1957 = vunpack.c.h.b16 %v761
        %v1958 = vunpack.c.l.b16 %v762
        %v1959 = vunpack.c.h.b16 %v762
        %v1960 = vunpack.c.l.b16 %v763
        %v1961 = vunpack.c.h.b16 %v763
        %v1962 = vunpack.c.l.b16 %v764
        %v1963 = vunpack.c.l.b16 %v765
        %v1964 = vunpack.c.h.b16 %v765
        %v1965 = vunpack.c.l.b16 %v766
        %v1966 = vunpack.c.h.b16 %v766
        %v1967 = vunpack.c.l.b16 %v767
        %v1968 = vunpack.c.h.b16 %v767
        %v1969 = vunpack.c.l.b16 %v768
        %v1970 = vunpack.c.h.b16 %v768
        %v1971 = vunpack.c.l.b16 %v769
        %v1972 = vunpack.c.h.b16 %v769
        %v1973 = vunpack.c.l.b16 %v770
        %v1974 = vunpack.c.h.b16 %v770
        %v1975 = vunpack.c.l.b16 %v771
        %v1976 = vunpack.c.h.b16 %v771
        %v1977 = vunpack.c.l.b16 %v772
        %v1978 = vunpack.c.l.b16 %v773
        %v1979 = vunpack.c.h.b16 %v773
        %v1980 = vunpack.c.l.b16 %v774
        %v1981 = vunpack.c.h.b16 %v774
        %v1982 = vunpack.c.l.b16 %v775
        %v1983 = vunpack.c.h.b16 %v775
        %v1984 = vunpack.c.l.b16 %v776
        %v1985 = vunpack.c.h.b16 %v776
        %v1986 = vunpack.c.l.b16 %v777
        %v1987 = vunpack.c.h.b16 %v777
        %v1988 = vunpack.c.l.b16 %v778
        %v1989 = vunpack.c.h.b16 %v778
        %v1990 = vunpack.c.l.b16 %v779
        %v1991 = vunpack.c.h.b16 %v779
        %v1992 = vunpack.c.l.b16 %v780
        %v1993 = vunpack.c.l.b16 %v781
        %v1994 = vunpack.c.h.b16 %v781
        %v1995 = vunpack.c.l.b16 %v782
        %v1996 = vunpack.c.h.b16 %v782
        %v1997 = vunpack.c.l.b16 %v783
        %v1998 = vunpack.c.h.b16 %v783
        %v1999 = vunpack.c.l.b16 %v784
        %v2000 = vunpack.c.h.b16 %v784
        %v2001 = vunpack.c.l.b16 %v785
        %v2002 = vunpack.c.h.b16 %v785
        %v2003 = vunpack.c.l.b16 %v786
        %v2004 = vunpack.c.h.b16 %v786
        %v2005 = vunpack.c.l.b16 %v787
        %v2006 = vunpack.c.h.b16 %v787
        %v2007 = vunpack.c.l.b16 %v788
        %v2008 = vunpack.c.l.b16 %v789
        %v2009 = vunpack.c.h.b16 %v789
        %v2010 = vunpack.c.l.b16 %v790
        %v2011 = vunpack.c.h.b16 %v790
        %v2012 = vunpack.c.l.b16 %v791
        %v2013 = vunpack.c.h.b16 %v791
        %v2014 = vunpack.c.l.b16 %v792
        %v2015 = vunpack.c.h.b16 %v792
        %v2016 = vunpack.c.l.b16 %v793
        %v2017 = vunpack.c.h.b16 %v793
        %v2018 = vunpack.c.l.b16 %v794
        %v2019 = vunpack.c.h.b16 %v794
        %v2020 = vunpack.c.l.b16 %v795
        %v2021 = vunpack.c.h.b16 %v795
        %v2022 = vunpack.c.l.b16 %v796
        %v2023 = vunpack.c.l.b16 %v797
        %v2024 = vunpack.c.h.b16 %v797
        %v2025 = vunpack.c.l.b16 %v798
        %v2026 = vunpack.c.h.b16 %v798
        %v2027 = vunpack.c.l.b16 %v799
        %v2028 = vunpack.c.h.b16 %v799
        %v2029 = vunpack.c.l.b16 %v800
        %v2030 = vunpack.c.h.b16 %v800
        %v2031 = vunpack.c.l.b16 %v801
        %v2032 = vunpack.c.h.b16 %v801
        %v2033 = vunpack.c.l.b16 %v802
        %v2034 = vunpack.c.h.b16 %v802
        %v2035 = vunpack.c.l.b16 %v803
        %v2036 = vunpack.c.h.b16 %v803
        %v2037 = vunpack.c.l.b16 %v804
        %v2038 = vunpack.c.l.b16 %v805
        %v2039 = vunpack.c.h.b16 %v805
        %v2040 = vunpack.c.l.b16 %v806
        %v2041 = vunpack.c.h.b16 %v806
        %v2042 = vunpack.c.l.b16 %v807
        %v2043 = vunpack.c.h.b16 %v807
        %v2044 = vunpack.c.l.b16 %v808
        %v2045 = vunpack.c.h.b16 %v808
        %v2046 = vunpack.c.l.b16 %v809
        %v2047 = vunpack.c.h.b16 %v809
        %v2048 = vunpack.c.l.b16 %v810
        %v2049 = vunpack.c.h.b16 %v810
        %v2050 = vunpack.c.l.b16 %v811
        %v2051 = vunpack.c.h.b16 %v811
        %v2052 = vunpack.c.l.b16 %v812
        %v2053 = vunpack.c.l.b16 %v813
        %v2054 = vunpack.c.h.b16 %v813
        %v2055 = vunpack.c.l.b16 %v814
        %v2056 = vunpack.c.h.b16 %v814
        %v2057 = vunpack.c.l.b16 %v815
        %v2058 = vunpack.c.h.b16 %v815
        %v2059 = vunpack.c.l.b16 %v816
        %v2060 = vunpack.c.h.b16 %v816
        %v2061 = vunpack.c.l.b16 %v817
        %v2062 = vunpack.c.h.b16 %v817
        %v2063 = vunpack.c.l.b16 %v818
        %v2064 = vunpack.c.h.b16 %v818
        %v2065 = vunpack.c.l.b16 %v819
        %v2066 = vunpack.c.h.b16 %v819
        %v2067 = vunpack.c.l.b16 %v820
        %v2068 = vunpack.c.l.b16 %v821
        %v2069 = vunpack.c.h.b16 %v821
        %v2070 = vunpack.c.l.b16 %v822
        %v2071 = vunpack.c.h.b16 %v822
        %v2072 = vunpack.c.l.b16 %v823
        %v2073 = vunpack.c.h.b16 %v823
        %v2074 = vunpack.c.l.b16 %v824
        %v2075 = vunpack.c.h.b16 %v824
        %v2076 = vunpack.c.l.b16 %v825
        %v2077 = vunpack.c.h.b16 %v825
        %v2078 = vunpack.c.l.b16 %v826
        %v2079 = vunpack.c.h.b16 %v826
        %v2080 = vunpack.c.l.b16 %v827
        %v2081 = vunpack.c.h.b16 %v827
        %v2082 = vunpack.c.l.b16 %v828
        %v2083 = vunpack.c.l.b16 %v829
        %v2084 = vunpack.c.h.b16 %v829
        %v2085 = vunpack.c.l.b16 %v830
        %v2086 = vunpack.c.h.b16 %v830
        %v2087 = vunpack.c.l.b16 %v831
        %v2088 = vunpack.c.h.b16 %v831
        %v2089 = vunpack.c.l.b16 %v832
        %v2090 = vunpack.c.h.b16 %v832
        %v2091 = vunpack.c.l.b16 %v833
        %v2092 = vunpack.c.h.b16 %v833
        %v2093 = vunpack.c.l.b16 %v834
        %v2094 = vunpack.c.h.b16 %v834
        %v2095 = vunpack.c.l.b16 %v835
        %v2096 = vunpack.c.h.b16 %v835
        %v2097 = vunpack.c.l.b16 %v836
        %v2098 = vunpack.c.l.b16 %v837
        %v2099 = vunpack.c.h.b16 %v837
        %v2100 = vunpack.c.l.b16 %v838
        %v2101 = vunpack.c.h.b16 %v838
        %v2102 = vunpack.c.l.b16 %v839
        %v2103 = vunpack.c.h.b16 %v839
        %v2104 = vunpack.c.l.b16 %v840
        %v2105 = vunpack.c.h.b16 %v840
        %v2106 = vunpack.c.l.b16 %v841
        %v2107 = vunpack.c.h.b16 %v841
        %v2108 = vunpack.c.l.b16 %v842
        %v2109 = vunpack.c.h.b16 %v842
        %v2110 = vunpack.c.l.b16 %v843
        %v2111 = vunpack.c.h.b16 %v843
        %v2112 = vunpack.c.l.b16 %v844
        %v2113 = vunpack.c.l.b16 %v845
        %v2114 = vunpack.c.h.b16 %v845
        %v2115 = vunpack.c.l.b16 %v846
        %v2116 = vunpack.c.h.b16 %v846
        %v2117 = vunpack.c.l.b16 %v847
        %v2118 = vunpack.c.h.b16 %v847
        %v2119 = vunpack.c.l.b16 %v848
        %v2120 = vunpack.c.h.b16 %v848
        %v2121 = vunpack.c.l.b16 %v849
        %v2122 = vunpack.c.h.b16 %v849
        %v2123 = vunpack.c.l.b16 %v850
        %v2124 = vunpack.c.h.b16 %v850
        %v2125 = vunpack.c.l.b16 %v851
        %v2126 = vunpack.c.h.b16 %v851
        %v2127 = vunpack.c.l.b16 %v852
        %v2128 = vunpack.c.l.b16 %v853
        %v2129 = vunpack.c.h.b16 %v853
        %v2130 = vunpack.c.l.b16 %v854
        %v2131 = vunpack.c.h.b16 %v854
        %v2132 = vunpack.c.l.b16 %v855
        %v2133 = vunpack.c.h.b16 %v855
        %v2134 = vunpack.c.l.b16 %v856
        %v2135 = vunpack.c.h.b16 %v856
        %v2136 = vunpack.c.l.b16 %v857
        %v2137 = vunpack.c.h.b16 %v857
        %v2138 = vunpack.c.l.b16 %v858
        %v2139 = vunpack.c.h.b16 %v858
        %v2140 = vunpack.c.l.b16 %v859
        %v2141 = vunpack.c.h.b16 %v859
        %v2142 = vunpack.c.l.b16 %v860
        %v2143 = vunpack.c.l.b16 %v861
        %v2144 = vunpack.c.h.b16 %v861
        %v2145 = vunpack.c.l.b16 %v862
        %v2146 = vunpack.c.h.b16 %v862
        %v2147 = vunpack.c.l.b16 %v863
        %v2148 = vunpack.c.h.b16 %v863
        %v2149 = vunpack.c.l.b16 %v864
        %v2150 = vunpack.c.h.b16 %v864
        %v2151 = vunpack.c.l.b16 %v865
        %v2152 = vunpack.c.h.b16 %v865
        %v2153 = vunpack.c.l.b16 %v866
        %v2154 = vunpack.c.h.b16 %v866
        %v2155 = vunpack.c.l.b16 %v867
        %v2156 = vunpack.c.h.b16 %v867
        %v2157 = vunpack.c.l.b16 %v868
        %v2158 = vunpack.c.l.b16 %v869
        %v2159 = vunpack.c.h.b16 %v869
        %v2160 = vunpack.c.l.b16 %v870
        %v2161 = vunpack.c.h.b16 %v870
        %v2162 = vunpack.c.l.b16 %v871
        %v2163 = vunpack.c.h.b16 %v871
        %v2164 = vunpack.c.l.b16 %v872
        %v2165 = vunpack.c.h.b16 %v872
        %v2166 = vunpack.c.l.b16 %v873
        %v2167 = vunpack.c.h.b16 %v873
        %v2168 = vunpack.c.l.b16 %v874
        %v2169 = vunpack.c.h.b16 %v874
        %v2170 = vunpack.c.l.b16 %v875
        %v2171 = vunpack.c.h.b16 %v875
        %v2172 = vunpack.c.l.b16 %v876
        %v2173 = vunpack.c.l.b16 %v877
        %v2174 = vunpack.c.h.b16 %v877
        %v2175 = vunpack.c.l.b16 %v878
        %v2176 = vunpack.c.h.b16 %v878
        %v2177 = vunpack.c.l.b16 %v879
        %v2178 = vunpack.c.h.b16 %v879
        %v2179 = vunpack.c.l.b16 %v880
        %v2180 = vunpack.c.h.b16 %v880
        %v2181 = vunpack.c.l.b16 %v881
        %v2182 = vunpack.c.h.b16 %v881
        %v2183 = vunpack.c.l.b16 %v882
        %v2184 = vunpack.c.h.b16 %v882
        %v2185 = vunpack.c.l.b16 %v883
        %v2186 = vunpack.c.h.b16 %v883
        %v2187 = vunpack.c.l.b16 %v884
        %v2188 = vunpack.c.l.b16 %v885
        %v2189 = vunpack.c.h.b16 %v885
        %v2190 = vunpack.c.l.b16 %v886
        %v2191 = vunpack.c.h.b16 %v886
        %v2192 = vunpack.c.l.b16 %v887
        %v2193 = vunpack.c.h.b16 %v887
        %v2194 = vunpack.c.l.b16 %v888
        %v2195 = vunpack.c.h.b16 %v888
        %v2196 = vunpack.c.l.b16 %v889
        %v2197 = vunpack.c.h.b16 %v889
        %v2198 = vunpack.c.l.b16 %v890
        %v2199 = vunpack.c.h.b16 %v890
        %v2200 = vunpack.c.l.b16 %v891
        %v2201 = vunpack.c.h.b16 %v891
        %v2202 = vunpack.c.l.b16 %v892
        %v2203 = vunpack.c.l.b16 %v893
        %v2204 = vunpack.c.h.b16 %v893
        %v2205 = vunpack.c.l.b16 %v894
        %v2206 = vunpack.c.h.b16 %v894
        %v2207 = vunpack.c.l.b16 %v895
        %v2208 = vunpack.c.h.b16 %v895
        %v2209 = vunpack.c.l.b16 %v896
        %v2210 = vunpack.c.h.b16 %v896
        %v2211 = vunpack.c.l.b16 %v897
        %v2212 = vunpack.c.h.b16 %v897
        %v2213 = vunpack.c.l.b16 %v898
        %v2214 = vunpack.c.h.b16 %v898
        %v2215 = vunpack.c.l.b16 %v899
        %v2216 = vunpack.c.h.b16 %v899
        %v2217 = vunpack.c.l.b16 %v900
        %v2218 = vunpack.c.l.b16 %v901
        %v2219 = vunpack.c.h.b16 %v901
        %v2220 = vunpack.c.l.b16 %v902
        %v2221 = vunpack.c.h.b16 %v902
        %v2222 = vunpack.c.l.b16 %v903
        %v2223 = vunpack.c.h.b16 %v903
        %v2224 = vunpack.c.l.b16 %v904
        %v2225 = vunpack.c.h.b16 %v904
        %v2226 = vunpack.c.l.b16 %v905
        %v2227 = vunpack.c.h.b16 %v905
        %v2228 = vunpack.c.l.b16 %v906
        %v2229 = vunpack.c.h.b16 %v906
        %v2230 = vunpack.c.l.b16 %v907
        %v2231 = vunpack.c.h.b16 %v907
        %v2232 = vunpack.c.l.b16 %v908
        %v2233 = vunpack.c.l.b16 %v909
        %v2234 = vunpack.c.h.b16 %v909
        %v2235 = vunpack.c.l.b16 %v910
        %v2236 = vunpack.c.h.b16 %v910
        %v2237 = vunpack.c.l.b16 %v911
        %v2238 = vunpack.c.h.b16 %v911
        %v2239 = vunpack.c.l.b16 %v912
        %v2240 = vunpack.c.h.b16 %v912
        %v2241 = vunpack.c.l.b16 %v913
        %v2242 = vunpack.c.h.b16 %v913
        %v2243 = vunpack.c.l.b16 %v914
        %v2244 = vunpack.c.h.b16 %v914
        %v2245 = vunpack.c.l.b16 %v915
        %v2246 = vunpack.c.h.b16 %v915
        %v2247 = vunpack.c.l.b16 %v916
        %v2248 = vunpack.c.l.b16 %v917
        %v2249 = vunpack.c.h.b16 %v917
        %v2250 = vunpack.c.l.b16 %v918
        %v2251 = vunpack.c.h.b16 %v918
        %v2252 = vunpack.c.l.b16 %v919
        %v2253 = vunpack.c.h.b16 %v919
        %v2254 = vunpack.c.l.b16 %v920
        %v2255 = vunpack.c.h.b16 %v920
        %v2256 = vunpack.c.l.b16 %v921
        %v2257 = vunpack.c.h.b16 %v921
        %v2258 = vunpack.c.l.b16 %v922
        %v2259 = vunpack.c.h.b16 %v922
        %v2260 = vunpack.c.l.b16 %v923
        %v2261 = vunpack.c.h.b16 %v923
        %v2262 = vunpack.c.l.b16 %v924
        %v2263 = vunpack.c.l.b16 %v925
        %v2264 = vunpack.c.h.b16 %v925
        %v2265 = vunpack.c.l.b16 %v926
        %v2266 = vunpack.c.h.b16 %v926
        %v2267 = vunpack.c.l.b16 %v927
        %v2268 = vunpack.c.h.b16 %v927
        %v2269 = vunpack.c.l.b16 %v928
        %v2270 = vunpack.c.h.b16 %v928
        %v2271 = vunpack.c.l.b16 %v929
        %v2272 = vunpack.c.h.b16 %v929
        %v2273 = vunpack.c.l.b16 %v930
        %v2274 = vunpack.c.h.b16 %v930
        %v2275 = vunpack.c.l.b16 %v931
        %v2276 = vunpack.c.h.b16 %v931
        %v2277 = vunpack.c.l.b16 %v932
        %v2278 = vunpack.c.l.b16 %v933
        %v2279 = vunpack.c.h.b16 %v933
        %v2280 = vunpack.c.l.b16 %v934
        %v2281 = vunpack.c.h.b16 %v934
        %v2282 = vunpack.c.l.b16 %v935
        %v2283 = vunpack.c.h.b16 %v935
        %v2284 = vunpack.c.l.b16 %v936
        %v2285 = vunpack.c.h.b16 %v936
        %v2286 = vunpack.c.l.b16 %v937
        %v2287 = vunpack.c.h.b16 %v937
        %v2288 = vunpack.c.l.b16 %v938
        %v2289 = vunpack.c.h.b16 %v938
        %v2290 = vunpack.c.l.b16 %v939
        %v2291 = vunpack.c.h.b16 %v939
        %v2292 = vunpack.c.l.b16 %v940
        %v2293 = vunpack.c.l.b16 %v941
        %v2294 = vunpack.c.h.b16 %v941
        %v2295 = vunpack.c.l.b16 %v942
        %v2296 = vunpack.c.h.b16 %v942
        %v2297 = vunpack.c.l.b16 %v943
        %v2298 = vunpack.c.h.b16 %v943
        %v2299 = vunpack.c.l.b16 %v944
        %v2300 = vunpack.c.h.b16 %v944
        %v2301 = vunpack.c.l.b16 %v945
        %v2302 = vunpack.c.h.b16 %v945
        %v2303 = vunpack.c.l.b16 %v946
        %v2304 = vunpack.c.h.b16 %v946
        %v2305 = vunpack.c.l.b16 %v947
        %v2306 = vunpack.c.h.b16 %v947
        %v2307 = vunpack.c.l.b16 %v948
        %v2308 = vunpack.c.l.b16 %v949
        %v2309 = vunpack.c.h.b16 %v949
        %v2310 = vunpack.c.l.b16 %v950
        %v2311 = vunpack.c.h.b16 %v950
        %v2312 = vunpack.c.l.b16 %v951
        %v2313 = vunpack.c.h.b16 %v951
        %v2314 = vunpack.c.l.b16 %v952
        %v2315 = vunpack.c.h.b16 %v952
        %v2316 = vunpack.c.l.b16 %v953
        %v2317 = vunpack.c.h.b16 %v953
        %v2318 = vunpack.c.l.b16 %v954
        %v2319 = vunpack.c.h.b16 %v954
        %v2320 = vunpack.c.l.b16 %v955
        %v2321 = vunpack.c.h.b16 %v955
        %v2322 = vunpack.c.l.b16 %v956
        %v2323 = vunpack.c.l.b16 %v957
        %v2324 = vunpack.c.h.b16 %v957
        %v2325 = vunpack.c.l.b16 %v958
        %v2326 = vunpack.c.h.b16 %v958
        %v2327 = vunpack.c.l.b16 %v959
        %v2328 = vunpack.c.h.b16 %v959
        %v2329 = vunpack.c.l.b16 %v960
        %v2330 = vunpack.c.h.b16 %v960
        %v2331 = vunpack.c.l.b16 %v961
        %v2332 = vunpack.c.h.b16 %v961
        %v2333 = vunpack.c.l.b16 %v962
        %v2334 = vunpack.c.h.b16 %v962
        %v2335 = vunpack.c.l.b16 %v963
        %v2336 = vunpack.c.h.b16 %v963
        %v2337 = vunpack.c.l.b16 %v964
        %v2338 = vunpack.c.l.b16 %v965
        %v2339 = vunpack.c.h.b16 %v965
        %v2340 = vunpack.c.l.b16 %v966
        %v2341 = vunpack.c.h.b16 %v966
        %v2342 = vunpack.c.l.b16 %v967
        %v2343 = vunpack.c.h.b16 %v967
        %v2344 = vunpack.c.l.b16 %v968
        %v2345 = vunpack.c.h.b16 %v968
        %v2346 = vunpack.c.l.b16 %v969
        %v2347 = vunpack.c.h.b16 %v969
        %v2348 = vunpack.c.l.b16 %v970
        %v2349 = vunpack.c.h.b16 %v970
        %v2350 = vunpack.c.l.b16 %v971
        %v2351 = vunpack.c.h.b16 %v971
        %v2352 = vunpack.c.l.b16 %v972
        %v2353 = vpack.c.b16 %v1468, %v1453
        %v2354 = vpack.c.b16 %v1469, %v1454
        %v2355 = vpack.c.b16 %v1470, %v1455
        %v2356 = vpack.c.b16 %v1471, %v1456
        %v2357 = vpack.c.b16 %v1472, %v1457
        %v2358 = vpack.c.b16 %v1473, %v1458
        %v2359 = vpack.c.b16 %v1474, %v1459
        %v2360 = vpack.c.b16 %v1475, %v1460
        %v2361 = vpack.c.b16 %v1476, %v1461
        %v2362 = vpack.c.b16 %v1477, %v1462
        %v2363 = vpack.c.b16 %v1478, %v1463
        %v2364 = vpack.c.b16 %v1479, %v1464
        %v2365 = vpack.c.b16 %v1480, %v1465
        %v2366 = vpack.c.b16 %v1481, %v1466
        %v2367 = vpack.c.b16 %v1482, %v1467
        %v2368 = vpack.c.b16 %v1498, %v1483
        %v2369 = vpack.c.b16 %v1499, %v1484
        %v2370 = vpack.c.b16 %v1500, %v1485
        %v2371 = vpack.c.b16 %v1501, %v1486
        %v2372 = vpack.c.b16 %v1502, %v1487
        %v2373 = vpack.c.b16 %v1503, %v1488
        %v2374 = vpack.c.b16 %v1504, %v1489
        %v2375 = vpack.c.b16 %v1505, %v1490
        %v2376 = vpack.c.b16 %v1506, %v1491
        %v2377 = vpack.c.b16 %v1507, %v1492
        %v2378 = vpack.c.b16 %v1508, %v1493
        %v2379 = vpack.c.b16 %v1509, %v1494
        %v2380 = vpack.c.b16 %v1510, %v1495
        %v2381 = vpack.c.b16 %v1511, %v1496
        %v2382 = vpack.c.b16 %v1512, %v1497
        %v2383 = vpack.c.b16 %v1528, %v1513
        %v2384 = vpack.c.b16 %v1529, %v1514
        %v2385 = vpack.c.b16 %v1530, %v1515
        %v2386 = vpack.c.b16 %v1531, %v1516
        %v2387 = vpack.c.b16 %v1532, %v1517
        %v2388 = vpack.c.b16 %v1533, %v1518
        %v2389 = vpack.c.b16 %v1534, %v1519
        %v2390 = vpack.c.b16 %v1535, %v1520
        %v2391 = vpack.c.b16 %v1536, %v1521
        %v2392 = vpack.c.b16 %v1537, %v1522
        %v2393 = vpack.c.b16 %v1538, %v1523
        %v2394 = vpack.c.b16 %v1539, %v1524
        %v2395 = vpack.c.b16 %v1540, %v1525
        %v2396 = vpack.c.b16 %v1541, %v1526
        %v2397 = vpack.c.b16 %v1542, %v1527
        %v2398 = vpack.c.b16 %v1558, %v1543
        %v2399 = vpack.c.b16 %v1559, %v1544
        %v2400 = vpack.c.b16 %v1560, %v1545
        %v2401 = vpack.c.b16 %v1561, %v1546
        %v2402 = vpack.c.b16 %v1562, %v1547
        %v2403 = vpack.c.b16 %v1563, %v1548
        %v2404 = vpack.c.b16 %v1564, %v1549
        %v2405 = vpack.c.b16 %v1565, %v1550
        %v2406 = vpack.c.b16 %v1566, %v1551
        %v2407 = vpack.c.b16 %v1567, %v1552
        %v2408 = vpack.c.b16 %v1568, %v1553
        %v2409 = vpack.c.b16 %v1569, %v1554
        %v2410 = vpack.c.b16 %v1570, %v1555
        %v2411 = vpack.c.b16 %v1571, %v1556
        %v2412 = vpack.c.b16 %v1572, %v1557
        %v2413 = vpack.c.b16 %v1588, %v1573
        %v2414 = vpack.c.b16 %v1589, %v1574
        %v2415 = vpack.c.b16 %v1590, %v1575
        %v2416 = vpack.c.b16 %v1591, %v1576
        %v2417 = vpack.c.b16 %v1592, %v1577
        %v2418 = vpack.c.b16 %v1593, %v1578
        %v2419 = vpack.c.b16 %v1594, %v1579
        %v2420 = vpack.c.b16 %v1595, %v1580
        %v2421 = vpack.c.b16 %v1596, %v1581
        %v2422 = vpack.c.b16 %v1597, %v1582
        %v2423 = vpack.c.b16 %v1598, %v1583
        %v2424 = vpack.c.b16 %v1599, %v1584
        %v2425 = vpack.c.b16 %v1600, %v1585
        %v2426 = vpack.c.b16 %v1601, %v1586
        %v2427 = vpack.c.b16 %v1602, %v1587
        %v2428 = vpack.c.b16 %v1618, %v1603
        %v2429 = vpack.c.b16 %v1619, %v1604
        %v2430 = vpack.c.b16 %v1620, %v1605
        %v2431 = vpack.c.b16 %v1621, %v1606
        %v2432 = vpack.c.b16 %v1622, %v1607
        %v2433 = vpack.c.b16 %v1623, %v1608
        %v2434 = vpack.c.b16 %v1624, %v1609
        %v2435 = vpack.c.b16 %v1625, %v1610
        %v2436 = vpack.c.b16 %v1626, %v1611
        %v2437 = vpack.c.b16 %v1627, %v1612
        %v2438 = vpack.c.b16 %v1628, %v1613
        %v2439 = vpack.c.b16 %v1629, %v1614
        %v2440 = vpack.c.b16 %v1630, %v1615
        %v2441 = vpack.c.b16 %v1631, %v1616
        %v2442 = vpack.c.b16 %v1632, %v1617
        %v2443 = vpack.c.b16 %v1648, %v1633
        %v2444 = vpack.c.b16 %v1649, %v1634
        %v2445 = vpack.c.b16 %v1650, %v1635
        %v2446 = vpack.c.b16 %v1651, %v1636
        %v2447 = vpack.c.b16 %v1652, %v1637
        %v2448 = vpack.c.b16 %v1653, %v1638
        %v2449 = vpack.c.b16 %v1654, %v1639
        %v2450 = vpack.c.b16 %v1655, %v1640
        %v2451 = vpack.c.b16 %v1656, %v1641
        %v2452 = vpack.c.b16 %v1657, %v1642
        %v2453 = vpack.c.b16 %v1658, %v1643
        %v2454 = vpack.c.b16 %v1659, %v1644
        %v2455 = vpack.c.b16 %v1660, %v1645
        %v2456 = vpack.c.b16 %v1661, %v1646
        %v2457 = vpack.c.b16 %v1662, %v1647
        %v2458 = vpack.c.b16 %v1678, %v1663
        %v2459 = vpack.c.b16 %v1679, %v1664
        %v2460 = vpack.c.b16 %v1680, %v1665
        %v2461 = vpack.c.b16 %v1681, %v1666
        %v2462 = vpack.c.b16 %v1682, %v1667
        %v2463 = vpack.c.b16 %v1683, %v1668
        %v2464 = vpack.c.b16 %v1684, %v1669
        %v2465 = vpack.c.b16 %v1685, %v1670
        %v2466 = vpack.c.b16 %v1686, %v1671
        %v2467 = vpack.c.b16 %v1687, %v1672
        %v2468 = vpack.c.b16 %v1688, %v1673
        %v2469 = vpack.c.b16 %v1689, %v1674
        %v2470 = vpack.c.b16 %v1690, %v1675
        %v2471 = vpack.c.b16 %v1691, %v1676
        %v2472 = vpack.c.b16 %v1692, %v1677
        %v2473 = vpack.c.b16 %v1708, %v1693
        %v2474 = vpack.c.b16 %v1709, %v1694
        %v2475 = vpack.c.b16 %v1710, %v1695
        %v2476 = vpack.c.b16 %v1711, %v1696
        %v2477 = vpack.c.b16 %v1712, %v1697
        %v2478 = vpack.c.b16 %v1713, %v1698
        %v2479 = vpack.c.b16 %v1714, %v1699
        %v2480 = vpack.c.b16 %v1715, %v1700
        %v2481 = vpack.c.b16 %v1716, %v1701
        %v2482 = vpack.c.b16 %v1717, %v1702
        %v2483 = vpack.c.b16 %v1718, %v1703
        %v2484 = vpack.c.b16 %v1719, %v1704
        %v2485 = vpack.c.b16 %v1720, %v1705
        %v2486 = vpack.c.b16 %v1721, %v1706
        %v2487 = vpack.c.b16 %v1722, %v1707
        %v2488 = vpack.c.b16 %v1738, %v1723
        %v2489 = vpack.c.b16 %v1739, %v1724
        %v2490 = vpack.c.b16 %v1740, %v1725
        %v2491 = vpack.c.b16 %v1741, %v1726
        %v2492 = vpack.c.b16 %v1742, %v1727
        %v2493 = vpack.c.b16 %v1743, %v1728
        %v2494 = vpack.c.b16 %v1744, %v1729
        %v2495 = vpack.c.b16 %v1745, %v1730
        %v2496 = vpack.c.b16 %v1746, %v1731
        %v2497 = vpack.c.b16 %v1747, %v1732
        %v2498 = vpack.c.b16 %v1748, %v1733
        %v2499 = vpack.c.b16 %v1749, %v1734
        %v2500 = vpack.c.b16 %v1750, %v1735
        %v2501 = vpack.c.b16 %v1751, %v1736
        %v2502 = vpack.c.b16 %v1752, %v1737
        %v2503 = vpack.c.b16 %v1768, %v1753
        %v2504 = vpack.c.b16 %v1769, %v1754
        %v2505 = vpack.c.b16 %v1770, %v1755
        %v2506 = vpack.c.b16 %v1771, %v1756
        %v2507 = vpack.c.b16 %v1772, %v1757
        %v2508 = vpack.c.b16 %v1773, %v1758
        %v2509 = vpack.c.b16 %v1774, %v1759
        %v2510 = vpack.c.b16 %v1775, %v1760
        %v2511 = vpack.c.b16 %v1776, %v1761
        %v2512 = vpack.c.b16 %v1777, %v1762
        %v2513 = vpack.c.b16 %v1778, %v1763
        %v2514 = vpack.c.b16 %v1779, %v1764
        %v2515 = vpack.c.b16 %v1780, %v1765
        %v2516 = vpack.c.b16 %v1781, %v1766
        %v2517 = vpack.c.b16 %v1782, %v1767
        %v2518 = vpack.c.b16 %v1798, %v1783
        %v2519 = vpack.c.b16 %v1799, %v1784
        %v2520 = vpack.c.b16 %v1800, %v1785
        %v2521 = vpack.c.b16 %v1801, %v1786
        %v2522 = vpack.c.b16 %v1802, %v1787
        %v2523 = vpack.c.b16 %v1803, %v1788
        %v2524 = vpack.c.b16 %v1804, %v1789
        %v2525 = vpack.c.b16 %v1805, %v1790
        %v2526 = vpack.c.b16 %v1806, %v1791
        %v2527 = vpack.c.b16 %v1807, %v1792
        %v2528 = vpack.c.b16 %v1808, %v1793
        %v2529 = vpack.c.b16 %v1809, %v1794
        %v2530 = vpack.c.b16 %v1810, %v1795
        %v2531 = vpack.c.b16 %v1811, %v1796
        %v2532 = vpack.c.b16 %v1812, %v1797
        %v2533 = vpack.c.b16 %v1828, %v1813
        %v2534 = vpack.c.b16 %v1829, %v1814
        %v2535 = vpack.c.b16 %v1830, %v1815
        %v2536 = vpack.c.b16 %v1831, %v1816
        %v2537 = vpack.c.b16 %v1832, %v1817
        %v2538 = vpack.c.b16 %v1833, %v1818
        %v2539 = vpack.c.b16 %v1834, %v1819
        %v2540 = vpack.c.b16 %v1835, %v1820
        %v2541 = vpack.c.b16 %v1836, %v1821
        %v2542 = vpack.c.b16 %v1837, %v1822
        %v2543 = vpack.c.b16 %v1838, %v1823
        %v2544 = vpack.c.b16 %v1839, %v1824
        %v2545 = vpack.c.b16 %v1840, %v1825
        %v2546 = vpack.c.b16 %v1841, %v1826
        %v2547 = vpack.c.b16 %v1842, %v1827
        %v2548 = vpack.c.b16 %v1858, %v1843
        %v2549 = vpack.c.b16 %v1859, %v1844
        %v2550 = vpack.c.b16 %v1860, %v1845
        %v2551 = vpack.c.b16 %v1861, %v1846
        %v2552 = vpack.c.b16 %v1862, %v1847
        %v2553 = vpack.c.b16 %v1863, %v1848
        %v2554 = vpack.c.b16 %v1864, %v1849
        %v2555 = vpack.c.b16 %v1865, %v1850
        %v2556 = vpack.c.b16 %v1866, %v1851
        %v2557 = vpack.c.b16 %v1867, %v1852
        %v2558 = vpack.c.b16 %v1868, %v1853
        %v2559 = vpack.c.b16 %v1869, %v1854
        %v2560 = vpack.c.b16 %v1870, %v1855
        %v2561 = vpack.c.b16 %v1871, %v1856
        %v2562 = vpack.c.b16 %v1872, %v1857
        %v2563 = vpack.c.b16 %v1888, %v1873
        %v2564 = vpack.c.b16 %v1889, %v1874
        %v2565 = vpack.c.b16 %v1890, %v1875
        %v2566 = vpack.c.b16 %v1891, %v1876
        %v2567 = vpack.c.b16 %v1892, %v1877
        %v2568 = vpack.c.b16 %v1893, %v1878
        %v2569 = vpack.c.b16 %v1894, %v1879
        %v2570 = vpack.c.b16 %v1895, %v1880
        %v2571 = vpack.c.b16 %v1896, %v1881
        %v2572 = vpack.c.b16 %v1897, %v1882
        %v2573 = vpack.c.b16 %v1898, %v1883
        %v2574 = vpack.c.b16 %v1899, %v1884
        %v2575 = vpack.c.b16 %v1900, %v1885
        %v2576 = vpack.c.b16 %v1901, %v1886
        %v2577 = vpack.c.b16 %v1902, %v1887
        %v2578 = vpack.c.b16 %v1918, %v1903
        %v2579 = vpack.c.b16 %v1919, %v1904
        %v2580 = vpack.c.b16 %v1920, %v1905
        %v2581 = vpack.c.b16 %v1921, %v1906
        %v2582 = vpack.c.b16 %v1922, %v1907
        %v2583 = vpack.c.b16 %v1923, %v1908
        %v2584 = vpack.c.b16 %v1924, %v1909
        %v2585 = vpack.c.b16 %v1925, %v1910
        %v2586 = vpack.c.b16 %v1926, %v1911
        %v2587 = vpack.c.b16 %v1927, %v1912
        %v2588 = vpack.c.b16 %v1928, %v1913
        %v2589 = vpack.c.b16 %v1929, %v1914
        %v2590 = vpack.c.b16 %v1930, %v1915
        %v2591 = vpack.c.b16 %v1931, %v1916
        %v2592 = vpack.c.b16 %v1932, %v1917
        %v2593 = vpack.c.b16 %v1948, %v1933
        %v2594 = vpack.c.b16 %v1949, %v1934
        %v2595 = vpack.c.b16 %v1950, %v1935
        %v2596 = vpack.c.b16 %v1951, %v1936
        %v2597 = vpack.c.b16 %v1952, %v1937
        %v2598 = vpack.c.b16 %v1953, %v1938
        %v2599 = vpack.c.b16 %v1954, %v1939
        %v2600 = vpack.c.b16 %v1955, %v1940
        %v2601 = vpack.c.b16 %v1956, %v1941
        %v2602 = vpack.c.b16 %v1957, %v1942
        %v2603 = vpack.c.b16 %v1958, %v1943
        %v2604 = vpack.c.b16 %v1959, %v1944
        %v2605 = vpack.c.b16 %v1960, %v1945
        %v2606 = vpack.c.b16 %v1961, %v1946
        %v2607 = vpack.c.b16 %v1962, %v1947
        %v2608 = vpack.c.b16 %v1978, %v1963
        %v2609 = vpack.c.b16 %v1979, %v1964
        %v2610 = vpack.c.b16 %v1980, %v1965
        %v2611 = vpack.c.b16 %v1981, %v1966
        %v2612 = vpack.c.b16 %v1982, %v1967
        %v2613 = vpack.c.b16 %v1983, %v1968
        %v2614 = vpack.c.b16 %v1984, %v1969
        %v2615 = vpack.c.b16 %v1985, %v1970
        %v2616 = vpack.c.b16 %v1986, %v1971
        %v2617 = vpack.c.b16 %v1987, %v1972
        %v2618 = vpack.c.b16 %v1988, %v1973
        %v2619 = vpack.c.b16 %v1989, %v1974
        %v2620 = vpack.c.b16 %v1990, %v1975
        %v2621 = vpack.c.b16 %v1991, %v1976
        %v2622 = vpack.c.b16 %v1992, %v1977
        %v2623 = vpack.c.b16 %v2008, %v1993
        %v2624 = vpack.c.b16 %v2009, %v1994
        %v2625 = vpack.c.b16 %v2010, %v1995
        %v2626 = vpack.c.b16 %v2011, %v1996
        %v2627 = vpack.c.b16 %v2012, %v1997
        %v2628 = vpack.c.b16 %v2013, %v1998
        %v2629 = vpack.c.b16 %v2014, %v1999
        %v2630 = vpack.c.b16 %v2015, %v2000
        %v2631 = vpack.c.b16 %v2016, %v2001
        %v2632 = vpack.c.b16 %v2017, %v2002
        %v2633 = vpack.c.b16 %v2018, %v2003
        %v2634 = vpack.c.b16 %v2019, %v2004
        %v2635 = vpack.c.b16 %v2020, %v2005
        %v2636 = vpack.c.b16 %v2021, %v2006
        %v2637 = vpack.c.b16 %v2022, %v2007
        %v2638 = vpack.c.b16 %v2038, %v2023
        %v2639 = vpack.c.b16 %v2039, %v2024
        %v2640 = vpack.c.b16 %v2040, %v2025
        %v2641 = vpack.c.b16 %v2041, %v2026
        %v2642 = vpack.c.b16 %v2042, %v2027
        %v2643 = vpack.c.b16 %v2043, %v2028
        %v2644 = vpack.c.b16 %v2044, %v2029
        %v2645 = vpack.c.b16 %v2045, %v2030
        %v2646 = vpack.c.b16 %v2046, %v2031
        %v2647 = vpack.c.b16 %v2047, %v2032
        %v2648 = vpack.c.b16 %v2048, %v2033
        %v2649 = vpack.c.b16 %v2049, %v2034
        %v2650 = vpack.c.b16 %v2050, %v2035
        %v2651 = vpack.c.b16 %v2051, %v2036
        %v2652 = vpack.c.b16 %v2052, %v2037
        %v2653 = vpack.c.b16 %v2068, %v2053
        %v2654 = vpack.c.b16 %v2069, %v2054
        %v2655 = vpack.c.b16 %v2070, %v2055
        %v2656 = vpack.c.b16 %v2071, %v2056
        %v2657 = vpack.c.b16 %v2072, %v2057
        %v2658 = vpack.c.b16 %v2073, %v2058
        %v2659 = vpack.c.b16 %v2074, %v2059
        %v2660 = vpack.c.b16 %v2075, %v2060
        %v2661 = vpack.c.b16 %v2076, %v2061
        %v2662 = vpack.c.b16 %v2077, %v2062
        %v2663 = vpack.c.b16 %v2078, %v2063
        %v2664 = vpack.c.b16 %v2079, %v2064
        %v2665 = vpack.c.b16 %v2080, %v2065
        %v2666 = vpack.c.b16 %v2081, %v2066
        %v2667 = vpack.c.b16 %v2082, %v2067
        %v2668 = vpack.c.b16 %v2098, %v2083
        %v2669 = vpack.c.b16 %v2099, %v2084
        %v2670 = vpack.c.b16 %v2100, %v2085
        %v2671 = vpack.c.b16 %v2101, %v2086
        %v2672 = vpack.c.b16 %v2102, %v2087
        %v2673 = vpack.c.b16 %v2103, %v2088
        %v2674 = vpack.c.b16 %v2104, %v2089
        %v2675 = vpack.c.b16 %v2105, %v2090
        %v2676 = vpack.c.b16 %v2106, %v2091
        %v2677 = vpack.c.b16 %v2107, %v2092
        %v2678 = vpack.c.b16 %v2108, %v2093
        %v2679 = vpack.c.b16 %v2109, %v2094
        %v2680 = vpack.c.b16 %v2110, %v2095
        %v2681 = vpack.c.b16 %v2111, %v2096
        %v2682 = vpack.c.b16 %v2112, %v2097
        %v2683 = vpack.c.b16 %v2128, %v2113
        %v2684 = vpack.c.b16 %v2129, %v2114
        %v2685 = vpack.c.b16 %v2130, %v2115
        %v2686 = vpack.c.b16 %v2131, %v2116
        %v2687 = vpack.c.b16 %v2132, %v2117
        %v2688 = vpack.c.b16 %v2133, %v2118
        %v2689 = vpack.c.b16 %v2134, %v2119
        %v2690 = vpack.c.b16 %v2135, %v2120
        %v2691 = vpack.c.b16 %v2136, %v2121
        %v2692 = vpack.c.b16 %v2137, %v2122
        %v2693 = vpack.c.b16 %v2138, %v2123
        %v2694 = vpack.c.b16 %v2139, %v2124
        %v2695 = vpack.c.b16 %v2140, %v2125
        %v2696 = vpack.c.b16 %v2141, %v2126
        %v2697 = vpack.c.b16 %v2142, %v2127
        %v2698 = vpack.c.b16 %v2158, %v2143
        %v2699 = vpack.c.b16 %v2159, %v2144
        %v2700 = vpack.c.b16 %v2160, %v2145
        %v2701 = vpack.c.b16 %v2161, %v2146
        %v2702 = vpack.c.b16 %v2162, %v2147
        %v2703 = vpack.c.b16 %v2163, %v2148
        %v2704 = vpack.c.b16 %v2164, %v2149
        %v2705 = vpack.c.b16 %v2165, %v2150
        %v2706 = vpack.c.b16 %v2166, %v2151
        %v2707 = vpack.c.b16 %v2167, %v2152
        %v2708 = vpack.c.b16 %v2168, %v2153
        %v2709 = vpack.c.b16 %v2169, %v2154
        %v2710 = vpack.c.b16 %v2170, %v2155
        %v2711 = vpack.c.b16 %v2171, %v2156
        %v2712 = vpack.c.b16 %v2172, %v2157
        %v2713 = vpack.c.b16 %v2188, %v2173
        %v2714 = vpack.c.b16 %v2189, %v2174
        %v2715 = vpack.c.b16 %v2190, %v2175
        %v2716 = vpack.c.b16 %v2191, %v2176
        %v2717 = vpack.c.b16 %v2192, %v2177
        %v2718 = vpack.c.b16 %v2193, %v2178
        %v2719 = vpack.c.b16 %v2194, %v2179
        %v2720 = vpack.c.b16 %v2195, %v2180
        %v2721 = vpack.c.b16 %v2196, %v2181
        %v2722 = vpack.c.b16 %v2197, %v2182
        %v2723 = vpack.c.b16 %v2198, %v2183
        %v2724 = vpack.c.b16 %v2199, %v2184
        %v2725 = vpack.c.b16 %v2200, %v2185
        %v2726 = vpack.c.b16 %v2201, %v2186
        %v2727 = vpack.c.b16 %v2202, %v2187
        %v2728 = vpack.c.b16 %v2218, %v2203
        %v2729 = vpack.c.b16 %v2219, %v2204
        %v2730 = vpack.c.b16 %v2220, %v2205
        %v2731 = vpack.c.b16 %v2221, %v2206
        %v2732 = vpack.c.b16 %v2222, %v2207
        %v2733 = vpack.c.b16 %v2223, %v2208
        %v2734 = vpack.c.b16 %v2224, %v2209
        %v2735 = vpack.c.b16 %v2225, %v2210
        %v2736 = vpack.c.b16 %v2226, %v2211
        %v2737 = vpack.c.b16 %v2227, %v2212
        %v2738 = vpack.c.b16 %v2228, %v2213
        %v2739 = vpack.c.b16 %v2229, %v2214
        %v2740 = vpack.c.b16 %v2230, %v2215
        %v2741 = vpack.c.b16 %v2231, %v2216
        %v2742 = vpack.c.b16 %v2232, %v2217
        %v2743 = vpack.c.b16 %v2248, %v2233
        %v2744 = vpack.c.b16 %v2249, %v2234
        %v2745 = vpack.c.b16 %v2250, %v2235
        %v2746 = vpack.c.b16 %v2251, %v2236
        %v2747 = vpack.c.b16 %v2252, %v2237
        %v2748 = vpack.c.b16 %v2253, %v2238
        %v2749 = vpack.c.b16 %v2254, %v2239
        %v2750 = vpack.c.b16 %v2255, %v2240
        %v2751 = vpack.c.b16 %v2256, %v2241
        %v2752 = vpack.c.b16 %v2257, %v2242
        %v2753 = vpack.c.b16 %v2258, %v2243
        %v2754 = vpack.c.b16 %v2259, %v2244
        %v2755 = vpack.c.b16 %v2260, %v2245
        %v2756 = vpack.c.b16 %v2261, %v2246
        %v2757 = vpack.c.b16 %v2262, %v2247
        %v2758 = vpack.c.b16 %v2278, %v2263
        %v2759 = vpack.c.b16 %v2279, %v2264
        %v2760 = vpack.c.b16 %v2280, %v2265
        %v2761 = vpack.c.b16 %v2281, %v2266
        %v2762 = vpack.c.b16 %v2282, %v2267
        %v2763 = vpack.c.b16 %v2283, %v2268
        %v2764 = vpack.c.b16 %v2284, %v2269
        %v2765 = vpack.c.b16 %v2285, %v2270
        %v2766 = vpack.c.b16 %v2286, %v2271
        %v2767 = vpack.c.b16 %v2287, %v2272
        %v2768 = vpack.c.b16 %v2288, %v2273
        %v2769 = vpack.c.b16 %v2289, %v2274
        %v2770 = vpack.c.b16 %v2290, %v2275
        %v2771 = vpack.c.b16 %v2291, %v2276
        %v2772 = vpack.c.b16 %v2292, %v2277
        %v2773 = vpack.c.b16 %v2308, %v2293
        %v2774 = vpack.c.b16 %v2309, %v2294
        %v2775 = vpack.c.b16 %v2310, %v2295
        %v2776 = vpack.c.b16 %v2311, %v2296
        %v2777 = vpack.c.b16 %v2312, %v2297
        %v2778 = vpack.c.b16 %v2313, %v2298
        %v2779 = vpack.c.b16 %v2314, %v2299
        %v2780 = vpack.c.b16 %v2315, %v2300
        %v2781 = vpack.c.b16 %v2316, %v2301
        %v2782 = vpack.c.b16 %v2317, %v2302
        %v2783 = vpack.c.b16 %v2318, %v2303
        %v2784 = vpack.c.b16 %v2319, %v2304
        %v2785 = vpack.c.b16 %v2320, %v2305
        %v2786 = vpack.c.b16 %v2321, %v2306
        %v2787 = vpack.c.b16 %v2322, %v2307
        %v2788 = vpack.c.b16 %v2338, %v2323
        %v2789 = vpack.c.b16 %v2339, %v2324
        %v2790 = vpack.c.b16 %v2340, %v2325
        %v2791 = vpack.c.b16 %v2341, %v2326
        %v2792 = vpack.c.b16 %v2342, %v2327
        %v2793 = vpack.c.b16 %v2343, %v2328
        %v2794 = vpack.c.b16 %v2344, %v2329
        %v2795 = vpack.c.b16 %v2345, %v2330
        %v2796 = vpack.c.b16 %v2346, %v2331
        %v2797 = vpack.c.b16 %v2347, %v2332
        %v2798 = vpack.c.b16 %v2348, %v2333
        %v2799 = vpack.c.b16 %v2349, %v2334
        %v2800 = vpack.c.b16 %v2350, %v2335
        %v2801 = vpack.c.b16 %v2351, %v2336
        %v2802 = vpack.c.b16 %v2352, %v2337
        %3253 = vmatpush.bf16.xpose.msra.mxu0 %v2458
        %3254 = vmatpush.bf16.xpose.msra.mxu0 %v2443
        %3255 = vmatpush.bf16.xpose.msra.mxu0 %v2428
        %3256 = vmatpush.bf16.xpose.msra.mxu0 %v2413
        %3257 = vmatpush.bf16.xpose.msra.mxu0 %v2398
        %3258 = vmatpush.bf16.xpose.msra.mxu0 %v2383
        %3259 = vmatpush.bf16.xpose.msra.mxu0 %v2368
        %3260 = vmatpush.bf16.xpose.msra.mxu0 %v2353
        %3261 = vmatmul.bf16.gmra.mxu0 %v478
        %v3262 = vpop.f32.mrf.mxu0
        %v3263 = vadd.f32 0.0, %v3262
        %v3264 = vpop.f32.mrf.mxu0
        %3265 = vdwg.mxu0
        %3266 = vmatpush.bf16.xpose.msra.mxu0 %v2459
        %3267 = vmatpush.bf16.xpose.msra.mxu0 %v2444
        %3268 = vmatpush.bf16.xpose.msra.mxu0 %v2429
        %3269 = vmatpush.bf16.xpose.msra.mxu0 %v2414
        %3270 = vmatpush.bf16.xpose.msra.mxu0 %v2399
        %3271 = vmatpush.bf16.xpose.msra.mxu0 %v2384
        %3272 = vmatpush.bf16.xpose.msra.mxu0 %v2369
        %3273 = vmatpush.bf16.xpose.msra.mxu0 %v2354
        %3274 = vmatmul.bf16.gmra.mxu0 %v479
        %v3275 = vpop.f32.mrf.mxu0
        %v3276 = vadd.f32 %v3263, %v3275
        %v3277 = vpop.f32.mrf.mxu0
        %3278 = vdwg.mxu0
        %3279 = vmatpush.bf16.xpose.msra.mxu0 %v2460
        %3280 = vmatpush.bf16.xpose.msra.mxu0 %v2445
        %3281 = vmatpush.bf16.xpose.msra.mxu0 %v2430
        %3282 = vmatpush.bf16.xpose.msra.mxu0 %v2415
        %3283 = vmatpush.bf16.xpose.msra.mxu0 %v2400
        %3284 = vmatpush.bf16.xpose.msra.mxu0 %v2385
        %3285 = vmatpush.bf16.xpose.msra.mxu0 %v2370
        %3286 = vmatpush.bf16.xpose.msra.mxu0 %v2355
        %3287 = vmatmul.bf16.gmra.mxu0 %v480
        %v3288 = vpop.f32.mrf.mxu0
        %v3289 = vadd.f32 %v3276, %v3288
        %v3290 = vpop.f32.mrf.mxu0
        %3291 = vdwg.mxu0
        %3292 = vmatpush.bf16.xpose.msra.mxu0 %v2461
        %3293 = vmatpush.bf16.xpose.msra.mxu0 %v2446
        %3294 = vmatpush.bf16.xpose.msra.mxu0 %v2431
        %3295 = vmatpush.bf16.xpose.msra.mxu0 %v2416
        %3296 = vmatpush.bf16.xpose.msra.mxu0 %v2401
        %3297 = vmatpush.bf16.xpose.msra.mxu0 %v2386
        %3298 = vmatpush.bf16.xpose.msra.mxu0 %v2371
        %3299 = vmatpush.bf16.xpose.msra.mxu0 %v2356
        %3300 = vmatmul.bf16.gmra.mxu0 %v481
        %v3301 = vpop.f32.mrf.mxu0
        %v3302 = vadd.f32 %v3289, %v3301
        %v3303 = vpop.f32.mrf.mxu0
        %3304 = vdwg.mxu0
        %3305 = vmatpush.bf16.xpose.msra.mxu0 %v2462
        %3306 = vmatpush.bf16.xpose.msra.mxu0 %v2447
        %3307 = vmatpush.bf16.xpose.msra.mxu0 %v2432
        %3308 = vmatpush.bf16.xpose.msra.mxu0 %v2417
        %3309 = vmatpush.bf16.xpose.msra.mxu0 %v2402
        %3310 = vmatpush.bf16.xpose.msra.mxu0 %v2387
        %3311 = vmatpush.bf16.xpose.msra.mxu0 %v2372
        %3312 = vmatpush.bf16.xpose.msra.mxu0 %v2357
        %3313 = vmatmul.bf16.gmra.mxu0 %v482
        %v3314 = vpop.f32.mrf.mxu0
        %v3315 = vadd.f32 %v3302, %v3314
        %v3316 = vpop.f32.mrf.mxu0
        %3317 = vdwg.mxu0
        %3318 = vmatpush.bf16.xpose.msra.mxu0 %v2463
        %3319 = vmatpush.bf16.xpose.msra.mxu0 %v2448
        %3320 = vmatpush.bf16.xpose.msra.mxu0 %v2433
        %3321 = vmatpush.bf16.xpose.msra.mxu0 %v2418
        %3322 = vmatpush.bf16.xpose.msra.mxu0 %v2403
        %3323 = vmatpush.bf16.xpose.msra.mxu0 %v2388
        %3324 = vmatpush.bf16.xpose.msra.mxu0 %v2373
        %3325 = vmatpush.bf16.xpose.msra.mxu0 %v2358
        %3326 = vmatmul.bf16.gmra.mxu0 %v483
        %v3327 = vpop.f32.mrf.mxu0
        %v3328 = vadd.f32 %v3315, %v3327
        %v3329 = vpop.f32.mrf.mxu0
        %3330 = vdwg.mxu0
        %3331 = vmatpush.bf16.xpose.msra.mxu0 %v2464
        %3332 = vmatpush.bf16.xpose.msra.mxu0 %v2449
        %3333 = vmatpush.bf16.xpose.msra.mxu0 %v2434
        %3334 = vmatpush.bf16.xpose.msra.mxu0 %v2419
        %3335 = vmatpush.bf16.xpose.msra.mxu0 %v2404
        %3336 = vmatpush.bf16.xpose.msra.mxu0 %v2389
        %3337 = vmatpush.bf16.xpose.msra.mxu0 %v2374
        %3338 = vmatpush.bf16.xpose.msra.mxu0 %v2359
        %3339 = vmatmul.bf16.gmra.mxu0 %v484
        %v3340 = vpop.f32.mrf.mxu0
        %v3341 = vadd.f32 %v3328, %v3340
        %v3342 = vpop.f32.mrf.mxu0
        %3343 = vdwg.mxu0
        %3344 = vmatpush.bf16.xpose.msra.mxu0 %v2465
        %3345 = vmatpush.bf16.xpose.msra.mxu0 %v2450
        %3346 = vmatpush.bf16.xpose.msra.mxu0 %v2435
        %3347 = vmatpush.bf16.xpose.msra.mxu0 %v2420
        %3348 = vmatpush.bf16.xpose.msra.mxu0 %v2405
        %3349 = vmatpush.bf16.xpose.msra.mxu0 %v2390
        %3350 = vmatpush.bf16.xpose.msra.mxu0 %v2375
        %3351 = vmatpush.bf16.xpose.msra.mxu0 %v2360
        %3352 = vmatmul.bf16.gmra.mxu0 %v485
        %v3353 = vpop.f32.mrf.mxu0
        %v3354 = vadd.f32 %v3341, %v3353
        %v3355 = vpop.f32.mrf.mxu0
        %3356 = vdwg.mxu0
        %3357 = vmatpush.bf16.xpose.msra.mxu0 %v2466
        %3358 = vmatpush.bf16.xpose.msra.mxu0 %v2451
        %3359 = vmatpush.bf16.xpose.msra.mxu0 %v2436
        %3360 = vmatpush.bf16.xpose.msra.mxu0 %v2421
        %3361 = vmatpush.bf16.xpose.msra.mxu0 %v2406
        %3362 = vmatpush.bf16.xpose.msra.mxu0 %v2391
        %3363 = vmatpush.bf16.xpose.msra.mxu0 %v2376
        %3364 = vmatpush.bf16.xpose.msra.mxu0 %v2361
        %3365 = vmatmul.bf16.gmra.mxu0 %v486
        %v3366 = vpop.f32.mrf.mxu0
        %v3367 = vadd.f32 %v3354, %v3366
        %v3368 = vpop.f32.mrf.mxu0
        %3369 = vdwg.mxu0
        %3370 = vmatpush.bf16.xpose.msra.mxu0 %v2467
        %3371 = vmatpush.bf16.xpose.msra.mxu0 %v2452
        %3372 = vmatpush.bf16.xpose.msra.mxu0 %v2437
        %3373 = vmatpush.bf16.xpose.msra.mxu0 %v2422
        %3374 = vmatpush.bf16.xpose.msra.mxu0 %v2407
        %3375 = vmatpush.bf16.xpose.msra.mxu0 %v2392
        %3376 = vmatpush.bf16.xpose.msra.mxu0 %v2377
        %3377 = vmatpush.bf16.xpose.msra.mxu0 %v2362
        %3378 = vmatmul.bf16.gmra.mxu0 %v487
        %v3379 = vpop.f32.mrf.mxu0
        %v3380 = vadd.f32 %v3367, %v3379
        %v3381 = vpop.f32.mrf.mxu0
        %3382 = vdwg.mxu0
        %3383 = vmatpush.bf16.xpose.msra.mxu0 %v2468
        %3384 = vmatpush.bf16.xpose.msra.mxu0 %v2453
        %3385 = vmatpush.bf16.xpose.msra.mxu0 %v2438
        %3386 = vmatpush.bf16.xpose.msra.mxu0 %v2423
        %3387 = vmatpush.bf16.xpose.msra.mxu0 %v2408
        %3388 = vmatpush.bf16.xpose.msra.mxu0 %v2393
        %3389 = vmatpush.bf16.xpose.msra.mxu0 %v2378
        %3390 = vmatpush.bf16.xpose.msra.mxu0 %v2363
        %3391 = vmatmul.bf16.gmra.mxu0 %v488
        %v3392 = vpop.f32.mrf.mxu0
        %v3393 = vadd.f32 %v3380, %v3392
        %v3394 = vpop.f32.mrf.mxu0
        %3395 = vdwg.mxu0
        %3396 = vmatpush.bf16.xpose.msra.mxu0 %v2469
        %3397 = vmatpush.bf16.xpose.msra.mxu0 %v2454
        %3398 = vmatpush.bf16.xpose.msra.mxu0 %v2439
        %3399 = vmatpush.bf16.xpose.msra.mxu0 %v2424
        %3400 = vmatpush.bf16.xpose.msra.mxu0 %v2409
        %3401 = vmatpush.bf16.xpose.msra.mxu0 %v2394
        %3402 = vmatpush.bf16.xpose.msra.mxu0 %v2379
        %3403 = vmatpush.bf16.xpose.msra.mxu0 %v2364
        %3404 = vmatmul.bf16.gmra.mxu0 %v489
        %v3405 = vpop.f32.mrf.mxu0
        %v3406 = vadd.f32 %v3393, %v3405
        %v3407 = vpop.f32.mrf.mxu0
        %3408 = vdwg.mxu0
        %3409 = vmatpush.bf16.xpose.msra.mxu0 %v2470
        %3410 = vmatpush.bf16.xpose.msra.mxu0 %v2455
        %3411 = vmatpush.bf16.xpose.msra.mxu0 %v2440
        %3412 = vmatpush.bf16.xpose.msra.mxu0 %v2425
        %3413 = vmatpush.bf16.xpose.msra.mxu0 %v2410
        %3414 = vmatpush.bf16.xpose.msra.mxu0 %v2395
        %3415 = vmatpush.bf16.xpose.msra.mxu0 %v2380
        %3416 = vmatpush.bf16.xpose.msra.mxu0 %v2365
        %3417 = vmatmul.bf16.gmra.mxu0 %v490
        %v3418 = vpop.f32.mrf.mxu0
        %v3419 = vadd.f32 %v3406, %v3418
        %v3420 = vpop.f32.mrf.mxu0
        %3421 = vdwg.mxu0
        %3422 = vmatpush.bf16.xpose.msra.mxu0 %v2471
        %3423 = vmatpush.bf16.xpose.msra.mxu0 %v2456
        %3424 = vmatpush.bf16.xpose.msra.mxu0 %v2441
        %3425 = vmatpush.bf16.xpose.msra.mxu0 %v2426
        %3426 = vmatpush.bf16.xpose.msra.mxu0 %v2411
        %3427 = vmatpush.bf16.xpose.msra.mxu0 %v2396
        %3428 = vmatpush.bf16.xpose.msra.mxu0 %v2381
        %3429 = vmatpush.bf16.xpose.msra.mxu0 %v2366
        %3430 = vmatmul.bf16.gmra.mxu0 %v491
        %v3431 = vpop.f32.mrf.mxu0
        %v3432 = vadd.f32 %v3419, %v3431
        %v3433 = vpop.f32.mrf.mxu0
        %3434 = vdwg.mxu0
        %3435 = vmatpush.bf16.xpose.msra.mxu0 %v2472
        %3436 = vmatpush.bf16.xpose.msra.mxu0 %v2457
        %3437 = vmatpush.bf16.xpose.msra.mxu0 %v2442
        %3438 = vmatpush.bf16.xpose.msra.mxu0 %v2427
        %3439 = vmatpush.bf16.xpose.msra.mxu0 %v2412
        %3440 = vmatpush.bf16.xpose.msra.mxu0 %v2397
        %3441 = vmatpush.bf16.xpose.msra.mxu0 %v2382
        %3442 = vmatpush.bf16.xpose.msra.mxu0 %v2367
        %3443 = vmatmul.bf16.gmra.mxu0 %v492
        %v3444 = vpop.f32.mrf.mxu0
        %v3445 = vadd.f32 %v3432, %v3444
        %v3446 = vpop.f32.mrf.mxu0
        %3447 = vdwg.mxu0
        %3448 = vmatpush.bf16.xpose.msra.mxu0 %v2578
        %3449 = vmatpush.bf16.xpose.msra.mxu0 %v2563
        %3450 = vmatpush.bf16.xpose.msra.mxu0 %v2548
        %3451 = vmatpush.bf16.xpose.msra.mxu0 %v2533
        %3452 = vmatpush.bf16.xpose.msra.mxu0 %v2518
        %3453 = vmatpush.bf16.xpose.msra.mxu0 %v2503
        %3454 = vmatpush.bf16.xpose.msra.mxu0 %v2488
        %3455 = vmatpush.bf16.xpose.msra.mxu0 %v2473
        %3456 = vmatmul.bf16.gmra.mxu0 %v478
        %v3457 = vpop.f32.mrf.mxu0
        %v3458 = vadd.f32 0.0, %v3457
        %v3459 = vpop.f32.mrf.mxu0
        %3460 = vdwg.mxu0
        %3461 = vmatpush.bf16.xpose.msra.mxu0 %v2579
        %3462 = vmatpush.bf16.xpose.msra.mxu0 %v2564
        %3463 = vmatpush.bf16.xpose.msra.mxu0 %v2549
        %3464 = vmatpush.bf16.xpose.msra.mxu0 %v2534
        %3465 = vmatpush.bf16.xpose.msra.mxu0 %v2519
        %3466 = vmatpush.bf16.xpose.msra.mxu0 %v2504
        %3467 = vmatpush.bf16.xpose.msra.mxu0 %v2489
        %3468 = vmatpush.bf16.xpose.msra.mxu0 %v2474
        %3469 = vmatmul.bf16.gmra.mxu0 %v479
        %v3470 = vpop.f32.mrf.mxu0
        %v3471 = vadd.f32 %v3458, %v3470
        %v3472 = vpop.f32.mrf.mxu0
        %3473 = vdwg.mxu0
        %3474 = vmatpush.bf16.xpose.msra.mxu0 %v2580
        %3475 = vmatpush.bf16.xpose.msra.mxu0 %v2565
        %3476 = vmatpush.bf16.xpose.msra.mxu0 %v2550
        %3477 = vmatpush.bf16.xpose.msra.mxu0 %v2535
        %3478 = vmatpush.bf16.xpose.msra.mxu0 %v2520
        %3479 = vmatpush.bf16.xpose.msra.mxu0 %v2505
        %3480 = vmatpush.bf16.xpose.msra.mxu0 %v2490
        %3481 = vmatpush.bf16.xpose.msra.mxu0 %v2475
        %3482 = vmatmul.bf16.gmra.mxu0 %v480
        %v3483 = vpop.f32.mrf.mxu0
        %v3484 = vadd.f32 %v3471, %v3483
        %v3485 = vpop.f32.mrf.mxu0
        %3486 = vdwg.mxu0
        %3487 = vmatpush.bf16.xpose.msra.mxu0 %v2581
        %3488 = vmatpush.bf16.xpose.msra.mxu0 %v2566
        %3489 = vmatpush.bf16.xpose.msra.mxu0 %v2551
        %3490 = vmatpush.bf16.xpose.msra.mxu0 %v2536
        %3491 = vmatpush.bf16.xpose.msra.mxu0 %v2521
        %3492 = vmatpush.bf16.xpose.msra.mxu0 %v2506
        %3493 = vmatpush.bf16.xpose.msra.mxu0 %v2491
        %3494 = vmatpush.bf16.xpose.msra.mxu0 %v2476
        %3495 = vmatmul.bf16.gmra.mxu0 %v481
        %v3496 = vpop.f32.mrf.mxu0
        %v3497 = vadd.f32 %v3484, %v3496
        %v3498 = vpop.f32.mrf.mxu0
        %3499 = vdwg.mxu0
        %3500 = vmatpush.bf16.xpose.msra.mxu0 %v2582
        %3501 = vmatpush.bf16.xpose.msra.mxu0 %v2567
        %3502 = vmatpush.bf16.xpose.msra.mxu0 %v2552
        %3503 = vmatpush.bf16.xpose.msra.mxu0 %v2537
        %3504 = vmatpush.bf16.xpose.msra.mxu0 %v2522
        %3505 = vmatpush.bf16.xpose.msra.mxu0 %v2507
        %3506 = vmatpush.bf16.xpose.msra.mxu0 %v2492
        %3507 = vmatpush.bf16.xpose.msra.mxu0 %v2477
        %3508 = vmatmul.bf16.gmra.mxu0 %v482
        %v3509 = vpop.f32.mrf.mxu0
        %v3510 = vadd.f32 %v3497, %v3509
        %v3511 = vpop.f32.mrf.mxu0
        %3512 = vdwg.mxu0
        %3513 = vmatpush.bf16.xpose.msra.mxu0 %v2583
        %3514 = vmatpush.bf16.xpose.msra.mxu0 %v2568
        %3515 = vmatpush.bf16.xpose.msra.mxu0 %v2553
        %3516 = vmatpush.bf16.xpose.msra.mxu0 %v2538
        %3517 = vmatpush.bf16.xpose.msra.mxu0 %v2523
        %3518 = vmatpush.bf16.xpose.msra.mxu0 %v2508
        %3519 = vmatpush.bf16.xpose.msra.mxu0 %v2493
        %3520 = vmatpush.bf16.xpose.msra.mxu0 %v2478
        %3521 = vmatmul.bf16.gmra.mxu0 %v483
        %v3522 = vpop.f32.mrf.mxu0
        %v3523 = vadd.f32 %v3510, %v3522
        %v3524 = vpop.f32.mrf.mxu0
        %3525 = vdwg.mxu0
        %3526 = vmatpush.bf16.xpose.msra.mxu0 %v2584
        %3527 = vmatpush.bf16.xpose.msra.mxu0 %v2569
        %3528 = vmatpush.bf16.xpose.msra.mxu0 %v2554
        %3529 = vmatpush.bf16.xpose.msra.mxu0 %v2539
        %3530 = vmatpush.bf16.xpose.msra.mxu0 %v2524
        %3531 = vmatpush.bf16.xpose.msra.mxu0 %v2509
        %3532 = vmatpush.bf16.xpose.msra.mxu0 %v2494
        %3533 = vmatpush.bf16.xpose.msra.mxu0 %v2479
        %3534 = vmatmul.bf16.gmra.mxu0 %v484
        %v3535 = vpop.f32.mrf.mxu0
        %v3536 = vadd.f32 %v3523, %v3535
        %v3537 = vpop.f32.mrf.mxu0
        %3538 = vdwg.mxu0
        %3539 = vmatpush.bf16.xpose.msra.mxu0 %v2585
        %3540 = vmatpush.bf16.xpose.msra.mxu0 %v2570
        %3541 = vmatpush.bf16.xpose.msra.mxu0 %v2555
        %3542 = vmatpush.bf16.xpose.msra.mxu0 %v2540
        %3543 = vmatpush.bf16.xpose.msra.mxu0 %v2525
        %3544 = vmatpush.bf16.xpose.msra.mxu0 %v2510
        %3545 = vmatpush.bf16.xpose.msra.mxu0 %v2495
        %3546 = vmatpush.bf16.xpose.msra.mxu0 %v2480
        %3547 = vmatmul.bf16.gmra.mxu0 %v485
        %v3548 = vpop.f32.mrf.mxu0
        %v3549 = vadd.f32 %v3536, %v3548
        %v3550 = vpop.f32.mrf.mxu0
        %3551 = vdwg.mxu0
        %3552 = vmatpush.bf16.xpose.msra.mxu0 %v2586
        %3553 = vmatpush.bf16.xpose.msra.mxu0 %v2571
        %3554 = vmatpush.bf16.xpose.msra.mxu0 %v2556
        %3555 = vmatpush.bf16.xpose.msra.mxu0 %v2541
        %3556 = vmatpush.bf16.xpose.msra.mxu0 %v2526
        %3557 = vmatpush.bf16.xpose.msra.mxu0 %v2511
        %3558 = vmatpush.bf16.xpose.msra.mxu0 %v2496
        %3559 = vmatpush.bf16.xpose.msra.mxu0 %v2481
        %3560 = vmatmul.bf16.gmra.mxu0 %v486
        %v3561 = vpop.f32.mrf.mxu0
        %v3562 = vadd.f32 %v3549, %v3561
        %v3563 = vpop.f32.mrf.mxu0
        %3564 = vdwg.mxu0
        %3565 = vmatpush.bf16.xpose.msra.mxu0 %v2587
        %3566 = vmatpush.bf16.xpose.msra.mxu0 %v2572
        %3567 = vmatpush.bf16.xpose.msra.mxu0 %v2557
        %3568 = vmatpush.bf16.xpose.msra.mxu0 %v2542
        %3569 = vmatpush.bf16.xpose.msra.mxu0 %v2527
        %3570 = vmatpush.bf16.xpose.msra.mxu0 %v2512
        %3571 = vmatpush.bf16.xpose.msra.mxu0 %v2497
        %3572 = vmatpush.bf16.xpose.msra.mxu0 %v2482
        %3573 = vmatmul.bf16.gmra.mxu0 %v487
        %v3574 = vpop.f32.mrf.mxu0
        %v3575 = vadd.f32 %v3562, %v3574
        %v3576 = vpop.f32.mrf.mxu0
        %3577 = vdwg.mxu0
        %3578 = vmatpush.bf16.xpose.msra.mxu0 %v2588
        %3579 = vmatpush.bf16.xpose.msra.mxu0 %v2573
        %3580 = vmatpush.bf16.xpose.msra.mxu0 %v2558
        %3581 = vmatpush.bf16.xpose.msra.mxu0 %v2543
        %3582 = vmatpush.bf16.xpose.msra.mxu0 %v2528
        %3583 = vmatpush.bf16.xpose.msra.mxu0 %v2513
        %3584 = vmatpush.bf16.xpose.msra.mxu0 %v2498
        %3585 = vmatpush.bf16.xpose.msra.mxu0 %v2483
        %3586 = vmatmul.bf16.gmra.mxu0 %v488
        %v3587 = vpop.f32.mrf.mxu0
        %v3588 = vadd.f32 %v3575, %v3587
        %v3589 = vpop.f32.mrf.mxu0
        %3590 = vdwg.mxu0
        %3591 = vmatpush.bf16.xpose.msra.mxu0 %v2589
        %3592 = vmatpush.bf16.xpose.msra.mxu0 %v2574
        %3593 = vmatpush.bf16.xpose.msra.mxu0 %v2559
        %3594 = vmatpush.bf16.xpose.msra.mxu0 %v2544
        %3595 = vmatpush.bf16.xpose.msra.mxu0 %v2529
        %3596 = vmatpush.bf16.xpose.msra.mxu0 %v2514
        %3597 = vmatpush.bf16.xpose.msra.mxu0 %v2499
        %3598 = vmatpush.bf16.xpose.msra.mxu0 %v2484
        %3599 = vmatmul.bf16.gmra.mxu0 %v489
        %v3600 = vpop.f32.mrf.mxu0
        %v3601 = vadd.f32 %v3588, %v3600
        %v3602 = vpop.f32.mrf.mxu0
        %3603 = vdwg.mxu0
        %3604 = vmatpush.bf16.xpose.msra.mxu0 %v2590
        %3605 = vmatpush.bf16.xpose.msra.mxu0 %v2575
        %3606 = vmatpush.bf16.xpose.msra.mxu0 %v2560
        %3607 = vmatpush.bf16.xpose.msra.mxu0 %v2545
        %3608 = vmatpush.bf16.xpose.msra.mxu0 %v2530
        %3609 = vmatpush.bf16.xpose.msra.mxu0 %v2515
        %3610 = vmatpush.bf16.xpose.msra.mxu0 %v2500
        %3611 = vmatpush.bf16.xpose.msra.mxu0 %v2485
        %3612 = vmatmul.bf16.gmra.mxu0 %v490
        %v3613 = vpop.f32.mrf.mxu0
        %v3614 = vadd.f32 %v3601, %v3613
        %v3615 = vpop.f32.mrf.mxu0
        %3616 = vdwg.mxu0
        %3617 = vmatpush.bf16.xpose.msra.mxu0 %v2591
        %3618 = vmatpush.bf16.xpose.msra.mxu0 %v2576
        %3619 = vmatpush.bf16.xpose.msra.mxu0 %v2561
        %3620 = vmatpush.bf16.xpose.msra.mxu0 %v2546
        %3621 = vmatpush.bf16.xpose.msra.mxu0 %v2531
        %3622 = vmatpush.bf16.xpose.msra.mxu0 %v2516
        %3623 = vmatpush.bf16.xpose.msra.mxu0 %v2501
        %3624 = vmatpush.bf16.xpose.msra.mxu0 %v2486
        %3625 = vmatmul.bf16.gmra.mxu0 %v491
        %v3626 = vpop.f32.mrf.mxu0
        %v3627 = vadd.f32 %v3614, %v3626
        %v3628 = vpop.f32.mrf.mxu0
        %3629 = vdwg.mxu0
        %3630 = vmatpush.bf16.xpose.msra.mxu0 %v2592
        %3631 = vmatpush.bf16.xpose.msra.mxu0 %v2577
        %3632 = vmatpush.bf16.xpose.msra.mxu0 %v2562
        %3633 = vmatpush.bf16.xpose.msra.mxu0 %v2547
        %3634 = vmatpush.bf16.xpose.msra.mxu0 %v2532
        %3635 = vmatpush.bf16.xpose.msra.mxu0 %v2517
        %3636 = vmatpush.bf16.xpose.msra.mxu0 %v2502
        %3637 = vmatpush.bf16.xpose.msra.mxu0 %v2487
        %3638 = vmatmul.bf16.gmra.mxu0 %v492
        %v3639 = vpop.f32.mrf.mxu0
        %v3640 = vadd.f32 %v3627, %v3639
        %v3641 = vpop.f32.mrf.mxu0
        %3642 = vdwg.mxu0
        %3643 = vmatpush.bf16.xpose.msra.mxu0 %v2698
        %3644 = vmatpush.bf16.xpose.msra.mxu0 %v2683
        %3645 = vmatpush.bf16.xpose.msra.mxu0 %v2668
        %3646 = vmatpush.bf16.xpose.msra.mxu0 %v2653
        %3647 = vmatpush.bf16.xpose.msra.mxu0 %v2638
        %3648 = vmatpush.bf16.xpose.msra.mxu0 %v2623
        %3649 = vmatpush.bf16.xpose.msra.mxu0 %v2608
        %3650 = vmatpush.bf16.xpose.msra.mxu0 %v2593
        %3651 = vmatmul.bf16.gmra.mxu0 %v478
        %v3652 = vpop.f32.mrf.mxu0
        %v3653 = vadd.f32 0.0, %v3652
        %v3654 = vpop.f32.mrf.mxu0
        %3655 = vdwg.mxu0
        %3656 = vmatpush.bf16.xpose.msra.mxu0 %v2699
        %3657 = vmatpush.bf16.xpose.msra.mxu0 %v2684
        %3658 = vmatpush.bf16.xpose.msra.mxu0 %v2669
        %3659 = vmatpush.bf16.xpose.msra.mxu0 %v2654
        %3660 = vmatpush.bf16.xpose.msra.mxu0 %v2639
        %3661 = vmatpush.bf16.xpose.msra.mxu0 %v2624
        %3662 = vmatpush.bf16.xpose.msra.mxu0 %v2609
        %3663 = vmatpush.bf16.xpose.msra.mxu0 %v2594
        %3664 = vmatmul.bf16.gmra.mxu0 %v479
        %v3665 = vpop.f32.mrf.mxu0
        %v3666 = vadd.f32 %v3653, %v3665
        %v3667 = vpop.f32.mrf.mxu0
        %3668 = vdwg.mxu0
        %3669 = vmatpush.bf16.xpose.msra.mxu0 %v2700
        %3670 = vmatpush.bf16.xpose.msra.mxu0 %v2685
        %3671 = vmatpush.bf16.xpose.msra.mxu0 %v2670
        %3672 = vmatpush.bf16.xpose.msra.mxu0 %v2655
        %3673 = vmatpush.bf16.xpose.msra.mxu0 %v2640
        %3674 = vmatpush.bf16.xpose.msra.mxu0 %v2625
        %3675 = vmatpush.bf16.xpose.msra.mxu0 %v2610
        %3676 = vmatpush.bf16.xpose.msra.mxu0 %v2595
        %3677 = vmatmul.bf16.gmra.mxu0 %v480
        %v3678 = vpop.f32.mrf.mxu0
        %v3679 = vadd.f32 %v3666, %v3678
        %v3680 = vpop.f32.mrf.mxu0
        %3681 = vdwg.mxu0
        %3682 = vmatpush.bf16.xpose.msra.mxu0 %v2701
        %3683 = vmatpush.bf16.xpose.msra.mxu0 %v2686
        %3684 = vmatpush.bf16.xpose.msra.mxu0 %v2671
        %3685 = vmatpush.bf16.xpose.msra.mxu0 %v2656
        %3686 = vmatpush.bf16.xpose.msra.mxu0 %v2641
        %3687 = vmatpush.bf16.xpose.msra.mxu0 %v2626
        %3688 = vmatpush.bf16.xpose.msra.mxu0 %v2611
        %3689 = vmatpush.bf16.xpose.msra.mxu0 %v2596
        %3690 = vmatmul.bf16.gmra.mxu0 %v481
        %v3691 = vpop.f32.mrf.mxu0
        %v3692 = vadd.f32 %v3679, %v3691
        %v3693 = vpop.f32.mrf.mxu0
        %3694 = vdwg.mxu0
        %3695 = vmatpush.bf16.xpose.msra.mxu0 %v2702
        %3696 = vmatpush.bf16.xpose.msra.mxu0 %v2687
        %3697 = vmatpush.bf16.xpose.msra.mxu0 %v2672
        %3698 = vmatpush.bf16.xpose.msra.mxu0 %v2657
        %3699 = vmatpush.bf16.xpose.msra.mxu0 %v2642
        %3700 = vmatpush.bf16.xpose.msra.mxu0 %v2627
        %3701 = vmatpush.bf16.xpose.msra.mxu0 %v2612
        %3702 = vmatpush.bf16.xpose.msra.mxu0 %v2597
        %3703 = vmatmul.bf16.gmra.mxu0 %v482
        %v3704 = vpop.f32.mrf.mxu0
        %v3705 = vadd.f32 %v3692, %v3704
        %v3706 = vpop.f32.mrf.mxu0
        %3707 = vdwg.mxu0
        %3708 = vmatpush.bf16.xpose.msra.mxu0 %v2703
        %3709 = vmatpush.bf16.xpose.msra.mxu0 %v2688
        %3710 = vmatpush.bf16.xpose.msra.mxu0 %v2673
        %3711 = vmatpush.bf16.xpose.msra.mxu0 %v2658
        %3712 = vmatpush.bf16.xpose.msra.mxu0 %v2643
        %3713 = vmatpush.bf16.xpose.msra.mxu0 %v2628
        %3714 = vmatpush.bf16.xpose.msra.mxu0 %v2613
        %3715 = vmatpush.bf16.xpose.msra.mxu0 %v2598
        %3716 = vmatmul.bf16.gmra.mxu0 %v483
        %v3717 = vpop.f32.mrf.mxu0
        %v3718 = vadd.f32 %v3705, %v3717
        %v3719 = vpop.f32.mrf.mxu0
        %3720 = vdwg.mxu0
        %3721 = vmatpush.bf16.xpose.msra.mxu0 %v2704
        %3722 = vmatpush.bf16.xpose.msra.mxu0 %v2689
        %3723 = vmatpush.bf16.xpose.msra.mxu0 %v2674
        %3724 = vmatpush.bf16.xpose.msra.mxu0 %v2659
        %3725 = vmatpush.bf16.xpose.msra.mxu0 %v2644
        %3726 = vmatpush.bf16.xpose.msra.mxu0 %v2629
        %3727 = vmatpush.bf16.xpose.msra.mxu0 %v2614
        %3728 = vmatpush.bf16.xpose.msra.mxu0 %v2599
        %3729 = vmatmul.bf16.gmra.mxu0 %v484
        %v3730 = vpop.f32.mrf.mxu0
        %v3731 = vadd.f32 %v3718, %v3730
        %v3732 = vpop.f32.mrf.mxu0
        %3733 = vdwg.mxu0
        %3734 = vmatpush.bf16.xpose.msra.mxu0 %v2705
        %3735 = vmatpush.bf16.xpose.msra.mxu0 %v2690
        %3736 = vmatpush.bf16.xpose.msra.mxu0 %v2675
        %3737 = vmatpush.bf16.xpose.msra.mxu0 %v2660
        %3738 = vmatpush.bf16.xpose.msra.mxu0 %v2645
        %3739 = vmatpush.bf16.xpose.msra.mxu0 %v2630
        %3740 = vmatpush.bf16.xpose.msra.mxu0 %v2615
        %3741 = vmatpush.bf16.xpose.msra.mxu0 %v2600
        %3742 = vmatmul.bf16.gmra.mxu0 %v485
        %v3743 = vpop.f32.mrf.mxu0
        %v3744 = vadd.f32 %v3731, %v3743
        %v3745 = vpop.f32.mrf.mxu0
        %3746 = vdwg.mxu0
        %3747 = vmatpush.bf16.xpose.msra.mxu0 %v2706
        %3748 = vmatpush.bf16.xpose.msra.mxu0 %v2691
        %3749 = vmatpush.bf16.xpose.msra.mxu0 %v2676
        %3750 = vmatpush.bf16.xpose.msra.mxu0 %v2661
        %3751 = vmatpush.bf16.xpose.msra.mxu0 %v2646
        %3752 = vmatpush.bf16.xpose.msra.mxu0 %v2631
        %3753 = vmatpush.bf16.xpose.msra.mxu0 %v2616
        %3754 = vmatpush.bf16.xpose.msra.mxu0 %v2601
        %3755 = vmatmul.bf16.gmra.mxu0 %v486
        %v3756 = vpop.f32.mrf.mxu0
        %v3757 = vadd.f32 %v3744, %v3756
        %v3758 = vpop.f32.mrf.mxu0
        %3759 = vdwg.mxu0
        %3760 = vmatpush.bf16.xpose.msra.mxu0 %v2707
        %3761 = vmatpush.bf16.xpose.msra.mxu0 %v2692
        %3762 = vmatpush.bf16.xpose.msra.mxu0 %v2677
        %3763 = vmatpush.bf16.xpose.msra.mxu0 %v2662
        %3764 = vmatpush.bf16.xpose.msra.mxu0 %v2647
        %3765 = vmatpush.bf16.xpose.msra.mxu0 %v2632
        %3766 = vmatpush.bf16.xpose.msra.mxu0 %v2617
        %3767 = vmatpush.bf16.xpose.msra.mxu0 %v2602
        %3768 = vmatmul.bf16.gmra.mxu0 %v487
        %v3769 = vpop.f32.mrf.mxu0
        %v3770 = vadd.f32 %v3757, %v3769
        %v3771 = vpop.f32.mrf.mxu0
        %3772 = vdwg.mxu0
        %3773 = vmatpush.bf16.xpose.msra.mxu0 %v2708
        %3774 = vmatpush.bf16.xpose.msra.mxu0 %v2693
        %3775 = vmatpush.bf16.xpose.msra.mxu0 %v2678
        %3776 = vmatpush.bf16.xpose.msra.mxu0 %v2663
        %3777 = vmatpush.bf16.xpose.msra.mxu0 %v2648
        %3778 = vmatpush.bf16.xpose.msra.mxu0 %v2633
        %3779 = vmatpush.bf16.xpose.msra.mxu0 %v2618
        %3780 = vmatpush.bf16.xpose.msra.mxu0 %v2603
        %3781 = vmatmul.bf16.gmra.mxu0 %v488
        %v3782 = vpop.f32.mrf.mxu0
        %v3783 = vadd.f32 %v3770, %v3782
        %v3784 = vpop.f32.mrf.mxu0
        %3785 = vdwg.mxu0
        %3786 = vmatpush.bf16.xpose.msra.mxu0 %v2709
        %3787 = vmatpush.bf16.xpose.msra.mxu0 %v2694
        %3788 = vmatpush.bf16.xpose.msra.mxu0 %v2679
        %3789 = vmatpush.bf16.xpose.msra.mxu0 %v2664
        %3790 = vmatpush.bf16.xpose.msra.mxu0 %v2649
        %3791 = vmatpush.bf16.xpose.msra.mxu0 %v2634
        %3792 = vmatpush.bf16.xpose.msra.mxu0 %v2619
        %3793 = vmatpush.bf16.xpose.msra.mxu0 %v2604
        %3794 = vmatmul.bf16.gmra.mxu0 %v489
        %v3795 = vpop.f32.mrf.mxu0
        %v3796 = vadd.f32 %v3783, %v3795
        %v3797 = vpop.f32.mrf.mxu0
        %3798 = vdwg.mxu0
        %3799 = vmatpush.bf16.xpose.msra.mxu0 %v2710
        %3800 = vmatpush.bf16.xpose.msra.mxu0 %v2695
        %3801 = vmatpush.bf16.xpose.msra.mxu0 %v2680
        %3802 = vmatpush.bf16.xpose.msra.mxu0 %v2665
        %3803 = vmatpush.bf16.xpose.msra.mxu0 %v2650
        %3804 = vmatpush.bf16.xpose.msra.mxu0 %v2635
        %3805 = vmatpush.bf16.xpose.msra.mxu0 %v2620
        %3806 = vmatpush.bf16.xpose.msra.mxu0 %v2605
        %3807 = vmatmul.bf16.gmra.mxu0 %v490
        %v3808 = vpop.f32.mrf.mxu0
        %v3809 = vadd.f32 %v3796, %v3808
        %v3810 = vpop.f32.mrf.mxu0
        %3811 = vdwg.mxu0
        %3812 = vmatpush.bf16.xpose.msra.mxu0 %v2711
        %3813 = vmatpush.bf16.xpose.msra.mxu0 %v2696
        %3814 = vmatpush.bf16.xpose.msra.mxu0 %v2681
        %3815 = vmatpush.bf16.xpose.msra.mxu0 %v2666
        %3816 = vmatpush.bf16.xpose.msra.mxu0 %v2651
        %3817 = vmatpush.bf16.xpose.msra.mxu0 %v2636
        %3818 = vmatpush.bf16.xpose.msra.mxu0 %v2621
        %3819 = vmatpush.bf16.xpose.msra.mxu0 %v2606
        %3820 = vmatmul.bf16.gmra.mxu0 %v491
        %v3821 = vpop.f32.mrf.mxu0
        %v3822 = vadd.f32 %v3809, %v3821
        %v3823 = vpop.f32.mrf.mxu0
        %3824 = vdwg.mxu0
        %3825 = vmatpush.bf16.xpose.msra.mxu0 %v2712
        %3826 = vmatpush.bf16.xpose.msra.mxu0 %v2697
        %3827 = vmatpush.bf16.xpose.msra.mxu0 %v2682
        %3828 = vmatpush.bf16.xpose.msra.mxu0 %v2667
        %3829 = vmatpush.bf16.xpose.msra.mxu0 %v2652
        %3830 = vmatpush.bf16.xpose.msra.mxu0 %v2637
        %3831 = vmatpush.bf16.xpose.msra.mxu0 %v2622
        %3832 = vmatpush.bf16.xpose.msra.mxu0 %v2607
        %3833 = vmatmul.bf16.gmra.mxu0 %v492
        %v3834 = vpop.f32.mrf.mxu0
        %v3835 = vadd.f32 %v3822, %v3834
        %v3836 = vpop.f32.mrf.mxu0
        %3837 = vdwg.mxu0
        %3838 = vmatpush.bf16.xpose.msra.mxu0 0
        %3839 = vmatpush.bf16.xpose.msra.mxu0 0
        %3840 = vmatpush.bf16.xpose.msra.mxu0 %v2788
        %3841 = vmatpush.bf16.xpose.msra.mxu0 %v2773
        %3842 = vmatpush.bf16.xpose.msra.mxu0 %v2758
        %3843 = vmatpush.bf16.xpose.msra.mxu0 %v2743
        %3844 = vmatpush.bf16.xpose.msra.mxu0 %v2728
        %3845 = vmatpush.bf16.xpose.msra.mxu0 %v2713
        %3846 = vmatmul.bf16.gmra.mxu0 %v478
        %v3847 = vpop.f32.mrf.mxu0
        %v3848 = vadd.f32 0.0, %v3847
        %v3849 = vpop.f32.mrf.mxu0
        %3850 = vdwg.mxu0
        %3851 = vmatpush.bf16.xpose.msra.mxu0 0
        %3852 = vmatpush.bf16.xpose.msra.mxu0 0
        %3853 = vmatpush.bf16.xpose.msra.mxu0 %v2789
        %3854 = vmatpush.bf16.xpose.msra.mxu0 %v2774
        %3855 = vmatpush.bf16.xpose.msra.mxu0 %v2759
        %3856 = vmatpush.bf16.xpose.msra.mxu0 %v2744
        %3857 = vmatpush.bf16.xpose.msra.mxu0 %v2729
        %3858 = vmatpush.bf16.xpose.msra.mxu0 %v2714
        %3859 = vmatmul.bf16.gmra.mxu0 %v479
        %v3860 = vpop.f32.mrf.mxu0
        %v3861 = vadd.f32 %v3848, %v3860
        %v3862 = vpop.f32.mrf.mxu0
        %3863 = vdwg.mxu0
        %3864 = vmatpush.bf16.xpose.msra.mxu0 0
        %3865 = vmatpush.bf16.xpose.msra.mxu0 0
        %3866 = vmatpush.bf16.xpose.msra.mxu0 %v2790
        %3867 = vmatpush.bf16.xpose.msra.mxu0 %v2775
        %3868 = vmatpush.bf16.xpose.msra.mxu0 %v2760
        %3869 = vmatpush.bf16.xpose.msra.mxu0 %v2745
        %3870 = vmatpush.bf16.xpose.msra.mxu0 %v2730
        %3871 = vmatpush.bf16.xpose.msra.mxu0 %v2715
        %3872 = vmatmul.bf16.gmra.mxu0 %v480
        %v3873 = vpop.f32.mrf.mxu0
        %v3874 = vadd.f32 %v3861, %v3873
        %v3875 = vpop.f32.mrf.mxu0
        %3876 = vdwg.mxu0
        %3877 = vmatpush.bf16.xpose.msra.mxu0 0
        %3878 = vmatpush.bf16.xpose.msra.mxu0 0
        %3879 = vmatpush.bf16.xpose.msra.mxu0 %v2791
        %3880 = vmatpush.bf16.xpose.msra.mxu0 %v2776
        %3881 = vmatpush.bf16.xpose.msra.mxu0 %v2761
        %3882 = vmatpush.bf16.xpose.msra.mxu0 %v2746
        %3883 = vmatpush.bf16.xpose.msra.mxu0 %v2731
        %3884 = vmatpush.bf16.xpose.msra.mxu0 %v2716
        %3885 = vmatmul.bf16.gmra.mxu0 %v481
        %v3886 = vpop.f32.mrf.mxu0
        %v3887 = vadd.f32 %v3874, %v3886
        %v3888 = vpop.f32.mrf.mxu0
        %3889 = vdwg.mxu0
        %3890 = vmatpush.bf16.xpose.msra.mxu0 0
        %3891 = vmatpush.bf16.xpose.msra.mxu0 0
        %3892 = vmatpush.bf16.xpose.msra.mxu0 %v2792
        %3893 = vmatpush.bf16.xpose.msra.mxu0 %v2777
        %3894 = vmatpush.bf16.xpose.msra.mxu0 %v2762
        %3895 = vmatpush.bf16.xpose.msra.mxu0 %v2747
        %3896 = vmatpush.bf16.xpose.msra.mxu0 %v2732
        %3897 = vmatpush.bf16.xpose.msra.mxu0 %v2717
        %3898 = vmatmul.bf16.gmra.mxu0 %v482
        %v3899 = vpop.f32.mrf.mxu0
        %v3900 = vadd.f32 %v3887, %v3899
        %v3901 = vpop.f32.mrf.mxu0
        %3902 = vdwg.mxu0
        %3903 = vmatpush.bf16.xpose.msra.mxu0 0
        %3904 = vmatpush.bf16.xpose.msra.mxu0 0
        %3905 = vmatpush.bf16.xpose.msra.mxu0 %v2793
        %3906 = vmatpush.bf16.xpose.msra.mxu0 %v2778
        %3907 = vmatpush.bf16.xpose.msra.mxu0 %v2763
        %3908 = vmatpush.bf16.xpose.msra.mxu0 %v2748
        %3909 = vmatpush.bf16.xpose.msra.mxu0 %v2733
        %3910 = vmatpush.bf16.xpose.msra.mxu0 %v2718
        %3911 = vmatmul.bf16.gmra.mxu0 %v483
        %v3912 = vpop.f32.mrf.mxu0
        %v3913 = vadd.f32 %v3900, %v3912
        %v3914 = vpop.f32.mrf.mxu0
        %3915 = vdwg.mxu0
        %3916 = vmatpush.bf16.xpose.msra.mxu0 0
        %3917 = vmatpush.bf16.xpose.msra.mxu0 0
        %3918 = vmatpush.bf16.xpose.msra.mxu0 %v2794
        %3919 = vmatpush.bf16.xpose.msra.mxu0 %v2779
        %3920 = vmatpush.bf16.xpose.msra.mxu0 %v2764
        %3921 = vmatpush.bf16.xpose.msra.mxu0 %v2749
        %3922 = vmatpush.bf16.xpose.msra.mxu0 %v2734
        %3923 = vmatpush.bf16.xpose.msra.mxu0 %v2719
        %3924 = vmatmul.bf16.gmra.mxu0 %v484
        %v3925 = vpop.f32.mrf.mxu0
        %v3926 = vadd.f32 %v3913, %v3925
        %v3927 = vpop.f32.mrf.mxu0
        %3928 = vdwg.mxu0
        %3929 = vmatpush.bf16.xpose.msra.mxu0 0
        %3930 = vmatpush.bf16.xpose.msra.mxu0 0
        %3931 = vmatpush.bf16.xpose.msra.mxu0 %v2795
        %3932 = vmatpush.bf16.xpose.msra.mxu0 %v2780
        %3933 = vmatpush.bf16.xpose.msra.mxu0 %v2765
        %3934 = vmatpush.bf16.xpose.msra.mxu0 %v2750
        %3935 = vmatpush.bf16.xpose.msra.mxu0 %v2735
        %3936 = vmatpush.bf16.xpose.msra.mxu0 %v2720
        %3937 = vmatmul.bf16.gmra.mxu0 %v485
        %v3938 = vpop.f32.mrf.mxu0
        %v3939 = vadd.f32 %v3926, %v3938
        %v3940 = vpop.f32.mrf.mxu0
        %3941 = vdwg.mxu0
        %3942 = vmatpush.bf16.xpose.msra.mxu0 0
        %3943 = vmatpush.bf16.xpose.msra.mxu0 0
        %3944 = vmatpush.bf16.xpose.msra.mxu0 %v2796
        %3945 = vmatpush.bf16.xpose.msra.mxu0 %v2781
        %3946 = vmatpush.bf16.xpose.msra.mxu0 %v2766
        %3947 = vmatpush.bf16.xpose.msra.mxu0 %v2751
        %3948 = vmatpush.bf16.xpose.msra.mxu0 %v2736
        %3949 = vmatpush.bf16.xpose.msra.mxu0 %v2721
        %3950 = vmatmul.bf16.gmra.mxu0 %v486
        %v3951 = vpop.f32.mrf.mxu0
        %v3952 = vadd.f32 %v3939, %v3951
        %v3953 = vpop.f32.mrf.mxu0
        %3954 = vdwg.mxu0
        %3955 = vmatpush.bf16.xpose.msra.mxu0 0
        %3956 = vmatpush.bf16.xpose.msra.mxu0 0
        %3957 = vmatpush.bf16.xpose.msra.mxu0 %v2797
        %3958 = vmatpush.bf16.xpose.msra.mxu0 %v2782
        %3959 = vmatpush.bf16.xpose.msra.mxu0 %v2767
        %3960 = vmatpush.bf16.xpose.msra.mxu0 %v2752
        %3961 = vmatpush.bf16.xpose.msra.mxu0 %v2737
        %3962 = vmatpush.bf16.xpose.msra.mxu0 %v2722
        %3963 = vmatmul.bf16.gmra.mxu0 %v487
        %v3964 = vpop.f32.mrf.mxu0
        %v3965 = vadd.f32 %v3952, %v3964
        %v3966 = vpop.f32.mrf.mxu0
        %3967 = vdwg.mxu0
        %3968 = vmatpush.bf16.xpose.msra.mxu0 0
        %3969 = vmatpush.bf16.xpose.msra.mxu0 0
        %3970 = vmatpush.bf16.xpose.msra.mxu0 %v2798
        %3971 = vmatpush.bf16.xpose.msra.mxu0 %v2783
        %3972 = vmatpush.bf16.xpose.msra.mxu0 %v2768
        %3973 = vmatpush.bf16.xpose.msra.mxu0 %v2753
        %3974 = vmatpush.bf16.xpose.msra.mxu0 %v2738
        %3975 = vmatpush.bf16.xpose.msra.mxu0 %v2723
        %3976 = vmatmul.bf16.gmra.mxu0 %v488
        %v3977 = vpop.f32.mrf.mxu0
        %v3978 = vadd.f32 %v3965, %v3977
        %v3979 = vpop.f32.mrf.mxu0
        %3980 = vdwg.mxu0
        %3981 = vmatpush.bf16.xpose.msra.mxu0 0
        %3982 = vmatpush.bf16.xpose.msra.mxu0 0
        %3983 = vmatpush.bf16.xpose.msra.mxu0 %v2799
        %3984 = vmatpush.bf16.xpose.msra.mxu0 %v2784
        %3985 = vmatpush.bf16.xpose.msra.mxu0 %v2769
        %3986 = vmatpush.bf16.xpose.msra.mxu0 %v2754
        %3987 = vmatpush.bf16.xpose.msra.mxu0 %v2739
        %3988 = vmatpush.bf16.xpose.msra.mxu0 %v2724
        %3989 = vmatmul.bf16.gmra.mxu0 %v489
        %v3990 = vpop.f32.mrf.mxu0
        %v3991 = vadd.f32 %v3978, %v3990
        %v3992 = vpop.f32.mrf.mxu0
        %3993 = vdwg.mxu0
        %3994 = vmatpush.bf16.xpose.msra.mxu0 0
        %3995 = vmatpush.bf16.xpose.msra.mxu0 0
        %3996 = vmatpush.bf16.xpose.msra.mxu0 %v2800
        %3997 = vmatpush.bf16.xpose.msra.mxu0 %v2785
        %3998 = vmatpush.bf16.xpose.msra.mxu0 %v2770
        %3999 = vmatpush.bf16.xpose.msra.mxu0 %v2755
        %4000 = vmatpush.bf16.xpose.msra.mxu0 %v2740
        %4001 = vmatpush.bf16.xpose.msra.mxu0 %v2725
        %4002 = vmatmul.bf16.gmra.mxu0 %v490
        %v4003 = vpop.f32.mrf.mxu0
        %v4004 = vadd.f32 %v3991, %v4003
        %v4005 = vpop.f32.mrf.mxu0
        %4006 = vdwg.mxu0
        %4007 = vmatpush.bf16.xpose.msra.mxu0 0
        %4008 = vmatpush.bf16.xpose.msra.mxu0 0
        %4009 = vmatpush.bf16.xpose.msra.mxu0 %v2801
        %4010 = vmatpush.bf16.xpose.msra.mxu0 %v2786
        %4011 = vmatpush.bf16.xpose.msra.mxu0 %v2771
        %4012 = vmatpush.bf16.xpose.msra.mxu0 %v2756
        %4013 = vmatpush.bf16.xpose.msra.mxu0 %v2741
        %4014 = vmatpush.bf16.xpose.msra.mxu0 %v2726
        %4015 = vmatmul.bf16.gmra.mxu0 %v491
        %v4016 = vpop.f32.mrf.mxu0
        %v4017 = vadd.f32 %v4004, %v4016
        %v4018 = vpop.f32.mrf.mxu0
        %4019 = vdwg.mxu0
        %4020 = vmatpush.bf16.xpose.msra.mxu0 0
        %4021 = vmatpush.bf16.xpose.msra.mxu0 0
        %4022 = vmatpush.bf16.xpose.msra.mxu0 %v2802
        %4023 = vmatpush.bf16.xpose.msra.mxu0 %v2787
        %4024 = vmatpush.bf16.xpose.msra.mxu0 %v2772
        %4025 = vmatpush.bf16.xpose.msra.mxu0 %v2757
        %4026 = vmatpush.bf16.xpose.msra.mxu0 %v2742
        %4027 = vmatpush.bf16.xpose.msra.mxu0 %v2727
        %4028 = vmatmul.bf16.gmra.mxu0 %v492
        %v4029 = vpop.f32.mrf.mxu0
        %v4030 = vadd.f32 %v4017, %v4029
        %v4031 = vpop.f32.mrf.mxu0
        %4032 = vdwg.mxu0
        %v4033 = vrot.slane %v3445, 4
        %v4034 = vadd.f32 %v3445, %v4033
        %v4035 = vrot.slane %v4034, 2
        %v4036 = vadd.f32 %v4034, %v4035
        %v4037 = vrot.slane %v4036, 1
        %v4038 = vadd.f32 %v4036, %v4037
        %v4039 = vrot.slane %v3640, 4
        %v4040 = vadd.f32 %v3640, %v4039
        %v4041 = vrot.slane %v4040, 2
        %v4042 = vadd.f32 %v4040, %v4041
        %v4043 = vrot.slane %v4042, 1
        %v4044 = vadd.f32 %v4042, %v4043
        %v4045 = vrot.slane %v3835, 4
        %v4046 = vadd.f32 %v3835, %v4045
        %v4047 = vrot.slane %v4046, 2
        %v4048 = vadd.f32 %v4046, %v4047
        %v4049 = vrot.slane %v4048, 1
        %v4050 = vadd.f32 %v4048, %v4049
        %vm4051 = vcmask 785408
        %v4052 = vsel %vm4051, %v4030, 0.0
        %v4053 = vrot.slane %v4052, 4
        %v4054 = vadd.f32 %v4052, %v4053
        %v4055 = vrot.slane %v4054, 2
        %v4056 = vadd.f32 %v4054, %v4055
        %v4057 = vrot.slane %v4056, 1
        %v4058 = vadd.f32 %v4056, %v4057
        %v4059 = vrcp.pop 8.0
        %v4060 = vmul.f32 8.0, %v4059
        %v4061 = vsub.f32 1.0, %v4060
        %v4062 = vmul.f32 %v4059, %v4061
        %v4063 = vadd.f32 %v4059, %v4062
        %vm4064 = vweird.f32 %v4059
        %v4065 = vsel %vm4064, %v4059, %v4063
        %v4066 = vmul.f32 %v4038, %v4065
        %v4067 = vmul.f32 %v4044, %v4065
        %v4068 = vmul.f32 %v4050, %v4065
        %v4069 = vmul.f32 %v4058, %v4065
        %v4070 = vsub.f32 %v3445, %v4066
        %v4071 = vsub.f32 %v3640, %v4067
        %v4072 = vsub.f32 %v3835, %v4068
        %v4073 = vsub.f32 %v4030, %v4069
        %v4074 = vmul.f32 %v4070, %v4070
        %v4075 = vmul.f32 %v4071, %v4071
        %v4076 = vmul.f32 %v4072, %v4072
        %v4077 = vmul.f32 %v4073, %v4073
        %v4078 = vrot.slane %v4074, 4
        %v4079 = vadd.f32 %v4074, %v4078
        %v4080 = vrot.slane %v4079, 2
        %v4081 = vadd.f32 %v4079, %v4080
        %v4082 = vrot.slane %v4081, 1
        %v4083 = vadd.f32 %v4081, %v4082
        %v4084 = vrot.slane %v4075, 4
        %v4085 = vadd.f32 %v4075, %v4084
        %v4086 = vrot.slane %v4085, 2
        %v4087 = vadd.f32 %v4085, %v4086
        %v4088 = vrot.slane %v4087, 1
        %v4089 = vadd.f32 %v4087, %v4088
        %v4090 = vrot.slane %v4076, 4
        %v4091 = vadd.f32 %v4076, %v4090
        %v4092 = vrot.slane %v4091, 2
        %v4093 = vadd.f32 %v4091, %v4092
        %v4094 = vrot.slane %v4093, 1
        %v4095 = vadd.f32 %v4093, %v4094
        %v4096 = vsel %vm4051, %v4077, 0.0
        %v4097 = vrot.slane %v4096, 4
        %v4098 = vadd.f32 %v4096, %v4097
        %v4099 = vrot.slane %v4098, 2
        %v4100 = vadd.f32 %v4098, %v4099
        %v4101 = vrot.slane %v4100, 1
        %v4102 = vadd.f32 %v4100, %v4101
        %v4103 = vmul.f32 %v4083, %v4065
        %v4104 = vmul.f32 %v4089, %v4065
        %v4105 = vmul.f32 %v4095, %v4065
        %v4106 = vmul.f32 %v4102, %v4065
        %s4107 = sshra.s32 %s403, 2
        %s4108 = sand.u32 %s403, 3
        %s4109 = sshra.s32 %s403, 2
        %s4110 = sand.u32 %s403, 3
        %s4111 = smul.u32 %s4107, 4
        %s4112 = smul.u32 %s4111, 4
        %s4113 = sadd.s32 %s4112, %s4110
        %s4114 = scalar_lea.vmem [#allocation7], %s4113
        %v4115 = vld [vmem:[%s4114] ss:$4 sm:$0xf]
        %s4116 = scalar_lea.vmem [#allocation8], %s4113
        %v4117 = vld [vmem:[%s4116] ss:$4 sm:$0xf]
        %v4118 = vadd.f32 %v4103, 1e-05
        %v4119 = vadd.f32 %v4104, 1e-05
        %v4120 = vadd.f32 %v4105, 1e-05
        %v4121 = vadd.f32 %v4106, 1e-05
        %v4122 = vrsqrt.pop %v4118
        %v4123 = vmul.f32 %v4122, %v4118
        %v4124 = vmul.f32 %v4123, %v4122
        %v4125 = vmul.f32 0.5, %v4124
        %v4126 = vsub.f32 1.5, %v4125
        %v4127 = vmul.f32 %v4122, %v4126
        %vm4128 = vweird.f32 %v4118
        %vm4129 = vweird.f32 %v4122
        %vm4130 = vmor %vm4128, %vm4129
        %v4131 = vsel %vm4130, %v4122, %v4127
        %v4132 = vrsqrt.pop %v4119
        %v4133 = vmul.f32 %v4132, %v4119
        %v4134 = vmul.f32 %v4133, %v4132
        %v4135 = vmul.f32 0.5, %v4134
        %v4136 = vsub.f32 1.5, %v4135
        %v4137 = vmul.f32 %v4132, %v4136
        %vm4138 = vweird.f32 %v4119
        %vm4139 = vweird.f32 %v4132
        %vm4140 = vmor %vm4138, %vm4139
        %v4141 = vsel %vm4140, %v4132, %v4137
        %v4142 = vrsqrt.pop %v4120
        %v4143 = vmul.f32 %v4142, %v4120
        %v4144 = vmul.f32 %v4143, %v4142
        %v4145 = vmul.f32 0.5, %v4144
        %v4146 = vsub.f32 1.5, %v4145
        %v4147 = vmul.f32 %v4142, %v4146
        %vm4148 = vweird.f32 %v4120
        %vm4149 = vweird.f32 %v4142
        %vm4150 = vmor %vm4148, %vm4149
        %v4151 = vsel %vm4150, %v4142, %v4147
        %v4152 = vrsqrt.pop %v4121
        %v4153 = vmul.f32 %v4152, %v4121
        %v4154 = vmul.f32 %v4153, %v4152
        %v4155 = vmul.f32 0.5, %v4154
        %v4156 = vsub.f32 1.5, %v4155
        %v4157 = vmul.f32 %v4152, %v4156
        %vm4158 = vweird.f32 %v4121
        %vm4159 = vweird.f32 %v4152
        %vm4160 = vmor %vm4158, %vm4159
        %v4161 = vsel %vm4160, %v4152, %v4157
        %v4162 = vmul.f32 %v4070, %v4131
        %v4163 = vmul.f32 %v4071, %v4141
        %v4164 = vmul.f32 %v4072, %v4151
        %v4165 = vmul.f32 %v4073, %v4161
        %v4167 = vperm.slane %v4115, 0
        %v4168 = vperm.slane %v4115, 1
        %v4169 = vperm.slane %v4115, 2
        %v4170 = vperm.slane %v4115, 3
        %v4175 = vmul.f32 %v4162, %v4167
        %v4176 = vmul.f32 %v4163, %v4168
        %v4177 = vmul.f32 %v4164, %v4169
        %v4178 = vmul.f32 %v4165, %v4170
        %v4180 = vperm.slane %v4117, 0
        %v4181 = vperm.slane %v4117, 1
        %v4182 = vperm.slane %v4117, 2
        %v4183 = vperm.slane %v4117, 3
        %v4188 = vadd.f32 %v4175, %v4180
        %v4189 = vadd.f32 %v4176, %v4181
        %v4190 = vadd.f32 %v4177, %v4182
        %v4191 = vadd.f32 %v4178, %v4183
        %v4192 = vmax.f32 %v4188, 0.0
        %v4193 = vmax.f32 %v4189, 0.0
        %v4194 = vmax.f32 %v4190, 0.0
        %v4195 = vmax.f32 %v4191, 0.0
        %v4196 = vld [vmem:[%s394] sm:$0xff]
        %v4197 = vld [vmem:[%s394 + $0x8] sm:$0xff]
        %v4198 = vld [vmem:[%s394 + $0x10] sm:$0xff]
        %v4199 = vld [vmem:[%s394 + $0x18] sm:$0xff]
        %v4200 = vld [vmem:[%s394 + $0x20] sm:$0xff]
        %v4201 = vld [vmem:[%s394 + $0x28] sm:$0xff]
        %v4202 = vld [vmem:[%s394 + $0x30] sm:$0xff]
        %v4203 = vld [vmem:[%s394 + $0x38] sm:$0xff]
        %v4204 = vld [vmem:[%s394 + $0x40] sm:$0xff]
        %v4205 = vld [vmem:[%s394 + $0x48] sm:$0xff]
        %v4206 = vld [vmem:[%s394 + $0x50] sm:$0xff]
        %v4207 = vld [vmem:[%s394 + $0x58] sm:$0xff]
        %v4208 = vld [vmem:[%s394 + $0x60] sm:$0xff]
        %v4209 = vld [vmem:[%s394 + $0x68] sm:$0xff]
        %v4210 = vld [vmem:[%s394 + $0x70] sm:$0xff]
        %v4211 = vpack.c.bf16 %v4192, %v4192
        %v4212 = vpack.c.bf16 %v4193, %v4193
        %v4213 = vpack.c.bf16 %v4194, %v4194
        %v4214 = vpack.c.bf16 %v4195, %v4195
        %v4215 = vld [vmem:[%s355] sm:$0xff]
        %v4216 = vld [vmem:[%s355 + $0x8] sm:$0xff]
        %v4217 = vld [vmem:[%s355 + $0x10] sm:$0xff]
        %v4218 = vld [vmem:[%s355 + $0x18] sm:$0xff]
        %v4219 = vld [vmem:[%s355 + $0x20] sm:$0xff]
        %v4220 = vld [vmem:[%s355 + $0x28] sm:$0xff]
        %v4221 = vld [vmem:[%s355 + $0x30] sm:$0xff]
        %v4222 = vld [vmem:[%s355 + $0x38] sm:$0xf]
        %v4223 = vld [vmem:[%s355 + $0x3c] sm:$0xff]
        %v4224 = vld [vmem:[%s355 + $0x44] sm:$0xff]
        %v4225 = vld [vmem:[%s355 + $0x4c] sm:$0xff]
        %v4226 = vld [vmem:[%s355 + $0x54] sm:$0xff]
        %v4227 = vld [vmem:[%s355 + $0x5c] sm:$0xff]
        %v4228 = vld [vmem:[%s355 + $0x64] sm:$0xff]
        %v4229 = vld [vmem:[%s355 + $0x6c] sm:$0xff]
        %v4230 = vld [vmem:[%s355 + $0x74] sm:$0xf]
        %v4231 = vld [vmem:[%s355 + $0x78] sm:$0xff]
        %v4232 = vld [vmem:[%s355 + $0x80] sm:$0xff]
        %v4233 = vld [vmem:[%s355 + $0x88] sm:$0xff]
        %v4234 = vld [vmem:[%s355 + $0x90] sm:$0xff]
        %v4235 = vld [vmem:[%s355 + $0x98] sm:$0xff]
        %v4236 = vld [vmem:[%s355 + $0xa0] sm:$0xff]
        %v4237 = vld [vmem:[%s355 + $0xa8] sm:$0xff]
        %v4238 = vld [vmem:[%s355 + $0xb0] sm:$0xf]
        %v4239 = vld [vmem:[%s355 + $0xb4] sm:$0xff]
        %v4240 = vld [vmem:[%s355 + $0xbc] sm:$0xff]
        %v4241 = vld [vmem:[%s355 + $0xc4] sm:$0xff]
        %v4242 = vld [vmem:[%s355 + $0xcc] sm:$0xff]
        %v4243 = vld [vmem:[%s355 + $0xd4] sm:$0xff]
        %v4244 = vld [vmem:[%s355 + $0xdc] sm:$0xff]
        %v4245 = vld [vmem:[%s355 + $0xe4] sm:$0xff]
        %v4246 = vld [vmem:[%s355 + $0xec] sm:$0xf]
        %v4247 = vld [vmem:[%s355 + $0xf0] sm:$0xff]
        %v4248 = vld [vmem:[%s355 + $0xf8] sm:$0xff]
        %v4249 = vld [vmem:[%s355 + $0x100] sm:$0xff]
        %v4250 = vld [vmem:[%s355 + $0x108] sm:$0xff]
        %v4251 = vld [vmem:[%s355 + $0x110] sm:$0xff]
        %v4252 = vld [vmem:[%s355 + $0x118] sm:$0xff]
        %v4253 = vld [vmem:[%s355 + $0x120] sm:$0xff]
        %v4254 = vld [vmem:[%s355 + $0x128] sm:$0xf]
        %v4255 = vld [vmem:[%s355 + $0x12c] sm:$0xff]
        %v4256 = vld [vmem:[%s355 + $0x134] sm:$0xff]
        %v4257 = vld [vmem:[%s355 + $0x13c] sm:$0xff]
        %v4258 = vld [vmem:[%s355 + $0x144] sm:$0xff]
        %v4259 = vld [vmem:[%s355 + $0x14c] sm:$0xff]
        %v4260 = vld [vmem:[%s355 + $0x154] sm:$0xff]
        %v4261 = vld [vmem:[%s355 + $0x15c] sm:$0xff]
        %v4262 = vld [vmem:[%s355 + $0x164] sm:$0xf]
        %v4263 = vld [vmem:[%s355 + $0x168] sm:$0xff]
        %v4264 = vld [vmem:[%s355 + $0x170] sm:$0xff]
        %v4265 = vld [vmem:[%s355 + $0x178] sm:$0xff]
        %v4266 = vld [vmem:[%s355 + $0x180] sm:$0xff]
        %v4267 = vld [vmem:[%s355 + $0x188] sm:$0xff]
        %v4268 = vld [vmem:[%s355 + $0x190] sm:$0xff]
        %v4269 = vld [vmem:[%s355 + $0x198] sm:$0xff]
        %v4270 = vld [vmem:[%s355 + $0x1a0] sm:$0xf]
        %v4271 = vld [vmem:[%s355 + $0x1a4] sm:$0xff]
        %v4272 = vld [vmem:[%s355 + $0x1ac] sm:$0xff]
        %v4273 = vld [vmem:[%s355 + $0x1b4] sm:$0xff]
        %v4274 = vld [vmem:[%s355 + $0x1bc] sm:$0xff]
        %v4275 = vld [vmem:[%s355 + $0x1c4] sm:$0xff]
        %v4276 = vld [vmem:[%s355 + $0x1cc] sm:$0xff]
        %v4277 = vld [vmem:[%s355 + $0x1d4] sm:$0xff]
        %v4278 = vld [vmem:[%s355 + $0x1dc] sm:$0xf]
        %v4279 = vld [vmem:[%s355 + $0x1e0] sm:$0xff]
        %v4280 = vld [vmem:[%s355 + $0x1e8] sm:$0xff]
        %v4281 = vld [vmem:[%s355 + $0x1f0] sm:$0xff]
        %v4282 = vld [vmem:[%s355 + $0x1f8] sm:$0xff]
        %v4283 = vld [vmem:[%s355 + $0x200] sm:$0xff]
        %v4284 = vld [vmem:[%s355 + $0x208] sm:$0xff]
        %v4285 = vld [vmem:[%s355 + $0x210] sm:$0xff]
        %v4286 = vld [vmem:[%s355 + $0x218] sm:$0xf]
        %v4287 = vld [vmem:[%s355 + $0x21c] sm:$0xff]
        %v4288 = vld [vmem:[%s355 + $0x224] sm:$0xff]
        %v4289 = vld [vmem:[%s355 + $0x22c] sm:$0xff]
        %v4290 = vld [vmem:[%s355 + $0x234] sm:$0xff]
        %v4291 = vld [vmem:[%s355 + $0x23c] sm:$0xff]
        %v4292 = vld [vmem:[%s355 + $0x244] sm:$0xff]
        %v4293 = vld [vmem:[%s355 + $0x24c] sm:$0xff]
        %v4294 = vld [vmem:[%s355 + $0x254] sm:$0xf]
        %v4295 = vld [vmem:[%s355 + $0x258] sm:$0xff]
        %v4296 = vld [vmem:[%s355 + $0x260] sm:$0xff]
        %v4297 = vld [vmem:[%s355 + $0x268] sm:$0xff]
        %v4298 = vld [vmem:[%s355 + $0x270] sm:$0xff]
        %v4299 = vld [vmem:[%s355 + $0x278] sm:$0xff]
        %v4300 = vld [vmem:[%s355 + $0x280] sm:$0xff]
        %v4301 = vld [vmem:[%s355 + $0x288] sm:$0xff]
        %v4302 = vld [vmem:[%s355 + $0x290] sm:$0xf]
        %v4303 = vld [vmem:[%s355 + $0x294] sm:$0xff]
        %v4304 = vld [vmem:[%s355 + $0x29c] sm:$0xff]
        %v4305 = vld [vmem:[%s355 + $0x2a4] sm:$0xff]
        %v4306 = vld [vmem:[%s355 + $0x2ac] sm:$0xff]
        %v4307 = vld [vmem:[%s355 + $0x2b4] sm:$0xff]
        %v4308 = vld [vmem:[%s355 + $0x2bc] sm:$0xff]
        %v4309 = vld [vmem:[%s355 + $0x2c4] sm:$0xff]
        %v4310 = vld [vmem:[%s355 + $0x2cc] sm:$0xf]
        %v4311 = vld [vmem:[%s355 + $0x2d0] sm:$0xff]
        %v4312 = vld [vmem:[%s355 + $0x2d8] sm:$0xff]
        %v4313 = vld [vmem:[%s355 + $0x2e0] sm:$0xff]
        %v4314 = vld [vmem:[%s355 + $0x2e8] sm:$0xff]
        %v4315 = vld [vmem:[%s355 + $0x2f0] sm:$0xff]
        %v4316 = vld [vmem:[%s355 + $0x2f8] sm:$0xff]
        %v4317 = vld [vmem:[%s355 + $0x300] sm:$0xff]
        %v4318 = vld [vmem:[%s355 + $0x308] sm:$0xf]
        %v4319 = vld [vmem:[%s355 + $0x30c] sm:$0xff]
        %v4320 = vld [vmem:[%s355 + $0x314] sm:$0xff]
        %v4321 = vld [vmem:[%s355 + $0x31c] sm:$0xff]
        %v4322 = vld [vmem:[%s355 + $0x324] sm:$0xff]
        %v4323 = vld [vmem:[%s355 + $0x32c] sm:$0xff]
        %v4324 = vld [vmem:[%s355 + $0x334] sm:$0xff]
        %v4325 = vld [vmem:[%s355 + $0x33c] sm:$0xff]
        %v4326 = vld [vmem:[%s355 + $0x344] sm:$0xf]
        %v4327 = vld [vmem:[%s355 + $0x348] sm:$0xff]
        %v4328 = vld [vmem:[%s355 + $0x350] sm:$0xff]
        %v4329 = vld [vmem:[%s355 + $0x358] sm:$0xff]
        %v4330 = vld [vmem:[%s355 + $0x360] sm:$0xff]
        %v4331 = vld [vmem:[%s355 + $0x368] sm:$0xff]
        %v4332 = vld [vmem:[%s355 + $0x370] sm:$0xff]
        %v4333 = vld [vmem:[%s355 + $0x378] sm:$0xff]
        %v4334 = vld [vmem:[%s355 + $0x380] sm:$0xf]
        %v4335 = vld [vmem:[%s355 + $0x384] sm:$0xff]
        %v4336 = vld [vmem:[%s355 + $0x38c] sm:$0xff]
        %v4337 = vld [vmem:[%s355 + $0x394] sm:$0xff]
        %v4338 = vld [vmem:[%s355 + $0x39c] sm:$0xff]
        %v4339 = vld [vmem:[%s355 + $0x3a4] sm:$0xff]
        %v4340 = vld [vmem:[%s355 + $0x3ac] sm:$0xff]
        %v4341 = vld [vmem:[%s355 + $0x3b4] sm:$0xff]
        %v4342 = vld [vmem:[%s355 + $0x3bc] sm:$0xf]
        %v4343 = vld [vmem:[%s355 + $0x3c0] sm:$0xff]
        %v4344 = vld [vmem:[%s355 + $0x3c8] sm:$0xff]
        %v4345 = vld [vmem:[%s355 + $0x3d0] sm:$0xff]
        %v4346 = vld [vmem:[%s355 + $0x3d8] sm:$0xff]
        %v4347 = vld [vmem:[%s355 + $0x3e0] sm:$0xff]
        %v4348 = vld [vmem:[%s355 + $0x3e8] sm:$0xff]
        %v4349 = vld [vmem:[%s355 + $0x3f0] sm:$0xff]
        %v4350 = vld [vmem:[%s355 + $0x3f8] sm:$0xf]
        %v4351 = vld [vmem:[%s355 + $0x3fc] sm:$0xff]
        %v4352 = vld [vmem:[%s355 + $0x404] sm:$0xff]
        %v4353 = vld [vmem:[%s355 + $0x40c] sm:$0xff]
        %v4354 = vld [vmem:[%s355 + $0x414] sm:$0xff]
        %v4355 = vld [vmem:[%s355 + $0x41c] sm:$0xff]
        %v4356 = vld [vmem:[%s355 + $0x424] sm:$0xff]
        %v4357 = vld [vmem:[%s355 + $0x42c] sm:$0xff]
        %v4358 = vld [vmem:[%s355 + $0x434] sm:$0xf]
        %v4359 = vld [vmem:[%s355 + $0x438] sm:$0xff]
        %v4360 = vld [vmem:[%s355 + $0x440] sm:$0xff]
        %v4361 = vld [vmem:[%s355 + $0x448] sm:$0xff]
        %v4362 = vld [vmem:[%s355 + $0x450] sm:$0xff]
        %v4363 = vld [vmem:[%s355 + $0x458] sm:$0xff]
        %v4364 = vld [vmem:[%s355 + $0x460] sm:$0xff]
        %v4365 = vld [vmem:[%s355 + $0x468] sm:$0xff]
        %v4366 = vld [vmem:[%s355 + $0x470] sm:$0xf]
        %v4367 = vld [vmem:[%s355 + $0x474] sm:$0xff]
        %v4368 = vld [vmem:[%s355 + $0x47c] sm:$0xff]
        %v4369 = vld [vmem:[%s355 + $0x484] sm:$0xff]
        %v4370 = vld [vmem:[%s355 + $0x48c] sm:$0xff]
        %v4371 = vld [vmem:[%s355 + $0x494] sm:$0xff]
        %v4372 = vld [vmem:[%s355 + $0x49c] sm:$0xff]
        %v4373 = vld [vmem:[%s355 + $0x4a4] sm:$0xff]
        %v4374 = vld [vmem:[%s355 + $0x4ac] sm:$0xf]
        %v4375 = vld [vmem:[%s355 + $0x4b0] sm:$0xff]
        %v4376 = vld [vmem:[%s355 + $0x4b8] sm:$0xff]
        %v4377 = vld [vmem:[%s355 + $0x4c0] sm:$0xff]
        %v4378 = vld [vmem:[%s355 + $0x4c8] sm:$0xff]
        %v4379 = vld [vmem:[%s355 + $0x4d0] sm:$0xff]
        %v4380 = vld [vmem:[%s355 + $0x4d8] sm:$0xff]
        %v4381 = vld [vmem:[%s355 + $0x4e0] sm:$0xff]
        %v4382 = vld [vmem:[%s355 + $0x4e8] sm:$0xf]
        %v4383 = vld [vmem:[%s355 + $0x4ec] sm:$0xff]
        %v4384 = vld [vmem:[%s355 + $0x4f4] sm:$0xff]
        %v4385 = vld [vmem:[%s355 + $0x4fc] sm:$0xff]
        %v4386 = vld [vmem:[%s355 + $0x504] sm:$0xff]
        %v4387 = vld [vmem:[%s355 + $0x50c] sm:$0xff]
        %v4388 = vld [vmem:[%s355 + $0x514] sm:$0xff]
        %v4389 = vld [vmem:[%s355 + $0x51c] sm:$0xff]
        %v4390 = vld [vmem:[%s355 + $0x524] sm:$0xf]
        %v4391 = vld [vmem:[%s355 + $0x528] sm:$0xff]
        %v4392 = vld [vmem:[%s355 + $0x530] sm:$0xff]
        %v4393 = vld [vmem:[%s355 + $0x538] sm:$0xff]
        %v4394 = vld [vmem:[%s355 + $0x540] sm:$0xff]
        %v4395 = vld [vmem:[%s355 + $0x548] sm:$0xff]
        %v4396 = vld [vmem:[%s355 + $0x550] sm:$0xff]
        %v4397 = vld [vmem:[%s355 + $0x558] sm:$0xff]
        %v4398 = vld [vmem:[%s355 + $0x560] sm:$0xf]
        %v4399 = vld [vmem:[%s355 + $0x564] sm:$0xff]
        %v4400 = vld [vmem:[%s355 + $0x56c] sm:$0xff]
        %v4401 = vld [vmem:[%s355 + $0x574] sm:$0xff]
        %v4402 = vld [vmem:[%s355 + $0x57c] sm:$0xff]
        %v4403 = vld [vmem:[%s355 + $0x584] sm:$0xff]
        %v4404 = vld [vmem:[%s355 + $0x58c] sm:$0xff]
        %v4405 = vld [vmem:[%s355 + $0x594] sm:$0xff]
        %v4406 = vld [vmem:[%s355 + $0x59c] sm:$0xf]
        %v4407 = vld [vmem:[%s355 + $0x5a0] sm:$0xff]
        %v4408 = vld [vmem:[%s355 + $0x5a8] sm:$0xff]
        %v4409 = vld [vmem:[%s355 + $0x5b0] sm:$0xff]
        %v4410 = vld [vmem:[%s355 + $0x5b8] sm:$0xff]
        %v4411 = vld [vmem:[%s355 + $0x5c0] sm:$0xff]
        %v4412 = vld [vmem:[%s355 + $0x5c8] sm:$0xff]
        %v4413 = vld [vmem:[%s355 + $0x5d0] sm:$0xff]
        %v4414 = vld [vmem:[%s355 + $0x5d8] sm:$0xf]
        %v4415 = vld [vmem:[%s355 + $0x5dc] sm:$0xff]
        %v4416 = vld [vmem:[%s355 + $0x5e4] sm:$0xff]
        %v4417 = vld [vmem:[%s355 + $0x5ec] sm:$0xff]
        %v4418 = vld [vmem:[%s355 + $0x5f4] sm:$0xff]
        %v4419 = vld [vmem:[%s355 + $0x5fc] sm:$0xff]
        %v4420 = vld [vmem:[%s355 + $0x604] sm:$0xff]
        %v4421 = vld [vmem:[%s355 + $0x60c] sm:$0xff]
        %v4422 = vld [vmem:[%s355 + $0x614] sm:$0xf]
        %v4423 = vld [vmem:[%s355 + $0x618] sm:$0xff]
        %v4424 = vld [vmem:[%s355 + $0x620] sm:$0xff]
        %v4425 = vld [vmem:[%s355 + $0x628] sm:$0xff]
        %v4426 = vld [vmem:[%s355 + $0x630] sm:$0xff]
        %v4427 = vld [vmem:[%s355 + $0x638] sm:$0xff]
        %v4428 = vld [vmem:[%s355 + $0x640] sm:$0xff]
        %v4429 = vld [vmem:[%s355 + $0x648] sm:$0xff]
        %v4430 = vld [vmem:[%s355 + $0x650] sm:$0xf]
        %v4431 = vld [vmem:[%s355 + $0x654] sm:$0xff]
        %v4432 = vld [vmem:[%s355 + $0x65c] sm:$0xff]
        %v4433 = vld [vmem:[%s355 + $0x664] sm:$0xff]
        %v4434 = vld [vmem:[%s355 + $0x66c] sm:$0xff]
        %v4435 = vld [vmem:[%s355 + $0x674] sm:$0xff]
        %v4436 = vld [vmem:[%s355 + $0x67c] sm:$0xff]
        %v4437 = vld [vmem:[%s355 + $0x684] sm:$0xff]
        %v4438 = vld [vmem:[%s355 + $0x68c] sm:$0xf]
        %v4439 = vld [vmem:[%s355 + $0x690] sm:$0xff]
        %v4440 = vld [vmem:[%s355 + $0x698] sm:$0xff]
        %v4441 = vld [vmem:[%s355 + $0x6a0] sm:$0xff]
        %v4442 = vld [vmem:[%s355 + $0x6a8] sm:$0xff]
        %v4443 = vld [vmem:[%s355 + $0x6b0] sm:$0xff]
        %v4444 = vld [vmem:[%s355 + $0x6b8] sm:$0xff]
        %v4445 = vld [vmem:[%s355 + $0x6c0] sm:$0xff]
        %v4446 = vld [vmem:[%s355 + $0x6c8] sm:$0xf]
        %v4447 = vld [vmem:[%s355 + $0x6cc] sm:$0xff]
        %v4448 = vld [vmem:[%s355 + $0x6d4] sm:$0xff]
        %v4449 = vld [vmem:[%s355 + $0x6dc] sm:$0xff]
        %v4450 = vld [vmem:[%s355 + $0x6e4] sm:$0xff]
        %v4451 = vld [vmem:[%s355 + $0x6ec] sm:$0xff]
        %v4452 = vld [vmem:[%s355 + $0x6f4] sm:$0xff]
        %v4453 = vld [vmem:[%s355 + $0x6fc] sm:$0xff]
        %v4454 = vld [vmem:[%s355 + $0x704] sm:$0xf]
        %v4455 = vld [vmem:[%s355 + $0x708] sm:$0xff]
        %v4456 = vld [vmem:[%s355 + $0x710] sm:$0xff]
        %v4457 = vld [vmem:[%s355 + $0x718] sm:$0xff]
        %v4458 = vld [vmem:[%s355 + $0x720] sm:$0xff]
        %v4459 = vld [vmem:[%s355 + $0x728] sm:$0xff]
        %v4460 = vld [vmem:[%s355 + $0x730] sm:$0xff]
        %v4461 = vld [vmem:[%s355 + $0x738] sm:$0xff]
        %v4462 = vld [vmem:[%s355 + $0x740] sm:$0xf]
        %v4463 = vld [vmem:[%s355 + $0x744] sm:$0xff]
        %v4464 = vld [vmem:[%s355 + $0x74c] sm:$0xff]
        %v4465 = vld [vmem:[%s355 + $0x754] sm:$0xff]
        %v4466 = vld [vmem:[%s355 + $0x75c] sm:$0xff]
        %v4467 = vld [vmem:[%s355 + $0x764] sm:$0xff]
        %v4468 = vld [vmem:[%s355 + $0x76c] sm:$0xff]
        %v4469 = vld [vmem:[%s355 + $0x774] sm:$0xff]
        %v4470 = vld [vmem:[%s355 + $0x77c] sm:$0xf]
        %v4471 = vld [vmem:[%s355 + $0x780] sm:$0xff]
        %v4472 = vld [vmem:[%s355 + $0x788] sm:$0xff]
        %v4473 = vld [vmem:[%s355 + $0x790] sm:$0xff]
        %v4474 = vld [vmem:[%s355 + $0x798] sm:$0xff]
        %v4475 = vld [vmem:[%s355 + $0x7a0] sm:$0xff]
        %v4476 = vld [vmem:[%s355 + $0x7a8] sm:$0xff]
        %v4477 = vld [vmem:[%s355 + $0x7b0] sm:$0xff]
        %v4478 = vld [vmem:[%s355 + $0x7b8] sm:$0xf]
        %v4479 = vld [vmem:[%s355 + $0x7bc] sm:$0xff]
        %v4480 = vld [vmem:[%s355 + $0x7c4] sm:$0xff]
        %v4481 = vld [vmem:[%s355 + $0x7cc] sm:$0xff]
        %v4482 = vld [vmem:[%s355 + $0x7d4] sm:$0xff]
        %v4483 = vld [vmem:[%s355 + $0x7dc] sm:$0xff]
        %v4484 = vld [vmem:[%s355 + $0x7e4] sm:$0xff]
        %v4485 = vld [vmem:[%s355 + $0x7ec] sm:$0xff]
        %v4486 = vld [vmem:[%s355 + $0x7f4] sm:$0xf]
        %v4487 = vld [vmem:[%s355 + $0x7f8] sm:$0xff]
        %v4488 = vld [vmem:[%s355 + $0x800] sm:$0xff]
        %v4489 = vld [vmem:[%s355 + $0x808] sm:$0xff]
        %v4490 = vld [vmem:[%s355 + $0x810] sm:$0xff]
        %v4491 = vld [vmem:[%s355 + $0x818] sm:$0xff]
        %v4492 = vld [vmem:[%s355 + $0x820] sm:$0xff]
        %v4493 = vld [vmem:[%s355 + $0x828] sm:$0xff]
        %v4494 = vld [vmem:[%s355 + $0x830] sm:$0xf]
        %v4495 = vld [vmem:[%s355 + $0x834] sm:$0xff]
        %v4496 = vld [vmem:[%s355 + $0x83c] sm:$0xff]
        %v4497 = vld [vmem:[%s355 + $0x844] sm:$0xff]
        %v4498 = vld [vmem:[%s355 + $0x84c] sm:$0xff]
        %v4499 = vld [vmem:[%s355 + $0x854] sm:$0xff]
        %v4500 = vld [vmem:[%s355 + $0x85c] sm:$0xff]
        %v4501 = vld [vmem:[%s355 + $0x864] sm:$0xff]
        %v4502 = vld [vmem:[%s355 + $0x86c] sm:$0xf]
        %v4503 = vld [vmem:[%s355 + $0x870] sm:$0xff]
        %v4504 = vld [vmem:[%s355 + $0x878] sm:$0xff]
        %v4505 = vld [vmem:[%s355 + $0x880] sm:$0xff]
        %v4506 = vld [vmem:[%s355 + $0x888] sm:$0xff]
        %v4507 = vld [vmem:[%s355 + $0x890] sm:$0xff]
        %v4508 = vld [vmem:[%s355 + $0x898] sm:$0xff]
        %v4509 = vld [vmem:[%s355 + $0x8a0] sm:$0xff]
        %v4510 = vld [vmem:[%s355 + $0x8a8] sm:$0xf]
        %v4511 = vld [vmem:[%s355 + $0x8ac] sm:$0xff]
        %v4512 = vld [vmem:[%s355 + $0x8b4] sm:$0xff]
        %v4513 = vld [vmem:[%s355 + $0x8bc] sm:$0xff]
        %v4514 = vld [vmem:[%s355 + $0x8c4] sm:$0xff]
        %v4515 = vld [vmem:[%s355 + $0x8cc] sm:$0xff]
        %v4516 = vld [vmem:[%s355 + $0x8d4] sm:$0xff]
        %v4517 = vld [vmem:[%s355 + $0x8dc] sm:$0xff]
        %v4518 = vld [vmem:[%s355 + $0x8e4] sm:$0xf]
        %v4519 = vld [vmem:[%s355 + $0x8e8] sm:$0xff]
        %v4520 = vld [vmem:[%s355 + $0x8f0] sm:$0xff]
        %v4521 = vld [vmem:[%s355 + $0x8f8] sm:$0xff]
        %v4522 = vld [vmem:[%s355 + $0x900] sm:$0xff]
        %v4523 = vld [vmem:[%s355 + $0x908] sm:$0xff]
        %v4524 = vld [vmem:[%s355 + $0x910] sm:$0xff]
        %v4525 = vld [vmem:[%s355 + $0x918] sm:$0xff]
        %v4526 = vld [vmem:[%s355 + $0x920] sm:$0xf]
        %v4527 = vld [vmem:[%s355 + $0x924] sm:$0xff]
        %v4528 = vld [vmem:[%s355 + $0x92c] sm:$0xff]
        %v4529 = vld [vmem:[%s355 + $0x934] sm:$0xff]
        %v4530 = vld [vmem:[%s355 + $0x93c] sm:$0xff]
        %v4531 = vld [vmem:[%s355 + $0x944] sm:$0xff]
        %v4532 = vld [vmem:[%s355 + $0x94c] sm:$0xff]
        %v4533 = vld [vmem:[%s355 + $0x954] sm:$0xff]
        %v4534 = vld [vmem:[%s355 + $0x95c] sm:$0xf]
        %v4535 = vld [vmem:[%s355 + $0x960] sm:$0xff]
        %v4536 = vld [vmem:[%s355 + $0x968] sm:$0xff]
        %v4537 = vld [vmem:[%s355 + $0x970] sm:$0xff]
        %v4538 = vld [vmem:[%s355 + $0x978] sm:$0xff]
        %v4539 = vld [vmem:[%s355 + $0x980] sm:$0xff]
        %v4540 = vld [vmem:[%s355 + $0x988] sm:$0xff]
        %v4541 = vld [vmem:[%s355 + $0x990] sm:$0xff]
        %v4542 = vld [vmem:[%s355 + $0x998] sm:$0xf]
        %v4543 = vld [vmem:[%s355 + $0x99c] sm:$0xff]
        %v4544 = vld [vmem:[%s355 + $0x9a4] sm:$0xff]
        %v4545 = vld [vmem:[%s355 + $0x9ac] sm:$0xff]
        %v4546 = vld [vmem:[%s355 + $0x9b4] sm:$0xff]
        %v4547 = vld [vmem:[%s355 + $0x9bc] sm:$0xff]
        %v4548 = vld [vmem:[%s355 + $0x9c4] sm:$0xff]
        %v4549 = vld [vmem:[%s355 + $0x9cc] sm:$0xff]
        %v4550 = vld [vmem:[%s355 + $0x9d4] sm:$0xf]
        %v4551 = vld [vmem:[%s355 + $0x9d8] sm:$0xff]
        %v4552 = vld [vmem:[%s355 + $0x9e0] sm:$0xff]
        %v4553 = vld [vmem:[%s355 + $0x9e8] sm:$0xff]
        %v4554 = vld [vmem:[%s355 + $0x9f0] sm:$0xff]
        %v4555 = vld [vmem:[%s355 + $0x9f8] sm:$0xff]
        %v4556 = vld [vmem:[%s355 + $0xa00] sm:$0xff]
        %v4557 = vld [vmem:[%s355 + $0xa08] sm:$0xff]
        %v4558 = vld [vmem:[%s355 + $0xa10] sm:$0xf]
        %v4559 = vld [vmem:[%s355 + $0xa14] sm:$0xff]
        %v4560 = vld [vmem:[%s355 + $0xa1c] sm:$0xff]
        %v4561 = vld [vmem:[%s355 + $0xa24] sm:$0xff]
        %v4562 = vld [vmem:[%s355 + $0xa2c] sm:$0xff]
        %v4563 = vld [vmem:[%s355 + $0xa34] sm:$0xff]
        %v4564 = vld [vmem:[%s355 + $0xa3c] sm:$0xff]
        %v4565 = vld [vmem:[%s355 + $0xa44] sm:$0xff]
        %v4566 = vld [vmem:[%s355 + $0xa4c] sm:$0xf]
        %v4567 = vld [vmem:[%s355 + $0xa50] sm:$0xff]
        %v4568 = vld [vmem:[%s355 + $0xa58] sm:$0xff]
        %v4569 = vld [vmem:[%s355 + $0xa60] sm:$0xff]
        %v4570 = vld [vmem:[%s355 + $0xa68] sm:$0xff]
        %v4571 = vld [vmem:[%s355 + $0xa70] sm:$0xff]
        %v4572 = vld [vmem:[%s355 + $0xa78] sm:$0xff]
        %v4573 = vld [vmem:[%s355 + $0xa80] sm:$0xff]
        %v4574 = vld [vmem:[%s355 + $0xa88] sm:$0xf]
        %v4575 = vld [vmem:[%s355 + $0xa8c] sm:$0xff]
        %v4576 = vld [vmem:[%s355 + $0xa94] sm:$0xff]
        %v4577 = vld [vmem:[%s355 + $0xa9c] sm:$0xff]
        %v4578 = vld [vmem:[%s355 + $0xaa4] sm:$0xff]
        %v4579 = vld [vmem:[%s355 + $0xaac] sm:$0xff]
        %v4580 = vld [vmem:[%s355 + $0xab4] sm:$0xff]
        %v4581 = vld [vmem:[%s355 + $0xabc] sm:$0xff]
        %v4582 = vld [vmem:[%s355 + $0xac4] sm:$0xf]
        %v4583 = vld [vmem:[%s355 + $0xac8] sm:$0xff]
        %v4584 = vld [vmem:[%s355 + $0xad0] sm:$0xff]
        %v4585 = vld [vmem:[%s355 + $0xad8] sm:$0xff]
        %v4586 = vld [vmem:[%s355 + $0xae0] sm:$0xff]
        %v4587 = vld [vmem:[%s355 + $0xae8] sm:$0xff]
        %v4588 = vld [vmem:[%s355 + $0xaf0] sm:$0xff]
        %v4589 = vld [vmem:[%s355 + $0xaf8] sm:$0xff]
        %v4590 = vld [vmem:[%s355 + $0xb00] sm:$0xf]
        %v4591 = vld [vmem:[%s355 + $0xb04] sm:$0xff]
        %v4592 = vld [vmem:[%s355 + $0xb0c] sm:$0xff]
        %v4593 = vld [vmem:[%s355 + $0xb14] sm:$0xff]
        %v4594 = vld [vmem:[%s355 + $0xb1c] sm:$0xff]
        %v4595 = vld [vmem:[%s355 + $0xb24] sm:$0xff]
        %v4596 = vld [vmem:[%s355 + $0xb2c] sm:$0xff]
        %v4597 = vld [vmem:[%s355 + $0xb34] sm:$0xff]
        %v4598 = vld [vmem:[%s355 + $0xb3c] sm:$0xf]
        %v4599 = vld [vmem:[%s355 + $0xb40] sm:$0xff]
        %v4600 = vld [vmem:[%s355 + $0xb48] sm:$0xff]
        %v4601 = vld [vmem:[%s355 + $0xb50] sm:$0xff]
        %v4602 = vld [vmem:[%s355 + $0xb58] sm:$0xff]
        %v4603 = vld [vmem:[%s355 + $0xb60] sm:$0xff]
        %v4604 = vld [vmem:[%s355 + $0xb68] sm:$0xff]
        %v4605 = vld [vmem:[%s355 + $0xb70] sm:$0xff]
        %v4606 = vld [vmem:[%s355 + $0xb78] sm:$0xf]
        %v4607 = vld [vmem:[%s355 + $0xb7c] sm:$0xff]
        %v4608 = vld [vmem:[%s355 + $0xb84] sm:$0xff]
        %v4609 = vld [vmem:[%s355 + $0xb8c] sm:$0xff]
        %v4610 = vld [vmem:[%s355 + $0xb94] sm:$0xff]
        %v4611 = vld [vmem:[%s355 + $0xb9c] sm:$0xff]
        %v4612 = vld [vmem:[%s355 + $0xba4] sm:$0xff]
        %v4613 = vld [vmem:[%s355 + $0xbac] sm:$0xff]
        %v4614 = vld [vmem:[%s355 + $0xbb4] sm:$0xf]
        %v4615 = vld [vmem:[%s355 + $0xbb8] sm:$0xff]
        %v4616 = vld [vmem:[%s355 + $0xbc0] sm:$0xff]
        %v4617 = vld [vmem:[%s355 + $0xbc8] sm:$0xff]
        %v4618 = vld [vmem:[%s355 + $0xbd0] sm:$0xff]
        %v4619 = vld [vmem:[%s355 + $0xbd8] sm:$0xff]
        %v4620 = vld [vmem:[%s355 + $0xbe0] sm:$0xff]
        %v4621 = vld [vmem:[%s355 + $0xbe8] sm:$0xff]
        %v4622 = vld [vmem:[%s355 + $0xbf0] sm:$0xf]
        %v4623 = vld [vmem:[%s355 + $0xbf4] sm:$0xff]
        %v4624 = vld [vmem:[%s355 + $0xbfc] sm:$0xff]
        %v4625 = vld [vmem:[%s355 + $0xc04] sm:$0xff]
        %v4626 = vld [vmem:[%s355 + $0xc0c] sm:$0xff]
        %v4627 = vld [vmem:[%s355 + $0xc14] sm:$0xff]
        %v4628 = vld [vmem:[%s355 + $0xc1c] sm:$0xff]
        %v4629 = vld [vmem:[%s355 + $0xc24] sm:$0xff]
        %v4630 = vld [vmem:[%s355 + $0xc2c] sm:$0xf]
        %v4631 = vld [vmem:[%s355 + $0xc30] sm:$0xff]
        %v4632 = vld [vmem:[%s355 + $0xc38] sm:$0xff]
        %v4633 = vld [vmem:[%s355 + $0xc40] sm:$0xff]
        %v4634 = vld [vmem:[%s355 + $0xc48] sm:$0xff]
        %v4635 = vld [vmem:[%s355 + $0xc50] sm:$0xff]
        %v4636 = vld [vmem:[%s355 + $0xc58] sm:$0xff]
        %v4637 = vld [vmem:[%s355 + $0xc60] sm:$0xff]
        %v4638 = vld [vmem:[%s355 + $0xc68] sm:$0xf]
        %v4639 = vld [vmem:[%s355 + $0xc6c] sm:$0xff]
        %v4640 = vld [vmem:[%s355 + $0xc74] sm:$0xff]
        %v4641 = vld [vmem:[%s355 + $0xc7c] sm:$0xff]
        %v4642 = vld [vmem:[%s355 + $0xc84] sm:$0xff]
        %v4643 = vld [vmem:[%s355 + $0xc8c] sm:$0xff]
        %v4644 = vld [vmem:[%s355 + $0xc94] sm:$0xff]
        %v4645 = vld [vmem:[%s355 + $0xc9c] sm:$0xff]
        %v4646 = vld [vmem:[%s355 + $0xca4] sm:$0xf]
        %v4647 = vld [vmem:[%s355 + $0xca8] sm:$0xff]
        %v4648 = vld [vmem:[%s355 + $0xcb0] sm:$0xff]
        %v4649 = vld [vmem:[%s355 + $0xcb8] sm:$0xff]
        %v4650 = vld [vmem:[%s355 + $0xcc0] sm:$0xff]
        %v4651 = vld [vmem:[%s355 + $0xcc8] sm:$0xff]
        %v4652 = vld [vmem:[%s355 + $0xcd0] sm:$0xff]
        %v4653 = vld [vmem:[%s355 + $0xcd8] sm:$0xff]
        %v4654 = vld [vmem:[%s355 + $0xce0] sm:$0xf]
        %v4655 = vld [vmem:[%s355 + $0xce4] sm:$0xff]
        %v4656 = vld [vmem:[%s355 + $0xcec] sm:$0xff]
        %v4657 = vld [vmem:[%s355 + $0xcf4] sm:$0xff]
        %v4658 = vld [vmem:[%s355 + $0xcfc] sm:$0xff]
        %v4659 = vld [vmem:[%s355 + $0xd04] sm:$0xff]
        %v4660 = vld [vmem:[%s355 + $0xd0c] sm:$0xff]
        %v4661 = vld [vmem:[%s355 + $0xd14] sm:$0xff]
        %v4662 = vld [vmem:[%s355 + $0xd1c] sm:$0xf]
        %v4663 = vld [vmem:[%s355 + $0xd20] sm:$0xff]
        %v4664 = vld [vmem:[%s355 + $0xd28] sm:$0xff]
        %v4665 = vld [vmem:[%s355 + $0xd30] sm:$0xff]
        %v4666 = vld [vmem:[%s355 + $0xd38] sm:$0xff]
        %v4667 = vld [vmem:[%s355 + $0xd40] sm:$0xff]
        %v4668 = vld [vmem:[%s355 + $0xd48] sm:$0xff]
        %v4669 = vld [vmem:[%s355 + $0xd50] sm:$0xff]
        %v4670 = vld [vmem:[%s355 + $0xd58] sm:$0xf]
        %v4671 = vld [vmem:[%s355 + $0xd5c] sm:$0xff]
        %v4672 = vld [vmem:[%s355 + $0xd64] sm:$0xff]
        %v4673 = vld [vmem:[%s355 + $0xd6c] sm:$0xff]
        %v4674 = vld [vmem:[%s355 + $0xd74] sm:$0xff]
        %v4675 = vld [vmem:[%s355 + $0xd7c] sm:$0xff]
        %v4676 = vld [vmem:[%s355 + $0xd84] sm:$0xff]
        %v4677 = vld [vmem:[%s355 + $0xd8c] sm:$0xff]
        %v4678 = vld [vmem:[%s355 + $0xd94] sm:$0xf]
        %v4679 = vld [vmem:[%s355 + $0xd98] sm:$0xff]
        %v4680 = vld [vmem:[%s355 + $0xda0] sm:$0xff]
        %v4681 = vld [vmem:[%s355 + $0xda8] sm:$0xff]
        %v4682 = vld [vmem:[%s355 + $0xdb0] sm:$0xff]
        %v4683 = vld [vmem:[%s355 + $0xdb8] sm:$0xff]
        %v4684 = vld [vmem:[%s355 + $0xdc0] sm:$0xff]
        %v4685 = vld [vmem:[%s355 + $0xdc8] sm:$0xff]
        %v4686 = vld [vmem:[%s355 + $0xdd0] sm:$0xf]
        %v4687 = vld [vmem:[%s355 + $0xdd4] sm:$0xff]
        %v4688 = vld [vmem:[%s355 + $0xddc] sm:$0xff]
        %v4689 = vld [vmem:[%s355 + $0xde4] sm:$0xff]
        %v4690 = vld [vmem:[%s355 + $0xdec] sm:$0xff]
        %v4691 = vld [vmem:[%s355 + $0xdf4] sm:$0xff]
        %v4692 = vld [vmem:[%s355 + $0xdfc] sm:$0xff]
        %v4693 = vld [vmem:[%s355 + $0xe04] sm:$0xff]
        %v4694 = vld [vmem:[%s355 + $0xe0c] sm:$0xf]
        %v5175 = vunpack.c.l.b16 %v4215
        %v5176 = vunpack.c.h.b16 %v4215
        %v5177 = vunpack.c.l.b16 %v4216
        %v5178 = vunpack.c.h.b16 %v4216
        %v5179 = vunpack.c.l.b16 %v4217
        %v5180 = vunpack.c.h.b16 %v4217
        %v5181 = vunpack.c.l.b16 %v4218
        %v5182 = vunpack.c.h.b16 %v4218
        %v5183 = vunpack.c.l.b16 %v4219
        %v5184 = vunpack.c.h.b16 %v4219
        %v5185 = vunpack.c.l.b16 %v4220
        %v5186 = vunpack.c.h.b16 %v4220
        %v5187 = vunpack.c.l.b16 %v4221
        %v5188 = vunpack.c.h.b16 %v4221
        %v5189 = vunpack.c.l.b16 %v4222
        %v5190 = vunpack.c.l.b16 %v4223
        %v5191 = vunpack.c.h.b16 %v4223
        %v5192 = vunpack.c.l.b16 %v4224
        %v5193 = vunpack.c.h.b16 %v4224
        %v5194 = vunpack.c.l.b16 %v4225
        %v5195 = vunpack.c.h.b16 %v4225
        %v5196 = vunpack.c.l.b16 %v4226
        %v5197 = vunpack.c.h.b16 %v4226
        %v5198 = vunpack.c.l.b16 %v4227
        %v5199 = vunpack.c.h.b16 %v4227
        %v5200 = vunpack.c.l.b16 %v4228
        %v5201 = vunpack.c.h.b16 %v4228
        %v5202 = vunpack.c.l.b16 %v4229
        %v5203 = vunpack.c.h.b16 %v4229
        %v5204 = vunpack.c.l.b16 %v4230
        %v5205 = vunpack.c.l.b16 %v4231
        %v5206 = vunpack.c.h.b16 %v4231
        %v5207 = vunpack.c.l.b16 %v4232
        %v5208 = vunpack.c.h.b16 %v4232
        %v5209 = vunpack.c.l.b16 %v4233
        %v5210 = vunpack.c.h.b16 %v4233
        %v5211 = vunpack.c.l.b16 %v4234
        %v5212 = vunpack.c.h.b16 %v4234
        %v5213 = vunpack.c.l.b16 %v4235
        %v5214 = vunpack.c.h.b16 %v4235
        %v5215 = vunpack.c.l.b16 %v4236
        %v5216 = vunpack.c.h.b16 %v4236
        %v5217 = vunpack.c.l.b16 %v4237
        %v5218 = vunpack.c.h.b16 %v4237
        %v5219 = vunpack.c.l.b16 %v4238
        %v5220 = vunpack.c.l.b16 %v4239
        %v5221 = vunpack.c.h.b16 %v4239
        %v5222 = vunpack.c.l.b16 %v4240
        %v5223 = vunpack.c.h.b16 %v4240
        %v5224 = vunpack.c.l.b16 %v4241
        %v5225 = vunpack.c.h.b16 %v4241
        %v5226 = vunpack.c.l.b16 %v4242
        %v5227 = vunpack.c.h.b16 %v4242
        %v5228 = vunpack.c.l.b16 %v4243
        %v5229 = vunpack.c.h.b16 %v4243
        %v5230 = vunpack.c.l.b16 %v4244
        %v5231 = vunpack.c.h.b16 %v4244
        %v5232 = vunpack.c.l.b16 %v4245
        %v5233 = vunpack.c.h.b16 %v4245
        %v5234 = vunpack.c.l.b16 %v4246
        %v5235 = vunpack.c.l.b16 %v4247
        %v5236 = vunpack.c.h.b16 %v4247
        %v5237 = vunpack.c.l.b16 %v4248
        %v5238 = vunpack.c.h.b16 %v4248
        %v5239 = vunpack.c.l.b16 %v4249
        %v5240 = vunpack.c.h.b16 %v4249
        %v5241 = vunpack.c.l.b16 %v4250
        %v5242 = vunpack.c.h.b16 %v4250
        %v5243 = vunpack.c.l.b16 %v4251
        %v5244 = vunpack.c.h.b16 %v4251
        %v5245 = vunpack.c.l.b16 %v4252
        %v5246 = vunpack.c.h.b16 %v4252
        %v5247 = vunpack.c.l.b16 %v4253
        %v5248 = vunpack.c.h.b16 %v4253
        %v5249 = vunpack.c.l.b16 %v4254
        %v5250 = vunpack.c.l.b16 %v4255
        %v5251 = vunpack.c.h.b16 %v4255
        %v5252 = vunpack.c.l.b16 %v4256
        %v5253 = vunpack.c.h.b16 %v4256
        %v5254 = vunpack.c.l.b16 %v4257
        %v5255 = vunpack.c.h.b16 %v4257
        %v5256 = vunpack.c.l.b16 %v4258
        %v5257 = vunpack.c.h.b16 %v4258
        %v5258 = vunpack.c.l.b16 %v4259
        %v5259 = vunpack.c.h.b16 %v4259
        %v5260 = vunpack.c.l.b16 %v4260
        %v5261 = vunpack.c.h.b16 %v4260
        %v5262 = vunpack.c.l.b16 %v4261
        %v5263 = vunpack.c.h.b16 %v4261
        %v5264 = vunpack.c.l.b16 %v4262
        %v5265 = vunpack.c.l.b16 %v4263
        %v5266 = vunpack.c.h.b16 %v4263
        %v5267 = vunpack.c.l.b16 %v4264
        %v5268 = vunpack.c.h.b16 %v4264
        %v5269 = vunpack.c.l.b16 %v4265
        %v5270 = vunpack.c.h.b16 %v4265
        %v5271 = vunpack.c.l.b16 %v4266
        %v5272 = vunpack.c.h.b16 %v4266
        %v5273 = vunpack.c.l.b16 %v4267
        %v5274 = vunpack.c.h.b16 %v4267
        %v5275 = vunpack.c.l.b16 %v4268
        %v5276 = vunpack.c.h.b16 %v4268
        %v5277 = vunpack.c.l.b16 %v4269
        %v5278 = vunpack.c.h.b16 %v4269
        %v5279 = vunpack.c.l.b16 %v4270
        %v5280 = vunpack.c.l.b16 %v4271
        %v5281 = vunpack.c.h.b16 %v4271
        %v5282 = vunpack.c.l.b16 %v4272
        %v5283 = vunpack.c.h.b16 %v4272
        %v5284 = vunpack.c.l.b16 %v4273
        %v5285 = vunpack.c.h.b16 %v4273
        %v5286 = vunpack.c.l.b16 %v4274
        %v5287 = vunpack.c.h.b16 %v4274
        %v5288 = vunpack.c.l.b16 %v4275
        %v5289 = vunpack.c.h.b16 %v4275
        %v5290 = vunpack.c.l.b16 %v4276
        %v5291 = vunpack.c.h.b16 %v4276
        %v5292 = vunpack.c.l.b16 %v4277
        %v5293 = vunpack.c.h.b16 %v4277
        %v5294 = vunpack.c.l.b16 %v4278
        %v5295 = vunpack.c.l.b16 %v4279
        %v5296 = vunpack.c.h.b16 %v4279
        %v5297 = vunpack.c.l.b16 %v4280
        %v5298 = vunpack.c.h.b16 %v4280
        %v5299 = vunpack.c.l.b16 %v4281
        %v5300 = vunpack.c.h.b16 %v4281
        %v5301 = vunpack.c.l.b16 %v4282
        %v5302 = vunpack.c.h.b16 %v4282
        %v5303 = vunpack.c.l.b16 %v4283
        %v5304 = vunpack.c.h.b16 %v4283
        %v5305 = vunpack.c.l.b16 %v4284
        %v5306 = vunpack.c.h.b16 %v4284
        %v5307 = vunpack.c.l.b16 %v4285
        %v5308 = vunpack.c.h.b16 %v4285
        %v5309 = vunpack.c.l.b16 %v4286
        %v5310 = vunpack.c.l.b16 %v4287
        %v5311 = vunpack.c.h.b16 %v4287
        %v5312 = vunpack.c.l.b16 %v4288
        %v5313 = vunpack.c.h.b16 %v4288
        %v5314 = vunpack.c.l.b16 %v4289
        %v5315 = vunpack.c.h.b16 %v4289
        %v5316 = vunpack.c.l.b16 %v4290
        %v5317 = vunpack.c.h.b16 %v4290
        %v5318 = vunpack.c.l.b16 %v4291
        %v5319 = vunpack.c.h.b16 %v4291
        %v5320 = vunpack.c.l.b16 %v4292
        %v5321 = vunpack.c.h.b16 %v4292
        %v5322 = vunpack.c.l.b16 %v4293
        %v5323 = vunpack.c.h.b16 %v4293
        %v5324 = vunpack.c.l.b16 %v4294
        %v5325 = vunpack.c.l.b16 %v4295
        %v5326 = vunpack.c.h.b16 %v4295
        %v5327 = vunpack.c.l.b16 %v4296
        %v5328 = vunpack.c.h.b16 %v4296
        %v5329 = vunpack.c.l.b16 %v4297
        %v5330 = vunpack.c.h.b16 %v4297
        %v5331 = vunpack.c.l.b16 %v4298
        %v5332 = vunpack.c.h.b16 %v4298
        %v5333 = vunpack.c.l.b16 %v4299
        %v5334 = vunpack.c.h.b16 %v4299
        %v5335 = vunpack.c.l.b16 %v4300
        %v5336 = vunpack.c.h.b16 %v4300
        %v5337 = vunpack.c.l.b16 %v4301
        %v5338 = vunpack.c.h.b16 %v4301
        %v5339 = vunpack.c.l.b16 %v4302
        %v5340 = vunpack.c.l.b16 %v4303
        %v5341 = vunpack.c.h.b16 %v4303
        %v5342 = vunpack.c.l.b16 %v4304
        %v5343 = vunpack.c.h.b16 %v4304
        %v5344 = vunpack.c.l.b16 %v4305
        %v5345 = vunpack.c.h.b16 %v4305
        %v5346 = vunpack.c.l.b16 %v4306
        %v5347 = vunpack.c.h.b16 %v4306
        %v5348 = vunpack.c.l.b16 %v4307
        %v5349 = vunpack.c.h.b16 %v4307
        %v5350 = vunpack.c.l.b16 %v4308
        %v5351 = vunpack.c.h.b16 %v4308
        %v5352 = vunpack.c.l.b16 %v4309
        %v5353 = vunpack.c.h.b16 %v4309
        %v5354 = vunpack.c.l.b16 %v4310
        %v5355 = vunpack.c.l.b16 %v4311
        %v5356 = vunpack.c.h.b16 %v4311
        %v5357 = vunpack.c.l.b16 %v4312
        %v5358 = vunpack.c.h.b16 %v4312
        %v5359 = vunpack.c.l.b16 %v4313
        %v5360 = vunpack.c.h.b16 %v4313
        %v5361 = vunpack.c.l.b16 %v4314
        %v5362 = vunpack.c.h.b16 %v4314
        %v5363 = vunpack.c.l.b16 %v4315
        %v5364 = vunpack.c.h.b16 %v4315
        %v5365 = vunpack.c.l.b16 %v4316
        %v5366 = vunpack.c.h.b16 %v4316
        %v5367 = vunpack.c.l.b16 %v4317
        %v5368 = vunpack.c.h.b16 %v4317
        %v5369 = vunpack.c.l.b16 %v4318
        %v5370 = vunpack.c.l.b16 %v4319
        %v5371 = vunpack.c.h.b16 %v4319
        %v5372 = vunpack.c.l.b16 %v4320
        %v5373 = vunpack.c.h.b16 %v4320
        %v5374 = vunpack.c.l.b16 %v4321
        %v5375 = vunpack.c.h.b16 %v4321
        %v5376 = vunpack.c.l.b16 %v4322
        %v5377 = vunpack.c.h.b16 %v4322
        %v5378 = vunpack.c.l.b16 %v4323
        %v5379 = vunpack.c.h.b16 %v4323
        %v5380 = vunpack.c.l.b16 %v4324
        %v5381 = vunpack.c.h.b16 %v4324
        %v5382 = vunpack.c.l.b16 %v4325
        %v5383 = vunpack.c.h.b16 %v4325
        %v5384 = vunpack.c.l.b16 %v4326
        %v5385 = vunpack.c.l.b16 %v4327
        %v5386 = vunpack.c.h.b16 %v4327
        %v5387 = vunpack.c.l.b16 %v4328
        %v5388 = vunpack.c.h.b16 %v4328
        %v5389 = vunpack.c.l.b16 %v4329
        %v5390 = vunpack.c.h.b16 %v4329
        %v5391 = vunpack.c.l.b16 %v4330
        %v5392 = vunpack.c.h.b16 %v4330
        %v5393 = vunpack.c.l.b16 %v4331
        %v5394 = vunpack.c.h.b16 %v4331
        %v5395 = vunpack.c.l.b16 %v4332
        %v5396 = vunpack.c.h.b16 %v4332
        %v5397 = vunpack.c.l.b16 %v4333
        %v5398 = vunpack.c.h.b16 %v4333
        %v5399 = vunpack.c.l.b16 %v4334
        %v5400 = vunpack.c.l.b16 %v4335
        %v5401 = vunpack.c.h.b16 %v4335
        %v5402 = vunpack.c.l.b16 %v4336
        %v5403 = vunpack.c.h.b16 %v4336
        %v5404 = vunpack.c.l.b16 %v4337
        %v5405 = vunpack.c.h.b16 %v4337
        %v5406 = vunpack.c.l.b16 %v4338
        %v5407 = vunpack.c.h.b16 %v4338
        %v5408 = vunpack.c.l.b16 %v4339
        %v5409 = vunpack.c.h.b16 %v4339
        %v5410 = vunpack.c.l.b16 %v4340
        %v5411 = vunpack.c.h.b16 %v4340
        %v5412 = vunpack.c.l.b16 %v4341
        %v5413 = vunpack.c.h.b16 %v4341
        %v5414 = vunpack.c.l.b16 %v4342
        %v5415 = vunpack.c.l.b16 %v4343
        %v5416 = vunpack.c.h.b16 %v4343
        %v5417 = vunpack.c.l.b16 %v4344
        %v5418 = vunpack.c.h.b16 %v4344
        %v5419 = vunpack.c.l.b16 %v4345
        %v5420 = vunpack.c.h.b16 %v4345
        %v5421 = vunpack.c.l.b16 %v4346
        %v5422 = vunpack.c.h.b16 %v4346
        %v5423 = vunpack.c.l.b16 %v4347
        %v5424 = vunpack.c.h.b16 %v4347
        %v5425 = vunpack.c.l.b16 %v4348
        %v5426 = vunpack.c.h.b16 %v4348
        %v5427 = vunpack.c.l.b16 %v4349
        %v5428 = vunpack.c.h.b16 %v4349
        %v5429 = vunpack.c.l.b16 %v4350
        %v5430 = vunpack.c.l.b16 %v4351
        %v5431 = vunpack.c.h.b16 %v4351
        %v5432 = vunpack.c.l.b16 %v4352
        %v5433 = vunpack.c.h.b16 %v4352
        %v5434 = vunpack.c.l.b16 %v4353
        %v5435 = vunpack.c.h.b16 %v4353
        %v5436 = vunpack.c.l.b16 %v4354
        %v5437 = vunpack.c.h.b16 %v4354
        %v5438 = vunpack.c.l.b16 %v4355
        %v5439 = vunpack.c.h.b16 %v4355
        %v5440 = vunpack.c.l.b16 %v4356
        %v5441 = vunpack.c.h.b16 %v4356
        %v5442 = vunpack.c.l.b16 %v4357
        %v5443 = vunpack.c.h.b16 %v4357
        %v5444 = vunpack.c.l.b16 %v4358
        %v5445 = vunpack.c.l.b16 %v4359
        %v5446 = vunpack.c.h.b16 %v4359
        %v5447 = vunpack.c.l.b16 %v4360
        %v5448 = vunpack.c.h.b16 %v4360
        %v5449 = vunpack.c.l.b16 %v4361
        %v5450 = vunpack.c.h.b16 %v4361
        %v5451 = vunpack.c.l.b16 %v4362
        %v5452 = vunpack.c.h.b16 %v4362
        %v5453 = vunpack.c.l.b16 %v4363
        %v5454 = vunpack.c.h.b16 %v4363
        %v5455 = vunpack.c.l.b16 %v4364
        %v5456 = vunpack.c.h.b16 %v4364
        %v5457 = vunpack.c.l.b16 %v4365
        %v5458 = vunpack.c.h.b16 %v4365
        %v5459 = vunpack.c.l.b16 %v4366
        %v5460 = vunpack.c.l.b16 %v4367
        %v5461 = vunpack.c.h.b16 %v4367
        %v5462 = vunpack.c.l.b16 %v4368
        %v5463 = vunpack.c.h.b16 %v4368
        %v5464 = vunpack.c.l.b16 %v4369
        %v5465 = vunpack.c.h.b16 %v4369
        %v5466 = vunpack.c.l.b16 %v4370
        %v5467 = vunpack.c.h.b16 %v4370
        %v5468 = vunpack.c.l.b16 %v4371
        %v5469 = vunpack.c.h.b16 %v4371
        %v5470 = vunpack.c.l.b16 %v4372
        %v5471 = vunpack.c.h.b16 %v4372
        %v5472 = vunpack.c.l.b16 %v4373
        %v5473 = vunpack.c.h.b16 %v4373
        %v5474 = vunpack.c.l.b16 %v4374
        %v5475 = vunpack.c.l.b16 %v4375
        %v5476 = vunpack.c.h.b16 %v4375
        %v5477 = vunpack.c.l.b16 %v4376
        %v5478 = vunpack.c.h.b16 %v4376
        %v5479 = vunpack.c.l.b16 %v4377
        %v5480 = vunpack.c.h.b16 %v4377
        %v5481 = vunpack.c.l.b16 %v4378
        %v5482 = vunpack.c.h.b16 %v4378
        %v5483 = vunpack.c.l.b16 %v4379
        %v5484 = vunpack.c.h.b16 %v4379
        %v5485 = vunpack.c.l.b16 %v4380
        %v5486 = vunpack.c.h.b16 %v4380
        %v5487 = vunpack.c.l.b16 %v4381
        %v5488 = vunpack.c.h.b16 %v4381
        %v5489 = vunpack.c.l.b16 %v4382
        %v5490 = vunpack.c.l.b16 %v4383
        %v5491 = vunpack.c.h.b16 %v4383
        %v5492 = vunpack.c.l.b16 %v4384
        %v5493 = vunpack.c.h.b16 %v4384
        %v5494 = vunpack.c.l.b16 %v4385
        %v5495 = vunpack.c.h.b16 %v4385
        %v5496 = vunpack.c.l.b16 %v4386
        %v5497 = vunpack.c.h.b16 %v4386
        %v5498 = vunpack.c.l.b16 %v4387
        %v5499 = vunpack.c.h.b16 %v4387
        %v5500 = vunpack.c.l.b16 %v4388
        %v5501 = vunpack.c.h.b16 %v4388
        %v5502 = vunpack.c.l.b16 %v4389
        %v5503 = vunpack.c.h.b16 %v4389
        %v5504 = vunpack.c.l.b16 %v4390
        %v5505 = vunpack.c.l.b16 %v4391
        %v5506 = vunpack.c.h.b16 %v4391
        %v5507 = vunpack.c.l.b16 %v4392
        %v5508 = vunpack.c.h.b16 %v4392
        %v5509 = vunpack.c.l.b16 %v4393
        %v5510 = vunpack.c.h.b16 %v4393
        %v5511 = vunpack.c.l.b16 %v4394
        %v5512 = vunpack.c.h.b16 %v4394
        %v5513 = vunpack.c.l.b16 %v4395
        %v5514 = vunpack.c.h.b16 %v4395
        %v5515 = vunpack.c.l.b16 %v4396
        %v5516 = vunpack.c.h.b16 %v4396
        %v5517 = vunpack.c.l.b16 %v4397
        %v5518 = vunpack.c.h.b16 %v4397
        %v5519 = vunpack.c.l.b16 %v4398
        %v5520 = vunpack.c.l.b16 %v4399
        %v5521 = vunpack.c.h.b16 %v4399
        %v5522 = vunpack.c.l.b16 %v4400
        %v5523 = vunpack.c.h.b16 %v4400
        %v5524 = vunpack.c.l.b16 %v4401
        %v5525 = vunpack.c.h.b16 %v4401
        %v5526 = vunpack.c.l.b16 %v4402
        %v5527 = vunpack.c.h.b16 %v4402
        %v5528 = vunpack.c.l.b16 %v4403
        %v5529 = vunpack.c.h.b16 %v4403
        %v5530 = vunpack.c.l.b16 %v4404
        %v5531 = vunpack.c.h.b16 %v4404
        %v5532 = vunpack.c.l.b16 %v4405
        %v5533 = vunpack.c.h.b16 %v4405
        %v5534 = vunpack.c.l.b16 %v4406
        %v5535 = vunpack.c.l.b16 %v4407
        %v5536 = vunpack.c.h.b16 %v4407
        %v5537 = vunpack.c.l.b16 %v4408
        %v5538 = vunpack.c.h.b16 %v4408
        %v5539 = vunpack.c.l.b16 %v4409
        %v5540 = vunpack.c.h.b16 %v4409
        %v5541 = vunpack.c.l.b16 %v4410
        %v5542 = vunpack.c.h.b16 %v4410
        %v5543 = vunpack.c.l.b16 %v4411
        %v5544 = vunpack.c.h.b16 %v4411
        %v5545 = vunpack.c.l.b16 %v4412
        %v5546 = vunpack.c.h.b16 %v4412
        %v5547 = vunpack.c.l.b16 %v4413
        %v5548 = vunpack.c.h.b16 %v4413
        %v5549 = vunpack.c.l.b16 %v4414
        %v5550 = vunpack.c.l.b16 %v4415
        %v5551 = vunpack.c.h.b16 %v4415
        %v5552 = vunpack.c.l.b16 %v4416
        %v5553 = vunpack.c.h.b16 %v4416
        %v5554 = vunpack.c.l.b16 %v4417
        %v5555 = vunpack.c.h.b16 %v4417
        %v5556 = vunpack.c.l.b16 %v4418
        %v5557 = vunpack.c.h.b16 %v4418
        %v5558 = vunpack.c.l.b16 %v4419
        %v5559 = vunpack.c.h.b16 %v4419
        %v5560 = vunpack.c.l.b16 %v4420
        %v5561 = vunpack.c.h.b16 %v4420
        %v5562 = vunpack.c.l.b16 %v4421
        %v5563 = vunpack.c.h.b16 %v4421
        %v5564 = vunpack.c.l.b16 %v4422
        %v5565 = vunpack.c.l.b16 %v4423
        %v5566 = vunpack.c.h.b16 %v4423
        %v5567 = vunpack.c.l.b16 %v4424
        %v5568 = vunpack.c.h.b16 %v4424
        %v5569 = vunpack.c.l.b16 %v4425
        %v5570 = vunpack.c.h.b16 %v4425
        %v5571 = vunpack.c.l.b16 %v4426
        %v5572 = vunpack.c.h.b16 %v4426
        %v5573 = vunpack.c.l.b16 %v4427
        %v5574 = vunpack.c.h.b16 %v4427
        %v5575 = vunpack.c.l.b16 %v4428
        %v5576 = vunpack.c.h.b16 %v4428
        %v5577 = vunpack.c.l.b16 %v4429
        %v5578 = vunpack.c.h.b16 %v4429
        %v5579 = vunpack.c.l.b16 %v4430
        %v5580 = vunpack.c.l.b16 %v4431
        %v5581 = vunpack.c.h.b16 %v4431
        %v5582 = vunpack.c.l.b16 %v4432
        %v5583 = vunpack.c.h.b16 %v4432
        %v5584 = vunpack.c.l.b16 %v4433
        %v5585 = vunpack.c.h.b16 %v4433
        %v5586 = vunpack.c.l.b16 %v4434
        %v5587 = vunpack.c.h.b16 %v4434
        %v5588 = vunpack.c.l.b16 %v4435
        %v5589 = vunpack.c.h.b16 %v4435
        %v5590 = vunpack.c.l.b16 %v4436
        %v5591 = vunpack.c.h.b16 %v4436
        %v5592 = vunpack.c.l.b16 %v4437
        %v5593 = vunpack.c.h.b16 %v4437
        %v5594 = vunpack.c.l.b16 %v4438
        %v5595 = vunpack.c.l.b16 %v4439
        %v5596 = vunpack.c.h.b16 %v4439
        %v5597 = vunpack.c.l.b16 %v4440
        %v5598 = vunpack.c.h.b16 %v4440
        %v5599 = vunpack.c.l.b16 %v4441
        %v5600 = vunpack.c.h.b16 %v4441
        %v5601 = vunpack.c.l.b16 %v4442
        %v5602 = vunpack.c.h.b16 %v4442
        %v5603 = vunpack.c.l.b16 %v4443
        %v5604 = vunpack.c.h.b16 %v4443
        %v5605 = vunpack.c.l.b16 %v4444
        %v5606 = vunpack.c.h.b16 %v4444
        %v5607 = vunpack.c.l.b16 %v4445
        %v5608 = vunpack.c.h.b16 %v4445
        %v5609 = vunpack.c.l.b16 %v4446
        %v5610 = vunpack.c.l.b16 %v4447
        %v5611 = vunpack.c.h.b16 %v4447
        %v5612 = vunpack.c.l.b16 %v4448
        %v5613 = vunpack.c.h.b16 %v4448
        %v5614 = vunpack.c.l.b16 %v4449
        %v5615 = vunpack.c.h.b16 %v4449
        %v5616 = vunpack.c.l.b16 %v4450
        %v5617 = vunpack.c.h.b16 %v4450
        %v5618 = vunpack.c.l.b16 %v4451
        %v5619 = vunpack.c.h.b16 %v4451
        %v5620 = vunpack.c.l.b16 %v4452
        %v5621 = vunpack.c.h.b16 %v4452
        %v5622 = vunpack.c.l.b16 %v4453
        %v5623 = vunpack.c.h.b16 %v4453
        %v5624 = vunpack.c.l.b16 %v4454
        %v5625 = vunpack.c.l.b16 %v4455
        %v5626 = vunpack.c.h.b16 %v4455
        %v5627 = vunpack.c.l.b16 %v4456
        %v5628 = vunpack.c.h.b16 %v4456
        %v5629 = vunpack.c.l.b16 %v4457
        %v5630 = vunpack.c.h.b16 %v4457
        %v5631 = vunpack.c.l.b16 %v4458
        %v5632 = vunpack.c.h.b16 %v4458
        %v5633 = vunpack.c.l.b16 %v4459
        %v5634 = vunpack.c.h.b16 %v4459
        %v5635 = vunpack.c.l.b16 %v4460
        %v5636 = vunpack.c.h.b16 %v4460
        %v5637 = vunpack.c.l.b16 %v4461
        %v5638 = vunpack.c.h.b16 %v4461
        %v5639 = vunpack.c.l.b16 %v4462
        %v5640 = vunpack.c.l.b16 %v4463
        %v5641 = vunpack.c.h.b16 %v4463
        %v5642 = vunpack.c.l.b16 %v4464
        %v5643 = vunpack.c.h.b16 %v4464
        %v5644 = vunpack.c.l.b16 %v4465
        %v5645 = vunpack.c.h.b16 %v4465
        %v5646 = vunpack.c.l.b16 %v4466
        %v5647 = vunpack.c.h.b16 %v4466
        %v5648 = vunpack.c.l.b16 %v4467
        %v5649 = vunpack.c.h.b16 %v4467
        %v5650 = vunpack.c.l.b16 %v4468
        %v5651 = vunpack.c.h.b16 %v4468
        %v5652 = vunpack.c.l.b16 %v4469
        %v5653 = vunpack.c.h.b16 %v4469
        %v5654 = vunpack.c.l.b16 %v4470
        %v5655 = vunpack.c.l.b16 %v4471
        %v5656 = vunpack.c.h.b16 %v4471
        %v5657 = vunpack.c.l.b16 %v4472
        %v5658 = vunpack.c.h.b16 %v4472
        %v5659 = vunpack.c.l.b16 %v4473
        %v5660 = vunpack.c.h.b16 %v4473
        %v5661 = vunpack.c.l.b16 %v4474
        %v5662 = vunpack.c.h.b16 %v4474
        %v5663 = vunpack.c.l.b16 %v4475
        %v5664 = vunpack.c.h.b16 %v4475
        %v5665 = vunpack.c.l.b16 %v4476
        %v5666 = vunpack.c.h.b16 %v4476
        %v5667 = vunpack.c.l.b16 %v4477
        %v5668 = vunpack.c.h.b16 %v4477
        %v5669 = vunpack.c.l.b16 %v4478
        %v5670 = vunpack.c.l.b16 %v4479
        %v5671 = vunpack.c.h.b16 %v4479
        %v5672 = vunpack.c.l.b16 %v4480
        %v5673 = vunpack.c.h.b16 %v4480
        %v5674 = vunpack.c.l.b16 %v4481
        %v5675 = vunpack.c.h.b16 %v4481
        %v5676 = vunpack.c.l.b16 %v4482
        %v5677 = vunpack.c.h.b16 %v4482
        %v5678 = vunpack.c.l.b16 %v4483
        %v5679 = vunpack.c.h.b16 %v4483
        %v5680 = vunpack.c.l.b16 %v4484
        %v5681 = vunpack.c.h.b16 %v4484
        %v5682 = vunpack.c.l.b16 %v4485
        %v5683 = vunpack.c.h.b16 %v4485
        %v5684 = vunpack.c.l.b16 %v4486
        %v5685 = vunpack.c.l.b16 %v4487
        %v5686 = vunpack.c.h.b16 %v4487
        %v5687 = vunpack.c.l.b16 %v4488
        %v5688 = vunpack.c.h.b16 %v4488
        %v5689 = vunpack.c.l.b16 %v4489
        %v5690 = vunpack.c.h.b16 %v4489
        %v5691 = vunpack.c.l.b16 %v4490
        %v5692 = vunpack.c.h.b16 %v4490
        %v5693 = vunpack.c.l.b16 %v4491
        %v5694 = vunpack.c.h.b16 %v4491
        %v5695 = vunpack.c.l.b16 %v4492
        %v5696 = vunpack.c.h.b16 %v4492
        %v5697 = vunpack.c.l.b16 %v4493
        %v5698 = vunpack.c.h.b16 %v4493
        %v5699 = vunpack.c.l.b16 %v4494
        %v5700 = vunpack.c.l.b16 %v4495
        %v5701 = vunpack.c.h.b16 %v4495
        %v5702 = vunpack.c.l.b16 %v4496
        %v5703 = vunpack.c.h.b16 %v4496
        %v5704 = vunpack.c.l.b16 %v4497
        %v5705 = vunpack.c.h.b16 %v4497
        %v5706 = vunpack.c.l.b16 %v4498
        %v5707 = vunpack.c.h.b16 %v4498
        %v5708 = vunpack.c.l.b16 %v4499
        %v5709 = vunpack.c.h.b16 %v4499
        %v5710 = vunpack.c.l.b16 %v4500
        %v5711 = vunpack.c.h.b16 %v4500
        %v5712 = vunpack.c.l.b16 %v4501
        %v5713 = vunpack.c.h.b16 %v4501
        %v5714 = vunpack.c.l.b16 %v4502
        %v5715 = vunpack.c.l.b16 %v4503
        %v5716 = vunpack.c.h.b16 %v4503
        %v5717 = vunpack.c.l.b16 %v4504
        %v5718 = vunpack.c.h.b16 %v4504
        %v5719 = vunpack.c.l.b16 %v4505
        %v5720 = vunpack.c.h.b16 %v4505
        %v5721 = vunpack.c.l.b16 %v4506
        %v5722 = vunpack.c.h.b16 %v4506
        %v5723 = vunpack.c.l.b16 %v4507
        %v5724 = vunpack.c.h.b16 %v4507
        %v5725 = vunpack.c.l.b16 %v4508
        %v5726 = vunpack.c.h.b16 %v4508
        %v5727 = vunpack.c.l.b16 %v4509
        %v5728 = vunpack.c.h.b16 %v4509
        %v5729 = vunpack.c.l.b16 %v4510
        %v5730 = vunpack.c.l.b16 %v4511
        %v5731 = vunpack.c.h.b16 %v4511
        %v5732 = vunpack.c.l.b16 %v4512
        %v5733 = vunpack.c.h.b16 %v4512
        %v5734 = vunpack.c.l.b16 %v4513
        %v5735 = vunpack.c.h.b16 %v4513
        %v5736 = vunpack.c.l.b16 %v4514
        %v5737 = vunpack.c.h.b16 %v4514
        %v5738 = vunpack.c.l.b16 %v4515
        %v5739 = vunpack.c.h.b16 %v4515
        %v5740 = vunpack.c.l.b16 %v4516
        %v5741 = vunpack.c.h.b16 %v4516
        %v5742 = vunpack.c.l.b16 %v4517
        %v5743 = vunpack.c.h.b16 %v4517
        %v5744 = vunpack.c.l.b16 %v4518
        %v5745 = vunpack.c.l.b16 %v4519
        %v5746 = vunpack.c.h.b16 %v4519
        %v5747 = vunpack.c.l.b16 %v4520
        %v5748 = vunpack.c.h.b16 %v4520
        %v5749 = vunpack.c.l.b16 %v4521
        %v5750 = vunpack.c.h.b16 %v4521
        %v5751 = vunpack.c.l.b16 %v4522
        %v5752 = vunpack.c.h.b16 %v4522
        %v5753 = vunpack.c.l.b16 %v4523
        %v5754 = vunpack.c.h.b16 %v4523
        %v5755 = vunpack.c.l.b16 %v4524
        %v5756 = vunpack.c.h.b16 %v4524
        %v5757 = vunpack.c.l.b16 %v4525
        %v5758 = vunpack.c.h.b16 %v4525
        %v5759 = vunpack.c.l.b16 %v4526
        %v5760 = vunpack.c.l.b16 %v4527
        %v5761 = vunpack.c.h.b16 %v4527
        %v5762 = vunpack.c.l.b16 %v4528
        %v5763 = vunpack.c.h.b16 %v4528
        %v5764 = vunpack.c.l.b16 %v4529
        %v5765 = vunpack.c.h.b16 %v4529
        %v5766 = vunpack.c.l.b16 %v4530
        %v5767 = vunpack.c.h.b16 %v4530
        %v5768 = vunpack.c.l.b16 %v4531
        %v5769 = vunpack.c.h.b16 %v4531
        %v5770 = vunpack.c.l.b16 %v4532
        %v5771 = vunpack.c.h.b16 %v4532
        %v5772 = vunpack.c.l.b16 %v4533
        %v5773 = vunpack.c.h.b16 %v4533
        %v5774 = vunpack.c.l.b16 %v4534
        %v5775 = vunpack.c.l.b16 %v4535
        %v5776 = vunpack.c.h.b16 %v4535
        %v5777 = vunpack.c.l.b16 %v4536
        %v5778 = vunpack.c.h.b16 %v4536
        %v5779 = vunpack.c.l.b16 %v4537
        %v5780 = vunpack.c.h.b16 %v4537
        %v5781 = vunpack.c.l.b16 %v4538
        %v5782 = vunpack.c.h.b16 %v4538
        %v5783 = vunpack.c.l.b16 %v4539
        %v5784 = vunpack.c.h.b16 %v4539
        %v5785 = vunpack.c.l.b16 %v4540
        %v5786 = vunpack.c.h.b16 %v4540
        %v5787 = vunpack.c.l.b16 %v4541
        %v5788 = vunpack.c.h.b16 %v4541
        %v5789 = vunpack.c.l.b16 %v4542
        %v5790 = vunpack.c.l.b16 %v4543
        %v5791 = vunpack.c.h.b16 %v4543
        %v5792 = vunpack.c.l.b16 %v4544
        %v5793 = vunpack.c.h.b16 %v4544
        %v5794 = vunpack.c.l.b16 %v4545
        %v5795 = vunpack.c.h.b16 %v4545
        %v5796 = vunpack.c.l.b16 %v4546
        %v5797 = vunpack.c.h.b16 %v4546
        %v5798 = vunpack.c.l.b16 %v4547
        %v5799 = vunpack.c.h.b16 %v4547
        %v5800 = vunpack.c.l.b16 %v4548
        %v5801 = vunpack.c.h.b16 %v4548
        %v5802 = vunpack.c.l.b16 %v4549
        %v5803 = vunpack.c.h.b16 %v4549
        %v5804 = vunpack.c.l.b16 %v4550
        %v5805 = vunpack.c.l.b16 %v4551
        %v5806 = vunpack.c.h.b16 %v4551
        %v5807 = vunpack.c.l.b16 %v4552
        %v5808 = vunpack.c.h.b16 %v4552
        %v5809 = vunpack.c.l.b16 %v4553
        %v5810 = vunpack.c.h.b16 %v4553
        %v5811 = vunpack.c.l.b16 %v4554
        %v5812 = vunpack.c.h.b16 %v4554
        %v5813 = vunpack.c.l.b16 %v4555
        %v5814 = vunpack.c.h.b16 %v4555
        %v5815 = vunpack.c.l.b16 %v4556
        %v5816 = vunpack.c.h.b16 %v4556
        %v5817 = vunpack.c.l.b16 %v4557
        %v5818 = vunpack.c.h.b16 %v4557
        %v5819 = vunpack.c.l.b16 %v4558
        %v5820 = vunpack.c.l.b16 %v4559
        %v5821 = vunpack.c.h.b16 %v4559
        %v5822 = vunpack.c.l.b16 %v4560
        %v5823 = vunpack.c.h.b16 %v4560
        %v5824 = vunpack.c.l.b16 %v4561
        %v5825 = vunpack.c.h.b16 %v4561
        %v5826 = vunpack.c.l.b16 %v4562
        %v5827 = vunpack.c.h.b16 %v4562
        %v5828 = vunpack.c.l.b16 %v4563
        %v5829 = vunpack.c.h.b16 %v4563
        %v5830 = vunpack.c.l.b16 %v4564
        %v5831 = vunpack.c.h.b16 %v4564
        %v5832 = vunpack.c.l.b16 %v4565
        %v5833 = vunpack.c.h.b16 %v4565
        %v5834 = vunpack.c.l.b16 %v4566
        %v5835 = vunpack.c.l.b16 %v4567
        %v5836 = vunpack.c.h.b16 %v4567
        %v5837 = vunpack.c.l.b16 %v4568
        %v5838 = vunpack.c.h.b16 %v4568
        %v5839 = vunpack.c.l.b16 %v4569
        %v5840 = vunpack.c.h.b16 %v4569
        %v5841 = vunpack.c.l.b16 %v4570
        %v5842 = vunpack.c.h.b16 %v4570
        %v5843 = vunpack.c.l.b16 %v4571
        %v5844 = vunpack.c.h.b16 %v4571
        %v5845 = vunpack.c.l.b16 %v4572
        %v5846 = vunpack.c.h.b16 %v4572
        %v5847 = vunpack.c.l.b16 %v4573
        %v5848 = vunpack.c.h.b16 %v4573
        %v5849 = vunpack.c.l.b16 %v4574
        %v5850 = vunpack.c.l.b16 %v4575
        %v5851 = vunpack.c.h.b16 %v4575
        %v5852 = vunpack.c.l.b16 %v4576
        %v5853 = vunpack.c.h.b16 %v4576
        %v5854 = vunpack.c.l.b16 %v4577
        %v5855 = vunpack.c.h.b16 %v4577
        %v5856 = vunpack.c.l.b16 %v4578
        %v5857 = vunpack.c.h.b16 %v4578
        %v5858 = vunpack.c.l.b16 %v4579
        %v5859 = vunpack.c.h.b16 %v4579
        %v5860 = vunpack.c.l.b16 %v4580
        %v5861 = vunpack.c.h.b16 %v4580
        %v5862 = vunpack.c.l.b16 %v4581
        %v5863 = vunpack.c.h.b16 %v4581
        %v5864 = vunpack.c.l.b16 %v4582
        %v5865 = vunpack.c.l.b16 %v4583
        %v5866 = vunpack.c.h.b16 %v4583
        %v5867 = vunpack.c.l.b16 %v4584
        %v5868 = vunpack.c.h.b16 %v4584
        %v5869 = vunpack.c.l.b16 %v4585
        %v5870 = vunpack.c.h.b16 %v4585
        %v5871 = vunpack.c.l.b16 %v4586
        %v5872 = vunpack.c.h.b16 %v4586
        %v5873 = vunpack.c.l.b16 %v4587
        %v5874 = vunpack.c.h.b16 %v4587
        %v5875 = vunpack.c.l.b16 %v4588
        %v5876 = vunpack.c.h.b16 %v4588
        %v5877 = vunpack.c.l.b16 %v4589
        %v5878 = vunpack.c.h.b16 %v4589
        %v5879 = vunpack.c.l.b16 %v4590
        %v5880 = vunpack.c.l.b16 %v4591
        %v5881 = vunpack.c.h.b16 %v4591
        %v5882 = vunpack.c.l.b16 %v4592
        %v5883 = vunpack.c.h.b16 %v4592
        %v5884 = vunpack.c.l.b16 %v4593
        %v5885 = vunpack.c.h.b16 %v4593
        %v5886 = vunpack.c.l.b16 %v4594
        %v5887 = vunpack.c.h.b16 %v4594
        %v5888 = vunpack.c.l.b16 %v4595
        %v5889 = vunpack.c.h.b16 %v4595
        %v5890 = vunpack.c.l.b16 %v4596
        %v5891 = vunpack.c.h.b16 %v4596
        %v5892 = vunpack.c.l.b16 %v4597
        %v5893 = vunpack.c.h.b16 %v4597
        %v5894 = vunpack.c.l.b16 %v4598
        %v5895 = vunpack.c.l.b16 %v4599
        %v5896 = vunpack.c.h.b16 %v4599
        %v5897 = vunpack.c.l.b16 %v4600
        %v5898 = vunpack.c.h.b16 %v4600
        %v5899 = vunpack.c.l.b16 %v4601
        %v5900 = vunpack.c.h.b16 %v4601
        %v5901 = vunpack.c.l.b16 %v4602
        %v5902 = vunpack.c.h.b16 %v4602
        %v5903 = vunpack.c.l.b16 %v4603
        %v5904 = vunpack.c.h.b16 %v4603
        %v5905 = vunpack.c.l.b16 %v4604
        %v5906 = vunpack.c.h.b16 %v4604
        %v5907 = vunpack.c.l.b16 %v4605
        %v5908 = vunpack.c.h.b16 %v4605
        %v5909 = vunpack.c.l.b16 %v4606
        %v5910 = vunpack.c.l.b16 %v4607
        %v5911 = vunpack.c.h.b16 %v4607
        %v5912 = vunpack.c.l.b16 %v4608
        %v5913 = vunpack.c.h.b16 %v4608
        %v5914 = vunpack.c.l.b16 %v4609
        %v5915 = vunpack.c.h.b16 %v4609
        %v5916 = vunpack.c.l.b16 %v4610
        %v5917 = vunpack.c.h.b16 %v4610
        %v5918 = vunpack.c.l.b16 %v4611
        %v5919 = vunpack.c.h.b16 %v4611
        %v5920 = vunpack.c.l.b16 %v4612
        %v5921 = vunpack.c.h.b16 %v4612
        %v5922 = vunpack.c.l.b16 %v4613
        %v5923 = vunpack.c.h.b16 %v4613
        %v5924 = vunpack.c.l.b16 %v4614
        %v5925 = vunpack.c.l.b16 %v4615
        %v5926 = vunpack.c.h.b16 %v4615
        %v5927 = vunpack.c.l.b16 %v4616
        %v5928 = vunpack.c.h.b16 %v4616
        %v5929 = vunpack.c.l.b16 %v4617
        %v5930 = vunpack.c.h.b16 %v4617
        %v5931 = vunpack.c.l.b16 %v4618
        %v5932 = vunpack.c.h.b16 %v4618
        %v5933 = vunpack.c.l.b16 %v4619
        %v5934 = vunpack.c.h.b16 %v4619
        %v5935 = vunpack.c.l.b16 %v4620
        %v5936 = vunpack.c.h.b16 %v4620
        %v5937 = vunpack.c.l.b16 %v4621
        %v5938 = vunpack.c.h.b16 %v4621
        %v5939 = vunpack.c.l.b16 %v4622
        %v5940 = vunpack.c.l.b16 %v4623
        %v5941 = vunpack.c.h.b16 %v4623
        %v5942 = vunpack.c.l.b16 %v4624
        %v5943 = vunpack.c.h.b16 %v4624
        %v5944 = vunpack.c.l.b16 %v4625
        %v5945 = vunpack.c.h.b16 %v4625
        %v5946 = vunpack.c.l.b16 %v4626
        %v5947 = vunpack.c.h.b16 %v4626
        %v5948 = vunpack.c.l.b16 %v4627
        %v5949 = vunpack.c.h.b16 %v4627
        %v5950 = vunpack.c.l.b16 %v4628
        %v5951 = vunpack.c.h.b16 %v4628
        %v5952 = vunpack.c.l.b16 %v4629
        %v5953 = vunpack.c.h.b16 %v4629
        %v5954 = vunpack.c.l.b16 %v4630
        %v5955 = vunpack.c.l.b16 %v4631
        %v5956 = vunpack.c.h.b16 %v4631
        %v5957 = vunpack.c.l.b16 %v4632
        %v5958 = vunpack.c.h.b16 %v4632
        %v5959 = vunpack.c.l.b16 %v4633
        %v5960 = vunpack.c.h.b16 %v4633
        %v5961 = vunpack.c.l.b16 %v4634
        %v5962 = vunpack.c.h.b16 %v4634
        %v5963 = vunpack.c.l.b16 %v4635
        %v5964 = vunpack.c.h.b16 %v4635
        %v5965 = vunpack.c.l.b16 %v4636
        %v5966 = vunpack.c.h.b16 %v4636
        %v5967 = vunpack.c.l.b16 %v4637
        %v5968 = vunpack.c.h.b16 %v4637
        %v5969 = vunpack.c.l.b16 %v4638
        %v5970 = vunpack.c.l.b16 %v4639
        %v5971 = vunpack.c.h.b16 %v4639
        %v5972 = vunpack.c.l.b16 %v4640
        %v5973 = vunpack.c.h.b16 %v4640
        %v5974 = vunpack.c.l.b16 %v4641
        %v5975 = vunpack.c.h.b16 %v4641
        %v5976 = vunpack.c.l.b16 %v4642
        %v5977 = vunpack.c.h.b16 %v4642
        %v5978 = vunpack.c.l.b16 %v4643
        %v5979 = vunpack.c.h.b16 %v4643
        %v5980 = vunpack.c.l.b16 %v4644
        %v5981 = vunpack.c.h.b16 %v4644
        %v5982 = vunpack.c.l.b16 %v4645
        %v5983 = vunpack.c.h.b16 %v4645
        %v5984 = vunpack.c.l.b16 %v4646
        %v5985 = vunpack.c.l.b16 %v4647
        %v5986 = vunpack.c.h.b16 %v4647
        %v5987 = vunpack.c.l.b16 %v4648
        %v5988 = vunpack.c.h.b16 %v4648
        %v5989 = vunpack.c.l.b16 %v4649
        %v5990 = vunpack.c.h.b16 %v4649
        %v5991 = vunpack.c.l.b16 %v4650
        %v5992 = vunpack.c.h.b16 %v4650
        %v5993 = vunpack.c.l.b16 %v4651
        %v5994 = vunpack.c.h.b16 %v4651
        %v5995 = vunpack.c.l.b16 %v4652
        %v5996 = vunpack.c.h.b16 %v4652
        %v5997 = vunpack.c.l.b16 %v4653
        %v5998 = vunpack.c.h.b16 %v4653
        %v5999 = vunpack.c.l.b16 %v4654
        %v6000 = vunpack.c.l.b16 %v4655
        %v6001 = vunpack.c.h.b16 %v4655
        %v6002 = vunpack.c.l.b16 %v4656
        %v6003 = vunpack.c.h.b16 %v4656
        %v6004 = vunpack.c.l.b16 %v4657
        %v6005 = vunpack.c.h.b16 %v4657
        %v6006 = vunpack.c.l.b16 %v4658
        %v6007 = vunpack.c.h.b16 %v4658
        %v6008 = vunpack.c.l.b16 %v4659
        %v6009 = vunpack.c.h.b16 %v4659
        %v6010 = vunpack.c.l.b16 %v4660
        %v6011 = vunpack.c.h.b16 %v4660
        %v6012 = vunpack.c.l.b16 %v4661
        %v6013 = vunpack.c.h.b16 %v4661
        %v6014 = vunpack.c.l.b16 %v4662
        %v6015 = vunpack.c.l.b16 %v4663
        %v6016 = vunpack.c.h.b16 %v4663
        %v6017 = vunpack.c.l.b16 %v4664
        %v6018 = vunpack.c.h.b16 %v4664
        %v6019 = vunpack.c.l.b16 %v4665
        %v6020 = vunpack.c.h.b16 %v4665
        %v6021 = vunpack.c.l.b16 %v4666
        %v6022 = vunpack.c.h.b16 %v4666
        %v6023 = vunpack.c.l.b16 %v4667
        %v6024 = vunpack.c.h.b16 %v4667
        %v6025 = vunpack.c.l.b16 %v4668
        %v6026 = vunpack.c.h.b16 %v4668
        %v6027 = vunpack.c.l.b16 %v4669
        %v6028 = vunpack.c.h.b16 %v4669
        %v6029 = vunpack.c.l.b16 %v4670
        %v6030 = vunpack.c.l.b16 %v4671
        %v6031 = vunpack.c.h.b16 %v4671
        %v6032 = vunpack.c.l.b16 %v4672
        %v6033 = vunpack.c.h.b16 %v4672
        %v6034 = vunpack.c.l.b16 %v4673
        %v6035 = vunpack.c.h.b16 %v4673
        %v6036 = vunpack.c.l.b16 %v4674
        %v6037 = vunpack.c.h.b16 %v4674
        %v6038 = vunpack.c.l.b16 %v4675
        %v6039 = vunpack.c.h.b16 %v4675
        %v6040 = vunpack.c.l.b16 %v4676
        %v6041 = vunpack.c.h.b16 %v4676
        %v6042 = vunpack.c.l.b16 %v4677
        %v6043 = vunpack.c.h.b16 %v4677
        %v6044 = vunpack.c.l.b16 %v4678
        %v6045 = vunpack.c.l.b16 %v4679
        %v6046 = vunpack.c.h.b16 %v4679
        %v6047 = vunpack.c.l.b16 %v4680
        %v6048 = vunpack.c.h.b16 %v4680
        %v6049 = vunpack.c.l.b16 %v4681
        %v6050 = vunpack.c.h.b16 %v4681
        %v6051 = vunpack.c.l.b16 %v4682
        %v6052 = vunpack.c.h.b16 %v4682
        %v6053 = vunpack.c.l.b16 %v4683
        %v6054 = vunpack.c.h.b16 %v4683
        %v6055 = vunpack.c.l.b16 %v4684
        %v6056 = vunpack.c.h.b16 %v4684
        %v6057 = vunpack.c.l.b16 %v4685
        %v6058 = vunpack.c.h.b16 %v4685
        %v6059 = vunpack.c.l.b16 %v4686
        %v6060 = vunpack.c.l.b16 %v4687
        %v6061 = vunpack.c.h.b16 %v4687
        %v6062 = vunpack.c.l.b16 %v4688
        %v6063 = vunpack.c.h.b16 %v4688
        %v6064 = vunpack.c.l.b16 %v4689
        %v6065 = vunpack.c.h.b16 %v4689
        %v6066 = vunpack.c.l.b16 %v4690
        %v6067 = vunpack.c.h.b16 %v4690
        %v6068 = vunpack.c.l.b16 %v4691
        %v6069 = vunpack.c.h.b16 %v4691
        %v6070 = vunpack.c.l.b16 %v4692
        %v6071 = vunpack.c.h.b16 %v4692
        %v6072 = vunpack.c.l.b16 %v4693
        %v6073 = vunpack.c.h.b16 %v4693
        %v6074 = vunpack.c.l.b16 %v4694
        %v6075 = vpack.c.b16 %v5190, %v5175
        %v6076 = vpack.c.b16 %v5191, %v5176
        %v6077 = vpack.c.b16 %v5192, %v5177
        %v6078 = vpack.c.b16 %v5193, %v5178
        %v6079 = vpack.c.b16 %v5194, %v5179
        %v6080 = vpack.c.b16 %v5195, %v5180
        %v6081 = vpack.c.b16 %v5196, %v5181
        %v6082 = vpack.c.b16 %v5197, %v5182
        %v6083 = vpack.c.b16 %v5198, %v5183
        %v6084 = vpack.c.b16 %v5199, %v5184
        %v6085 = vpack.c.b16 %v5200, %v5185
        %v6086 = vpack.c.b16 %v5201, %v5186
        %v6087 = vpack.c.b16 %v5202, %v5187
        %v6088 = vpack.c.b16 %v5203, %v5188
        %v6089 = vpack.c.b16 %v5204, %v5189
        %v6090 = vpack.c.b16 %v5220, %v5205
        %v6091 = vpack.c.b16 %v5221, %v5206
        %v6092 = vpack.c.b16 %v5222, %v5207
        %v6093 = vpack.c.b16 %v5223, %v5208
        %v6094 = vpack.c.b16 %v5224, %v5209
        %v6095 = vpack.c.b16 %v5225, %v5210
        %v6096 = vpack.c.b16 %v5226, %v5211
        %v6097 = vpack.c.b16 %v5227, %v5212
        %v6098 = vpack.c.b16 %v5228, %v5213
        %v6099 = vpack.c.b16 %v5229, %v5214
        %v6100 = vpack.c.b16 %v5230, %v5215
        %v6101 = vpack.c.b16 %v5231, %v5216
        %v6102 = vpack.c.b16 %v5232, %v5217
        %v6103 = vpack.c.b16 %v5233, %v5218
        %v6104 = vpack.c.b16 %v5234, %v5219
        %v6105 = vpack.c.b16 %v5250, %v5235
        %v6106 = vpack.c.b16 %v5251, %v5236
        %v6107 = vpack.c.b16 %v5252, %v5237
        %v6108 = vpack.c.b16 %v5253, %v5238
        %v6109 = vpack.c.b16 %v5254, %v5239
        %v6110 = vpack.c.b16 %v5255, %v5240
        %v6111 = vpack.c.b16 %v5256, %v5241
        %v6112 = vpack.c.b16 %v5257, %v5242
        %v6113 = vpack.c.b16 %v5258, %v5243
        %v6114 = vpack.c.b16 %v5259, %v5244
        %v6115 = vpack.c.b16 %v5260, %v5245
        %v6116 = vpack.c.b16 %v5261, %v5246
        %v6117 = vpack.c.b16 %v5262, %v5247
        %v6118 = vpack.c.b16 %v5263, %v5248
        %v6119 = vpack.c.b16 %v5264, %v5249
        %v6120 = vpack.c.b16 %v5280, %v5265
        %v6121 = vpack.c.b16 %v5281, %v5266
        %v6122 = vpack.c.b16 %v5282, %v5267
        %v6123 = vpack.c.b16 %v5283, %v5268
        %v6124 = vpack.c.b16 %v5284, %v5269
        %v6125 = vpack.c.b16 %v5285, %v5270
        %v6126 = vpack.c.b16 %v5286, %v5271
        %v6127 = vpack.c.b16 %v5287, %v5272
        %v6128 = vpack.c.b16 %v5288, %v5273
        %v6129 = vpack.c.b16 %v5289, %v5274
        %v6130 = vpack.c.b16 %v5290, %v5275
        %v6131 = vpack.c.b16 %v5291, %v5276
        %v6132 = vpack.c.b16 %v5292, %v5277
        %v6133 = vpack.c.b16 %v5293, %v5278
        %v6134 = vpack.c.b16 %v5294, %v5279
        %v6135 = vpack.c.b16 %v5310, %v5295
        %v6136 = vpack.c.b16 %v5311, %v5296
        %v6137 = vpack.c.b16 %v5312, %v5297
        %v6138 = vpack.c.b16 %v5313, %v5298
        %v6139 = vpack.c.b16 %v5314, %v5299
        %v6140 = vpack.c.b16 %v5315, %v5300
        %v6141 = vpack.c.b16 %v5316, %v5301
        %v6142 = vpack.c.b16 %v5317, %v5302
        %v6143 = vpack.c.b16 %v5318, %v5303
        %v6144 = vpack.c.b16 %v5319, %v5304
        %v6145 = vpack.c.b16 %v5320, %v5305
        %v6146 = vpack.c.b16 %v5321, %v5306
        %v6147 = vpack.c.b16 %v5322, %v5307
        %v6148 = vpack.c.b16 %v5323, %v5308
        %v6149 = vpack.c.b16 %v5324, %v5309
        %v6150 = vpack.c.b16 %v5340, %v5325
        %v6151 = vpack.c.b16 %v5341, %v5326
        %v6152 = vpack.c.b16 %v5342, %v5327
        %v6153 = vpack.c.b16 %v5343, %v5328
        %v6154 = vpack.c.b16 %v5344, %v5329
        %v6155 = vpack.c.b16 %v5345, %v5330
        %v6156 = vpack.c.b16 %v5346, %v5331
        %v6157 = vpack.c.b16 %v5347, %v5332
        %v6158 = vpack.c.b16 %v5348, %v5333
        %v6159 = vpack.c.b16 %v5349, %v5334
        %v6160 = vpack.c.b16 %v5350, %v5335
        %v6161 = vpack.c.b16 %v5351, %v5336
        %v6162 = vpack.c.b16 %v5352, %v5337
        %v6163 = vpack.c.b16 %v5353, %v5338
        %v6164 = vpack.c.b16 %v5354, %v5339
        %v6165 = vpack.c.b16 %v5370, %v5355
        %v6166 = vpack.c.b16 %v5371, %v5356
        %v6167 = vpack.c.b16 %v5372, %v5357
        %v6168 = vpack.c.b16 %v5373, %v5358
        %v6169 = vpack.c.b16 %v5374, %v5359
        %v6170 = vpack.c.b16 %v5375, %v5360
        %v6171 = vpack.c.b16 %v5376, %v5361
        %v6172 = vpack.c.b16 %v5377, %v5362
        %v6173 = vpack.c.b16 %v5378, %v5363
        %v6174 = vpack.c.b16 %v5379, %v5364
        %v6175 = vpack.c.b16 %v5380, %v5365
        %v6176 = vpack.c.b16 %v5381, %v5366
        %v6177 = vpack.c.b16 %v5382, %v5367
        %v6178 = vpack.c.b16 %v5383, %v5368
        %v6179 = vpack.c.b16 %v5384, %v5369
        %v6180 = vpack.c.b16 %v5400, %v5385
        %v6181 = vpack.c.b16 %v5401, %v5386
        %v6182 = vpack.c.b16 %v5402, %v5387
        %v6183 = vpack.c.b16 %v5403, %v5388
        %v6184 = vpack.c.b16 %v5404, %v5389
        %v6185 = vpack.c.b16 %v5405, %v5390
        %v6186 = vpack.c.b16 %v5406, %v5391
        %v6187 = vpack.c.b16 %v5407, %v5392
        %v6188 = vpack.c.b16 %v5408, %v5393
        %v6189 = vpack.c.b16 %v5409, %v5394
        %v6190 = vpack.c.b16 %v5410, %v5395
        %v6191 = vpack.c.b16 %v5411, %v5396
        %v6192 = vpack.c.b16 %v5412, %v5397
        %v6193 = vpack.c.b16 %v5413, %v5398
        %v6194 = vpack.c.b16 %v5414, %v5399
        %v6195 = vpack.c.b16 %v5430, %v5415
        %v6196 = vpack.c.b16 %v5431, %v5416
        %v6197 = vpack.c.b16 %v5432, %v5417
        %v6198 = vpack.c.b16 %v5433, %v5418
        %v6199 = vpack.c.b16 %v5434, %v5419
        %v6200 = vpack.c.b16 %v5435, %v5420
        %v6201 = vpack.c.b16 %v5436, %v5421
        %v6202 = vpack.c.b16 %v5437, %v5422
        %v6203 = vpack.c.b16 %v5438, %v5423
        %v6204 = vpack.c.b16 %v5439, %v5424
        %v6205 = vpack.c.b16 %v5440, %v5425
        %v6206 = vpack.c.b16 %v5441, %v5426
        %v6207 = vpack.c.b16 %v5442, %v5427
        %v6208 = vpack.c.b16 %v5443, %v5428
        %v6209 = vpack.c.b16 %v5444, %v5429
        %v6210 = vpack.c.b16 %v5460, %v5445
        %v6211 = vpack.c.b16 %v5461, %v5446
        %v6212 = vpack.c.b16 %v5462, %v5447
        %v6213 = vpack.c.b16 %v5463, %v5448
        %v6214 = vpack.c.b16 %v5464, %v5449
        %v6215 = vpack.c.b16 %v5465, %v5450
        %v6216 = vpack.c.b16 %v5466, %v5451
        %v6217 = vpack.c.b16 %v5467, %v5452
        %v6218 = vpack.c.b16 %v5468, %v5453
        %v6219 = vpack.c.b16 %v5469, %v5454
        %v6220 = vpack.c.b16 %v5470, %v5455
        %v6221 = vpack.c.b16 %v5471, %v5456
        %v6222 = vpack.c.b16 %v5472, %v5457
        %v6223 = vpack.c.b16 %v5473, %v5458
        %v6224 = vpack.c.b16 %v5474, %v5459
        %v6225 = vpack.c.b16 %v5490, %v5475
        %v6226 = vpack.c.b16 %v5491, %v5476
        %v6227 = vpack.c.b16 %v5492, %v5477
        %v6228 = vpack.c.b16 %v5493, %v5478
        %v6229 = vpack.c.b16 %v5494, %v5479
        %v6230 = vpack.c.b16 %v5495, %v5480
        %v6231 = vpack.c.b16 %v5496, %v5481
        %v6232 = vpack.c.b16 %v5497, %v5482
        %v6233 = vpack.c.b16 %v5498, %v5483
        %v6234 = vpack.c.b16 %v5499, %v5484
        %v6235 = vpack.c.b16 %v5500, %v5485
        %v6236 = vpack.c.b16 %v5501, %v5486
        %v6237 = vpack.c.b16 %v5502, %v5487
        %v6238 = vpack.c.b16 %v5503, %v5488
        %v6239 = vpack.c.b16 %v5504, %v5489
        %v6240 = vpack.c.b16 %v5520, %v5505
        %v6241 = vpack.c.b16 %v5521, %v5506
        %v6242 = vpack.c.b16 %v5522, %v5507
        %v6243 = vpack.c.b16 %v5523, %v5508
        %v6244 = vpack.c.b16 %v5524, %v5509
        %v6245 = vpack.c.b16 %v5525, %v5510
        %v6246 = vpack.c.b16 %v5526, %v5511
        %v6247 = vpack.c.b16 %v5527, %v5512
        %v6248 = vpack.c.b16 %v5528, %v5513
        %v6249 = vpack.c.b16 %v5529, %v5514
        %v6250 = vpack.c.b16 %v5530, %v5515
        %v6251 = vpack.c.b16 %v5531, %v5516
        %v6252 = vpack.c.b16 %v5532, %v5517
        %v6253 = vpack.c.b16 %v5533, %v5518
        %v6254 = vpack.c.b16 %v5534, %v5519
        %v6255 = vpack.c.b16 %v5550, %v5535
        %v6256 = vpack.c.b16 %v5551, %v5536
        %v6257 = vpack.c.b16 %v5552, %v5537
        %v6258 = vpack.c.b16 %v5553, %v5538
        %v6259 = vpack.c.b16 %v5554, %v5539
        %v6260 = vpack.c.b16 %v5555, %v5540
        %v6261 = vpack.c.b16 %v5556, %v5541
        %v6262 = vpack.c.b16 %v5557, %v5542
        %v6263 = vpack.c.b16 %v5558, %v5543
        %v6264 = vpack.c.b16 %v5559, %v5544
        %v6265 = vpack.c.b16 %v5560, %v5545
        %v6266 = vpack.c.b16 %v5561, %v5546
        %v6267 = vpack.c.b16 %v5562, %v5547
        %v6268 = vpack.c.b16 %v5563, %v5548
        %v6269 = vpack.c.b16 %v5564, %v5549
        %v6270 = vpack.c.b16 %v5580, %v5565
        %v6271 = vpack.c.b16 %v5581, %v5566
        %v6272 = vpack.c.b16 %v5582, %v5567
        %v6273 = vpack.c.b16 %v5583, %v5568
        %v6274 = vpack.c.b16 %v5584, %v5569
        %v6275 = vpack.c.b16 %v5585, %v5570
        %v6276 = vpack.c.b16 %v5586, %v5571
        %v6277 = vpack.c.b16 %v5587, %v5572
        %v6278 = vpack.c.b16 %v5588, %v5573
        %v6279 = vpack.c.b16 %v5589, %v5574
        %v6280 = vpack.c.b16 %v5590, %v5575
        %v6281 = vpack.c.b16 %v5591, %v5576
        %v6282 = vpack.c.b16 %v5592, %v5577
        %v6283 = vpack.c.b16 %v5593, %v5578
        %v6284 = vpack.c.b16 %v5594, %v5579
        %v6285 = vpack.c.b16 %v5610, %v5595
        %v6286 = vpack.c.b16 %v5611, %v5596
        %v6287 = vpack.c.b16 %v5612, %v5597
        %v6288 = vpack.c.b16 %v5613, %v5598
        %v6289 = vpack.c.b16 %v5614, %v5599
        %v6290 = vpack.c.b16 %v5615, %v5600
        %v6291 = vpack.c.b16 %v5616, %v5601
        %v6292 = vpack.c.b16 %v5617, %v5602
        %v6293 = vpack.c.b16 %v5618, %v5603
        %v6294 = vpack.c.b16 %v5619, %v5604
        %v6295 = vpack.c.b16 %v5620, %v5605
        %v6296 = vpack.c.b16 %v5621, %v5606
        %v6297 = vpack.c.b16 %v5622, %v5607
        %v6298 = vpack.c.b16 %v5623, %v5608
        %v6299 = vpack.c.b16 %v5624, %v5609
        %v6300 = vpack.c.b16 %v5640, %v5625
        %v6301 = vpack.c.b16 %v5641, %v5626
        %v6302 = vpack.c.b16 %v5642, %v5627
        %v6303 = vpack.c.b16 %v5643, %v5628
        %v6304 = vpack.c.b16 %v5644, %v5629
        %v6305 = vpack.c.b16 %v5645, %v5630
        %v6306 = vpack.c.b16 %v5646, %v5631
        %v6307 = vpack.c.b16 %v5647, %v5632
        %v6308 = vpack.c.b16 %v5648, %v5633
        %v6309 = vpack.c.b16 %v5649, %v5634
        %v6310 = vpack.c.b16 %v5650, %v5635
        %v6311 = vpack.c.b16 %v5651, %v5636
        %v6312 = vpack.c.b16 %v5652, %v5637
        %v6313 = vpack.c.b16 %v5653, %v5638
        %v6314 = vpack.c.b16 %v5654, %v5639
        %v6315 = vpack.c.b16 %v5670, %v5655
        %v6316 = vpack.c.b16 %v5671, %v5656
        %v6317 = vpack.c.b16 %v5672, %v5657
        %v6318 = vpack.c.b16 %v5673, %v5658
        %v6319 = vpack.c.b16 %v5674, %v5659
        %v6320 = vpack.c.b16 %v5675, %v5660
        %v6321 = vpack.c.b16 %v5676, %v5661
        %v6322 = vpack.c.b16 %v5677, %v5662
        %v6323 = vpack.c.b16 %v5678, %v5663
        %v6324 = vpack.c.b16 %v5679, %v5664
        %v6325 = vpack.c.b16 %v5680, %v5665
        %v6326 = vpack.c.b16 %v5681, %v5666
        %v6327 = vpack.c.b16 %v5682, %v5667
        %v6328 = vpack.c.b16 %v5683, %v5668
        %v6329 = vpack.c.b16 %v5684, %v5669
        %v6330 = vpack.c.b16 %v5700, %v5685
        %v6331 = vpack.c.b16 %v5701, %v5686
        %v6332 = vpack.c.b16 %v5702, %v5687
        %v6333 = vpack.c.b16 %v5703, %v5688
        %v6334 = vpack.c.b16 %v5704, %v5689
        %v6335 = vpack.c.b16 %v5705, %v5690
        %v6336 = vpack.c.b16 %v5706, %v5691
        %v6337 = vpack.c.b16 %v5707, %v5692
        %v6338 = vpack.c.b16 %v5708, %v5693
        %v6339 = vpack.c.b16 %v5709, %v5694
        %v6340 = vpack.c.b16 %v5710, %v5695
        %v6341 = vpack.c.b16 %v5711, %v5696
        %v6342 = vpack.c.b16 %v5712, %v5697
        %v6343 = vpack.c.b16 %v5713, %v5698
        %v6344 = vpack.c.b16 %v5714, %v5699
        %v6345 = vpack.c.b16 %v5730, %v5715
        %v6346 = vpack.c.b16 %v5731, %v5716
        %v6347 = vpack.c.b16 %v5732, %v5717
        %v6348 = vpack.c.b16 %v5733, %v5718
        %v6349 = vpack.c.b16 %v5734, %v5719
        %v6350 = vpack.c.b16 %v5735, %v5720
        %v6351 = vpack.c.b16 %v5736, %v5721
        %v6352 = vpack.c.b16 %v5737, %v5722
        %v6353 = vpack.c.b16 %v5738, %v5723
        %v6354 = vpack.c.b16 %v5739, %v5724
        %v6355 = vpack.c.b16 %v5740, %v5725
        %v6356 = vpack.c.b16 %v5741, %v5726
        %v6357 = vpack.c.b16 %v5742, %v5727
        %v6358 = vpack.c.b16 %v5743, %v5728
        %v6359 = vpack.c.b16 %v5744, %v5729
        %v6360 = vpack.c.b16 %v5760, %v5745
        %v6361 = vpack.c.b16 %v5761, %v5746
        %v6362 = vpack.c.b16 %v5762, %v5747
        %v6363 = vpack.c.b16 %v5763, %v5748
        %v6364 = vpack.c.b16 %v5764, %v5749
        %v6365 = vpack.c.b16 %v5765, %v5750
        %v6366 = vpack.c.b16 %v5766, %v5751
        %v6367 = vpack.c.b16 %v5767, %v5752
        %v6368 = vpack.c.b16 %v5768, %v5753
        %v6369 = vpack.c.b16 %v5769, %v5754
        %v6370 = vpack.c.b16 %v5770, %v5755
        %v6371 = vpack.c.b16 %v5771, %v5756
        %v6372 = vpack.c.b16 %v5772, %v5757
        %v6373 = vpack.c.b16 %v5773, %v5758
        %v6374 = vpack.c.b16 %v5774, %v5759
        %v6375 = vpack.c.b16 %v5790, %v5775
        %v6376 = vpack.c.b16 %v5791, %v5776
        %v6377 = vpack.c.b16 %v5792, %v5777
        %v6378 = vpack.c.b16 %v5793, %v5778
        %v6379 = vpack.c.b16 %v5794, %v5779
        %v6380 = vpack.c.b16 %v5795, %v5780
        %v6381 = vpack.c.b16 %v5796, %v5781
        %v6382 = vpack.c.b16 %v5797, %v5782
        %v6383 = vpack.c.b16 %v5798, %v5783
        %v6384 = vpack.c.b16 %v5799, %v5784
        %v6385 = vpack.c.b16 %v5800, %v5785
        %v6386 = vpack.c.b16 %v5801, %v5786
        %v6387 = vpack.c.b16 %v5802, %v5787
        %v6388 = vpack.c.b16 %v5803, %v5788
        %v6389 = vpack.c.b16 %v5804, %v5789
        %v6390 = vpack.c.b16 %v5820, %v5805
        %v6391 = vpack.c.b16 %v5821, %v5806
        %v6392 = vpack.c.b16 %v5822, %v5807
        %v6393 = vpack.c.b16 %v5823, %v5808
        %v6394 = vpack.c.b16 %v5824, %v5809
        %v6395 = vpack.c.b16 %v5825, %v5810
        %v6396 = vpack.c.b16 %v5826, %v5811
        %v6397 = vpack.c.b16 %v5827, %v5812
        %v6398 = vpack.c.b16 %v5828, %v5813
        %v6399 = vpack.c.b16 %v5829, %v5814
        %v6400 = vpack.c.b16 %v5830, %v5815
        %v6401 = vpack.c.b16 %v5831, %v5816
        %v6402 = vpack.c.b16 %v5832, %v5817
        %v6403 = vpack.c.b16 %v5833, %v5818
        %v6404 = vpack.c.b16 %v5834, %v5819
        %v6405 = vpack.c.b16 %v5850, %v5835
        %v6406 = vpack.c.b16 %v5851, %v5836
        %v6407 = vpack.c.b16 %v5852, %v5837
        %v6408 = vpack.c.b16 %v5853, %v5838
        %v6409 = vpack.c.b16 %v5854, %v5839
        %v6410 = vpack.c.b16 %v5855, %v5840
        %v6411 = vpack.c.b16 %v5856, %v5841
        %v6412 = vpack.c.b16 %v5857, %v5842
        %v6413 = vpack.c.b16 %v5858, %v5843
        %v6414 = vpack.c.b16 %v5859, %v5844
        %v6415 = vpack.c.b16 %v5860, %v5845
        %v6416 = vpack.c.b16 %v5861, %v5846
        %v6417 = vpack.c.b16 %v5862, %v5847
        %v6418 = vpack.c.b16 %v5863, %v5848
        %v6419 = vpack.c.b16 %v5864, %v5849
        %v6420 = vpack.c.b16 %v5880, %v5865
        %v6421 = vpack.c.b16 %v5881, %v5866
        %v6422 = vpack.c.b16 %v5882, %v5867
        %v6423 = vpack.c.b16 %v5883, %v5868
        %v6424 = vpack.c.b16 %v5884, %v5869
        %v6425 = vpack.c.b16 %v5885, %v5870
        %v6426 = vpack.c.b16 %v5886, %v5871
        %v6427 = vpack.c.b16 %v5887, %v5872
        %v6428 = vpack.c.b16 %v5888, %v5873
        %v6429 = vpack.c.b16 %v5889, %v5874
        %v6430 = vpack.c.b16 %v5890, %v5875
        %v6431 = vpack.c.b16 %v5891, %v5876
        %v6432 = vpack.c.b16 %v5892, %v5877
        %v6433 = vpack.c.b16 %v5893, %v5878
        %v6434 = vpack.c.b16 %v5894, %v5879
        %v6435 = vpack.c.b16 %v5910, %v5895
        %v6436 = vpack.c.b16 %v5911, %v5896
        %v6437 = vpack.c.b16 %v5912, %v5897
        %v6438 = vpack.c.b16 %v5913, %v5898
        %v6439 = vpack.c.b16 %v5914, %v5899
        %v6440 = vpack.c.b16 %v5915, %v5900
        %v6441 = vpack.c.b16 %v5916, %v5901
        %v6442 = vpack.c.b16 %v5917, %v5902
        %v6443 = vpack.c.b16 %v5918, %v5903
        %v6444 = vpack.c.b16 %v5919, %v5904
        %v6445 = vpack.c.b16 %v5920, %v5905
        %v6446 = vpack.c.b16 %v5921, %v5906
        %v6447 = vpack.c.b16 %v5922, %v5907
        %v6448 = vpack.c.b16 %v5923, %v5908
        %v6449 = vpack.c.b16 %v5924, %v5909
        %v6450 = vpack.c.b16 %v5940, %v5925
        %v6451 = vpack.c.b16 %v5941, %v5926
        %v6452 = vpack.c.b16 %v5942, %v5927
        %v6453 = vpack.c.b16 %v5943, %v5928
        %v6454 = vpack.c.b16 %v5944, %v5929
        %v6455 = vpack.c.b16 %v5945, %v5930
        %v6456 = vpack.c.b16 %v5946, %v5931
        %v6457 = vpack.c.b16 %v5947, %v5932
        %v6458 = vpack.c.b16 %v5948, %v5933
        %v6459 = vpack.c.b16 %v5949, %v5934
        %v6460 = vpack.c.b16 %v5950, %v5935
        %v6461 = vpack.c.b16 %v5951, %v5936
        %v6462 = vpack.c.b16 %v5952, %v5937
        %v6463 = vpack.c.b16 %v5953, %v5938
        %v6464 = vpack.c.b16 %v5954, %v5939
        %v6465 = vpack.c.b16 %v5970, %v5955
        %v6466 = vpack.c.b16 %v5971, %v5956
        %v6467 = vpack.c.b16 %v5972, %v5957
        %v6468 = vpack.c.b16 %v5973, %v5958
        %v6469 = vpack.c.b16 %v5974, %v5959
        %v6470 = vpack.c.b16 %v5975, %v5960
        %v6471 = vpack.c.b16 %v5976, %v5961
        %v6472 = vpack.c.b16 %v5977, %v5962
        %v6473 = vpack.c.b16 %v5978, %v5963
        %v6474 = vpack.c.b16 %v5979, %v5964
        %v6475 = vpack.c.b16 %v5980, %v5965
        %v6476 = vpack.c.b16 %v5981, %v5966
        %v6477 = vpack.c.b16 %v5982, %v5967
        %v6478 = vpack.c.b16 %v5983, %v5968
        %v6479 = vpack.c.b16 %v5984, %v5969
        %v6480 = vpack.c.b16 %v6000, %v5985
        %v6481 = vpack.c.b16 %v6001, %v5986
        %v6482 = vpack.c.b16 %v6002, %v5987
        %v6483 = vpack.c.b16 %v6003, %v5988
        %v6484 = vpack.c.b16 %v6004, %v5989
        %v6485 = vpack.c.b16 %v6005, %v5990
        %v6486 = vpack.c.b16 %v6006, %v5991
        %v6487 = vpack.c.b16 %v6007, %v5992
        %v6488 = vpack.c.b16 %v6008, %v5993
        %v6489 = vpack.c.b16 %v6009, %v5994
        %v6490 = vpack.c.b16 %v6010, %v5995
        %v6491 = vpack.c.b16 %v6011, %v5996
        %v6492 = vpack.c.b16 %v6012, %v5997
        %v6493 = vpack.c.b16 %v6013, %v5998
        %v6494 = vpack.c.b16 %v6014, %v5999
        %v6495 = vpack.c.b16 %v6030, %v6015
        %v6496 = vpack.c.b16 %v6031, %v6016
        %v6497 = vpack.c.b16 %v6032, %v6017
        %v6498 = vpack.c.b16 %v6033, %v6018
        %v6499 = vpack.c.b16 %v6034, %v6019
        %v6500 = vpack.c.b16 %v6035, %v6020
        %v6501 = vpack.c.b16 %v6036, %v6021
        %v6502 = vpack.c.b16 %v6037, %v6022
        %v6503 = vpack.c.b16 %v6038, %v6023
        %v6504 = vpack.c.b16 %v6039, %v6024
        %v6505 = vpack.c.b16 %v6040, %v6025
        %v6506 = vpack.c.b16 %v6041, %v6026
        %v6507 = vpack.c.b16 %v6042, %v6027
        %v6508 = vpack.c.b16 %v6043, %v6028
        %v6509 = vpack.c.b16 %v6044, %v6029
        %v6510 = vpack.c.b16 %v6060, %v6045
        %v6511 = vpack.c.b16 %v6061, %v6046
        %v6512 = vpack.c.b16 %v6062, %v6047
        %v6513 = vpack.c.b16 %v6063, %v6048
        %v6514 = vpack.c.b16 %v6064, %v6049
        %v6515 = vpack.c.b16 %v6065, %v6050
        %v6516 = vpack.c.b16 %v6066, %v6051
        %v6517 = vpack.c.b16 %v6067, %v6052
        %v6518 = vpack.c.b16 %v6068, %v6053
        %v6519 = vpack.c.b16 %v6069, %v6054
        %v6520 = vpack.c.b16 %v6070, %v6055
        %v6521 = vpack.c.b16 %v6071, %v6056
        %v6522 = vpack.c.b16 %v6072, %v6057
        %v6523 = vpack.c.b16 %v6073, %v6058
        %v6524 = vpack.c.b16 %v6074, %v6059
        %v6976 = vsel %vm4051, %v4214, 0
        %6978 = vmatpush.bf16.msra.mxu0 %v6180
        %6979 = vmatpush.bf16.msra.mxu0 %v6165
        %6980 = vmatpush.bf16.msra.mxu0 %v6150
        %6981 = vmatpush.bf16.msra.mxu0 %v6135
        %6982 = vmatpush.bf16.msra.mxu0 %v6120
        %6983 = vmatpush.bf16.msra.mxu0 %v6105
        %6984 = vmatpush.bf16.msra.mxu0 %v6090
        %6985 = vmatpush.bf16.msra.mxu0 %v6075
        %6986 = vmatmul.bf16.gmra.mxu0 %v4211
        %v6987 = vpop.f32.mrf.mxu0
        %v6988 = vadd.f32 0.0, %v6987
        %v6989 = vpop.f32.mrf.mxu0
        %6990 = vdwg.mxu0
        %6991 = vmatpush.bf16.msra.mxu0 %v6300
        %6992 = vmatpush.bf16.msra.mxu0 %v6285
        %6993 = vmatpush.bf16.msra.mxu0 %v6270
        %6994 = vmatpush.bf16.msra.mxu0 %v6255
        %6995 = vmatpush.bf16.msra.mxu0 %v6240
        %6996 = vmatpush.bf16.msra.mxu0 %v6225
        %6997 = vmatpush.bf16.msra.mxu0 %v6210
        %6998 = vmatpush.bf16.msra.mxu0 %v6195
        %6999 = vmatmul.bf16.gmra.mxu0 %v4212
        %v7000 = vpop.f32.mrf.mxu0
        %v7001 = vadd.f32 %v6988, %v7000
        %v7002 = vpop.f32.mrf.mxu0
        %7003 = vdwg.mxu0
        %7004 = vmatpush.bf16.msra.mxu0 %v6420
        %7005 = vmatpush.bf16.msra.mxu0 %v6405
        %7006 = vmatpush.bf16.msra.mxu0 %v6390
        %7007 = vmatpush.bf16.msra.mxu0 %v6375
        %7008 = vmatpush.bf16.msra.mxu0 %v6360
        %7009 = vmatpush.bf16.msra.mxu0 %v6345
        %7010 = vmatpush.bf16.msra.mxu0 %v6330
        %7011 = vmatpush.bf16.msra.mxu0 %v6315
        %7012 = vmatmul.bf16.gmra.mxu0 %v4213
        %v7013 = vpop.f32.mrf.mxu0
        %v7014 = vadd.f32 %v7001, %v7013
        %v7015 = vpop.f32.mrf.mxu0
        %7016 = vdwg.mxu0
        %7017 = vmatpush.bf16.msra.mxu0 0
        %7018 = vmatpush.bf16.msra.mxu0 0
        %7019 = vmatpush.bf16.msra.mxu0 %v6510
        %7020 = vmatpush.bf16.msra.mxu0 %v6495
        %7021 = vmatpush.bf16.msra.mxu0 %v6480
        %7022 = vmatpush.bf16.msra.mxu0 %v6465
        %7023 = vmatpush.bf16.msra.mxu0 %v6450
        %7024 = vmatpush.bf16.msra.mxu0 %v6435
        %7025 = vmatmul.bf16.gmra.mxu0 %v6976
        %v7026 = vpop.f32.mrf.mxu0
        %v7027 = vadd.f32 %v7014, %v7026
        %v7028 = vpop.f32.mrf.mxu0
        %7029 = vdwg.mxu0
        %7030 = vmatpush.bf16.msra.mxu0 %v6181
        %7031 = vmatpush.bf16.msra.mxu0 %v6166
        %7032 = vmatpush.bf16.msra.mxu0 %v6151
        %7033 = vmatpush.bf16.msra.mxu0 %v6136
        %7034 = vmatpush.bf16.msra.mxu0 %v6121
        %7035 = vmatpush.bf16.msra.mxu0 %v6106
        %7036 = vmatpush.bf16.msra.mxu0 %v6091
        %7037 = vmatpush.bf16.msra.mxu0 %v6076
        %7038 = vmatmul.bf16.gmra.mxu0 %v4211
        %v7039 = vpop.f32.mrf.mxu0
        %v7040 = vadd.f32 0.0, %v7039
        %v7041 = vpop.f32.mrf.mxu0
        %7042 = vdwg.mxu0
        %7043 = vmatpush.bf16.msra.mxu0 %v6301
        %7044 = vmatpush.bf16.msra.mxu0 %v6286
        %7045 = vmatpush.bf16.msra.mxu0 %v6271
        %7046 = vmatpush.bf16.msra.mxu0 %v6256
        %7047 = vmatpush.bf16.msra.mxu0 %v6241
        %7048 = vmatpush.bf16.msra.mxu0 %v6226
        %7049 = vmatpush.bf16.msra.mxu0 %v6211
        %7050 = vmatpush.bf16.msra.mxu0 %v6196
        %7051 = vmatmul.bf16.gmra.mxu0 %v4212
        %v7052 = vpop.f32.mrf.mxu0
        %v7053 = vadd.f32 %v7040, %v7052
        %v7054 = vpop.f32.mrf.mxu0
        %7055 = vdwg.mxu0
        %7056 = vmatpush.bf16.msra.mxu0 %v6421
        %7057 = vmatpush.bf16.msra.mxu0 %v6406
        %7058 = vmatpush.bf16.msra.mxu0 %v6391
        %7059 = vmatpush.bf16.msra.mxu0 %v6376
        %7060 = vmatpush.bf16.msra.mxu0 %v6361
        %7061 = vmatpush.bf16.msra.mxu0 %v6346
        %7062 = vmatpush.bf16.msra.mxu0 %v6331
        %7063 = vmatpush.bf16.msra.mxu0 %v6316
        %7064 = vmatmul.bf16.gmra.mxu0 %v4213
        %v7065 = vpop.f32.mrf.mxu0
        %v7066 = vadd.f32 %v7053, %v7065
        %v7067 = vpop.f32.mrf.mxu0
        %7068 = vdwg.mxu0
        %7069 = vmatpush.bf16.msra.mxu0 0
        %7070 = vmatpush.bf16.msra.mxu0 0
        %7071 = vmatpush.bf16.msra.mxu0 %v6511
        %7072 = vmatpush.bf16.msra.mxu0 %v6496
        %7073 = vmatpush.bf16.msra.mxu0 %v6481
        %7074 = vmatpush.bf16.msra.mxu0 %v6466
        %7075 = vmatpush.bf16.msra.mxu0 %v6451
        %7076 = vmatpush.bf16.msra.mxu0 %v6436
        %7077 = vmatmul.bf16.gmra.mxu0 %v6976
        %v7078 = vpop.f32.mrf.mxu0
        %v7079 = vadd.f32 %v7066, %v7078
        %v7080 = vpop.f32.mrf.mxu0
        %7081 = vdwg.mxu0
        %7082 = vmatpush.bf16.msra.mxu0 %v6182
        %7083 = vmatpush.bf16.msra.mxu0 %v6167
        %7084 = vmatpush.bf16.msra.mxu0 %v6152
        %7085 = vmatpush.bf16.msra.mxu0 %v6137
        %7086 = vmatpush.bf16.msra.mxu0 %v6122
        %7087 = vmatpush.bf16.msra.mxu0 %v6107
        %7088 = vmatpush.bf16.msra.mxu0 %v6092
        %7089 = vmatpush.bf16.msra.mxu0 %v6077
        %7090 = vmatmul.bf16.gmra.mxu0 %v4211
        %v7091 = vpop.f32.mrf.mxu0
        %v7092 = vadd.f32 0.0, %v7091
        %v7093 = vpop.f32.mrf.mxu0
        %7094 = vdwg.mxu0
        %7095 = vmatpush.bf16.msra.mxu0 %v6302
        %7096 = vmatpush.bf16.msra.mxu0 %v6287
        %7097 = vmatpush.bf16.msra.mxu0 %v6272
        %7098 = vmatpush.bf16.msra.mxu0 %v6257
        %7099 = vmatpush.bf16.msra.mxu0 %v6242
        %7100 = vmatpush.bf16.msra.mxu0 %v6227
        %7101 = vmatpush.bf16.msra.mxu0 %v6212
        %7102 = vmatpush.bf16.msra.mxu0 %v6197
        %7103 = vmatmul.bf16.gmra.mxu0 %v4212
        %v7104 = vpop.f32.mrf.mxu0
        %v7105 = vadd.f32 %v7092, %v7104
        %v7106 = vpop.f32.mrf.mxu0
        %7107 = vdwg.mxu0
        %7108 = vmatpush.bf16.msra.mxu0 %v6422
        %7109 = vmatpush.bf16.msra.mxu0 %v6407
        %7110 = vmatpush.bf16.msra.mxu0 %v6392
        %7111 = vmatpush.bf16.msra.mxu0 %v6377
        %7112 = vmatpush.bf16.msra.mxu0 %v6362
        %7113 = vmatpush.bf16.msra.mxu0 %v6347
        %7114 = vmatpush.bf16.msra.mxu0 %v6332
        %7115 = vmatpush.bf16.msra.mxu0 %v6317
        %7116 = vmatmul.bf16.gmra.mxu0 %v4213
        %v7117 = vpop.f32.mrf.mxu0
        %v7118 = vadd.f32 %v7105, %v7117
        %v7119 = vpop.f32.mrf.mxu0
        %7120 = vdwg.mxu0
        %7121 = vmatpush.bf16.msra.mxu0 0
        %7122 = vmatpush.bf16.msra.mxu0 0
        %7123 = vmatpush.bf16.msra.mxu0 %v6512
        %7124 = vmatpush.bf16.msra.mxu0 %v6497
        %7125 = vmatpush.bf16.msra.mxu0 %v6482
        %7126 = vmatpush.bf16.msra.mxu0 %v6467
        %7127 = vmatpush.bf16.msra.mxu0 %v6452
        %7128 = vmatpush.bf16.msra.mxu0 %v6437
        %7129 = vmatmul.bf16.gmra.mxu0 %v6976
        %v7130 = vpop.f32.mrf.mxu0
        %v7131 = vadd.f32 %v7118, %v7130
        %v7132 = vpop.f32.mrf.mxu0
        %7133 = vdwg.mxu0
        %7134 = vmatpush.bf16.msra.mxu0 %v6183
        %7135 = vmatpush.bf16.msra.mxu0 %v6168
        %7136 = vmatpush.bf16.msra.mxu0 %v6153
        %7137 = vmatpush.bf16.msra.mxu0 %v6138
        %7138 = vmatpush.bf16.msra.mxu0 %v6123
        %7139 = vmatpush.bf16.msra.mxu0 %v6108
        %7140 = vmatpush.bf16.msra.mxu0 %v6093
        %7141 = vmatpush.bf16.msra.mxu0 %v6078
        %7142 = vmatmul.bf16.gmra.mxu0 %v4211
        %v7143 = vpop.f32.mrf.mxu0
        %v7144 = vadd.f32 0.0, %v7143
        %v7145 = vpop.f32.mrf.mxu0
        %7146 = vdwg.mxu0
        %7147 = vmatpush.bf16.msra.mxu0 %v6303
        %7148 = vmatpush.bf16.msra.mxu0 %v6288
        %7149 = vmatpush.bf16.msra.mxu0 %v6273
        %7150 = vmatpush.bf16.msra.mxu0 %v6258
        %7151 = vmatpush.bf16.msra.mxu0 %v6243
        %7152 = vmatpush.bf16.msra.mxu0 %v6228
        %7153 = vmatpush.bf16.msra.mxu0 %v6213
        %7154 = vmatpush.bf16.msra.mxu0 %v6198
        %7155 = vmatmul.bf16.gmra.mxu0 %v4212
        %v7156 = vpop.f32.mrf.mxu0
        %v7157 = vadd.f32 %v7144, %v7156
        %v7158 = vpop.f32.mrf.mxu0
        %7159 = vdwg.mxu0
        %7160 = vmatpush.bf16.msra.mxu0 %v6423
        %7161 = vmatpush.bf16.msra.mxu0 %v6408
        %7162 = vmatpush.bf16.msra.mxu0 %v6393
        %7163 = vmatpush.bf16.msra.mxu0 %v6378
        %7164 = vmatpush.bf16.msra.mxu0 %v6363
        %7165 = vmatpush.bf16.msra.mxu0 %v6348
        %7166 = vmatpush.bf16.msra.mxu0 %v6333
        %7167 = vmatpush.bf16.msra.mxu0 %v6318
        %7168 = vmatmul.bf16.gmra.mxu0 %v4213
        %v7169 = vpop.f32.mrf.mxu0
        %v7170 = vadd.f32 %v7157, %v7169
        %v7171 = vpop.f32.mrf.mxu0
        %7172 = vdwg.mxu0
        %7173 = vmatpush.bf16.msra.mxu0 0
        %7174 = vmatpush.bf16.msra.mxu0 0
        %7175 = vmatpush.bf16.msra.mxu0 %v6513
        %7176 = vmatpush.bf16.msra.mxu0 %v6498
        %7177 = vmatpush.bf16.msra.mxu0 %v6483
        %7178 = vmatpush.bf16.msra.mxu0 %v6468
        %7179 = vmatpush.bf16.msra.mxu0 %v6453
        %7180 = vmatpush.bf16.msra.mxu0 %v6438
        %7181 = vmatmul.bf16.gmra.mxu0 %v6976
        %v7182 = vpop.f32.mrf.mxu0
        %v7183 = vadd.f32 %v7170, %v7182
        %v7184 = vpop.f32.mrf.mxu0
        %7185 = vdwg.mxu0
        %7186 = vmatpush.bf16.msra.mxu0 %v6184
        %7187 = vmatpush.bf16.msra.mxu0 %v6169
        %7188 = vmatpush.bf16.msra.mxu0 %v6154
        %7189 = vmatpush.bf16.msra.mxu0 %v6139
        %7190 = vmatpush.bf16.msra.mxu0 %v6124
        %7191 = vmatpush.bf16.msra.mxu0 %v6109
        %7192 = vmatpush.bf16.msra.mxu0 %v6094
        %7193 = vmatpush.bf16.msra.mxu0 %v6079
        %7194 = vmatmul.bf16.gmra.mxu0 %v4211
        %v7195 = vpop.f32.mrf.mxu0
        %v7196 = vadd.f32 0.0, %v7195
        %v7197 = vpop.f32.mrf.mxu0
        %7198 = vdwg.mxu0
        %7199 = vmatpush.bf16.msra.mxu0 %v6304
        %7200 = vmatpush.bf16.msra.mxu0 %v6289
        %7201 = vmatpush.bf16.msra.mxu0 %v6274
        %7202 = vmatpush.bf16.msra.mxu0 %v6259
        %7203 = vmatpush.bf16.msra.mxu0 %v6244
        %7204 = vmatpush.bf16.msra.mxu0 %v6229
        %7205 = vmatpush.bf16.msra.mxu0 %v6214
        %7206 = vmatpush.bf16.msra.mxu0 %v6199
        %7207 = vmatmul.bf16.gmra.mxu0 %v4212
        %v7208 = vpop.f32.mrf.mxu0
        %v7209 = vadd.f32 %v7196, %v7208
        %v7210 = vpop.f32.mrf.mxu0
        %7211 = vdwg.mxu0
        %7212 = vmatpush.bf16.msra.mxu0 %v6424
        %7213 = vmatpush.bf16.msra.mxu0 %v6409
        %7214 = vmatpush.bf16.msra.mxu0 %v6394
        %7215 = vmatpush.bf16.msra.mxu0 %v6379
        %7216 = vmatpush.bf16.msra.mxu0 %v6364
        %7217 = vmatpush.bf16.msra.mxu0 %v6349
        %7218 = vmatpush.bf16.msra.mxu0 %v6334
        %7219 = vmatpush.bf16.msra.mxu0 %v6319
        %7220 = vmatmul.bf16.gmra.mxu0 %v4213
        %v7221 = vpop.f32.mrf.mxu0
        %v7222 = vadd.f32 %v7209, %v7221
        %v7223 = vpop.f32.mrf.mxu0
        %7224 = vdwg.mxu0
        %7225 = vmatpush.bf16.msra.mxu0 0
        %7226 = vmatpush.bf16.msra.mxu0 0
        %7227 = vmatpush.bf16.msra.mxu0 %v6514
        %7228 = vmatpush.bf16.msra.mxu0 %v6499
        %7229 = vmatpush.bf16.msra.mxu0 %v6484
        %7230 = vmatpush.bf16.msra.mxu0 %v6469
        %7231 = vmatpush.bf16.msra.mxu0 %v6454
        %7232 = vmatpush.bf16.msra.mxu0 %v6439
        %7233 = vmatmul.bf16.gmra.mxu0 %v6976
        %v7234 = vpop.f32.mrf.mxu0
        %v7235 = vadd.f32 %v7222, %v7234
        %v7236 = vpop.f32.mrf.mxu0
        %7237 = vdwg.mxu0
        %7238 = vmatpush.bf16.msra.mxu0 %v6185
        %7239 = vmatpush.bf16.msra.mxu0 %v6170
        %7240 = vmatpush.bf16.msra.mxu0 %v6155
        %7241 = vmatpush.bf16.msra.mxu0 %v6140
        %7242 = vmatpush.bf16.msra.mxu0 %v6125
        %7243 = vmatpush.bf16.msra.mxu0 %v6110
        %7244 = vmatpush.bf16.msra.mxu0 %v6095
        %7245 = vmatpush.bf16.msra.mxu0 %v6080
        %7246 = vmatmul.bf16.gmra.mxu0 %v4211
        %v7247 = vpop.f32.mrf.mxu0
        %v7248 = vadd.f32 0.0, %v7247
        %v7249 = vpop.f32.mrf.mxu0
        %7250 = vdwg.mxu0
        %7251 = vmatpush.bf16.msra.mxu0 %v6305
        %7252 = vmatpush.bf16.msra.mxu0 %v6290
        %7253 = vmatpush.bf16.msra.mxu0 %v6275
        %7254 = vmatpush.bf16.msra.mxu0 %v6260
        %7255 = vmatpush.bf16.msra.mxu0 %v6245
        %7256 = vmatpush.bf16.msra.mxu0 %v6230
        %7257 = vmatpush.bf16.msra.mxu0 %v6215
        %7258 = vmatpush.bf16.msra.mxu0 %v6200
        %7259 = vmatmul.bf16.gmra.mxu0 %v4212
        %v7260 = vpop.f32.mrf.mxu0
        %v7261 = vadd.f32 %v7248, %v7260
        %v7262 = vpop.f32.mrf.mxu0
        %7263 = vdwg.mxu0
        %7264 = vmatpush.bf16.msra.mxu0 %v6425
        %7265 = vmatpush.bf16.msra.mxu0 %v6410
        %7266 = vmatpush.bf16.msra.mxu0 %v6395
        %7267 = vmatpush.bf16.msra.mxu0 %v6380
        %7268 = vmatpush.bf16.msra.mxu0 %v6365
        %7269 = vmatpush.bf16.msra.mxu0 %v6350
        %7270 = vmatpush.bf16.msra.mxu0 %v6335
        %7271 = vmatpush.bf16.msra.mxu0 %v6320
        %7272 = vmatmul.bf16.gmra.mxu0 %v4213
        %v7273 = vpop.f32.mrf.mxu0
        %v7274 = vadd.f32 %v7261, %v7273
        %v7275 = vpop.f32.mrf.mxu0
        %7276 = vdwg.mxu0
        %7277 = vmatpush.bf16.msra.mxu0 0
        %7278 = vmatpush.bf16.msra.mxu0 0
        %7279 = vmatpush.bf16.msra.mxu0 %v6515
        %7280 = vmatpush.bf16.msra.mxu0 %v6500
        %7281 = vmatpush.bf16.msra.mxu0 %v6485
        %7282 = vmatpush.bf16.msra.mxu0 %v6470
        %7283 = vmatpush.bf16.msra.mxu0 %v6455
        %7284 = vmatpush.bf16.msra.mxu0 %v6440
        %7285 = vmatmul.bf16.gmra.mxu0 %v6976
        %v7286 = vpop.f32.mrf.mxu0
        %v7287 = vadd.f32 %v7274, %v7286
        %v7288 = vpop.f32.mrf.mxu0
        %7289 = vdwg.mxu0
        %7290 = vmatpush.bf16.msra.mxu0 %v6186
        %7291 = vmatpush.bf16.msra.mxu0 %v6171
        %7292 = vmatpush.bf16.msra.mxu0 %v6156
        %7293 = vmatpush.bf16.msra.mxu0 %v6141
        %7294 = vmatpush.bf16.msra.mxu0 %v6126
        %7295 = vmatpush.bf16.msra.mxu0 %v6111
        %7296 = vmatpush.bf16.msra.mxu0 %v6096
        %7297 = vmatpush.bf16.msra.mxu0 %v6081
        %7298 = vmatmul.bf16.gmra.mxu0 %v4211
        %v7299 = vpop.f32.mrf.mxu0
        %v7300 = vadd.f32 0.0, %v7299
        %v7301 = vpop.f32.mrf.mxu0
        %7302 = vdwg.mxu0
        %7303 = vmatpush.bf16.msra.mxu0 %v6306
        %7304 = vmatpush.bf16.msra.mxu0 %v6291
        %7305 = vmatpush.bf16.msra.mxu0 %v6276
        %7306 = vmatpush.bf16.msra.mxu0 %v6261
        %7307 = vmatpush.bf16.msra.mxu0 %v6246
        %7308 = vmatpush.bf16.msra.mxu0 %v6231
        %7309 = vmatpush.bf16.msra.mxu0 %v6216
        %7310 = vmatpush.bf16.msra.mxu0 %v6201
        %7311 = vmatmul.bf16.gmra.mxu0 %v4212
        %v7312 = vpop.f32.mrf.mxu0
        %v7313 = vadd.f32 %v7300, %v7312
        %v7314 = vpop.f32.mrf.mxu0
        %7315 = vdwg.mxu0
        %7316 = vmatpush.bf16.msra.mxu0 %v6426
        %7317 = vmatpush.bf16.msra.mxu0 %v6411
        %7318 = vmatpush.bf16.msra.mxu0 %v6396
        %7319 = vmatpush.bf16.msra.mxu0 %v6381
        %7320 = vmatpush.bf16.msra.mxu0 %v6366
        %7321 = vmatpush.bf16.msra.mxu0 %v6351
        %7322 = vmatpush.bf16.msra.mxu0 %v6336
        %7323 = vmatpush.bf16.msra.mxu0 %v6321
        %7324 = vmatmul.bf16.gmra.mxu0 %v4213
        %v7325 = vpop.f32.mrf.mxu0
        %v7326 = vadd.f32 %v7313, %v7325
        %v7327 = vpop.f32.mrf.mxu0
        %7328 = vdwg.mxu0
        %7329 = vmatpush.bf16.msra.mxu0 0
        %7330 = vmatpush.bf16.msra.mxu0 0
        %7331 = vmatpush.bf16.msra.mxu0 %v6516
        %7332 = vmatpush.bf16.msra.mxu0 %v6501
        %7333 = vmatpush.bf16.msra.mxu0 %v6486
        %7334 = vmatpush.bf16.msra.mxu0 %v6471
        %7335 = vmatpush.bf16.msra.mxu0 %v6456
        %7336 = vmatpush.bf16.msra.mxu0 %v6441
        %7337 = vmatmul.bf16.gmra.mxu0 %v6976
        %v7338 = vpop.f32.mrf.mxu0
        %v7339 = vadd.f32 %v7326, %v7338
        %v7340 = vpop.f32.mrf.mxu0
        %7341 = vdwg.mxu0
        %7342 = vmatpush.bf16.msra.mxu0 %v6187
        %7343 = vmatpush.bf16.msra.mxu0 %v6172
        %7344 = vmatpush.bf16.msra.mxu0 %v6157
        %7345 = vmatpush.bf16.msra.mxu0 %v6142
        %7346 = vmatpush.bf16.msra.mxu0 %v6127
        %7347 = vmatpush.bf16.msra.mxu0 %v6112
        %7348 = vmatpush.bf16.msra.mxu0 %v6097
        %7349 = vmatpush.bf16.msra.mxu0 %v6082
        %7350 = vmatmul.bf16.gmra.mxu0 %v4211
        %v7351 = vpop.f32.mrf.mxu0
        %v7352 = vadd.f32 0.0, %v7351
        %v7353 = vpop.f32.mrf.mxu0
        %7354 = vdwg.mxu0
        %7355 = vmatpush.bf16.msra.mxu0 %v6307
        %7356 = vmatpush.bf16.msra.mxu0 %v6292
        %7357 = vmatpush.bf16.msra.mxu0 %v6277
        %7358 = vmatpush.bf16.msra.mxu0 %v6262
        %7359 = vmatpush.bf16.msra.mxu0 %v6247
        %7360 = vmatpush.bf16.msra.mxu0 %v6232
        %7361 = vmatpush.bf16.msra.mxu0 %v6217
        %7362 = vmatpush.bf16.msra.mxu0 %v6202
        %7363 = vmatmul.bf16.gmra.mxu0 %v4212
        %v7364 = vpop.f32.mrf.mxu0
        %v7365 = vadd.f32 %v7352, %v7364
        %v7366 = vpop.f32.mrf.mxu0
        %7367 = vdwg.mxu0
        %7368 = vmatpush.bf16.msra.mxu0 %v6427
        %7369 = vmatpush.bf16.msra.mxu0 %v6412
        %7370 = vmatpush.bf16.msra.mxu0 %v6397
        %7371 = vmatpush.bf16.msra.mxu0 %v6382
        %7372 = vmatpush.bf16.msra.mxu0 %v6367
        %7373 = vmatpush.bf16.msra.mxu0 %v6352
        %7374 = vmatpush.bf16.msra.mxu0 %v6337
        %7375 = vmatpush.bf16.msra.mxu0 %v6322
        %7376 = vmatmul.bf16.gmra.mxu0 %v4213
        %v7377 = vpop.f32.mrf.mxu0
        %v7378 = vadd.f32 %v7365, %v7377
        %v7379 = vpop.f32.mrf.mxu0
        %7380 = vdwg.mxu0
        %7381 = vmatpush.bf16.msra.mxu0 0
        %7382 = vmatpush.bf16.msra.mxu0 0
        %7383 = vmatpush.bf16.msra.mxu0 %v6517
        %7384 = vmatpush.bf16.msra.mxu0 %v6502
        %7385 = vmatpush.bf16.msra.mxu0 %v6487
        %7386 = vmatpush.bf16.msra.mxu0 %v6472
        %7387 = vmatpush.bf16.msra.mxu0 %v6457
        %7388 = vmatpush.bf16.msra.mxu0 %v6442
        %7389 = vmatmul.bf16.gmra.mxu0 %v6976
        %v7390 = vpop.f32.mrf.mxu0
        %v7391 = vadd.f32 %v7378, %v7390
        %v7392 = vpop.f32.mrf.mxu0
        %7393 = vdwg.mxu0
        %7394 = vmatpush.bf16.msra.mxu0 %v6188
        %7395 = vmatpush.bf16.msra.mxu0 %v6173
        %7396 = vmatpush.bf16.msra.mxu0 %v6158
        %7397 = vmatpush.bf16.msra.mxu0 %v6143
        %7398 = vmatpush.bf16.msra.mxu0 %v6128
        %7399 = vmatpush.bf16.msra.mxu0 %v6113
        %7400 = vmatpush.bf16.msra.mxu0 %v6098
        %7401 = vmatpush.bf16.msra.mxu0 %v6083
        %7402 = vmatmul.bf16.gmra.mxu0 %v4211
        %v7403 = vpop.f32.mrf.mxu0
        %v7404 = vadd.f32 0.0, %v7403
        %v7405 = vpop.f32.mrf.mxu0
        %7406 = vdwg.mxu0
        %7407 = vmatpush.bf16.msra.mxu0 %v6308
        %7408 = vmatpush.bf16.msra.mxu0 %v6293
        %7409 = vmatpush.bf16.msra.mxu0 %v6278
        %7410 = vmatpush.bf16.msra.mxu0 %v6263
        %7411 = vmatpush.bf16.msra.mxu0 %v6248
        %7412 = vmatpush.bf16.msra.mxu0 %v6233
        %7413 = vmatpush.bf16.msra.mxu0 %v6218
        %7414 = vmatpush.bf16.msra.mxu0 %v6203
        %7415 = vmatmul.bf16.gmra.mxu0 %v4212
        %v7416 = vpop.f32.mrf.mxu0
        %v7417 = vadd.f32 %v7404, %v7416
        %v7418 = vpop.f32.mrf.mxu0
        %7419 = vdwg.mxu0
        %7420 = vmatpush.bf16.msra.mxu0 %v6428
        %7421 = vmatpush.bf16.msra.mxu0 %v6413
        %7422 = vmatpush.bf16.msra.mxu0 %v6398
        %7423 = vmatpush.bf16.msra.mxu0 %v6383
        %7424 = vmatpush.bf16.msra.mxu0 %v6368
        %7425 = vmatpush.bf16.msra.mxu0 %v6353
        %7426 = vmatpush.bf16.msra.mxu0 %v6338
        %7427 = vmatpush.bf16.msra.mxu0 %v6323
        %7428 = vmatmul.bf16.gmra.mxu0 %v4213
        %v7429 = vpop.f32.mrf.mxu0
        %v7430 = vadd.f32 %v7417, %v7429
        %v7431 = vpop.f32.mrf.mxu0
        %7432 = vdwg.mxu0
        %7433 = vmatpush.bf16.msra.mxu0 0
        %7434 = vmatpush.bf16.msra.mxu0 0
        %7435 = vmatpush.bf16.msra.mxu0 %v6518
        %7436 = vmatpush.bf16.msra.mxu0 %v6503
        %7437 = vmatpush.bf16.msra.mxu0 %v6488
        %7438 = vmatpush.bf16.msra.mxu0 %v6473
        %7439 = vmatpush.bf16.msra.mxu0 %v6458
        %7440 = vmatpush.bf16.msra.mxu0 %v6443
        %7441 = vmatmul.bf16.gmra.mxu0 %v6976
        %v7442 = vpop.f32.mrf.mxu0
        %v7443 = vadd.f32 %v7430, %v7442
        %v7444 = vpop.f32.mrf.mxu0
        %7445 = vdwg.mxu0
        %7446 = vmatpush.bf16.msra.mxu0 %v6189
        %7447 = vmatpush.bf16.msra.mxu0 %v6174
        %7448 = vmatpush.bf16.msra.mxu0 %v6159
        %7449 = vmatpush.bf16.msra.mxu0 %v6144
        %7450 = vmatpush.bf16.msra.mxu0 %v6129
        %7451 = vmatpush.bf16.msra.mxu0 %v6114
        %7452 = vmatpush.bf16.msra.mxu0 %v6099
        %7453 = vmatpush.bf16.msra.mxu0 %v6084
        %7454 = vmatmul.bf16.gmra.mxu0 %v4211
        %v7455 = vpop.f32.mrf.mxu0
        %v7456 = vadd.f32 0.0, %v7455
        %v7457 = vpop.f32.mrf.mxu0
        %7458 = vdwg.mxu0
        %7459 = vmatpush.bf16.msra.mxu0 %v6309
        %7460 = vmatpush.bf16.msra.mxu0 %v6294
        %7461 = vmatpush.bf16.msra.mxu0 %v6279
        %7462 = vmatpush.bf16.msra.mxu0 %v6264
        %7463 = vmatpush.bf16.msra.mxu0 %v6249
        %7464 = vmatpush.bf16.msra.mxu0 %v6234
        %7465 = vmatpush.bf16.msra.mxu0 %v6219
        %7466 = vmatpush.bf16.msra.mxu0 %v6204
        %7467 = vmatmul.bf16.gmra.mxu0 %v4212
        %v7468 = vpop.f32.mrf.mxu0
        %v7469 = vadd.f32 %v7456, %v7468
        %v7470 = vpop.f32.mrf.mxu0
        %7471 = vdwg.mxu0
        %7472 = vmatpush.bf16.msra.mxu0 %v6429
        %7473 = vmatpush.bf16.msra.mxu0 %v6414
        %7474 = vmatpush.bf16.msra.mxu0 %v6399
        %7475 = vmatpush.bf16.msra.mxu0 %v6384
        %7476 = vmatpush.bf16.msra.mxu0 %v6369
        %7477 = vmatpush.bf16.msra.mxu0 %v6354
        %7478 = vmatpush.bf16.msra.mxu0 %v6339
        %7479 = vmatpush.bf16.msra.mxu0 %v6324
        %7480 = vmatmul.bf16.gmra.mxu0 %v4213
        %v7481 = vpop.f32.mrf.mxu0
        %v7482 = vadd.f32 %v7469, %v7481
        %v7483 = vpop.f32.mrf.mxu0
        %7484 = vdwg.mxu0
        %7485 = vmatpush.bf16.msra.mxu0 0
        %7486 = vmatpush.bf16.msra.mxu0 0
        %7487 = vmatpush.bf16.msra.mxu0 %v6519
        %7488 = vmatpush.bf16.msra.mxu0 %v6504
        %7489 = vmatpush.bf16.msra.mxu0 %v6489
        %7490 = vmatpush.bf16.msra.mxu0 %v6474
        %7491 = vmatpush.bf16.msra.mxu0 %v6459
        %7492 = vmatpush.bf16.msra.mxu0 %v6444
        %7493 = vmatmul.bf16.gmra.mxu0 %v6976
        %v7494 = vpop.f32.mrf.mxu0
        %v7495 = vadd.f32 %v7482, %v7494
        %v7496 = vpop.f32.mrf.mxu0
        %7497 = vdwg.mxu0
        %7498 = vmatpush.bf16.msra.mxu0 %v6190
        %7499 = vmatpush.bf16.msra.mxu0 %v6175
        %7500 = vmatpush.bf16.msra.mxu0 %v6160
        %7501 = vmatpush.bf16.msra.mxu0 %v6145
        %7502 = vmatpush.bf16.msra.mxu0 %v6130
        %7503 = vmatpush.bf16.msra.mxu0 %v6115
        %7504 = vmatpush.bf16.msra.mxu0 %v6100
        %7505 = vmatpush.bf16.msra.mxu0 %v6085
        %7506 = vmatmul.bf16.gmra.mxu0 %v4211
        %v7507 = vpop.f32.mrf.mxu0
        %v7508 = vadd.f32 0.0, %v7507
        %v7509 = vpop.f32.mrf.mxu0
        %7510 = vdwg.mxu0
        %7511 = vmatpush.bf16.msra.mxu0 %v6310
        %7512 = vmatpush.bf16.msra.mxu0 %v6295
        %7513 = vmatpush.bf16.msra.mxu0 %v6280
        %7514 = vmatpush.bf16.msra.mxu0 %v6265
        %7515 = vmatpush.bf16.msra.mxu0 %v6250
        %7516 = vmatpush.bf16.msra.mxu0 %v6235
        %7517 = vmatpush.bf16.msra.mxu0 %v6220
        %7518 = vmatpush.bf16.msra.mxu0 %v6205
        %7519 = vmatmul.bf16.gmra.mxu0 %v4212
        %v7520 = vpop.f32.mrf.mxu0
        %v7521 = vadd.f32 %v7508, %v7520
        %v7522 = vpop.f32.mrf.mxu0
        %7523 = vdwg.mxu0
        %7524 = vmatpush.bf16.msra.mxu0 %v6430
        %7525 = vmatpush.bf16.msra.mxu0 %v6415
        %7526 = vmatpush.bf16.msra.mxu0 %v6400
        %7527 = vmatpush.bf16.msra.mxu0 %v6385
        %7528 = vmatpush.bf16.msra.mxu0 %v6370
        %7529 = vmatpush.bf16.msra.mxu0 %v6355
        %7530 = vmatpush.bf16.msra.mxu0 %v6340
        %7531 = vmatpush.bf16.msra.mxu0 %v6325
        %7532 = vmatmul.bf16.gmra.mxu0 %v4213
        %v7533 = vpop.f32.mrf.mxu0
        %v7534 = vadd.f32 %v7521, %v7533
        %v7535 = vpop.f32.mrf.mxu0
        %7536 = vdwg.mxu0
        %7537 = vmatpush.bf16.msra.mxu0 0
        %7538 = vmatpush.bf16.msra.mxu0 0
        %7539 = vmatpush.bf16.msra.mxu0 %v6520
        %7540 = vmatpush.bf16.msra.mxu0 %v6505
        %7541 = vmatpush.bf16.msra.mxu0 %v6490
        %7542 = vmatpush.bf16.msra.mxu0 %v6475
        %7543 = vmatpush.bf16.msra.mxu0 %v6460
        %7544 = vmatpush.bf16.msra.mxu0 %v6445
        %7545 = vmatmul.bf16.gmra.mxu0 %v6976
        %v7546 = vpop.f32.mrf.mxu0
        %v7547 = vadd.f32 %v7534, %v7546
        %v7548 = vpop.f32.mrf.mxu0
        %7549 = vdwg.mxu0
        %7550 = vmatpush.bf16.msra.mxu0 %v6191
        %7551 = vmatpush.bf16.msra.mxu0 %v6176
        %7552 = vmatpush.bf16.msra.mxu0 %v6161
        %7553 = vmatpush.bf16.msra.mxu0 %v6146
        %7554 = vmatpush.bf16.msra.mxu0 %v6131
        %7555 = vmatpush.bf16.msra.mxu0 %v6116
        %7556 = vmatpush.bf16.msra.mxu0 %v6101
        %7557 = vmatpush.bf16.msra.mxu0 %v6086
        %7558 = vmatmul.bf16.gmra.mxu0 %v4211
        %v7559 = vpop.f32.mrf.mxu0
        %v7560 = vadd.f32 0.0, %v7559
        %v7561 = vpop.f32.mrf.mxu0
        %7562 = vdwg.mxu0
        %7563 = vmatpush.bf16.msra.mxu0 %v6311
        %7564 = vmatpush.bf16.msra.mxu0 %v6296
        %7565 = vmatpush.bf16.msra.mxu0 %v6281
        %7566 = vmatpush.bf16.msra.mxu0 %v6266
        %7567 = vmatpush.bf16.msra.mxu0 %v6251
        %7568 = vmatpush.bf16.msra.mxu0 %v6236
        %7569 = vmatpush.bf16.msra.mxu0 %v6221
        %7570 = vmatpush.bf16.msra.mxu0 %v6206
        %7571 = vmatmul.bf16.gmra.mxu0 %v4212
        %v7572 = vpop.f32.mrf.mxu0
        %v7573 = vadd.f32 %v7560, %v7572
        %v7574 = vpop.f32.mrf.mxu0
        %7575 = vdwg.mxu0
        %7576 = vmatpush.bf16.msra.mxu0 %v6431
        %7577 = vmatpush.bf16.msra.mxu0 %v6416
        %7578 = vmatpush.bf16.msra.mxu0 %v6401
        %7579 = vmatpush.bf16.msra.mxu0 %v6386
        %7580 = vmatpush.bf16.msra.mxu0 %v6371
        %7581 = vmatpush.bf16.msra.mxu0 %v6356
        %7582 = vmatpush.bf16.msra.mxu0 %v6341
        %7583 = vmatpush.bf16.msra.mxu0 %v6326
        %7584 = vmatmul.bf16.gmra.mxu0 %v4213
        %v7585 = vpop.f32.mrf.mxu0
        %v7586 = vadd.f32 %v7573, %v7585
        %v7587 = vpop.f32.mrf.mxu0
        %7588 = vdwg.mxu0
        %7589 = vmatpush.bf16.msra.mxu0 0
        %7590 = vmatpush.bf16.msra.mxu0 0
        %7591 = vmatpush.bf16.msra.mxu0 %v6521
        %7592 = vmatpush.bf16.msra.mxu0 %v6506
        %7593 = vmatpush.bf16.msra.mxu0 %v6491
        %7594 = vmatpush.bf16.msra.mxu0 %v6476
        %7595 = vmatpush.bf16.msra.mxu0 %v6461
        %7596 = vmatpush.bf16.msra.mxu0 %v6446
        %7597 = vmatmul.bf16.gmra.mxu0 %v6976
        %v7598 = vpop.f32.mrf.mxu0
        %v7599 = vadd.f32 %v7586, %v7598
        %v7600 = vpop.f32.mrf.mxu0
        %7601 = vdwg.mxu0
        %7602 = vmatpush.bf16.msra.mxu0 %v6192
        %7603 = vmatpush.bf16.msra.mxu0 %v6177
        %7604 = vmatpush.bf16.msra.mxu0 %v6162
        %7605 = vmatpush.bf16.msra.mxu0 %v6147
        %7606 = vmatpush.bf16.msra.mxu0 %v6132
        %7607 = vmatpush.bf16.msra.mxu0 %v6117
        %7608 = vmatpush.bf16.msra.mxu0 %v6102
        %7609 = vmatpush.bf16.msra.mxu0 %v6087
        %7610 = vmatmul.bf16.gmra.mxu0 %v4211
        %v7611 = vpop.f32.mrf.mxu0
        %v7612 = vadd.f32 0.0, %v7611
        %v7613 = vpop.f32.mrf.mxu0
        %7614 = vdwg.mxu0
        %7615 = vmatpush.bf16.msra.mxu0 %v6312
        %7616 = vmatpush.bf16.msra.mxu0 %v6297
        %7617 = vmatpush.bf16.msra.mxu0 %v6282
        %7618 = vmatpush.bf16.msra.mxu0 %v6267
        %7619 = vmatpush.bf16.msra.mxu0 %v6252
        %7620 = vmatpush.bf16.msra.mxu0 %v6237
        %7621 = vmatpush.bf16.msra.mxu0 %v6222
        %7622 = vmatpush.bf16.msra.mxu0 %v6207
        %7623 = vmatmul.bf16.gmra.mxu0 %v4212
        %v7624 = vpop.f32.mrf.mxu0
        %v7625 = vadd.f32 %v7612, %v7624
        %v7626 = vpop.f32.mrf.mxu0
        %7627 = vdwg.mxu0
        %7628 = vmatpush.bf16.msra.mxu0 %v6432
        %7629 = vmatpush.bf16.msra.mxu0 %v6417
        %7630 = vmatpush.bf16.msra.mxu0 %v6402
        %7631 = vmatpush.bf16.msra.mxu0 %v6387
        %7632 = vmatpush.bf16.msra.mxu0 %v6372
        %7633 = vmatpush.bf16.msra.mxu0 %v6357
        %7634 = vmatpush.bf16.msra.mxu0 %v6342
        %7635 = vmatpush.bf16.msra.mxu0 %v6327
        %7636 = vmatmul.bf16.gmra.mxu0 %v4213
        %v7637 = vpop.f32.mrf.mxu0
        %v7638 = vadd.f32 %v7625, %v7637
        %v7639 = vpop.f32.mrf.mxu0
        %7640 = vdwg.mxu0
        %7641 = vmatpush.bf16.msra.mxu0 0
        %7642 = vmatpush.bf16.msra.mxu0 0
        %7643 = vmatpush.bf16.msra.mxu0 %v6522
        %7644 = vmatpush.bf16.msra.mxu0 %v6507
        %7645 = vmatpush.bf16.msra.mxu0 %v6492
        %7646 = vmatpush.bf16.msra.mxu0 %v6477
        %7647 = vmatpush.bf16.msra.mxu0 %v6462
        %7648 = vmatpush.bf16.msra.mxu0 %v6447
        %7649 = vmatmul.bf16.gmra.mxu0 %v6976
        %v7650 = vpop.f32.mrf.mxu0
        %v7651 = vadd.f32 %v7638, %v7650
        %v7652 = vpop.f32.mrf.mxu0
        %7653 = vdwg.mxu0
        %7654 = vmatpush.bf16.msra.mxu0 %v6193
        %7655 = vmatpush.bf16.msra.mxu0 %v6178
        %7656 = vmatpush.bf16.msra.mxu0 %v6163
        %7657 = vmatpush.bf16.msra.mxu0 %v6148
        %7658 = vmatpush.bf16.msra.mxu0 %v6133
        %7659 = vmatpush.bf16.msra.mxu0 %v6118
        %7660 = vmatpush.bf16.msra.mxu0 %v6103
        %7661 = vmatpush.bf16.msra.mxu0 %v6088
        %7662 = vmatmul.bf16.gmra.mxu0 %v4211
        %v7663 = vpop.f32.mrf.mxu0
        %v7664 = vadd.f32 0.0, %v7663
        %v7665 = vpop.f32.mrf.mxu0
        %7666 = vdwg.mxu0
        %7667 = vmatpush.bf16.msra.mxu0 %v6313
        %7668 = vmatpush.bf16.msra.mxu0 %v6298
        %7669 = vmatpush.bf16.msra.mxu0 %v6283
        %7670 = vmatpush.bf16.msra.mxu0 %v6268
        %7671 = vmatpush.bf16.msra.mxu0 %v6253
        %7672 = vmatpush.bf16.msra.mxu0 %v6238
        %7673 = vmatpush.bf16.msra.mxu0 %v6223
        %7674 = vmatpush.bf16.msra.mxu0 %v6208
        %7675 = vmatmul.bf16.gmra.mxu0 %v4212
        %v7676 = vpop.f32.mrf.mxu0
        %v7677 = vadd.f32 %v7664, %v7676
        %v7678 = vpop.f32.mrf.mxu0
        %7679 = vdwg.mxu0
        %7680 = vmatpush.bf16.msra.mxu0 %v6433
        %7681 = vmatpush.bf16.msra.mxu0 %v6418
        %7682 = vmatpush.bf16.msra.mxu0 %v6403
        %7683 = vmatpush.bf16.msra.mxu0 %v6388
        %7684 = vmatpush.bf16.msra.mxu0 %v6373
        %7685 = vmatpush.bf16.msra.mxu0 %v6358
        %7686 = vmatpush.bf16.msra.mxu0 %v6343
        %7687 = vmatpush.bf16.msra.mxu0 %v6328
        %7688 = vmatmul.bf16.gmra.mxu0 %v4213
        %v7689 = vpop.f32.mrf.mxu0
        %v7690 = vadd.f32 %v7677, %v7689
        %v7691 = vpop.f32.mrf.mxu0
        %7692 = vdwg.mxu0
        %7693 = vmatpush.bf16.msra.mxu0 0
        %7694 = vmatpush.bf16.msra.mxu0 0
        %7695 = vmatpush.bf16.msra.mxu0 %v6523
        %7696 = vmatpush.bf16.msra.mxu0 %v6508
        %7697 = vmatpush.bf16.msra.mxu0 %v6493
        %7698 = vmatpush.bf16.msra.mxu0 %v6478
        %7699 = vmatpush.bf16.msra.mxu0 %v6463
        %7700 = vmatpush.bf16.msra.mxu0 %v6448
        %7701 = vmatmul.bf16.gmra.mxu0 %v6976
        %v7702 = vpop.f32.mrf.mxu0
        %v7703 = vadd.f32 %v7690, %v7702
        %v7704 = vpop.f32.mrf.mxu0
        %7705 = vdwg.mxu0
        %7706 = vmatpush.bf16.msra.mxu0 %v6194
        %7707 = vmatpush.bf16.msra.mxu0 %v6179
        %7708 = vmatpush.bf16.msra.mxu0 %v6164
        %7709 = vmatpush.bf16.msra.mxu0 %v6149
        %7710 = vmatpush.bf16.msra.mxu0 %v6134
        %7711 = vmatpush.bf16.msra.mxu0 %v6119
        %7712 = vmatpush.bf16.msra.mxu0 %v6104
        %7713 = vmatpush.bf16.msra.mxu0 %v6089
        %7714 = vmatmul.bf16.gmra.mxu0 %v4211
        %v7715 = vpop.f32.mrf.mxu0
        %v7716 = vadd.f32 0.0, %v7715
        %v7717 = vpop.f32.mrf.mxu0
        %7718 = vdwg.mxu0
        %7719 = vmatpush.bf16.msra.mxu0 %v6314
        %7720 = vmatpush.bf16.msra.mxu0 %v6299
        %7721 = vmatpush.bf16.msra.mxu0 %v6284
        %7722 = vmatpush.bf16.msra.mxu0 %v6269
        %7723 = vmatpush.bf16.msra.mxu0 %v6254
        %7724 = vmatpush.bf16.msra.mxu0 %v6239
        %7725 = vmatpush.bf16.msra.mxu0 %v6224
        %7726 = vmatpush.bf16.msra.mxu0 %v6209
        %7727 = vmatmul.bf16.gmra.mxu0 %v4212
        %v7728 = vpop.f32.mrf.mxu0
        %v7729 = vadd.f32 %v7716, %v7728
        %v7730 = vpop.f32.mrf.mxu0
        %7731 = vdwg.mxu0
        %7732 = vmatpush.bf16.msra.mxu0 %v6434
        %7733 = vmatpush.bf16.msra.mxu0 %v6419
        %7734 = vmatpush.bf16.msra.mxu0 %v6404
        %7735 = vmatpush.bf16.msra.mxu0 %v6389
        %7736 = vmatpush.bf16.msra.mxu0 %v6374
        %7737 = vmatpush.bf16.msra.mxu0 %v6359
        %7738 = vmatpush.bf16.msra.mxu0 %v6344
        %7739 = vmatpush.bf16.msra.mxu0 %v6329
        %7740 = vmatmul.bf16.gmra.mxu0 %v4213
        %v7741 = vpop.f32.mrf.mxu0
        %v7742 = vadd.f32 %v7729, %v7741
        %v7743 = vpop.f32.mrf.mxu0
        %7744 = vdwg.mxu0
        %7745 = vmatpush.bf16.msra.mxu0 0
        %7746 = vmatpush.bf16.msra.mxu0 0
        %7747 = vmatpush.bf16.msra.mxu0 %v6524
        %7748 = vmatpush.bf16.msra.mxu0 %v6509
        %7749 = vmatpush.bf16.msra.mxu0 %v6494
        %7750 = vmatpush.bf16.msra.mxu0 %v6479
        %7751 = vmatpush.bf16.msra.mxu0 %v6464
        %7752 = vmatpush.bf16.msra.mxu0 %v6449
        %7753 = vmatmul.bf16.gmra.mxu0 %v6976
        %v7754 = vpop.f32.mrf.mxu0
        %v7755 = vadd.f32 %v7742, %v7754
        %v7756 = vpop.f32.mrf.mxu0
        %7757 = vdwg.mxu0
        %v7758 = vadd.f32 %v4196, %v7027
        %v7759 = vadd.f32 %v4197, %v7079
        %v7760 = vadd.f32 %v4198, %v7131
        %v7761 = vadd.f32 %v4199, %v7183
        %v7762 = vadd.f32 %v4200, %v7235
        %v7763 = vadd.f32 %v4201, %v7287
        %v7764 = vadd.f32 %v4202, %v7339
        %v7765 = vadd.f32 %v4203, %v7391
        %v7766 = vadd.f32 %v4204, %v7443
        %v7767 = vadd.f32 %v4205, %v7495
        %v7768 = vadd.f32 %v4206, %v7547
        %v7769 = vadd.f32 %v4207, %v7599
        %v7770 = vadd.f32 %v4208, %v7651
        %v7771 = vadd.f32 %v4209, %v7703
        %v7772 = vadd.f32 %v4210, %v7755
        %7773 = vst [vmem:[%s394] sm:$0xff] %v7758
        %7774 = vst [vmem:[%s394 + $0x8] sm:$0xff] %v7759
        %7775 = vst [vmem:[%s394 + $0x10] sm:$0xff] %v7760
        %7776 = vst [vmem:[%s394 + $0x18] sm:$0xff] %v7761
        %7777 = vst [vmem:[%s394 + $0x20] sm:$0xff] %v7762
        %7778 = vst [vmem:[%s394 + $0x28] sm:$0xff] %v7763
        %7779 = vst [vmem:[%s394 + $0x30] sm:$0xff] %v7764
        %7780 = vst [vmem:[%s394 + $0x38] sm:$0xff] %v7765
        %7781 = vst [vmem:[%s394 + $0x40] sm:$0xff] %v7766
        %7782 = vst [vmem:[%s394 + $0x48] sm:$0xff] %v7767
        %7783 = vst [vmem:[%s394 + $0x50] sm:$0xff] %v7768
        %7784 = vst [vmem:[%s394 + $0x58] sm:$0xff] %v7769
        %7785 = vst [vmem:[%s394 + $0x60] sm:$0xff] %v7770
        %7786 = vst [vmem:[%s394 + $0x68] sm:$0xff] %v7771
        %7787 = vst [vmem:[%s394 + $0x70] sm:$0xff] %v7772
        %s7788 = sand.u32 %s189, 1
        %s7789 = scalar_lea.sflag [#allocation4], %s7788
        %s7790 = sand.u32 %s189, 1
        %s7791 = smul.addr %s7790, 120
        %s7792 = scalar_lea.vmem [#allocation12], %s7791
        // Predicated region
        $region73: #{tpu_custom_call.1} parent=43 // pred_check
          %p7793 = pneg %p199
        $region74: #{tpu_custom_call.1} parent=43 // pred_check_branch
          %7795 = sbr.rel (%p7793) target = $region76
        $region75: #{tpu_custom_call.1} parent=43 // pred_region
          %7797 = vsyncadd %s7789, 0
          %s7798 = smul.addr %s29, 15
          %s7799 = smul.addr %s7798, 8
          %s7800 = scalar_lea.hbm %s6, %s7799
          %s7802 = sshll.u32 %s7792, 4
          %s7803 = int_to_ptr.vmem [resolvable:$true] %s7802
          %s7804 = sshll.u32 %s7800, 4
          %s7805 = int_to_ptr.hbm [resolvable:$true] %s7804
          %7807 = dma.vmem_to_hbm [thread:$0]  %s7803, 1920, %s7805, %s7789
        $region76: #{tpu_custom_call.1} parent=43 // pred_fallthru
          _
      $region44: #{tpu_custom_call.1} parent=5 // pred_fallthru
        _
      %p7808 = scmp.le.s32.totalorder 2, %s20
      // Predicated region
      $region77: #{tpu_custom_call.1} parent=5 // pred_check
        %p7809 = pneg %p7808
      $region78: #{tpu_custom_call.1} parent=5 // pred_check_branch
        %7811 = sbr.rel (%p7809) target = $region80
      $region79: #{tpu_custom_call.1} parent=5 // pred_region
        %s7812 = ssub.s32 %s20, 2
        // Predicated region
        $region81: #{tpu_custom_call.1} parent=79 // pred_check
          %p7813 = pneg %p205
        $region82: #{tpu_custom_call.1} parent=79 // pred_check_branch
          %7815 = sbr.rel (%p7813) target = $region84
        $region83: #{tpu_custom_call.1} parent=79 // pred_region
          %s7816 = sand.u32 %s190, 1
          %s7817 = scalar_lea.sflag [#allocation4], %s7816
          %s7818 = sand.u32 %s190, 1
          %s7819 = smul.addr %s7818, 120
          %s7820 = scalar_lea.vmem [#allocation12], %s7819
          %7822 = dma.done %s7817, 1920
        $region84: #{tpu_custom_call.1} parent=79 // pred_fallthru
          _
      $region80: #{tpu_custom_call.1} parent=5 // pred_fallthru
        _
    $region6: #{tpu_custom_call.1} parent=1 // loop_footer
      %s24 = sadd.s32 1, %s20
    $region7: #{tpu_custom_call.1} parent=1 // loop_footer_branch
      %19 = sbr.rel target = $region3
    $region8: #{tpu_custom_call.1} parent=1 // loop_exit
      _
    %7823 = vsyncpa [#allocation3], 1
    %s7824 = scalar_lea.sflag [#allocation3], 1
    %7825 = vsyncpa %s7824, 1
    %7826 = vsyncpa [#allocation6], 1
    %s7827 = scalar_lea.sflag [#allocation6], 1
    %7828 = vsyncpa %s7827, 1
    %7829 = vsyncpa [#allocation9], 1
    %7830 = vsyncpa [#allocation4], 1
    %s7831 = scalar_lea.sflag [#allocation4], 1
    %7832 = vsyncpa %s7831, 1

</llo_original>
